<compile_context>
chip_gen: v5e
topology: v5e:2x2
jax: 0.10.0
libtpu: 0.0.40
codegen_flags: <defaults>
</compile_context>

<pallas_src>
import jax
import jax.numpy as jnp
from jax.experimental import pallas as pl
from jax.experimental.pallas import tpu as pltpu

OBJ_BOUNDING_RADIUS = 3.0
W_HIDDEN = 64          # ImplicitSurface width (synthetic, small)
W_GEO_FEAT = 64        # W_geo_feat = -1 -> implicit_surface.W
TM_SURF = 1024         # points per tile, surface-only MLP (forward only, no stash)
TM_MODEL = 512         # points per tile, fused forward+backward+radiance kernel
TR = 32                # rays per tile for the per-ray kernels (grid >= 2 at R=64)


# ----------------------------- in-kernel helpers -----------------------------

def _softplus100(z):
    # Softplus(beta=100) as used by VolSDF's ImplicitSurface, numerically stable.
    zb = 100.0 * z
    e = jnp.exp(jnp.minimum(zb, 20.0))
    return jnp.where(zb > 20.0, z, 0.01 * jnp.log(1.0 + e))


def _sp_layer(z):
    # One exp shared between the softplus forward value and its derivative (sigmoid(100 z)).
    zb = 100.0 * z
    e = jnp.exp(jnp.minimum(zb, 20.0))
    h = jnp.where(zb > 20.0, z, 0.01 * jnp.log(1.0 + e))
    s = (e * pl.reciprocal(1.0 + e, approx=True)).astype(jnp.bfloat16)   # bf16 stash
    return h, s


def _sdf_to_sigma(sdf, alpha, inv_beta):
    e = 0.5 * jnp.exp(-jnp.abs(sdf) * inv_beta)
    psi = jnp.where(sdf >= 0, e, 1.0 - e)
    return alpha * psi


def _mm(w_bf16, h):
    # bf16 x bf16 matmul with f32 accumulation (MXU-native on all generations).
    return jnp.dot(w_bf16, h.astype(jnp.bfloat16), preferred_element_type=jnp.float32)


# --------------------------------- kernels -----------------------------------

def surface_sdf_kernel(x_ref, w0t_ref, b0_ref, w1t_ref, b1_ref, w2t_ref, b2_ref,
                       wo0t_ref, bo0_ref, sdf_ref):
    x = x_ref[...]                                                   # [3, TM]
    h = _softplus100(_mm(w0t_ref[...], x) + b0_ref[...])
    h = _softplus100(_mm(w1t_ref[...], h) + b1_ref[...])
    h = _softplus100(_mm(w2t_ref[...], h) + b2_ref[...])
    sdf = _mm(wo0t_ref[...], h) + bo0_ref[...]                       # [1, TM]
    # VolSDF.forward_surface sphere background: min(sdf, R - |x|)
    d_bg = OBJ_BOUNDING_RADIUS - jnp.sqrt(jnp.sum(x * x, axis=0, keepdims=True))
    sdf_ref[...] = jnp.minimum(sdf, d_bg)


def model_forward_kernel(xv_ref,
                         w0t_ref, b0_ref, w1t_ref, b1_ref, w2t_ref, b2_ref,
                         wot_ref, bot_ref,
                         w0_ref, w1_ref, w2_ref, wo0_ref,
                         rw0xv_ref, rw0n_ref, rw0f_ref, rb0_ref,
                         rw1t_ref, rb1_ref, rw2t_ref, rb2_ref,
                         out_ref):
    xv = xv_ref[...]                                                 # [8, TM] (x rows 0-2, v 3-5)
    xv_b = xv.astype(jnp.bfloat16)
    x = xv[0:3, :]                                                   # [3, TM] f32 (for |x|)

    # ---- surface MLP (channels on sublanes, points on lanes); bf16 sigmoid stashes ----
    z0 = jnp.dot(w0t_ref[...], xv_b, preferred_element_type=jnp.float32) + b0_ref[...]
    h0, s0 = _sp_layer(z0)
    z1 = _mm(w1t_ref[...], h0) + b1_ref[...]
    h1, s1 = _sp_layer(z1)
    z2 = _mm(w2t_ref[...], h1) + b2_ref[...]
    h2, s2 = _sp_layer(z2)
    # wot / bot are row-reordered: rows [0:W_GEO_FEAT] = geometry feature, last row = sdf,
    # so both slices below stay 8-sublane aligned.
    out = _mm(wot_ref[...], h2) + bot_ref[...]                       # [1 + W_GEO_FEAT, TM]
    feat_b = out[0:W_GEO_FEAT, :].astype(jnp.bfloat16)               # [Wf, TM] bf16
    sdf = out[W_GEO_FEAT:W_GEO_FEAT + 1, :]                          # [1, TM]

    # ---- reverse-mode gradient of the scalar sdf wrt x (nablas, raw network only) ----
    gz2 = s2 * wo0_ref[...]                                          # bf16 [64,TM] * bf16 [64,1]
    gh1 = _mm(w2_ref[...], gz2)
    gz1 = s1 * gh1
    gh0 = _mm(w1_ref[...], gz1)
    gz0 = s0 * gh0
    nab = _mm(w0_ref[...], gz0)                                      # [3, TM]

    # forward_surface_with_nablas: only sdf is replaced by the background distance.
    d_bg = OBJ_BOUNDING_RADIUS - jnp.sqrt(jnp.sum(x * x, axis=0, keepdims=True))
    sdf = jnp.where(d_bg < sdf, d_bg, sdf)

    # ---- RadianceNet: concat(x, v, nablas, feat) decomposed into a sum of matmuls.
    #      x and v share one K=8 matmul against the packed input slab.
    rz0 = (jnp.dot(rw0xv_ref[...], xv_b, preferred_element_type=jnp.float32)
           + _mm(rw0n_ref[...], nab) + _mm(rw0f_ref[...], feat_b) + rb0_ref[...])
    rh = jnp.maximum(rz0, 0.0)
    rh = jnp.maximum(_mm(rw1t_ref[...], rh) + rb1_ref[...], 0.0)
    ro = _mm(rw2t_ref[...], rh) + rb2_ref[...]                       # [3, TM]
    rad = pl.reciprocal(1.0 + jnp.exp(jnp.minimum(-ro, 80.0)), approx=True)

    # ---- single lane-dense output slab: rows 0-2 rad, 3-5 nablas, 6 sdf, 7 pad ----
    pad = jnp.zeros_like(sdf)
    out_ref[...] = jnp.concatenate([rad, nab, sdf, pad], axis=0)     # [8, TM]


def opacity_kernel(ab_ref, tri_ref, d_ref, sdf_ref, op_ref):
    alpha = ab_ref[0, 0]
    beta = ab_ref[0, 1]
    inv_beta = 1.0 / beta
    d = d_ref[...]                                                   # [TR, N]
    sdf = sdf_ref[...]                                               # [TR, N]
    sigma = _sdf_to_sigma(sdf, alpha, inv_beta)
    delta = d[:, 1:] - d[:, :-1]
    w = sigma[:, :-1] * delta                                        # [TR, N-1]
    # Zero-pad one lane so the cumsum matmul is K = N = 128 and the output is lane-dense.
    w_full = jnp.concatenate([w, jnp.zeros((w.shape[0], 1), w.dtype)], axis=-1)   # [TR, N]
    # tri[k, j] = 1 if k < j -> w @ tri is an exclusive cumulative sum (matches reference R_t).
    R_t = jnp.dot(w_full, tri_ref[...], preferred_element_type=jnp.float32)       # [TR, N]
    op_ref[...] = 1.0 - jnp.exp(-R_t)                                # opacity_approx (+1 junk lane)


def volume_integrate_kernel(ab_ref, tri_ref, d_ref, sdf_ref, r0_ref, r1_ref, r2_ref,
                            packed_ref, tau_ref, sigma_ref):
    alpha = ab_ref[0, 0]
    beta = ab_ref[0, 1]
    inv_beta = 1.0 / beta
    d = d_ref[...]                                                   # [TR, P]
    sdf = sdf_ref[...]                                               # [TR, P]
    sigma = _sdf_to_sigma(sdf, alpha, inv_beta)
    delta = d[:, 1:] - d[:, :-1]
    s = jnp.maximum(sigma[:, :-1] * delta, 0.0)                      # relu_
    p = jnp.exp(-s)
    cums = jnp.dot(s, tri_ref[...], preferred_element_type=jnp.float32)
    tau = (1.0 - p + 1e-10) * jnp.exp(-cums)                         # visibility weights

    rgb_cols = [jnp.sum(tau * r_ref[...][:, :-1], axis=-1, keepdims=True)
                for r_ref in (r0_ref, r1_ref, r2_ref)]               # 3 x [TR, 1]
    acc = jnp.sum(tau, axis=-1, keepdims=True)                       # [TR, 1]
    inv_acc = pl.reciprocal(acc + 1e-10, approx=True)
    depth = jnp.sum(tau * inv_acc * d[:, :-1], axis=-1, keepdims=True)

    # Single packed per-ray output block: lanes 0-2 rgb, 3 depth, 4 acc, 5-7 pad.
    zeros3 = jnp.zeros((tau.shape[0], 3), jnp.float32)
    packed_ref[...] = jnp.concatenate(rgb_cols + [depth, acc, zeros3], axis=-1)   # [TR, 8]
    tau_ref[...] = tau
    sigma_ref[...] = sigma


# ------------------------------ pallas wrappers -------------------------------

def _rep(shape):
    nd = len(shape)
    return pl.BlockSpec(shape, lambda i, _nd=nd: (0,) * _nd)


def _smem_ab():
    return pl.BlockSpec((1, 2), lambda i: (0, 0), memory_space=pltpu.MemorySpace.SMEM)


def _excl_tri(n):
    # T[k, j] = 1 if k < j  ->  x @ T is an exclusive cumulative sum along the last axis.
    return (jnp.arange(n)[:, None] < jnp.arange(n)[None, :]).astype(jnp.float32)


def _pad_rows_edge(x, mult):
    pad = (-x.shape[0]) % mult
    if pad:
        x = jnp.pad(x, ((0, pad),) + ((0, 0),) * (x.ndim - 1), mode="edge")
    return x


def _pad_lanes_zero(x, mult):
    pad = (-x.shape[-1]) % mult
    if pad:
        x = jnp.pad(x, ((0, 0),) * (x.ndim - 1) + ((0, pad),))
    return x


def prep_weights(params):
    (w0, b0, w1, b1, w2, b2, wo, bo, rw0, rb0, rw1, rb1, rw2, rb2) = params
    bf = lambda a: a.astype(jnp.bfloat16)
    col = lambda b: b.T.astype(jnp.float32)                          # [1,n] -> [n,1]

    w0t, w1t, w2t = bf(w0.T), bf(w1.T), bf(w2.T)
    b0c, b1c, b2c = col(b0), col(b1), col(b2)

    surf_w = (w0t, b0c, w1t, b1c, w2t, b2c, bf(wo[:, 0:1].T), col(bo[:, 0:1]))

    # Packed first-layer weight for the [8, TM] (x, v, pad) input slab: cols 0-2 = x.
    w0t_pad = bf(jnp.zeros((W_HIDDEN, 8), jnp.float32).at[:, 0:3].set(w0.T))

    # Row-reordered output head: geometry feature rows first, sdf row last (8-aligned slices).
    wot_r = bf(jnp.concatenate([wo[:, 1:], wo[:, 0:1]], axis=1).T)   # [1+Wf, W]
    bot_r = col(jnp.concatenate([bo[:, 1:], bo[:, 0:1]], axis=1))    # [1+Wf, 1]

    # RadianceNet first layer: one packed [64, 8] weight for (x, v), separate nab / feat blocks.
    rw0xv = jnp.zeros((W_HIDDEN, 8), jnp.float32)
    rw0xv = bf(rw0xv.at[:, 0:3].set(rw0[0:3].T).at[:, 3:6].set(rw0[3:6].T))

    model_w = (w0t_pad, b0c, w1t, b1c, w2t, b2c, wot_r, bot_r,
               bf(w0), bf(w1), bf(w2), bf(wo[:, 0:1]),
               rw0xv, bf(rw0[6:9].T), bf(rw0[9:].T), col(rb0),
               bf(rw1.T), col(rb1), bf(rw2.T), col(rb2))
    return surf_w, model_w


def run_surface_sdf(pts_t, surf_w):
    # pts_t: [3, M] (points on lanes). Returns sdf: [M].
    M = pts_t.shape[1]
    x = _pad_lanes_zero(pts_t, TM_SURF)
    Mp = x.shape[1]
    in_specs = [pl.BlockSpec((3, TM_SURF), lambda i: (0, i))] + [_rep(w.shape) for w in surf_w]
    out = pl.pallas_call(
        surface_sdf_kernel,
        out_shape=jax.ShapeDtypeStruct((1, Mp), jnp.float32),
        grid=(Mp // TM_SURF,),
        in_specs=in_specs,
        out_specs=pl.BlockSpec((1, TM_SURF), lambda i: (0, i)),
        compiler_params=pltpu.CompilerParams(dimension_semantics=("parallel",)),
    )(x, *surf_w)
    return out[0, :M]


def run_model_forward(pts_t, dirs_t, model_w):
    # pts_t / dirs_t: [3, M]. Returns rad [3, M], sdf [M], nablas [3, M].
    # TODO(synk): at production ray counts, pass ro/rd/d per-ray and build x = ro + rd*d
    # in-kernel to avoid the [8, M] HBM round trip (negligible at these test sizes).
    M = pts_t.shape[1]
    xv = jnp.concatenate([pts_t, dirs_t, jnp.zeros((2, M), jnp.float32)], axis=0)  # [8, M]
    xv = _pad_lanes_zero(xv, TM_MODEL)
    Mp = xv.shape[1]
    in_specs = ([pl.BlockSpec((8, TM_MODEL), lambda i: (0, i))] +
                [_rep(w.shape) for w in model_w])
    out = pl.pallas_call(
        model_forward_kernel,
        out_shape=jax.ShapeDtypeStruct((8, Mp), jnp.float32),
        grid=(Mp // TM_MODEL,),
        in_specs=in_specs,
        out_specs=pl.BlockSpec((8, TM_MODEL), lambda i: (0, i)),
        compiler_params=pltpu.CompilerParams(dimension_semantics=("parallel",)),
    )(xv, *model_w)
    return out[0:3, :M], out[6, :M], out[3:6, :M]


def run_opacity(ab, d_vals, sdf):
    R, N = d_vals.shape
    d_p = _pad_rows_edge(d_vals, TR)
    s_p = _pad_rows_edge(sdf, TR)
    Rp = d_p.shape[0]
    tri = _excl_tri(N)                                               # [N, N] (N = 128 here)
    in_specs = [_smem_ab(), _rep(tri.shape),
                pl.BlockSpec((TR, N), lambda i: (i, 0)),
                pl.BlockSpec((TR, N), lambda i: (i, 0))]
    out = pl.pallas_call(
        opacity_kernel,
        out_shape=jax.ShapeDtypeStruct((Rp, N), jnp.float32),
        grid=(Rp // TR,),
        in_specs=in_specs,
        out_specs=pl.BlockSpec((TR, N), lambda i: (i, 0)),
        compiler_params=pltpu.CompilerParams(dimension_semantics=("parallel",)),
    )(ab, tri, d_p, s_p)
    return out[:R, :N - 1]


def run_volume_integrate(ab, d_all, sdf, r0, r1, r2):
    R, P = d_all.shape
    d_p = _pad_rows_edge(d_all, TR)
    s_p = _pad_rows_edge(sdf, TR)
    r0p = _pad_rows_edge(r0, TR)
    r1p = _pad_rows_edge(r1, TR)
    r2p = _pad_rows_edge(r2, TR)
    Rp = d_p.shape[0]
    tri = _excl_tri(P - 1)
    row = pl.BlockSpec((TR, P), lambda i: (i, 0))
    in_specs = [_smem_ab(), _rep(tri.shape), row, row, row, row, row]
    out_shape = (jax.ShapeDtypeStruct((Rp, 8), jnp.float32),         # rgb/depth/acc packed
                 jax.ShapeDtypeStruct((Rp, P - 1), jnp.float32),     # tau
                 jax.ShapeDtypeStruct((Rp, P), jnp.float32))         # sigma
    out_specs = (pl.BlockSpec((TR, 8), lambda i: (i, 0)),
                 pl.BlockSpec((TR, P - 1), lambda i: (i, 0)),
                 pl.BlockSpec((TR, P), lambda i: (i, 0)))
    packed, tau, sigma = pl.pallas_call(
        volume_integrate_kernel,
        out_shape=out_shape,
        grid=(Rp // TR,),
        in_specs=in_specs,
        out_specs=out_specs,
        compiler_params=pltpu.CompilerParams(dimension_semantics=("parallel",)),
    )(ab, tri, d_p, s_p, r0p, r1p, r2p)
    rgb = packed[:R, 0:3]
    depth = packed[:R, 3]
    acc = packed[:R, 4]
    return rgb, depth, acc, tau[:R], sigma[:R]


# --------------------------------- JAX glue -----------------------------------

def sample_cdf(bins, cdf, n_importance):
    # Deterministic inverse-CDF sampling (det=True, since perturb defaults to False).
    # bins: [R, N], cdf (opacity_approx): [R, N-1] at the left endpoints d_vals[:N-1].
    n = cdf.shape[-1]
    cdf = cdf / (cdf[..., -1:] + 1e-10)
    u = jnp.linspace(0.0, 1.0, n_importance, dtype=jnp.float32)
    u = jnp.broadcast_to(u, (*cdf.shape[:-1], n_importance))
    inds = jnp.sum((cdf[..., None, :] <= u[..., :, None]).astype(jnp.int32), axis=-1)
    below = jnp.clip(inds - 1, 0, n - 1)
    above = jnp.clip(inds, 0, n - 1)
    cdf_b = jnp.take_along_axis(cdf, below, axis=-1)
    cdf_a = jnp.take_along_axis(cdf, above, axis=-1)
    bins_b = jnp.take_along_axis(bins[..., :n], below, axis=-1)
    bins_a = jnp.take_along_axis(bins[..., :n], above, axis=-1)
    denom = jnp.where(cdf_a - cdf_b < 1e-5, 1.0, cdf_a - cdf_b)
    t = jnp.clip((u - cdf_b) / denom, 0.0, 1.0)
    return bins_b + t * (bins_a - bins_b)


def volume_render(rays_o, rays_d, params, ln_beta, speed_factor=1.0,
                  near=0.0, far=6.0, N_samples=32, N_importance=16):
    rays_o = jnp.reshape(rays_o, (-1, 3)).astype(jnp.float32)
    rays_d = jnp.reshape(rays_d, (-1, 3)).astype(jnp.float32)
    rays_d = rays_d / (jnp.linalg.norm(rays_d, axis=-1, keepdims=True) + 1e-10)
    R = rays_o.shape[0]

    surf_w, model_w = prep_weights(params)

    # VolSDF.forward_ab
    beta = jnp.exp(ln_beta * speed_factor)
    alpha = 1.0 / beta
    ab = jnp.stack([alpha, beta]).reshape(1, 2).astype(jnp.float32)

    nears = jnp.full((R, 1), near, jnp.float32)
    fars = jnp.full((R, 1), far, jnp.float32)
    t = jnp.linspace(0.0, 1.0, N_samples, dtype=jnp.float32)
    d_coarse = nears * (1.0 - t) + fars * t                          # [R, N_samples]

    ro_t = rays_o.T                                                  # [3, R]
    rd_t = rays_d.T                                                  # [3, R]

    # ---- fine_sample: converged ("~mask") branch only ----
    t_init = jnp.linspace(0.0, 1.0, N_samples * 4, dtype=jnp.float32)
    d_init = nears * (1.0 - t_init) + fars * t_init                  # [R, 4*N_samples]
    pts_init_t = ro_t[:, :, None] + rd_t[:, :, None] * d_init[None, :, :]     # [3, R, 4N]
    sdf_init = run_surface_sdf(pts_init_t.reshape(3, -1), surf_w).reshape(R, -1)
    opacity = run_opacity(ab, d_init, sdf_init)                      # [R, 4*N_samples-1]
    d_fine = sample_cdf(d_init, opacity, N_importance)               # [R, N_importance]
    beta_map = jnp.full((R,), beta, jnp.float32)                     # converged rays -> beta_net
    iter_usage = jnp.zeros((R,), jnp.float32)
    # TODO(synk): the iterative error-bound-driven upsampling + beta bisection loop of
    # fine_sample (data-dependent while loop / per-ray masking / sort+gather) is not translated.

    d_all = jnp.sort(jnp.concatenate([d_coarse, d_fine], axis=-1), axis=-1)   # [R, P]
    P = d_all.shape[-1]
    pts_t = (ro_t[:, :, None] + rd_t[:, :, None] * d_all[None, :, :]).reshape(3, R * P)
    dirs_t = jnp.broadcast_to(rd_t[:, :, None], (3, R, P)).reshape(3, R * P)

    rad_t, sdf_flat, nab_t = run_model_forward(pts_t, dirs_t, model_w)
    sdf = sdf_flat.reshape(R, P)
    rad_planes = rad_t.reshape(3, R, P)                              # channel planes [3, R, P]
    rad = jnp.transpose(rad_planes, (1, 2, 0))                       # [R, P, 3]
    nablas = jnp.transpose(nab_t.reshape(3, R, P), (1, 2, 0))        # [R, P, 3]

    rgb, depth, acc, tau, sigma = run_volume_integrate(
        ab, d_all, sdf, rad_planes[0], rad_planes[1], rad_planes[2])

    ret = {
        'rgb': rgb, 'depth_volume': depth, 'mask_volume': acc,
        'implicit_surface': sdf, 'implicit_nablas': nablas, 'radiance': rad,
        'visibility_weights': tau, 'd_vals': d_all, 'sigma': sigma,
        'beta_map': beta_map, 'iter_usage': iter_usage,
    }
    return rgb, depth, ret


def init_params(key):
    ks = jax.random.split(key, 8)

    def dense_w(k, fan_in, fan_out, scale=1.0):
        return (scale / jnp.sqrt(jnp.float32(fan_in))) * jax.random.normal(
            k, (fan_in, fan_out), jnp.float32)

    w0 = dense_w(ks[0], 3, W_HIDDEN)
    b0 = jnp.zeros((1, W_HIDDEN), jnp.float32)
    w1 = dense_w(ks[1], W_HIDDEN, W_HIDDEN)
    b1 = jnp.zeros((1, W_HIDDEN), jnp.float32)
    w2 = dense_w(ks[2], W_HIDDEN, W_HIDDEN)
    b2 = jnp.zeros((1, W_HIDDEN), jnp.float32)
    wo = dense_w(ks[3], W_HIDDEN, 1 + W_GEO_FEAT, scale=0.5)
    bo = jnp.zeros((1, 1 + W_GEO_FEAT), jnp.float32)
    rin = 9 + W_GEO_FEAT
    rw0 = dense_w(ks[4], rin, W_HIDDEN)
    rb0 = jnp.zeros((1, W_HIDDEN), jnp.float32)
    rw1 = dense_w(ks[5], W_HIDDEN, W_HIDDEN)
    rb1 = jnp.zeros((1, W_HIDDEN), jnp.float32)
    rw2 = dense_w(ks[6], W_HIDDEN, 3)
    rb2 = jnp.zeros((1, 3), jnp.float32)
    return (w0, b0, w1, b1, w2, b2, wo, bo, rw0, rb0, rw1, rb1, rw2, rb2)


if __name__ == "__main__":
    key = jax.random.PRNGKey(0)
    k_param, k_o, k_d = jax.random.split(key, 3)
    params = init_params(k_param)
    # VolSDF.__init__: beta_init=0.1, speed_factor=1.0 -> ln_beta parameter
    ln_beta = jnp.log(jnp.float32(0.1)) / 1.0

    R = 64
    rays_o = jax.random.normal(k_o, (R, 3), jnp.float32) * 0.1 + jnp.array([0.0, 0.0, -2.0])
    rays_d = jax.random.normal(k_d, (R, 3), jnp.float32) * 0.3 + jnp.array([0.0, 0.0, 1.0])

    render = jax.jit(lambda ro, rd, p, lb: volume_render(
        ro, rd, p, lb, near=0.0, far=6.0, N_samples=32, N_importance=16))
    rgb, depth, ret = render(rays_o, rays_d, params, ln_beta)
    jax.block_until_ready((rgb, depth, ret))

    assert rgb.shape == (R, 3) and depth.shape == (R,)
    assert ret['radiance'].shape == (R, 48, 3) and ret['visibility_weights'].shape == (R, 47)
    assert bool(jnp.all(jnp.isfinite(rgb))) and bool(jnp.all(jnp.isfinite(depth)))
    print("KERNEL_OK")
</pallas_src>

<mosaic_0001>
module attributes {stable_mosaic.version = 11 : i64} {
  func.func @surface_sdf_kernel(%arg0: i32, %arg1: memref<3x1024xf32, #tpu.memory_space<vmem>>, %arg2: memref<64x3xbf16, #tpu.memory_space<vmem>>, %arg3: memref<64x1xf32, #tpu.memory_space<vmem>>, %arg4: memref<64x64xbf16, #tpu.memory_space<vmem>>, %arg5: memref<64x1xf32, #tpu.memory_space<vmem>>, %arg6: memref<64x64xbf16, #tpu.memory_space<vmem>>, %arg7: memref<64x1xf32, #tpu.memory_space<vmem>>, %arg8: memref<1x64xbf16, #tpu.memory_space<vmem>>, %arg9: memref<1x1xf32, #tpu.memory_space<vmem>>, %arg10: memref<1x1024xf32, #tpu.memory_space<vmem>>) attributes {dimension_semantics = [#tpu.dimension_semantics<parallel>], iteration_bounds = array<i64: 8>, scalar_prefetch = 0 : i64, scratch_operands = 0 : i64, tpu.core_type = #tpu.core_type<tc>, window_params = [{transform_indices = @transform_0, window_bounds = array<i64: 3, 1024>}, {pipeline_mode = #tpu.pipeline_mode<synchronous>, transform_indices = @transform_1, window_bounds = array<i64: 64, 3>}, {pipeline_mode = #tpu.pipeline_mode<synchronous>, transform_indices = @transform_2, window_bounds = array<i64: 64, 1>}, {pipeline_mode = #tpu.pipeline_mode<synchronous>, transform_indices = @transform_3, window_bounds = array<i64: 64, 64>}, {pipeline_mode = #tpu.pipeline_mode<synchronous>, transform_indices = @transform_4, window_bounds = array<i64: 64, 1>}, {pipeline_mode = #tpu.pipeline_mode<synchronous>, transform_indices = @transform_5, window_bounds = array<i64: 64, 64>}, {pipeline_mode = #tpu.pipeline_mode<synchronous>, transform_indices = @transform_6, window_bounds = array<i64: 64, 1>}, {pipeline_mode = #tpu.pipeline_mode<synchronous>, transform_indices = @transform_7, window_bounds = array<i64: 1, 64>}, {pipeline_mode = #tpu.pipeline_mode<synchronous>, transform_indices = @transform_8, window_bounds = array<i64: 1, 1>}, {transform_indices = @transform_9, window_bounds = array<i64: 1, 1024>}]} {
    %c0 = arith.constant 0 : index
    %c0_0 = arith.constant 0 : index
    %0 = vector.load %arg1[%c0, %c0_0] : memref<3x1024xf32, #tpu.memory_space<vmem>>, vector<3x1024xf32>
    %c0_1 = arith.constant 0 : index
    %c0_2 = arith.constant 0 : index
    %1 = vector.load %arg2[%c0_1, %c0_2] : memref<64x3xbf16, #tpu.memory_space<vmem>>, vector<64x3xbf16>
    %2 = arith.truncf %0 : vector<3x1024xf32> to vector<3x1024xbf16>
    %cst = arith.constant dense<0.000000e+00> : vector<64x1024xf32>
    %3 = tpu.matmul %1, %2, %cst {dimension_numbers = #tpu.dot_dimension_numbers<[1], [0], [0], [1], [0, 0, 1, 1], [], []>} : vector<64x3xbf16>, vector<3x1024xbf16>, vector<64x1024xf32> -> vector<64x1024xf32>
    %c0_3 = arith.constant 0 : index
    %c0_4 = arith.constant 0 : index
    %4 = vector.load %arg3[%c0_3, %c0_4] : memref<64x1xf32, #tpu.memory_space<vmem>>, vector<64x1xf32>
    %5 = vector.broadcast %4 : vector<64x1xf32> to vector<64x1024xf32>
    %6 = arith.addf %3, %5 : vector<64x1024xf32>
    %cst_5 = arith.constant 1.000000e+02 : f32
    %7 = vector.broadcast %cst_5 : f32 to vector<64x1024xf32>
    %8 = arith.mulf %7, %6 : vector<64x1024xf32>
    %cst_6 = arith.constant 2.000000e+01 : f32
    %9 = vector.broadcast %cst_6 : f32 to vector<64x1024xf32>
    %10 = arith.minimumf %8, %9 : vector<64x1024xf32>
    %11 = math.exp %10 : vector<64x1024xf32>
    %cst_7 = arith.constant 2.000000e+01 : f32
    %12 = vector.broadcast %cst_7 : f32 to vector<64x1024xf32>
    %13 = arith.cmpf ogt, %8, %12 : vector<64x1024xf32>
    %cst_8 = arith.constant 1.000000e+00 : f32
    %14 = vector.broadcast %cst_8 : f32 to vector<64x1024xf32>
    %15 = arith.addf %14, %11 : vector<64x1024xf32>
    %16 = math.log %15 : vector<64x1024xf32>
    %cst_9 = arith.constant 0.00999999977 : f32
    %17 = vector.broadcast %cst_9 : f32 to vector<64x1024xf32>
    %18 = arith.mulf %17, %16 : vector<64x1024xf32>
    %19 = arith.select %13, %6, %18 : vector<64x1024xi1>, vector<64x1024xf32>
    %c0_10 = arith.constant 0 : index
    %c0_11 = arith.constant 0 : index
    %20 = vector.load %arg4[%c0_10, %c0_11] : memref<64x64xbf16, #tpu.memory_space<vmem>>, vector<64x64xbf16>
    %21 = arith.truncf %19 : vector<64x1024xf32> to vector<64x1024xbf16>
    %cst_12 = arith.constant dense<0.000000e+00> : vector<64x1024xf32>
    %22 = tpu.matmul %20, %21, %cst_12 {dimension_numbers = #tpu.dot_dimension_numbers<[1], [0], [0], [1], [0, 0, 1, 1], [], []>} : vector<64x64xbf16>, vector<64x1024xbf16>, vector<64x1024xf32> -> vector<64x1024xf32>
    %c0_13 = arith.constant 0 : index
    %c0_14 = arith.constant 0 : index
    %23 = vector.load %arg5[%c0_13, %c0_14] : memref<64x1xf32, #tpu.memory_space<vmem>>, vector<64x1xf32>
    %24 = vector.broadcast %23 : vector<64x1xf32> to vector<64x1024xf32>
    %25 = arith.addf %22, %24 : vector<64x1024xf32>
    %cst_15 = arith.constant 1.000000e+02 : f32
    %26 = vector.broadcast %cst_15 : f32 to vector<64x1024xf32>
    %27 = arith.mulf %26, %25 : vector<64x1024xf32>
    %cst_16 = arith.constant 2.000000e+01 : f32
    %28 = vector.broadcast %cst_16 : f32 to vector<64x1024xf32>
    %29 = arith.minimumf %27, %28 : vector<64x1024xf32>
    %30 = math.exp %29 : vector<64x1024xf32>
    %cst_17 = arith.constant 2.000000e+01 : f32
    %31 = vector.broadcast %cst_17 : f32 to vector<64x1024xf32>
    %32 = arith.cmpf ogt, %27, %31 : vector<64x1024xf32>
    %cst_18 = arith.constant 1.000000e+00 : f32
    %33 = vector.broadcast %cst_18 : f32 to vector<64x1024xf32>
    %34 = arith.addf %33, %30 : vector<64x1024xf32>
    %35 = math.log %34 : vector<64x1024xf32>
    %cst_19 = arith.constant 0.00999999977 : f32
    %36 = vector.broadcast %cst_19 : f32 to vector<64x1024xf32>
    %37 = arith.mulf %36, %35 : vector<64x1024xf32>
    %38 = arith.select %32, %25, %37 : vector<64x1024xi1>, vector<64x1024xf32>
    %c0_20 = arith.constant 0 : index
    %c0_21 = arith.constant 0 : index
    %39 = vector.load %arg6[%c0_20, %c0_21] : memref<64x64xbf16, #tpu.memory_space<vmem>>, vector<64x64xbf16>
    %40 = arith.truncf %38 : vector<64x1024xf32> to vector<64x1024xbf16>
    %cst_22 = arith.constant dense<0.000000e+00> : vector<64x1024xf32>
    %41 = tpu.matmul %39, %40, %cst_22 {dimension_numbers = #tpu.dot_dimension_numbers<[1], [0], [0], [1], [0, 0, 1, 1], [], []>} : vector<64x64xbf16>, vector<64x1024xbf16>, vector<64x1024xf32> -> vector<64x1024xf32>
    %c0_23 = arith.constant 0 : index
    %c0_24 = arith.constant 0 : index
    %42 = vector.load %arg7[%c0_23, %c0_24] : memref<64x1xf32, #tpu.memory_space<vmem>>, vector<64x1xf32>
    %43 = vector.broadcast %42 : vector<64x1xf32> to vector<64x1024xf32>
    %44 = arith.addf %41, %43 : vector<64x1024xf32>
    %cst_25 = arith.constant 1.000000e+02 : f32
    %45 = vector.broadcast %cst_25 : f32 to vector<64x1024xf32>
    %46 = arith.mulf %45, %44 : vector<64x1024xf32>
    %cst_26 = arith.constant 2.000000e+01 : f32
    %47 = vector.broadcast %cst_26 : f32 to vector<64x1024xf32>
    %48 = arith.minimumf %46, %47 : vector<64x1024xf32>
    %49 = math.exp %48 : vector<64x1024xf32>
    %cst_27 = arith.constant 2.000000e+01 : f32
    %50 = vector.broadcast %cst_27 : f32 to vector<64x1024xf32>
    %51 = arith.cmpf ogt, %46, %50 : vector<64x1024xf32>
    %cst_28 = arith.constant 1.000000e+00 : f32
    %52 = vector.broadcast %cst_28 : f32 to vector<64x1024xf32>
    %53 = arith.addf %52, %49 : vector<64x1024xf32>
    %54 = math.log %53 : vector<64x1024xf32>
    %cst_29 = arith.constant 0.00999999977 : f32
    %55 = vector.broadcast %cst_29 : f32 to vector<64x1024xf32>
    %56 = arith.mulf %55, %54 : vector<64x1024xf32>
    %57 = arith.select %51, %44, %56 : vector<64x1024xi1>, vector<64x1024xf32>
    %c0_30 = arith.constant 0 : index
    %c0_31 = arith.constant 0 : index
    %58 = vector.load %arg8[%c0_30, %c0_31] : memref<1x64xbf16, #tpu.memory_space<vmem>>, vector<1x64xbf16>
    %59 = arith.truncf %57 : vector<64x1024xf32> to vector<64x1024xbf16>
    %cst_32 = arith.constant dense<0.000000e+00> : vector<1x1024xf32>
    %60 = tpu.matmul %58, %59, %cst_32 {dimension_numbers = #tpu.dot_dimension_numbers<[1], [0], [0], [1], [0, 0, 1, 1], [], []>} : vector<1x64xbf16>, vector<64x1024xbf16>, vector<1x1024xf32> -> vector<1x1024xf32>
    %c0_33 = arith.constant 0 : index
    %c0_34 = arith.constant 0 : index
    %61 = vector.load %arg9[%c0_33, %c0_34] : memref<1x1xf32, #tpu.memory_space<vmem>>, vector<1x1xf32>
    %62 = vector.broadcast %61 : vector<1x1xf32> to vector<1x1024xf32>
    %63 = arith.addf %60, %62 : vector<1x1024xf32>
    %64 = arith.mulf %0, %0 : vector<3x1024xf32>
    %cst_35 = arith.constant dense<0.000000e+00> : vector<1024xf32>
    %65 = vector.multi_reduction <add>, %64, %cst_35 [0] : vector<3x1024xf32> to vector<1024xf32>
    %66 = vector.shape_cast %65 : vector<1024xf32> to vector<1x1024xf32>
    %67 = math.sqrt %66 : vector<1x1024xf32>
    %cst_36 = arith.constant 3.000000e+00 : f32
    %68 = vector.broadcast %cst_36 : f32 to vector<1x1024xf32>
    %69 = arith.subf %68, %67 : vector<1x1024xf32>
    %70 = arith.minimumf %63, %69 : vector<1x1024xf32>
    %c0_37 = arith.constant 0 : index
    %c0_38 = arith.constant 0 : index
    %71 = vector.load %arg10[%c0_37, %c0_38] : memref<1x1024xf32, #tpu.memory_space<vmem>>, vector<1x1024xf32>
    tpu.vector_store %arg10[%c0_37, %c0_38], %70 {strides = array<i32>} : memref<1x1024xf32, #tpu.memory_space<vmem>>, vector<1x1024xf32>,
    return
  }
  func.func @transform_0(%arg0: i32) -> (i32, i32) {
    %c0_i32 = arith.constant 0 : i32
    %c0_i32_0 = arith.constant 0 : i32
    return %c0_i32, %arg0 : i32, i32
  }
  func.func @transform_1(%arg0: i32) -> (i32, i32) {
    %c0_i32 = arith.constant 0 : i32
    %c0_i32_0 = arith.constant 0 : i32
    %c0_i32_1 = arith.constant 0 : i32
    return %c0_i32, %c0_i32_0 : i32, i32
  }
  func.func @transform_2(%arg0: i32) -> (i32, i32) {
    %c0_i32 = arith.constant 0 : i32
    %c0_i32_0 = arith.constant 0 : i32
    %c0_i32_1 = arith.constant 0 : i32
    return %c0_i32, %c0_i32_0 : i32, i32
  }
  func.func @transform_3(%arg0: i32) -> (i32, i32) {
    %c0_i32 = arith.constant 0 : i32
    %c0_i32_0 = arith.constant 0 : i32
    %c0_i32_1 = arith.constant 0 : i32
    return %c0_i32, %c0_i32_0 : i32, i32
  }
  func.func @transform_4(%arg0: i32) -> (i32, i32) {
    %c0_i32 = arith.constant 0 : i32
    %c0_i32_0 = arith.constant 0 : i32
    %c0_i32_1 = arith.constant 0 : i32
    return %c0_i32, %c0_i32_0 : i32, i32
  }
  func.func @transform_5(%arg0: i32) -> (i32, i32) {
    %c0_i32 = arith.constant 0 : i32
    %c0_i32_0 = arith.constant 0 : i32
    %c0_i32_1 = arith.constant 0 : i32
    return %c0_i32, %c0_i32_0 : i32, i32
  }
  func.func @transform_6(%arg0: i32) -> (i32, i32) {
    %c0_i32 = arith.constant 0 : i32
    %c0_i32_0 = arith.constant 0 : i32
    %c0_i32_1 = arith.constant 0 : i32
    return %c0_i32, %c0_i32_0 : i32, i32
  }
  func.func @transform_7(%arg0: i32) -> (i32, i32) {
    %c0_i32 = arith.constant 0 : i32
    %c0_i32_0 = arith.constant 0 : i32
    %c0_i32_1 = arith.constant 0 : i32
    return %c0_i32, %c0_i32_0 : i32, i32
  }
  func.func @transform_8(%arg0: i32) -> (i32, i32) {
    %c0_i32 = arith.constant 0 : i32
    %c0_i32_0 = arith.constant 0 : i32
    %c0_i32_1 = arith.constant 0 : i32
    return %c0_i32, %c0_i32_0 : i32, i32
  }
  func.func @transform_9(%arg0: i32) -> (i32, i32) {
    %c0_i32 = arith.constant 0 : i32
    %c0_i32_0 = arith.constant 0 : i32
    return %c0_i32, %arg0 : i32, i32
  }
}

module attributes {stable_mosaic.version = 11 : i64} {
  func.func @opacity_kernel(%arg0: i32, %arg1: memref<1x2xf32, #tpu.memory_space<smem>>, %arg2: memref<128x128xf32, #tpu.memory_space<vmem>>, %arg3: memref<32x128xf32, #tpu.memory_space<vmem>>, %arg4: memref<32x128xf32, #tpu.memory_space<vmem>>, %arg5: memref<32x128xf32, #tpu.memory_space<vmem>>) attributes {dimension_semantics = [#tpu.dimension_semantics<parallel>], iteration_bounds = array<i64: 2>, scalar_prefetch = 0 : i64, scratch_operands = 0 : i64, tpu.core_type = #tpu.core_type<tc>, window_params = [{transform_indices = @transform_0, window_bounds = array<i64: 1, 2>}, {pipeline_mode = #tpu.pipeline_mode<synchronous>, transform_indices = @transform_1, window_bounds = array<i64: 128, 128>}, {transform_indices = @transform_2, window_bounds = array<i64: 32, 128>}, {transform_indices = @transform_3, window_bounds = array<i64: 32, 128>}, {transform_indices = @transform_4, window_bounds = array<i64: 32, 128>}]} {
    %c0 = arith.constant 0 : index
    %c0_0 = arith.constant 0 : index
    %0 = memref.load %arg1[%c0, %c0_0] : memref<1x2xf32, #tpu.memory_space<smem>>
    %c0_1 = arith.constant 0 : index
    %c1 = arith.constant 1 : index
    %1 = memref.load %arg1[%c0_1, %c1] : memref<1x2xf32, #tpu.memory_space<smem>>
    %cst = arith.constant 1.000000e+00 : f32
    %2 = arith.divf %cst, %1 : f32
    %c0_2 = arith.constant 0 : index
    %c0_3 = arith.constant 0 : index
    %3 = vector.load %arg3[%c0_2, %c0_3] : memref<32x128xf32, #tpu.memory_space<vmem>>, vector<32x128xf32>
    %c0_4 = arith.constant 0 : index
    %c0_5 = arith.constant 0 : index
    %4 = vector.load %arg4[%c0_4, %c0_5] : memref<32x128xf32, #tpu.memory_space<vmem>>, vector<32x128xf32>
    %5 = math.absf %4 : vector<32x128xf32>
    %cst_6 = arith.constant 0.000000e+00 : f32
    %6 = vector.broadcast %cst_6 : f32 to vector<32x128xf32>
    %7 = arith.subf %6, %5 : vector<32x128xf32>
    %8 = vector.broadcast %2 : f32 to vector<32x128xf32>
    %9 = arith.mulf %7, %8 : vector<32x128xf32>
    %10 = math.exp %9 : vector<32x128xf32>
    %cst_7 = arith.constant 5.000000e-01 : f32
    %11 = vector.broadcast %cst_7 : f32 to vector<32x128xf32>
    %12 = arith.mulf %11, %10 : vector<32x128xf32>
    %cst_8 = arith.constant 0.000000e+00 : f32
    %13 = vector.broadcast %cst_8 : f32 to vector<32x128xf32>
    %14 = arith.cmpf oge, %4, %13 : vector<32x128xf32>
    %cst_9 = arith.constant 1.000000e+00 : f32
    %15 = vector.broadcast %cst_9 : f32 to vector<32x128xf32>
    %16 = arith.subf %15, %12 : vector<32x128xf32>
    %17 = arith.select %14, %12, %16 : vector<32x128xi1>, vector<32x128xf32>
    %18 = vector.broadcast %0 : f32 to vector<32x128xf32>
    %19 = arith.mulf %18, %17 : vector<32x128xf32>
    %20 = vector.extract_strided_slice %3 {offsets = [0, 1], sizes = [32, 127], strides = [1, 1]} : vector<32x128xf32> to vector<32x127xf32>
    %21 = vector.extract_strided_slice %3 {offsets = [0, 0], sizes = [32, 127], strides = [1, 1]} : vector<32x128xf32> to vector<32x127xf32>
    %22 = arith.subf %20, %21 : vector<32x127xf32>
    %23 = vector.extract_strided_slice %19 {offsets = [0, 0], sizes = [32, 127], strides = [1, 1]} : vector<32x128xf32> to vector<32x127xf32>
    %24 = arith.mulf %23, %22 : vector<32x127xf32>
    %cst_10 = arith.constant 0.000000e+00 : f32
    %25 = vector.broadcast %cst_10 : f32 to vector<32x1xf32>
    %26 = tpu.concatenate %24, %25 in 1 : vector<32x127xf32>, vector<32x1xf32> -> vector<32x128xf32>
    %c0_11 = arith.constant 0 : index
    %c0_12 = arith.constant 0 : index
    %27 = vector.load %arg2[%c0_11, %c0_12] : memref<128x128xf32, #tpu.memory_space<vmem>>, vector<128x128xf32>
    %cst_13 = arith.constant dense<0.000000e+00> : vector<32x128xf32>
    %28 = tpu.matmul %26, %27, %cst_13 {dimension_numbers = #tpu.dot_dimension_numbers<[1], [0], [0], [1], [0, 0, 1, 1], [], []>} : vector<32x128xf32>, vector<128x128xf32>, vector<32x128xf32> -> vector<32x128xf32>
    %cst_14 = arith.constant 0.000000e+00 : f32
    %29 = vector.broadcast %cst_14 : f32 to vector<32x128xf32>
    %30 = arith.subf %29, %28 : vector<32x128xf32>
    %31 = math.exp %30 : vector<32x128xf32>
    %cst_15 = arith.constant 1.000000e+00 : f32
    %32 = vector.broadcast %cst_15 : f32 to vector<32x128xf32>
    %33 = arith.subf %32, %31 : vector<32x128xf32>
    %c0_16 = arith.constant 0 : index
    %c0_17 = arith.constant 0 : index
    %34 = vector.load %arg5[%c0_16, %c0_17] : memref<32x128xf32, #tpu.memory_space<vmem>>, vector<32x128xf32>
    tpu.vector_store %arg5[%c0_16, %c0_17], %33 {strides = array<i32>} : memref<32x128xf32, #tpu.memory_space<vmem>>, vector<32x128xf32>,
    return
  }
  func.func @transform_0(%arg0: i32) -> (i32, i32) {
    %c0_i32 = arith.constant 0 : i32
    %c0_i32_0 = arith.constant 0 : i32
    %c0_i32_1 = arith.constant 0 : i32
    return %c0_i32, %c0_i32_0 : i32, i32
  }
  func.func @transform_1(%arg0: i32) -> (i32, i32) {
    %c0_i32 = arith.constant 0 : i32
    %c0_i32_0 = arith.constant 0 : i32
    %c0_i32_1 = arith.constant 0 : i32
    return %c0_i32, %c0_i32_0 : i32, i32
  }
  func.func @transform_2(%arg0: i32) -> (i32, i32) {
    %c0_i32 = arith.constant 0 : i32
    %c0_i32_0 = arith.constant 0 : i32
    return %arg0, %c0_i32 : i32, i32
  }
  func.func @transform_3(%arg0: i32) -> (i32, i32) {
    %c0_i32 = arith.constant 0 : i32
    %c0_i32_0 = arith.constant 0 : i32
    return %arg0, %c0_i32 : i32, i32
  }
  func.func @transform_4(%arg0: i32) -> (i32, i32) {
    %c0_i32 = arith.constant 0 : i32
    %c0_i32_0 = arith.constant 0 : i32
    return %arg0, %c0_i32 : i32, i32
  }
}

module attributes {stable_mosaic.version = 11 : i64} {
  func.func @model_forward_kernel(%arg0: i32, %arg1: memref<8x512xf32, #tpu.memory_space<vmem>>, %arg2: memref<64x8xbf16, #tpu.memory_space<vmem>>, %arg3: memref<64x1xf32, #tpu.memory_space<vmem>>, %arg4: memref<64x64xbf16, #tpu.memory_space<vmem>>, %arg5: memref<64x1xf32, #tpu.memory_space<vmem>>, %arg6: memref<64x64xbf16, #tpu.memory_space<vmem>>, %arg7: memref<64x1xf32, #tpu.memory_space<vmem>>, %arg8: memref<65x64xbf16, #tpu.memory_space<vmem>>, %arg9: memref<65x1xf32, #tpu.memory_space<vmem>>, %arg10: memref<3x64xbf16, #tpu.memory_space<vmem>>, %arg11: memref<64x64xbf16, #tpu.memory_space<vmem>>, %arg12: memref<64x64xbf16, #tpu.memory_space<vmem>>, %arg13: memref<64x1xbf16, #tpu.memory_space<vmem>>, %arg14: memref<64x8xbf16, #tpu.memory_space<vmem>>, %arg15: memref<64x3xbf16, #tpu.memory_space<vmem>>, %arg16: memref<64x64xbf16, #tpu.memory_space<vmem>>, %arg17: memref<64x1xf32, #tpu.memory_space<vmem>>, %arg18: memref<64x64xbf16, #tpu.memory_space<vmem>>, %arg19: memref<64x1xf32, #tpu.memory_space<vmem>>, %arg20: memref<3x64xbf16, #tpu.memory_space<vmem>>, %arg21: memref<3x1xf32, #tpu.memory_space<vmem>>, %arg22: memref<8x512xf32, #tpu.memory_space<vmem>>) attributes {dimension_semantics = [#tpu.dimension_semantics<parallel>], iteration_bounds = array<i64: 6>, scalar_prefetch = 0 : i64, scratch_operands = 0 : i64, tpu.core_type = #tpu.core_type<tc>, window_params = [{transform_indices = @transform_0, window_bounds = array<i64: 8, 512>}, {pipeline_mode = #tpu.pipeline_mode<synchronous>, transform_indices = @transform_1, window_bounds = array<i64: 64, 8>}, {pipeline_mode = #tpu.pipeline_mode<synchronous>, transform_indices = @transform_2, window_bounds = array<i64: 64, 1>}, {pipeline_mode = #tpu.pipeline_mode<synchronous>, transform_indices = @transform_3, window_bounds = array<i64: 64, 64>}, {pipeline_mode = #tpu.pipeline_mode<synchronous>, transform_indices = @transform_4, window_bounds = array<i64: 64, 1>}, {pipeline_mode = #tpu.pipeline_mode<synchronous>, transform_indices = @transform_5, window_bounds = array<i64: 64, 64>}, {pipeline_mode = #tpu.pipeline_mode<synchronous>, transform_indices = @transform_6, window_bounds = array<i64: 64, 1>}, {pipeline_mode = #tpu.pipeline_mode<synchronous>, transform_indices = @transform_7, window_bounds = array<i64: 65, 64>}, {pipeline_mode = #tpu.pipeline_mode<synchronous>, transform_indices = @transform_8, window_bounds = array<i64: 65, 1>}, {pipeline_mode = #tpu.pipeline_mode<synchronous>, transform_indices = @transform_9, window_bounds = array<i64: 3, 64>}, {pipeline_mode = #tpu.pipeline_mode<synchronous>, transform_indices = @transform_10, window_bounds = array<i64: 64, 64>}, {pipeline_mode = #tpu.pipeline_mode<synchronous>, transform_indices = @transform_11, window_bounds = array<i64: 64, 64>}, {pipeline_mode = #tpu.pipeline_mode<synchronous>, transform_indices = @transform_12, window_bounds = array<i64: 64, 1>}, {pipeline_mode = #tpu.pipeline_mode<synchronous>, transform_indices = @transform_13, window_bounds = array<i64: 64, 8>}, {pipeline_mode = #tpu.pipeline_mode<synchronous>, transform_indices = @transform_14, window_bounds = array<i64: 64, 3>}, {pipeline_mode = #tpu.pipeline_mode<synchronous>, transform_indices = @transform_15, window_bounds = array<i64: 64, 64>}, {pipeline_mode = #tpu.pipeline_mode<synchronous>, transform_indices = @transform_16, window_bounds = array<i64: 64, 1>}, {pipeline_mode = #tpu.pipeline_mode<synchronous>, transform_indices = @transform_17, window_bounds = array<i64: 64, 64>}, {pipeline_mode = #tpu.pipeline_mode<synchronous>, transform_indices = @transform_18, window_bounds = array<i64: 64, 1>}, {pipeline_mode = #tpu.pipeline_mode<synchronous>, transform_indices = @transform_19, window_bounds = array<i64: 3, 64>}, {pipeline_mode = #tpu.pipeline_mode<synchronous>, transform_indices = @transform_20, window_bounds = array<i64: 3, 1>}, {transform_indices = @transform_21, window_bounds = array<i64: 8, 512>}]} {
    %c0 = arith.constant 0 : index
    %c0_0 = arith.constant 0 : index
    %0 = vector.load %arg1[%c0, %c0_0] : memref<8x512xf32, #tpu.memory_space<vmem>>, vector<8x512xf32>
    %1 = arith.truncf %0 : vector<8x512xf32> to vector<8x512xbf16>
    %2 = vector.extract_strided_slice %0 {offsets = [0, 0], sizes = [3, 512], strides = [1, 1]} : vector<8x512xf32> to vector<3x512xf32>
    %c0_1 = arith.constant 0 : index
    %c0_2 = arith.constant 0 : index
    %3 = vector.load %arg2[%c0_1, %c0_2] : memref<64x8xbf16, #tpu.memory_space<vmem>>, vector<64x8xbf16>
    %cst = arith.constant dense<0.000000e+00> : vector<64x512xf32>
    %4 = tpu.matmul %3, %1, %cst {dimension_numbers = #tpu.dot_dimension_numbers<[1], [0], [0], [1], [0, 0, 1, 1], [], []>} : vector<64x8xbf16>, vector<8x512xbf16>, vector<64x512xf32> -> vector<64x512xf32>
    %c0_3 = arith.constant 0 : index
    %c0_4 = arith.constant 0 : index
    %5 = vector.load %arg3[%c0_3, %c0_4] : memref<64x1xf32, #tpu.memory_space<vmem>>, vector<64x1xf32>
    %6 = vector.broadcast %5 : vector<64x1xf32> to vector<64x512xf32>
    %7 = arith.addf %4, %6 : vector<64x512xf32>
    %cst_5 = arith.constant 1.000000e+02 : f32
    %8 = vector.broadcast %cst_5 : f32 to vector<64x512xf32>
    %9 = arith.mulf %8, %7 : vector<64x512xf32>
    %cst_6 = arith.constant 2.000000e+01 : f32
    %10 = vector.broadcast %cst_6 : f32 to vector<64x512xf32>
    %11 = arith.minimumf %9, %10 : vector<64x512xf32>
    %12 = math.exp %11 : vector<64x512xf32>
    %cst_7 = arith.constant 2.000000e+01 : f32
    %13 = vector.broadcast %cst_7 : f32 to vector<64x512xf32>
    %14 = arith.cmpf ogt, %9, %13 : vector<64x512xf32>
    %cst_8 = arith.constant 1.000000e+00 : f32
    %15 = vector.broadcast %cst_8 : f32 to vector<64x512xf32>
    %16 = arith.addf %15, %12 : vector<64x512xf32>
    %17 = math.log %16 : vector<64x512xf32>
    %cst_9 = arith.constant 0.00999999977 : f32
    %18 = vector.broadcast %cst_9 : f32 to vector<64x512xf32>
    %19 = arith.mulf %18, %17 : vector<64x512xf32>
    %20 = arith.select %14, %7, %19 : vector<64x512xi1>, vector<64x512xf32>
    %cst_10 = arith.constant 1.000000e+00 : f32
    %21 = vector.broadcast %cst_10 : f32 to vector<64x512xf32>
    %22 = arith.addf %21, %12 : vector<64x512xf32>
    %23 = tpu.reciprocal %22 {approx = true} : vector<64x512xf32> -> vector<64x512xf32>
    %24 = arith.mulf %12, %23 : vector<64x512xf32>
    %25 = arith.truncf %24 : vector<64x512xf32> to vector<64x512xbf16>
    %c0_11 = arith.constant 0 : index
    %c0_12 = arith.constant 0 : index
    %26 = vector.load %arg4[%c0_11, %c0_12] : memref<64x64xbf16, #tpu.memory_space<vmem>>, vector<64x64xbf16>
    %27 = arith.truncf %20 : vector<64x512xf32> to vector<64x512xbf16>
    %cst_13 = arith.constant dense<0.000000e+00> : vector<64x512xf32>
    %28 = tpu.matmul %26, %27, %cst_13 {dimension_numbers = #tpu.dot_dimension_numbers<[1], [0], [0], [1], [0, 0, 1, 1], [], []>} : vector<64x64xbf16>, vector<64x512xbf16>, vector<64x512xf32> -> vector<64x512xf32>
    %c0_14 = arith.constant 0 : index
    %c0_15 = arith.constant 0 : index
    %29 = vector.load %arg5[%c0_14, %c0_15] : memref<64x1xf32, #tpu.memory_space<vmem>>, vector<64x1xf32>
    %30 = vector.broadcast %29 : vector<64x1xf32> to vector<64x512xf32>
    %31 = arith.addf %28, %30 : vector<64x512xf32>
    %cst_16 = arith.constant 1.000000e+02 : f32
    %32 = vector.broadcast %cst_16 : f32 to vector<64x512xf32>
    %33 = arith.mulf %32, %31 : vector<64x512xf32>
    %cst_17 = arith.constant 2.000000e+01 : f32
    %34 = vector.broadcast %cst_17 : f32 to vector<64x512xf32>
    %35 = arith.minimumf %33, %34 : vector<64x512xf32>
    %36 = math.exp %35 : vector<64x512xf32>
    %cst_18 = arith.constant 2.000000e+01 : f32
    %37 = vector.broadcast %cst_18 : f32 to vector<64x512xf32>
    %38 = arith.cmpf ogt, %33, %37 : vector<64x512xf32>
    %cst_19 = arith.constant 1.000000e+00 : f32
    %39 = vector.broadcast %cst_19 : f32 to vector<64x512xf32>
    %40 = arith.addf %39, %36 : vector<64x512xf32>
    %41 = math.log %40 : vector<64x512xf32>
    %cst_20 = arith.constant 0.00999999977 : f32
    %42 = vector.broadcast %cst_20 : f32 to vector<64x512xf32>
    %43 = arith.mulf %42, %41 : vector<64x512xf32>
    %44 = arith.select %38, %31, %43 : vector<64x512xi1>, vector<64x512xf32>
    %cst_21 = arith.constant 1.000000e+00 : f32
    %45 = vector.broadcast %cst_21 : f32 to vector<64x512xf32>
    %46 = arith.addf %45, %36 : vector<64x512xf32>
    %47 = tpu.reciprocal %46 {approx = true} : vector<64x512xf32> -> vector<64x512xf32>
    %48 = arith.mulf %36, %47 : vector<64x512xf32>
    %49 = arith.truncf %48 : vector<64x512xf32> to vector<64x512xbf16>
    %c0_22 = arith.constant 0 : index
    %c0_23 = arith.constant 0 : index
    %50 = vector.load %arg6[%c0_22, %c0_23] : memref<64x64xbf16, #tpu.memory_space<vmem>>, vector<64x64xbf16>
    %51 = arith.truncf %44 : vector<64x512xf32> to vector<64x512xbf16>
    %cst_24 = arith.constant dense<0.000000e+00> : vector<64x512xf32>
    %52 = tpu.matmul %50, %51, %cst_24 {dimension_numbers = #tpu.dot_dimension_numbers<[1], [0], [0], [1], [0, 0, 1, 1], [], []>} : vector<64x64xbf16>, vector<64x512xbf16>, vector<64x512xf32> -> vector<64x512xf32>
    %c0_25 = arith.constant 0 : index
    %c0_26 = arith.constant 0 : index
    %53 = vector.load %arg7[%c0_25, %c0_26] : memref<64x1xf32, #tpu.memory_space<vmem>>, vector<64x1xf32>
    %54 = vector.broadcast %53 : vector<64x1xf32> to vector<64x512xf32>
    %55 = arith.addf %52, %54 : vector<64x512xf32>
    %cst_27 = arith.constant 1.000000e+02 : f32
    %56 = vector.broadcast %cst_27 : f32 to vector<64x512xf32>
    %57 = arith.mulf %56, %55 : vector<64x512xf32>
    %cst_28 = arith.constant 2.000000e+01 : f32
    %58 = vector.broadcast %cst_28 : f32 to vector<64x512xf32>
    %59 = arith.minimumf %57, %58 : vector<64x512xf32>
    %60 = math.exp %59 : vector<64x512xf32>
    %cst_29 = arith.constant 2.000000e+01 : f32
    %61 = vector.broadcast %cst_29 : f32 to vector<64x512xf32>
    %62 = arith.cmpf ogt, %57, %61 : vector<64x512xf32>
    %cst_30 = arith.constant 1.000000e+00 : f32
    %63 = vector.broadcast %cst_30 : f32 to vector<64x512xf32>
    %64 = arith.addf %63, %60 : vector<64x512xf32>
    %65 = math.log %64 : vector<64x512xf32>
    %cst_31 = arith.constant 0.00999999977 : f32
    %66 = vector.broadcast %cst_31 : f32 to vector<64x512xf32>
    %67 = arith.mulf %66, %65 : vector<64x512xf32>
    %68 = arith.select %62, %55, %67 : vector<64x512xi1>, vector<64x512xf32>
    %cst_32 = arith.constant 1.000000e+00 : f32
    %69 = vector.broadcast %cst_32 : f32 to vector<64x512xf32>
    %70 = arith.addf %69, %60 : vector<64x512xf32>
    %71 = tpu.reciprocal %70 {approx = true} : vector<64x512xf32> -> vector<64x512xf32>
    %72 = arith.mulf %60, %71 : vector<64x512xf32>
    %73 = arith.truncf %72 : vector<64x512xf32> to vector<64x512xbf16>
    %c0_33 = arith.constant 0 : index
    %c0_34 = arith.constant 0 : index
    %74 = vector.load %arg8[%c0_33, %c0_34] : memref<65x64xbf16, #tpu.memory_space<vmem>>, vector<65x64xbf16>
    %75 = arith.truncf %68 : vector<64x512xf32> to vector<64x512xbf16>
    %cst_35 = arith.constant dense<0.000000e+00> : vector<65x512xf32>
    %76 = tpu.matmul %74, %75, %cst_35 {dimension_numbers = #tpu.dot_dimension_numbers<[1], [0], [0], [1], [0, 0, 1, 1], [], []>} : vector<65x64xbf16>, vector<64x512xbf16>, vector<65x512xf32> -> vector<65x512xf32>
    %c0_36 = arith.constant 0 : index
    %c0_37 = arith.constant 0 : index
    %77 = vector.load %arg9[%c0_36, %c0_37] : memref<65x1xf32, #tpu.memory_space<vmem>>, vector<65x1xf32>
    %78 = vector.broadcast %77 : vector<65x1xf32> to vector<65x512xf32>
    %79 = arith.addf %76, %78 : vector<65x512xf32>
    %80 = vector.extract_strided_slice %79 {offsets = [0, 0], sizes = [64, 512], strides = [1, 1]} : vector<65x512xf32> to vector<64x512xf32>
    %81 = arith.truncf %80 : vector<64x512xf32> to vector<64x512xbf16>
    %82 = vector.extract_strided_slice %79 {offsets = [64, 0], sizes = [1, 512], strides = [1, 1]} : vector<65x512xf32> to vector<1x512xf32>
    %c0_38 = arith.constant 0 : index
    %c0_39 = arith.constant 0 : index
    %83 = vector.load %arg13[%c0_38, %c0_39] : memref<64x1xbf16, #tpu.memory_space<vmem>>, vector<64x1xbf16>
    %84 = vector.broadcast %83 : vector<64x1xbf16> to vector<64x512xbf16>
    %85 = arith.mulf %73, %84 : vector<64x512xbf16>
    %c0_40 = arith.constant 0 : index
    %c0_41 = arith.constant 0 : index
    %86 = vector.load %arg12[%c0_40, %c0_41] : memref<64x64xbf16, #tpu.memory_space<vmem>>, vector<64x64xbf16>
    %cst_42 = arith.constant dense<0.000000e+00> : vector<64x512xf32>
    %87 = tpu.matmul %86, %85, %cst_42 {dimension_numbers = #tpu.dot_dimension_numbers<[1], [0], [0], [1], [0, 0, 1, 1], [], []>} : vector<64x64xbf16>, vector<64x512xbf16>, vector<64x512xf32> -> vector<64x512xf32>
    %88 = arith.extf %49 : vector<64x512xbf16> to vector<64x512xf32>
    %89 = arith.mulf %88, %87 : vector<64x512xf32>
    %c0_43 = arith.constant 0 : index
    %c0_44 = arith.constant 0 : index
    %90 = vector.load %arg11[%c0_43, %c0_44] : memref<64x64xbf16, #tpu.memory_space<vmem>>, vector<64x64xbf16>
    %91 = arith.truncf %89 : vector<64x512xf32> to vector<64x512xbf16>
    %cst_45 = arith.constant dense<0.000000e+00> : vector<64x512xf32>
    %92 = tpu.matmul %90, %91, %cst_45 {dimension_numbers = #tpu.dot_dimension_numbers<[1], [0], [0], [1], [0, 0, 1, 1], [], []>} : vector<64x64xbf16>, vector<64x512xbf16>, vector<64x512xf32> -> vector<64x512xf32>
    %93 = arith.extf %25 : vector<64x512xbf16> to vector<64x512xf32>
    %94 = arith.mulf %93, %92 : vector<64x512xf32>
    %c0_46 = arith.constant 0 : index
    %c0_47 = arith.constant 0 : index
    %95 = vector.load %arg10[%c0_46, %c0_47] : memref<3x64xbf16, #tpu.memory_space<vmem>>, vector<3x64xbf16>
    %96 = arith.truncf %94 : vector<64x512xf32> to vector<64x512xbf16>
    %cst_48 = arith.constant dense<0.000000e+00> : vector<3x512xf32>
    %97 = tpu.matmul %95, %96, %cst_48 {dimension_numbers = #tpu.dot_dimension_numbers<[1], [0], [0], [1], [0, 0, 1, 1], [], []>} : vector<3x64xbf16>, vector<64x512xbf16>, vector<3x512xf32> -> vector<3x512xf32>
    %98 = arith.mulf %2, %2 : vector<3x512xf32>
    %cst_49 = arith.constant dense<0.000000e+00> : vector<512xf32>
    %99 = vector.multi_reduction <add>, %98, %cst_49 [0] : vector<3x512xf32> to vector<512xf32>
    %100 = vector.shape_cast %99 : vector<512xf32> to vector<1x512xf32>
    %101 = math.sqrt %100 : vector<1x512xf32>
    %cst_50 = arith.constant 3.000000e+00 : f32
    %102 = vector.broadcast %cst_50 : f32 to vector<1x512xf32>
    %103 = arith.subf %102, %101 : vector<1x512xf32>
    %104 = arith.cmpf olt, %103, %82 : vector<1x512xf32>
    %105 = arith.select %104, %103, %82 : vector<1x512xi1>, vector<1x512xf32>
    %c0_51 = arith.constant 0 : index
    %c0_52 = arith.constant 0 : index
    %106 = vector.load %arg14[%c0_51, %c0_52] : memref<64x8xbf16, #tpu.memory_space<vmem>>, vector<64x8xbf16>
    %cst_53 = arith.constant dense<0.000000e+00> : vector<64x512xf32>
    %107 = tpu.matmul %106, %1, %cst_53 {dimension_numbers = #tpu.dot_dimension_numbers<[1], [0], [0], [1], [0, 0, 1, 1], [], []>} : vector<64x8xbf16>, vector<8x512xbf16>, vector<64x512xf32> -> vector<64x512xf32>
    %c0_54 = arith.constant 0 : index
    %c0_55 = arith.constant 0 : index
    %108 = vector.load %arg15[%c0_54, %c0_55] : memref<64x3xbf16, #tpu.memory_space<vmem>>, vector<64x3xbf16>
    %109 = arith.truncf %97 : vector<3x512xf32> to vector<3x512xbf16>
    %cst_56 = arith.constant dense<0.000000e+00> : vector<64x512xf32>
    %110 = tpu.matmul %108, %109, %cst_56 {dimension_numbers = #tpu.dot_dimension_numbers<[1], [0], [0], [1], [0, 0, 1, 1], [], []>} : vector<64x3xbf16>, vector<3x512xbf16>, vector<64x512xf32> -> vector<64x512xf32>
    %111 = arith.addf %107, %110 : vector<64x512xf32>
    %c0_57 = arith.constant 0 : index
    %c0_58 = arith.constant 0 : index
    %112 = vector.load %arg16[%c0_57, %c0_58] : memref<64x64xbf16, #tpu.memory_space<vmem>>, vector<64x64xbf16>
    %cst_59 = arith.constant dense<0.000000e+00> : vector<64x512xf32>
    %113 = tpu.matmul %112, %81, %cst_59 {dimension_numbers = #tpu.dot_dimension_numbers<[1], [0], [0], [1], [0, 0, 1, 1], [], []>} : vector<64x64xbf16>, vector<64x512xbf16>, vector<64x512xf32> -> vector<64x512xf32>
    %114 = arith.addf %111, %113 : vector<64x512xf32>
    %c0_60 = arith.constant 0 : index
    %c0_61 = arith.constant 0 : index
    %115 = vector.load %arg17[%c0_60, %c0_61] : memref<64x1xf32, #tpu.memory_space<vmem>>, vector<64x1xf32>
    %116 = vector.broadcast %115 : vector<64x1xf32> to vector<64x512xf32>
    %117 = arith.addf %114, %116 : vector<64x512xf32>
    %cst_62 = arith.constant 0.000000e+00 : f32
    %118 = vector.broadcast %cst_62 : f32 to vector<64x512xf32>
    %119 = arith.maximumf %117, %118 : vector<64x512xf32>
    %c0_63 = arith.constant 0 : index
    %c0_64 = arith.constant 0 : index
    %120 = vector.load %arg18[%c0_63, %c0_64] : memref<64x64xbf16, #tpu.memory_space<vmem>>, vector<64x64xbf16>
    %121 = arith.truncf %119 : vector<64x512xf32> to vector<64x512xbf16>
    %cst_65 = arith.constant dense<0.000000e+00> : vector<64x512xf32>
    %122 = tpu.matmul %120, %121, %cst_65 {dimension_numbers = #tpu.dot_dimension_numbers<[1], [0], [0], [1], [0, 0, 1, 1], [], []>} : vector<64x64xbf16>, vector<64x512xbf16>, vector<64x512xf32> -> vector<64x512xf32>
    %c0_66 = arith.constant 0 : index
    %c0_67 = arith.constant 0 : index
    %123 = vector.load %arg19[%c0_66, %c0_67] : memref<64x1xf32, #tpu.memory_space<vmem>>, vector<64x1xf32>
    %124 = vector.broadcast %123 : vector<64x1xf32> to vector<64x512xf32>
    %125 = arith.addf %122, %124 : vector<64x512xf32>
    %cst_68 = arith.constant 0.000000e+00 : f32
    %126 = vector.broadcast %cst_68 : f32 to vector<64x512xf32>
    %127 = arith.maximumf %125, %126 : vector<64x512xf32>
    %c0_69 = arith.constant 0 : index
    %c0_70 = arith.constant 0 : index
    %128 = vector.load %arg20[%c0_69, %c0_70] : memref<3x64xbf16, #tpu.memory_space<vmem>>, vector<3x64xbf16>
    %129 = arith.truncf %127 : vector<64x512xf32> to vector<64x512xbf16>
    %cst_71 = arith.constant dense<0.000000e+00> : vector<3x512xf32>
    %130 = tpu.matmul %128, %129, %cst_71 {dimension_numbers = #tpu.dot_dimension_numbers<[1], [0], [0], [1], [0, 0, 1, 1], [], []>} : vector<3x64xbf16>, vector<64x512xbf16>, vector<3x512xf32> -> vector<3x512xf32>
    %c0_72 = arith.constant 0 : index
    %c0_73 = arith.constant 0 : index
    %131 = vector.load %arg21[%c0_72, %c0_73] : memref<3x1xf32, #tpu.memory_space<vmem>>, vector<3x1xf32>
    %132 = vector.broadcast %131 : vector<3x1xf32> to vector<3x512xf32>
    %133 = arith.addf %130, %132 : vector<3x512xf32>
    %cst_74 = arith.constant 0.000000e+00 : f32
    %134 = vector.broadcast %cst_74 : f32 to vector<3x512xf32>
    %135 = arith.subf %134, %133 : vector<3x512xf32>
    %cst_75 = arith.constant 8.000000e+01 : f32
    %136 = vector.broadcast %cst_75 : f32 to vector<3x512xf32>
    %137 = arith.minimumf %135, %136 : vector<3x512xf32>
    %138 = math.exp %137 : vector<3x512xf32>
    %cst_76 = arith.constant 1.000000e+00 : f32
    %139 = vector.broadcast %cst_76 : f32 to vector<3x512xf32>
    %140 = arith.addf %139, %138 : vector<3x512xf32>
    %141 = tpu.reciprocal %140 {approx = true} : vector<3x512xf32> -> vector<3x512xf32>
    %cst_77 = arith.constant 0.000000e+00 : f32
    %142 = vector.broadcast %cst_77 : f32 to vector<1x512xf32>
    %143 = tpu.concatenate %141, %97, %105, %142 in 0 : vector<3x512xf32>, vector<3x512xf32>, vector<1x512xf32>, vector<1x512xf32> -> vector<8x512xf32>
    %c0_78 = arith.constant 0 : index
    %c0_79 = arith.constant 0 : index
    %144 = vector.load %arg22[%c0_78, %c0_79] : memref<8x512xf32, #tpu.memory_space<vmem>>, vector<8x512xf32>
    tpu.vector_store %arg22[%c0_78, %c0_79], %143 {strides = array<i32>} : memref<8x512xf32, #tpu.memory_space<vmem>>, vector<8x512xf32>,
    return
  }
  func.func @transform_0(%arg0: i32) -> (i32, i32) {
    %c0_i32 = arith.constant 0 : i32
    %c0_i32_0 = arith.constant 0 : i32
    return %c0_i32, %arg0 : i32, i32
  }
  func.func @transform_1(%arg0: i32) -> (i32, i32) {
    %c0_i32 = arith.constant 0 : i32
    %c0_i32_0 = arith.constant 0 : i32
    %c0_i32_1 = arith.constant 0 : i32
    return %c0_i32, %c0_i32_0 : i32, i32
  }
  func.func @transform_2(%arg0: i32) -> (i32, i32) {
    %c0_i32 = arith.constant 0 : i32
    %c0_i32_0 = arith.constant 0 : i32
    %c0_i32_1 = arith.constant 0 : i32
    return %c0_i32, %c0_i32_0 : i32, i32
  }
  func.func @transform_3(%arg0: i32) -> (i32, i32) {
    %c0_i32 = arith.constant 0 : i32
    %c0_i32_0 = arith.constant 0 : i32
    %c0_i32_1 = arith.constant 0 : i32
    return %c0_i32, %c0_i32_0 : i32, i32
  }
  func.func @transform_4(%arg0: i32) -> (i32, i32) {
    %c0_i32 = arith.constant 0 : i32
    %c0_i32_0 = arith.constant 0 : i32
    %c0_i32_1 = arith.constant 0 : i32
    return %c0_i32, %c0_i32_0 : i32, i32
  }
  func.func @transform_5(%arg0: i32) -> (i32, i32) {
    %c0_i32 = arith.constant 0 : i32
    %c0_i32_0 = arith.constant 0 : i32
    %c0_i32_1 = arith.constant 0 : i32
    return %c0_i32, %c0_i32_0 : i32, i32
  }
  func.func @transform_6(%arg0: i32) -> (i32, i32) {
    %c0_i32 = arith.constant 0 : i32
    %c0_i32_0 = arith.constant 0 : i32
    %c0_i32_1 = arith.constant 0 : i32
    return %c0_i32, %c0_i32_0 : i32, i32
  }
  func.func @transform_7(%arg0: i32) -> (i32, i32) {
    %c0_i32 = arith.constant 0 : i32
    %c0_i32_0 = arith.constant 0 : i32
    %c0_i32_1 = arith.constant 0 : i32
    return %c0_i32, %c0_i32_0 : i32, i32
  }
  func.func @transform_8(%arg0: i32) -> (i32, i32) {
    %c0_i32 = arith.constant 0 : i32
    %c0_i32_0 = arith.constant 0 : i32
    %c0_i32_1 = arith.constant 0 : i32
    return %c0_i32, %c0_i32_0 : i32, i32
  }
  func.func @transform_9(%arg0: i32) -> (i32, i32) {
    %c0_i32 = arith.constant 0 : i32
    %c0_i32_0 = arith.constant 0 : i32
    %c0_i32_1 = arith.constant 0 : i32
    return %c0_i32, %c0_i32_0 : i32, i32
  }
  func.func @transform_10(%arg0: i32) -> (i32, i32) {
    %c0_i32 = arith.constant 0 : i32
    %c0_i32_0 = arith.constant 0 : i32
    %c0_i32_1 = arith.constant 0 : i32
    return %c0_i32, %c0_i32_0 : i32, i32
  }
  func.func @transform_11(%arg0: i32) -> (i32, i32) {
    %c0_i32 = arith.constant 0 : i32
    %c0_i32_0 = arith.constant 0 : i32
    %c0_i32_1 = arith.constant 0 : i32
    return %c0_i32, %c0_i32_0 : i32, i32
  }
  func.func @transform_12(%arg0: i32) -> (i32, i32) {
    %c0_i32 = arith.constant 0 : i32
    %c0_i32_0 = arith.constant 0 : i32
    %c0_i32_1 = arith.constant 0 : i32
    return %c0_i32, %c0_i32_0 : i32, i32
  }
  func.func @transform_13(%arg0: i32) -> (i32, i32) {
    %c0_i32 = arith.constant 0 : i32
    %c0_i32_0 = arith.constant 0 : i32
    %c0_i32_1 = arith.constant 0 : i32
    return %c0_i32, %c0_i32_0 : i32, i32
  }
  func.func @transform_14(%arg0: i32) -> (i32, i32) {
    %c0_i32 = arith.constant 0 : i32
    %c0_i32_0 = arith.constant 0 : i32
    %c0_i32_1 = arith.constant 0 : i32
    return %c0_i32, %c0_i32_0 : i32, i32
  }
  func.func @transform_15(%arg0: i32) -> (i32, i32) {
    %c0_i32 = arith.constant 0 : i32
    %c0_i32_0 = arith.constant 0 : i32
    %c0_i32_1 = arith.constant 0 : i32
    return %c0_i32, %c0_i32_0 : i32, i32
  }
  func.func @transform_16(%arg0: i32) -> (i32, i32) {
    %c0_i32 = arith.constant 0 : i32
    %c0_i32_0 = arith.constant 0 : i32
    %c0_i32_1 = arith.constant 0 : i32
    return %c0_i32, %c0_i32_0 : i32, i32
  }
  func.func @transform_17(%arg0: i32) -> (i32, i32) {
    %c0_i32 = arith.constant 0 : i32
    %c0_i32_0 = arith.constant 0 : i32
    %c0_i32_1 = arith.constant 0 : i32
    return %c0_i32, %c0_i32_0 : i32, i32
  }
  func.func @transform_18(%arg0: i32) -> (i32, i32) {
    %c0_i32 = arith.constant 0 : i32
    %c0_i32_0 = arith.constant 0 : i32
    %c0_i32_1 = arith.constant 0 : i32
    return %c0_i32, %c0_i32_0 : i32, i32
  }
  func.func @transform_19(%arg0: i32) -> (i32, i32) {
    %c0_i32 = arith.constant 0 : i32
    %c0_i32_0 = arith.constant 0 : i32
    %c0_i32_1 = arith.constant 0 : i32
    return %c0_i32, %c0_i32_0 : i32, i32
  }
  func.func @transform_20(%arg0: i32) -> (i32, i32) {
    %c0_i32 = arith.constant 0 : i32
    %c0_i32_0 = arith.constant 0 : i32
    %c0_i32_1 = arith.constant 0 : i32
    return %c0_i32, %c0_i32_0 : i32, i32
  }
  func.func @transform_21(%arg0: i32) -> (i32, i32) {
    %c0_i32 = arith.constant 0 : i32
    %c0_i32_0 = arith.constant 0 : i32
    return %c0_i32, %arg0 : i32, i32
  }
}

module attributes {stable_mosaic.version = 11 : i64} {
  func.func @volume_integrate_kernel(%arg0: i32, %arg1: memref<1x2xf32, #tpu.memory_space<smem>>, %arg2: memref<47x47xf32, #tpu.memory_space<vmem>>, %arg3: memref<32x48xf32, #tpu.memory_space<vmem>>, %arg4: memref<32x48xf32, #tpu.memory_space<vmem>>, %arg5: memref<32x48xf32, #tpu.memory_space<vmem>>, %arg6: memref<32x48xf32, #tpu.memory_space<vmem>>, %arg7: memref<32x48xf32, #tpu.memory_space<vmem>>, %arg8: memref<32x8xf32, #tpu.memory_space<vmem>>, %arg9: memref<32x47xf32, #tpu.memory_space<vmem>>, %arg10: memref<32x48xf32, #tpu.memory_space<vmem>>) attributes {dimension_semantics = [#tpu.dimension_semantics<parallel>], iteration_bounds = array<i64: 2>, scalar_prefetch = 0 : i64, scratch_operands = 0 : i64, tpu.core_type = #tpu.core_type<tc>, window_params = [{transform_indices = @transform_0, window_bounds = array<i64: 1, 2>}, {pipeline_mode = #tpu.pipeline_mode<synchronous>, transform_indices = @transform_1, window_bounds = array<i64: 47, 47>}, {transform_indices = @transform_2, window_bounds = array<i64: 32, 48>}, {transform_indices = @transform_3, window_bounds = array<i64: 32, 48>}, {transform_indices = @transform_4, window_bounds = array<i64: 32, 48>}, {transform_indices = @transform_5, window_bounds = array<i64: 32, 48>}, {transform_indices = @transform_6, window_bounds = array<i64: 32, 48>}, {transform_indices = @transform_7, window_bounds = array<i64: 32, 8>}, {transform_indices = @transform_8, window_bounds = array<i64: 32, 47>}, {transform_indices = @transform_9, window_bounds = array<i64: 32, 48>}]} {
    %c0 = arith.constant 0 : index
    %c0_0 = arith.constant 0 : index
    %0 = memref.load %arg1[%c0, %c0_0] : memref<1x2xf32, #tpu.memory_space<smem>>
    %c0_1 = arith.constant 0 : index
    %c1 = arith.constant 1 : index
    %1 = memref.load %arg1[%c0_1, %c1] : memref<1x2xf32, #tpu.memory_space<smem>>
    %cst = arith.constant 1.000000e+00 : f32
    %2 = arith.divf %cst, %1 : f32
    %c0_2 = arith.constant 0 : index
    %c0_3 = arith.constant 0 : index
    %3 = vector.load %arg3[%c0_2, %c0_3] : memref<32x48xf32, #tpu.memory_space<vmem>>, vector<32x48xf32>
    %c0_4 = arith.constant 0 : index
    %c0_5 = arith.constant 0 : index
    %4 = vector.load %arg4[%c0_4, %c0_5] : memref<32x48xf32, #tpu.memory_space<vmem>>, vector<32x48xf32>
    %5 = math.absf %4 : vector<32x48xf32>
    %cst_6 = arith.constant 0.000000e+00 : f32
    %6 = vector.broadcast %cst_6 : f32 to vector<32x48xf32>
    %7 = arith.subf %6, %5 : vector<32x48xf32>
    %8 = vector.broadcast %2 : f32 to vector<32x48xf32>
    %9 = arith.mulf %7, %8 : vector<32x48xf32>
    %10 = math.exp %9 : vector<32x48xf32>
    %cst_7 = arith.constant 5.000000e-01 : f32
    %11 = vector.broadcast %cst_7 : f32 to vector<32x48xf32>
    %12 = arith.mulf %11, %10 : vector<32x48xf32>
    %cst_8 = arith.constant 0.000000e+00 : f32
    %13 = vector.broadcast %cst_8 : f32 to vector<32x48xf32>
    %14 = arith.cmpf oge, %4, %13 : vector<32x48xf32>
    %cst_9 = arith.constant 1.000000e+00 : f32
    %15 = vector.broadcast %cst_9 : f32 to vector<32x48xf32>
    %16 = arith.subf %15, %12 : vector<32x48xf32>
    %17 = arith.select %14, %12, %16 : vector<32x48xi1>, vector<32x48xf32>
    %18 = vector.broadcast %0 : f32 to vector<32x48xf32>
    %19 = arith.mulf %18, %17 : vector<32x48xf32>
    %20 = vector.extract_strided_slice %3 {offsets = [0, 1], sizes = [32, 47], strides = [1, 1]} : vector<32x48xf32> to vector<32x47xf32>
    %21 = vector.extract_strided_slice %3 {offsets = [0, 0], sizes = [32, 47], strides = [1, 1]} : vector<32x48xf32> to vector<32x47xf32>
    %22 = arith.subf %20, %21 : vector<32x47xf32>
    %23 = vector.extract_strided_slice %19 {offsets = [0, 0], sizes = [32, 47], strides = [1, 1]} : vector<32x48xf32> to vector<32x47xf32>
    %24 = arith.mulf %23, %22 : vector<32x47xf32>
    %cst_10 = arith.constant 0.000000e+00 : f32
    %25 = vector.broadcast %cst_10 : f32 to vector<32x47xf32>
    %26 = arith.maximumf %24, %25 : vector<32x47xf32>
    %cst_11 = arith.constant 0.000000e+00 : f32
    %27 = vector.broadcast %cst_11 : f32 to vector<32x47xf32>
    %28 = arith.subf %27, %26 : vector<32x47xf32>
    %29 = math.exp %28 : vector<32x47xf32>
    %c0_12 = arith.constant 0 : index
    %c0_13 = arith.constant 0 : index
    %30 = vector.load %arg2[%c0_12, %c0_13] : memref<47x47xf32, #tpu.memory_space<vmem>>, vector<47x47xf32>
    %cst_14 = arith.constant dense<0.000000e+00> : vector<32x47xf32>
    %31 = tpu.matmul %26, %30, %cst_14 {dimension_numbers = #tpu.dot_dimension_numbers<[1], [0], [0], [1], [0, 0, 1, 1], [], []>} : vector<32x47xf32>, vector<47x47xf32>, vector<32x47xf32> -> vector<32x47xf32>
    %cst_15 = arith.constant 1.000000e+00 : f32
    %32 = vector.broadcast %cst_15 : f32 to vector<32x47xf32>
    %33 = arith.subf %32, %29 : vector<32x47xf32>
    %cst_16 = arith.constant 1.000000e-10 : f32
    %34 = vector.broadcast %cst_16 : f32 to vector<32x47xf32>
    %35 = arith.addf %33, %34 : vector<32x47xf32>
    %cst_17 = arith.constant 0.000000e+00 : f32
    %36 = vector.broadcast %cst_17 : f32 to vector<32x47xf32>
    %37 = arith.subf %36, %31 : vector<32x47xf32>
    %38 = math.exp %37 : vector<32x47xf32>
    %39 = arith.mulf %35, %38 : vector<32x47xf32>
    %c0_18 = arith.constant 0 : index
    %c0_19 = arith.constant 0 : index
    %40 = vector.load %arg5[%c0_18, %c0_19] : memref<32x48xf32, #tpu.memory_space<vmem>>, vector<32x48xf32>
    %41 = vector.extract_strided_slice %40 {offsets = [0, 0], sizes = [32, 47], strides = [1, 1]} : vector<32x48xf32> to vector<32x47xf32>
    %42 = arith.mulf %39, %41 : vector<32x47xf32>
    %cst_20 = arith.constant dense<0.000000e+00> : vector<32xf32>
    %43 = vector.multi_reduction <add>, %42, %cst_20 [1] : vector<32x47xf32> to vector<32xf32>
    %44 = vector.shape_cast %43 : vector<32xf32> to vector<32x1xf32>
    %c0_21 = arith.constant 0 : index
    %c0_22 = arith.constant 0 : index
    %45 = vector.load %arg6[%c0_21, %c0_22] : memref<32x48xf32, #tpu.memory_space<vmem>>, vector<32x48xf32>
    %46 = vector.extract_strided_slice %45 {offsets = [0, 0], sizes = [32, 47], strides = [1, 1]} : vector<32x48xf32> to vector<32x47xf32>
    %47 = arith.mulf %39, %46 : vector<32x47xf32>
    %cst_23 = arith.constant dense<0.000000e+00> : vector<32xf32>
    %48 = vector.multi_reduction <add>, %47, %cst_23 [1] : vector<32x47xf32> to vector<32xf32>
    %49 = vector.shape_cast %48 : vector<32xf32> to vector<32x1xf32>
    %c0_24 = arith.constant 0 : index
    %c0_25 = arith.constant 0 : index
    %50 = vector.load %arg7[%c0_24, %c0_25] : memref<32x48xf32, #tpu.memory_space<vmem>>, vector<32x48xf32>
    %51 = vector.extract_strided_slice %50 {offsets = [0, 0], sizes = [32, 47], strides = [1, 1]} : vector<32x48xf32> to vector<32x47xf32>
    %52 = arith.mulf %39, %51 : vector<32x47xf32>
    %cst_26 = arith.constant dense<0.000000e+00> : vector<32xf32>
    %53 = vector.multi_reduction <add>, %52, %cst_26 [1] : vector<32x47xf32> to vector<32xf32>
    %54 = vector.shape_cast %53 : vector<32xf32> to vector<32x1xf32>
    %cst_27 = arith.constant dense<0.000000e+00> : vector<32xf32>
    %55 = vector.multi_reduction <add>, %39, %cst_27 [1] : vector<32x47xf32> to vector<32xf32>
    %56 = vector.shape_cast %55 : vector<32xf32> to vector<32x1xf32>
    %cst_28 = arith.constant 1.000000e-10 : f32
    %57 = vector.broadcast %cst_28 : f32 to vector<32x1xf32>
    %58 = arith.addf %56, %57 : vector<32x1xf32>
    %59 = tpu.reciprocal %58 {approx = true} : vector<32x1xf32> -> vector<32x1xf32>
    %60 = vector.broadcast %59 : vector<32x1xf32> to vector<32x47xf32>
    %61 = arith.mulf %39, %60 : vector<32x47xf32>
    %62 = vector.extract_strided_slice %3 {offsets = [0, 0], sizes = [32, 47], strides = [1, 1]} : vector<32x48xf32> to vector<32x47xf32>
    %63 = arith.mulf %61, %62 : vector<32x47xf32>
    %cst_29 = arith.constant dense<0.000000e+00> : vector<32xf32>
    %64 = vector.multi_reduction <add>, %63, %cst_29 [1] : vector<32x47xf32> to vector<32xf32>
    %65 = vector.shape_cast %64 : vector<32xf32> to vector<32x1xf32>
    %cst_30 = arith.constant 0.000000e+00 : f32
    %66 = vector.broadcast %cst_30 : f32 to vector<32x3xf32>
    %67 = tpu.concatenate %44, %49, %54, %65, %56, %66 in 1 : vector<32x1xf32>, vector<32x1xf32>, vector<32x1xf32>, vector<32x1xf32>, vector<32x1xf32>, vector<32x3xf32> -> vector<32x8xf32>
    %c0_31 = arith.constant 0 : index
    %c0_32 = arith.constant 0 : index
    %68 = vector.load %arg8[%c0_31, %c0_32] : memref<32x8xf32, #tpu.memory_space<vmem>>, vector<32x8xf32>
    tpu.vector_store %arg8[%c0_31, %c0_32], %67 {strides = array<i32>} : memref<32x8xf32, #tpu.memory_space<vmem>>, vector<32x8xf32>,
    %c0_33 = arith.constant 0 : index
    %c0_34 = arith.constant 0 : index
    %69 = vector.load %arg9[%c0_33, %c0_34] : memref<32x47xf32, #tpu.memory_space<vmem>>, vector<32x47xf32>
    tpu.vector_store %arg9[%c0_33, %c0_34], %39 {strides = array<i32>} : memref<32x47xf32, #tpu.memory_space<vmem>>, vector<32x47xf32>,
    %c0_35 = arith.constant 0 : index
    %c0_36 = arith.constant 0 : index
    %70 = vector.load %arg10[%c0_35, %c0_36] : memref<32x48xf32, #tpu.memory_space<vmem>>, vector<32x48xf32>
    tpu.vector_store %arg10[%c0_35, %c0_36], %19 {strides = array<i32>} : memref<32x48xf32, #tpu.memory_space<vmem>>, vector<32x48xf32>,
    return
  }
  func.func @transform_0(%arg0: i32) -> (i32, i32) {
    %c0_i32 = arith.constant 0 : i32
    %c0_i32_0 = arith.constant 0 : i32
    %c0_i32_1 = arith.constant 0 : i32
    return %c0_i32, %c0_i32_0 : i32, i32
  }
  func.func @transform_1(%arg0: i32) -> (i32, i32) {
    %c0_i32 = arith.constant 0 : i32
    %c0_i32_0 = arith.constant 0 : i32
    %c0_i32_1 = arith.constant 0 : i32
    return %c0_i32, %c0_i32_0 : i32, i32
  }
  func.func @transform_2(%arg0: i32) -> (i32, i32) {
    %c0_i32 = arith.constant 0 : i32
    %c0_i32_0 = arith.constant 0 : i32
    return %arg0, %c0_i32 : i32, i32
  }
  func.func @transform_3(%arg0: i32) -> (i32, i32) {
    %c0_i32 = arith.constant 0 : i32
    %c0_i32_0 = arith.constant 0 : i32
    return %arg0, %c0_i32 : i32, i32
  }
  func.func @transform_4(%arg0: i32) -> (i32, i32) {
    %c0_i32 = arith.constant 0 : i32
    %c0_i32_0 = arith.constant 0 : i32
    return %arg0, %c0_i32 : i32, i32
  }
  func.func @transform_5(%arg0: i32) -> (i32, i32) {
    %c0_i32 = arith.constant 0 : i32
    %c0_i32_0 = arith.constant 0 : i32
    return %arg0, %c0_i32 : i32, i32
  }
  func.func @transform_6(%arg0: i32) -> (i32, i32) {
    %c0_i32 = arith.constant 0 : i32
    %c0_i32_0 = arith.constant 0 : i32
    return %arg0, %c0_i32 : i32, i32
  }
  func.func @transform_7(%arg0: i32) -> (i32, i32) {
    %c0_i32 = arith.constant 0 : i32
    %c0_i32_0 = arith.constant 0 : i32
    return %arg0, %c0_i32 : i32, i32
  }
  func.func @transform_8(%arg0: i32) -> (i32, i32) {
    %c0_i32 = arith.constant 0 : i32
    %c0_i32_0 = arith.constant 0 : i32
    return %arg0, %c0_i32 : i32, i32
  }
  func.func @transform_9(%arg0: i32) -> (i32, i32) {
    %c0_i32 = arith.constant 0 : i32
    %c0_i32_0 = arith.constant 0 : i32
    return %arg0, %c0_i32 : i32, i32
  }
}

</mosaic_0001>

<llo_original>
// kernel: _lambda_.5
$region0: #{_lambda_.5}
  #allocation0 [shape = 'u32[]', space=smem, size = 0x4, offset = 0x4, fixed_abs, tag = 'smem constant byte address 0x4 - core index']
  #allocation1 [shape = 'u32[72,128]{1,0:T(1,128)}', space=vmem, size = 0x9000, scoped, tag = 'internal scratch']
  %s0 = inlined_call_operand.vmem [shape: f32[1,2], index: 0, kind: input, shape index: {}]
  %s1 = inlined_call_operand.vmem [shape: f32[128,128], index: 1, kind: input, shape index: {}]
  %s2 = inlined_call_operand.vmem [shape: f32[64,128], index: 2, kind: input, shape index: {}]
  %s3 = inlined_call_operand.vmem [shape: f32[64,128], index: 3, kind: input, shape index: {}]
  %s4 = inlined_call_operand.vmem [shape: f32[64,128], index: 4, kind: output, shape index: {}]
  %s5 = sld [smem:[#allocation0]]
  $region53: #{_lambda_.5} parent=0
    _
  %s7 = ssub.s32 1, %s5
  %s8 = scalar_select 0, %s7, %s5
  $region1: #{_lambda_.5} parent=0
    #allocation2 [shape = 'u8[512]{0}', space=smem, size = 0x200, scoped, tag = 'input window, operand 0, single buffered']
    #allocation3 [shape = 's32[2]{0}', space=sflag, size = 0x8, scoped, tag = 'scoped memory for _lambda_.5']
    %9 = vsyncpa [#allocation3], 0
    loop: start=0, step=1, limit=4
    $region2: #{_lambda_.5} parent=1 // loop_pre_header
      _
    $region3: #{_lambda_.5} parent=1 // loop_header
      %s11 = sphi 0, %s15
      %p12 = scmp.ge.s32.totalorder %s11, 4
      %s19 = sphi 0, %s19
      %s21 = sphi 0, %s19
      %s22 = sphi 0, %s21
      %s36 = sphi 0, %s22
      %s40 = sphi 0, %s40
      %s42 = sphi 0, %s40
      %s43 = sphi 0, %s42
      %s57 = sphi 0, %s43
      %s63 = sphi 0, %s65
      %s66 = sphi 0, %s63
      %s67 = sphi 0, %s66
      %s83 = sphi 0, %s67
      %s89 = sphi 0, %s91
      %s92 = sphi 0, %s89
      %s93 = sphi 0, %s92
      %s109 = sphi 0, %s93
      %s115 = sphi 0, %s117
      %s118 = sphi 0, %s115
      %s119 = sphi 0, %s118
      %s135 = sphi 0, %s119
    $region4: #{_lambda_.5} parent=1 // loop_header_branch
      %14 = sbr.rel (%p12) target = $region8
    $region5: #{_lambda_.5} parent=1 // loop_body
      %s16 = ssub.s32 %s11, 1
      %s17 = ssub.s32 %s11, 2
      %s18 = sadd.s32 %s11, 1
      %s20 = sadd.s32 %s19, 1
      %p23 = scmp.eq.s32.totalorder %s11, 1
      %p24 = scmp.ne.s32.totalorder %s19, %s21
      %p25 = scmp.eq.s32.totalorder %s11, 0
      %p26 = por %p24, %p25
      %p27 = scmp.ne.s32.totalorder %s19, %s21
      %p28 = scmp.eq.s32.totalorder %s16, 1
      %p29 = por %p27, %p28
      %p30 = scmp.ne.s32.totalorder %s21, %s22
      %p31 = scmp.eq.s32.totalorder %s16, 0
      %p32 = por %p30, %p31
      %p33 = scmp.ne.s32.totalorder %s21, %s22
      %p34 = scmp.eq.s32.totalorder %s17, 1
      %p35 = por %p33, %p34
      %p37 = scmp.ne.s32.totalorder %s22, %s36
      %p38 = scmp.eq.s32.totalorder %s17, 0
      %p39 = por %p37, %p38
      %s41 = sadd.s32 %s40, 1
      %p44 = scmp.eq.s32.totalorder %s11, 1
      %p45 = scmp.ne.s32.totalorder %s40, %s42
      %p46 = scmp.eq.s32.totalorder %s11, 0
      %p47 = por %p45, %p46
      %p48 = scmp.ne.s32.totalorder %s40, %s42
      %p49 = scmp.eq.s32.totalorder %s16, 1
      %p50 = por %p48, %p49
      %p51 = scmp.ne.s32.totalorder %s42, %s43
      %p52 = scmp.eq.s32.totalorder %s16, 0
      %p53 = por %p51, %p52
      %p54 = scmp.ne.s32.totalorder %s42, %s43
      %p55 = scmp.eq.s32.totalorder %s17, 1
      %p56 = por %p54, %p55
      %p58 = scmp.ne.s32.totalorder %s43, %s57
      %p59 = scmp.eq.s32.totalorder %s17, 0
      %p60 = por %p58, %p59
      %s61 = ssub.s32 %s11, %s18
      %p62 = scmp.eq.s32.totalorder %s61, 0
      %s64 = sadd.s32 %s63, 1
      %s65 = scalar_select %p62, %s63, %s64
      %p68 = pneg %p62
      %p69 = scmp.eq.s32.totalorder %s11, 1
      %p70 = por %p68, %p69
      %p71 = scmp.ne.s32.totalorder %s63, %s66
      %p72 = scmp.eq.s32.totalorder %s11, 0
      %p73 = por %p71, %p72
      %p74 = scmp.ne.s32.totalorder %s63, %s66
      %p75 = scmp.eq.s32.totalorder %s16, 1
      %p76 = por %p74, %p75
      %p77 = scmp.ne.s32.totalorder %s66, %s67
      %p78 = scmp.eq.s32.totalorder %s16, 0
      %p79 = por %p77, %p78
      %p80 = scmp.ne.s32.totalorder %s66, %s67
      %p81 = scmp.eq.s32.totalorder %s17, 1
      %p82 = por %p80, %p81
      %p84 = scmp.ne.s32.totalorder %s67, %s83
      %p85 = scmp.eq.s32.totalorder %s17, 0
      %p86 = por %p84, %p85
      %s87 = ssub.s32 %s11, %s18
      %p88 = scmp.eq.s32.totalorder %s87, 0
      %s90 = sadd.s32 %s89, 1
      %s91 = scalar_select %p88, %s89, %s90
      %p94 = pneg %p88
      %p95 = scmp.eq.s32.totalorder %s11, 1
      %p96 = por %p94, %p95
      %p97 = scmp.ne.s32.totalorder %s89, %s92
      %p98 = scmp.eq.s32.totalorder %s11, 0
      %p99 = por %p97, %p98
      %p100 = scmp.ne.s32.totalorder %s89, %s92
      %p101 = scmp.eq.s32.totalorder %s16, 1
      %p102 = por %p100, %p101
      %p103 = scmp.ne.s32.totalorder %s92, %s93
      %p104 = scmp.eq.s32.totalorder %s16, 0
      %p105 = por %p103, %p104
      %p106 = scmp.ne.s32.totalorder %s92, %s93
      %p107 = scmp.eq.s32.totalorder %s17, 1
      %p108 = por %p106, %p107
      %p110 = scmp.ne.s32.totalorder %s93, %s109
      %p111 = scmp.eq.s32.totalorder %s17, 0
      %p112 = por %p110, %p111
      %s113 = ssub.s32 %s11, %s18
      %p114 = scmp.eq.s32.totalorder %s113, 0
      %s116 = sadd.s32 %s115, 1
      %s117 = scalar_select %p114, %s115, %s116
      %p120 = pneg %p114
      %p121 = scmp.eq.s32.totalorder %s11, 1
      %p122 = por %p120, %p121
      %p123 = scmp.ne.s32.totalorder %s115, %s118
      %p124 = scmp.eq.s32.totalorder %s11, 0
      %p125 = por %p123, %p124
      %p126 = scmp.ne.s32.totalorder %s115, %s118
      %p127 = scmp.eq.s32.totalorder %s16, 1
      %p128 = por %p126, %p127
      %p129 = scmp.ne.s32.totalorder %s118, %s119
      %p130 = scmp.eq.s32.totalorder %s16, 0
      %p131 = por %p129, %p130
      %p132 = scmp.ne.s32.totalorder %s118, %s119
      %p133 = scmp.eq.s32.totalorder %s17, 1
      %p134 = por %p132, %p133
      %p136 = scmp.ne.s32.totalorder %s119, %s135
      %p137 = scmp.eq.s32.totalorder %s17, 0
      %p138 = por %p136, %p137
      %p139 = scmp.le.s32.totalorder 1, %s11
      %p140 = scmp.lt.s32.totalorder %s11, 3
      %p141 = pnand %p139, %p140
      %p142 = pneg %p141
      // Predicated region
      $region9: #{_lambda_.5} parent=5 // pred_check
        _
      $region10: #{_lambda_.5} parent=5 // pred_check_branch
        %144 = sbr.rel (%p141) target = $region12
      $region11: #{_lambda_.5} parent=5 // pred_region
        %s145 = ssub.s32 %s11, 1
        // Predicated region
        $region13: #{_lambda_.5} parent=11 // pred_check
          %p146 = pneg %p32
        $region14: #{_lambda_.5} parent=11 // pred_check_branch
          %148 = sbr.rel (%p146) target = $region16
        $region15: #{_lambda_.5} parent=11 // pred_region
          %150 = vsyncadd [#allocation3], 0
          %s152 = sshll.u32 %s0, 4
          %s153 = int_to_ptr.vmem [resolvable:$true] %s152
          %155 = dma.vmem_to_smem %s153, 16, [#allocation2], [#allocation3]
        $region16: #{_lambda_.5} parent=11 // pred_fallthru
          _
        // Predicated region
        $region17: #{_lambda_.5} parent=11 // pred_check
          %p156 = pneg %p53
        $region18: #{_lambda_.5} parent=11 // pred_check_branch
          %158 = sbr.rel (%p156) target = $region20
        $region19: #{_lambda_.5} parent=11 // pred_region
          _
        $region20: #{_lambda_.5} parent=11 // pred_fallthru
          _
      $region12: #{_lambda_.5} parent=5 // pred_fallthru
        _
      %p159 = scmp.lt.s32.totalorder %s11, 2
      // Predicated region
      $region21: #{_lambda_.5} parent=5 // pred_check
        %p160 = pneg %p159
      $region22: #{_lambda_.5} parent=5 // pred_check_branch
        %162 = sbr.rel (%p160) target = $region24
      $region23: #{_lambda_.5} parent=5 // pred_region
        // Predicated region
        $region25: #{_lambda_.5} parent=23 // pred_check
          %p163 = pneg %p73
        $region26: #{_lambda_.5} parent=23 // pred_check_branch
          %165 = sbr.rel (%p163) target = $region28
        $region27: #{_lambda_.5} parent=23 // pred_region
          %s166 = smul.u32 4, %s11
          %p167 = scmp.lt.s32.totalorder %s166, 7
          %s168 = scalar_select %p167, %s166, 7
          %s169 = smul.addr %s168, 8
          %s170 = scalar_lea.vmem %s2, %s169
          %s171 = smul.u32 4, %s11
        $region28: #{_lambda_.5} parent=23 // pred_fallthru
          _
        // Predicated region
        $region29: #{_lambda_.5} parent=23 // pred_check
          %p172 = pneg %p99
        $region30: #{_lambda_.5} parent=23 // pred_check_branch
          %174 = sbr.rel (%p172) target = $region32
        $region31: #{_lambda_.5} parent=23 // pred_region
          %s175 = smul.u32 4, %s11
          %p176 = scmp.lt.s32.totalorder %s175, 7
          %s177 = scalar_select %p176, %s175, 7
          %s178 = smul.addr %s177, 8
          %s179 = scalar_lea.vmem %s3, %s178
          %s180 = smul.u32 4, %s11
        $region32: #{_lambda_.5} parent=23 // pred_fallthru
          _
      $region24: #{_lambda_.5} parent=5 // pred_fallthru
        _
      %p181 = scmp.le.s32.totalorder 1, %s11
      %p182 = scmp.lt.s32.totalorder %s11, 3
      %p183 = pnand %p181, %p182
      %p184 = pneg %p183
      // Predicated region
      $region33: #{_lambda_.5} parent=5 // pred_check
        _
      $region34: #{_lambda_.5} parent=5 // pred_check_branch
        %186 = sbr.rel (%p183) target = $region36
      $region35: #{_lambda_.5} parent=5 // pred_region
        %s187 = ssub.s32 %s11, 1
        // Predicated region
        $region37: #{_lambda_.5} parent=35 // pred_check
          %p188 = pneg %p32
        $region38: #{_lambda_.5} parent=35 // pred_check_branch
          %190 = sbr.rel (%p188) target = $region40
        $region39: #{_lambda_.5} parent=35 // pred_region
          %192 = dma.done [#allocation3], 16
        $region40: #{_lambda_.5} parent=35 // pred_fallthru
          _
        %193 = sfence
        %p194 = pneg %p32
        %p195 = pneg %p29
        %p196 = pneg %p53
        %p197 = pneg %p50
        %s198 = smul.u32 4, %s16
        %p199 = scmp.lt.s32.totalorder %s198, 7
        %s200 = scalar_select %p199, %s198, 7
        %s201 = smul.addr %s200, 8
        %s202 = scalar_lea.vmem %s2, %s201
        %p203 = pneg %p79
        %p204 = pneg %p76
        %s205 = smul.u32 4, %s16
        %p206 = scmp.lt.s32.totalorder %s205, 7
        %s207 = scalar_select %p206, %s205, 7
        %s208 = smul.addr %s207, 8
        %s209 = scalar_lea.vmem %s3, %s208
        %p210 = pneg %p105
        %p211 = pneg %p102
        %p212 = pneg %p131
        %p213 = pneg %p128
        %s214 = smul.u32 4, %s16
        %p215 = scmp.lt.s32.totalorder %s214, 7
        %s216 = scalar_select %p215, %s214, 7
        %s217 = smul.addr %s216, 8
        %s218 = scalar_lea.vmem %s4, %s217
        %s219 = smul.u32 4, %s16
        %p220 = scmp.lt.s32.totalorder %s219, 7
        %s221 = scalar_select %p220, %s219, 7
        %s222 = smul.addr %s221, 8
        %s223 = scalar_lea.vmem %s2, %s222
        %s224 = smul.u32 4, %s16
        %s225 = smul.u32 4, %s16
        %p226 = scmp.lt.s32.totalorder %s225, 7
        %s227 = scalar_select %p226, %s225, 7
        %s228 = smul.addr %s227, 8
        %s229 = scalar_lea.vmem %s3, %s228
        %s230 = smul.u32 4, %s16
        %s231 = smul.u32 4, %s16
        %p232 = scmp.lt.s32.totalorder %s231, 7
        %s233 = scalar_select %p232, %s231, 7
        %s234 = smul.addr %s233, 8
        %s235 = scalar_lea.vmem %s4, %s234
        %s236 = smul.u32 4, %s16
        %s237 = sld [smem:[#allocation2]]
        %s238 = sld [smem:[#allocation2 + $0x1]]
        %v239 = vstv %s238
        %v240 = vrcp.pop %v239
        %v241 = vmul.f32 %v239, %v240
        %v242 = vsub.f32 1.0, %v241
        %v243 = vmul.f32 %v240, %v242
        %v244 = vadd.f32 %v240, %v243
        %vm245 = vweird.f32 %v239
        %vm246 = vweird.f32 %v240
        %vm247 = vmor %vm245, %vm246
        %v248 = vsel %vm247, %v240, %v244
        %v249 = vand.u32 2147483647, %v239
        %vm250 = vcmp.eq.f32.partialorder %v249, 8.507059e+37
        %v251 = vand.u32 %v239, 2147483648
        %v252 = vor.u32 1.1754944e-38, %v251
        %v253 = vsel %vm250, %v252, %v248
        %s254 = vtos %v253
        %v255 = vld [vmem:[%s223] sm:$0xff]
        %v256 = vld [vmem:[%s223 + $0x8] sm:$0xff]
        %v257 = vld [vmem:[%s223 + $0x10] sm:$0xff]
        %v258 = vld [vmem:[%s223 + $0x18] sm:$0xff]
        %v259 = vld [vmem:[%s229] sm:$0xff]
        %v260 = vld [vmem:[%s229 + $0x8] sm:$0xff]
        %v261 = vld [vmem:[%s229 + $0x10] sm:$0xff]
        %v262 = vld [vmem:[%s229 + $0x18] sm:$0xff]
        %v263 = vand.u32 2147483647, %v259
        %v264 = vand.u32 2147483647, %v260
        %v265 = vand.u32 2147483647, %v261
        %v266 = vand.u32 2147483647, %v262
        %v267 = vsub.f32 0.0, %v263
        %v268 = vsub.f32 0.0, %v264
        %v269 = vsub.f32 0.0, %v265
        %v270 = vsub.f32 0.0, %v266
        %v271 = vstv %s254
        %v272 = vmul.f32 %v267, %v271
        %v273 = vmul.f32 %v268, %v271
        %v274 = vmul.f32 %v269, %v271
        %v275 = vmul.f32 %v270, %v271
        %v276 = vmul.f32 %v272, 1.442695
        %v277 = vpow.pop %v276
        %v278 = vmul.f32 %v273, 1.442695
        %v279 = vpow.pop %v278
        %v280 = vmul.f32 %v274, 1.442695
        %v281 = vpow.pop %v280
        %v282 = vmul.f32 %v275, 1.442695
        %v283 = vpow.pop %v282
        %v284 = vmul.f32 %v277, 0.5
        %v285 = vmul.f32 %v279, 0.5
        %v286 = vmul.f32 %v281, 0.5
        %v287 = vmul.f32 %v283, 0.5
        %vm288 = vcmp.ge.f32.partialorder %v259, 0.0
        %vm289 = vcmp.ge.f32.partialorder %v260, 0.0
        %vm290 = vcmp.ge.f32.partialorder %v261, 0.0
        %vm291 = vcmp.ge.f32.partialorder %v262, 0.0
        %v292 = vsub.f32 1.0, %v284
        %v293 = vsub.f32 1.0, %v285
        %v294 = vsub.f32 1.0, %v286
        %v295 = vsub.f32 1.0, %v287
        %v296 = vsel %vm288, %v284, %v292
        %v297 = vsel %vm289, %v285, %v293
        %v298 = vsel %vm290, %v286, %v294
        %v299 = vsel %vm291, %v287, %v295
        %v300 = vstv %s237
        %v301 = vmul.f32 %v300, %v296
        %v302 = vmul.f32 %v300, %v297
        %v303 = vmul.f32 %v300, %v298
        %v304 = vmul.f32 %v300, %v299
        %309 = vrot.lane.b32.xlu0 %v255, 1
        %v310 = vpop.permute.xlu0 %309
        %311 = vrot.lane.b32.xlu0 %v256, 1
        %v312 = vpop.permute.xlu0 %311
        %313 = vrot.lane.b32.xlu0 %v257, 1
        %v314 = vpop.permute.xlu0 %313
        %315 = vrot.lane.b32.xlu0 %v258, 1
        %v316 = vpop.permute.xlu0 %315
        %v321 = vsub.f32 %v255, %v310
        %v322 = vsub.f32 %v256, %v312
        %v323 = vsub.f32 %v257, %v314
        %v324 = vsub.f32 %v258, %v316
        %329 = vrot.lane.b32.xlu0 %v321, 127
        %v330 = vpop.permute.xlu0 %329
        %331 = vrot.lane.b32.xlu0 %v322, 127
        %v332 = vpop.permute.xlu0 %331
        %333 = vrot.lane.b32.xlu0 %v323, 127
        %v334 = vpop.permute.xlu0 %333
        %335 = vrot.lane.b32.xlu0 %v324, 127
        %v336 = vpop.permute.xlu0 %335
        %v341 = vmul.f32 %v301, %v330
        %v342 = vmul.f32 %v302, %v332
        %v343 = vmul.f32 %v303, %v334
        %v344 = vmul.f32 %v304, %v336
        %vm345 = vcmask 1039360
        %v346 = vsel %vm345, %v341, 0.0
        %v347 = vsel %vm345, %v342, 0.0
        %v348 = vsel %vm345, %v343, 0.0
        %v349 = vsel %vm345, %v344, 0.0
        %v350 = vld [vmem:[%s1] sm:$0xff]
        %v351 = vld [vmem:[%s1 + $0x8] sm:$0xff]
        %v352 = vld [vmem:[%s1 + $0x10] sm:$0xff]
        %v353 = vld [vmem:[%s1 + $0x18] sm:$0xff]
        %v354 = vld [vmem:[%s1 + $0x20] sm:$0xff]
        %v355 = vld [vmem:[%s1 + $0x28] sm:$0xff]
        %v356 = vld [vmem:[%s1 + $0x30] sm:$0xff]
        %v357 = vld [vmem:[%s1 + $0x38] sm:$0xff]
        %v358 = vld [vmem:[%s1 + $0x40] sm:$0xff]
        %v359 = vld [vmem:[%s1 + $0x48] sm:$0xff]
        %v360 = vld [vmem:[%s1 + $0x50] sm:$0xff]
        %v361 = vld [vmem:[%s1 + $0x58] sm:$0xff]
        %v362 = vld [vmem:[%s1 + $0x60] sm:$0xff]
        %v363 = vld [vmem:[%s1 + $0x68] sm:$0xff]
        %v364 = vld [vmem:[%s1 + $0x70] sm:$0xff]
        %v365 = vld [vmem:[%s1 + $0x78] sm:$0xff]
        %366 = vmatpush.msra.mxu0 %v365
        %367 = vmatpush.msra.mxu0 %v364
        %368 = vmatpush.msra.mxu0 %v363
        %369 = vmatpush.msra.mxu0 %v362
        %370 = vmatpush.msra.mxu0 %v361
        %371 = vmatpush.msra.mxu0 %v360
        %372 = vmatpush.msra.mxu0 %v359
        %373 = vmatpush.msra.mxu0 %v358
        %374 = vmatpush.msra.mxu0 %v357
        %375 = vmatpush.msra.mxu0 %v356
        %376 = vmatpush.msra.mxu0 %v355
        %377 = vmatpush.msra.mxu0 %v354
        %378 = vmatpush.msra.mxu0 %v353
        %379 = vmatpush.msra.mxu0 %v352
        %380 = vmatpush.msra.mxu0 %v351
        %381 = vmatpush.msra.mxu0 %v350
        %382 = vmatmul.f32.gmra.mxu0 %v346
        %v383 = vpop.f32.mrf.mxu0
        %v384 = vadd.f32 0.0, %v383
        %385 = vmatmul.f32.gmra.mxu0 %v347
        %v386 = vpop.f32.mrf.mxu0
        %v387 = vadd.f32 0.0, %v386
        %388 = vmatmul.f32.gmra.mxu0 %v348
        %v389 = vpop.f32.mrf.mxu0
        %v390 = vadd.f32 0.0, %v389
        %391 = vmatmul.f32.gmra.mxu0 %v349
        %v392 = vpop.f32.mrf.mxu0
        %v393 = vadd.f32 0.0, %v392
        %394 = vdwg.mxu0
        %v395 = vsub.f32 0.0, %v384
        %v396 = vsub.f32 0.0, %v387
        %v397 = vsub.f32 0.0, %v390
        %v398 = vsub.f32 0.0, %v393
        %v399 = vmul.f32 %v395, 1.442695
        %v400 = vpow.pop %v399
        %v401 = vmul.f32 %v396, 1.442695
        %v402 = vpow.pop %v401
        %v403 = vmul.f32 %v397, 1.442695
        %v404 = vpow.pop %v403
        %v405 = vmul.f32 %v398, 1.442695
        %v406 = vpow.pop %v405
        %v407 = vsub.f32 1.0, %v400
        %v408 = vsub.f32 1.0, %v402
        %v409 = vsub.f32 1.0, %v404
        %v410 = vsub.f32 1.0, %v406
        %411 = vst [vmem:[%s235] sm:$0xff] %v407
        %412 = vst [vmem:[%s235 + $0x8] sm:$0xff] %v408
        %413 = vst [vmem:[%s235 + $0x10] sm:$0xff] %v409
        %414 = vst [vmem:[%s235 + $0x18] sm:$0xff] %v410
        %s415 = smul.u32 4, %s16
        %p416 = scmp.lt.s32.totalorder %s415, 7
        %s417 = scalar_select %p416, %s415, 7
        %s418 = smul.addr %s417, 8
        %s419 = scalar_lea.vmem %s4, %s418
        // Predicated region
        $region41: #{_lambda_.5} parent=35 // pred_check
          %p420 = pneg %p128
        $region42: #{_lambda_.5} parent=35 // pred_check_branch
          %422 = sbr.rel (%p420) target = $region44
        $region43: #{_lambda_.5} parent=35 // pred_region
          %s423 = smul.u32 4, %s16
        $region44: #{_lambda_.5} parent=35 // pred_fallthru
          _
      $region36: #{_lambda_.5} parent=5 // pred_fallthru
        _
      %p424 = scmp.le.s32.totalorder 2, %s11
      // Predicated region
      $region45: #{_lambda_.5} parent=5 // pred_check
        %p425 = pneg %p424
      $region46: #{_lambda_.5} parent=5 // pred_check_branch
        %427 = sbr.rel (%p425) target = $region48
      $region47: #{_lambda_.5} parent=5 // pred_region
        %s428 = ssub.s32 %s11, 2
        // Predicated region
        $region49: #{_lambda_.5} parent=47 // pred_check
          %p429 = pneg %p134
        $region50: #{_lambda_.5} parent=47 // pred_check_branch
          %431 = sbr.rel (%p429) target = $region52
        $region51: #{_lambda_.5} parent=47 // pred_region
          %s432 = smul.u32 4, %s17
          %p433 = scmp.lt.s32.totalorder %s432, 7
          %s434 = scalar_select %p433, %s432, 7
          %s435 = smul.addr %s434, 8
          %s436 = scalar_lea.vmem %s4, %s435
        $region52: #{_lambda_.5} parent=47 // pred_fallthru
          _
      $region48: #{_lambda_.5} parent=5 // pred_fallthru
        _
    $region6: #{_lambda_.5} parent=1 // loop_footer
      %s15 = sadd.s32 1, %s11
    $region7: #{_lambda_.5} parent=1 // loop_footer_branch
      %10 = sbr.rel target = $region3
    $region8: #{_lambda_.5} parent=1 // loop_exit
      _
    %437 = vsyncpa [#allocation3], 1
    %s438 = scalar_lea.sflag [#allocation3], 1
    %439 = vsyncpa %s438, 1

// kernel: _lambda_.4
$region0: #{_lambda_.4}
  #allocation0 [shape = 'u32[]', space=smem, size = 0x4, offset = 0x4, fixed_abs, tag = 'smem constant byte address 0x4 - core index']
  #allocation1 [shape = 'u32[72,128]{1,0:T(1,128)}', space=vmem, size = 0x9000, scoped, tag = 'internal scratch']
  #allocation2 [shape = 'f32[1,1]{1,0:T(1,128)S(1)}', space=vmem, size = 0x200, scoped, tag = 'scoped memory for _lambda_.4']
  %s0 = inlined_call_operand.vmem [shape: f32[3,8192], index: 0, kind: input, shape index: {}]
  %s1 = inlined_call_operand.vmem [shape: bf16[64,3], index: 1, kind: input, shape index: {}]
  %s2 = inlined_call_operand.vmem [shape: f32[64,1], index: 2, kind: input, shape index: {}]
  %s3 = inlined_call_operand.vmem [shape: bf16[64,64], index: 3, kind: input, shape index: {}]
  %s4 = inlined_call_operand.vmem [shape: f32[64,1], index: 4, kind: input, shape index: {}]
  %s5 = inlined_call_operand.vmem [shape: bf16[64,64], index: 5, kind: input, shape index: {}]
  %s6 = inlined_call_operand.vmem [shape: f32[64,1], index: 6, kind: input, shape index: {}]
  %s7 = inlined_call_operand.vmem [shape: bf16[1,64], index: 7, kind: input, shape index: {}]
  %s8 = inlined_call_operand.<no memory space> [shape: f32[1,1], index: 8, kind: input, shape index: {}]
  %s9 = inlined_call_operand.vmem [shape: f32[1,8192], index: 9, kind: output, shape index: {}]
  %s10 = sld [smem:[#allocation0]]
  $region69: #{_lambda_.4} parent=0
    _
  %s12 = ssub.s32 1, %s10
  %s13 = scalar_select 0, %s12, %s10
  %v14 = vstv %s8
  %15 = vst [vmem:[#allocation2] sm:$0x1] %v14
  loop: start=0, step=1, limit=10
  $region2: #{_lambda_.4} parent=0 // loop_pre_header
    _
  $region3: #{_lambda_.4} parent=0 // loop_header
    %s17 = sphi 0, %s21
    %p18 = scmp.ge.s32.totalorder %s17, 10
    %s27 = sphi 0, %s29
    %s30 = sphi 0, %s27
    %s31 = sphi 0, %s30
    %s47 = sphi 0, %s31
    %s51 = sphi 0, %s51
    %s53 = sphi 0, %s51
    %s54 = sphi 0, %s53
    %s68 = sphi 0, %s54
    %s72 = sphi 0, %s72
    %s74 = sphi 0, %s72
    %s75 = sphi 0, %s74
    %s89 = sphi 0, %s75
    %s93 = sphi 0, %s93
    %s95 = sphi 0, %s93
    %s96 = sphi 0, %s95
    %s110 = sphi 0, %s96
    %s114 = sphi 0, %s114
    %s116 = sphi 0, %s114
    %s117 = sphi 0, %s116
    %s131 = sphi 0, %s117
    %s135 = sphi 0, %s135
    %s137 = sphi 0, %s135
    %s138 = sphi 0, %s137
    %s152 = sphi 0, %s138
    %s156 = sphi 0, %s156
    %s158 = sphi 0, %s156
    %s159 = sphi 0, %s158
    %s173 = sphi 0, %s159
    %s177 = sphi 0, %s177
    %s179 = sphi 0, %s177
    %s180 = sphi 0, %s179
    %s194 = sphi 0, %s180
    %s198 = sphi 0, %s198
    %s200 = sphi 0, %s198
    %s201 = sphi 0, %s200
    %s215 = sphi 0, %s201
    %s221 = sphi 0, %s223
    %s224 = sphi 0, %s221
    %s225 = sphi 0, %s224
    %s241 = sphi 0, %s225
  $region4: #{_lambda_.4} parent=0 // loop_header_branch
    %20 = sbr.rel (%p18) target = $region8
  $region5: #{_lambda_.4} parent=0 // loop_body
    %s22 = ssub.s32 %s17, 1
    %s23 = ssub.s32 %s17, 2
    %s24 = sadd.s32 %s17, 1
    %s25 = ssub.s32 %s17, %s24
    %p26 = scmp.eq.s32.totalorder %s25, 0
    %s28 = sadd.s32 %s27, 1
    %s29 = scalar_select %p26, %s27, %s28
    %p32 = pneg %p26
    %p33 = scmp.eq.s32.totalorder %s17, 7
    %p34 = por %p32, %p33
    %p35 = scmp.ne.s32.totalorder %s27, %s30
    %p36 = scmp.eq.s32.totalorder %s17, 0
    %p37 = por %p35, %p36
    %p38 = scmp.ne.s32.totalorder %s27, %s30
    %p39 = scmp.eq.s32.totalorder %s22, 7
    %p40 = por %p38, %p39
    %p41 = scmp.ne.s32.totalorder %s30, %s31
    %p42 = scmp.eq.s32.totalorder %s22, 0
    %p43 = por %p41, %p42
    %p44 = scmp.ne.s32.totalorder %s30, %s31
    %p45 = scmp.eq.s32.totalorder %s23, 7
    %p46 = por %p44, %p45
    %p48 = scmp.ne.s32.totalorder %s31, %s47
    %p49 = scmp.eq.s32.totalorder %s23, 0
    %p50 = por %p48, %p49
    %s52 = sadd.s32 %s51, 1
    %p55 = scmp.eq.s32.totalorder %s17, 7
    %p56 = scmp.ne.s32.totalorder %s51, %s53
    %p57 = scmp.eq.s32.totalorder %s17, 0
    %p58 = por %p56, %p57
    %p59 = scmp.ne.s32.totalorder %s51, %s53
    %p60 = scmp.eq.s32.totalorder %s22, 7
    %p61 = por %p59, %p60
    %p62 = scmp.ne.s32.totalorder %s53, %s54
    %p63 = scmp.eq.s32.totalorder %s22, 0
    %p64 = por %p62, %p63
    %p65 = scmp.ne.s32.totalorder %s53, %s54
    %p66 = scmp.eq.s32.totalorder %s23, 7
    %p67 = por %p65, %p66
    %p69 = scmp.ne.s32.totalorder %s54, %s68
    %p70 = scmp.eq.s32.totalorder %s23, 0
    %p71 = por %p69, %p70
    %s73 = sadd.s32 %s72, 1
    %p76 = scmp.eq.s32.totalorder %s17, 7
    %p77 = scmp.ne.s32.totalorder %s72, %s74
    %p78 = scmp.eq.s32.totalorder %s17, 0
    %p79 = por %p77, %p78
    %p80 = scmp.ne.s32.totalorder %s72, %s74
    %p81 = scmp.eq.s32.totalorder %s22, 7
    %p82 = por %p80, %p81
    %p83 = scmp.ne.s32.totalorder %s74, %s75
    %p84 = scmp.eq.s32.totalorder %s22, 0
    %p85 = por %p83, %p84
    %p86 = scmp.ne.s32.totalorder %s74, %s75
    %p87 = scmp.eq.s32.totalorder %s23, 7
    %p88 = por %p86, %p87
    %p90 = scmp.ne.s32.totalorder %s75, %s89
    %p91 = scmp.eq.s32.totalorder %s23, 0
    %p92 = por %p90, %p91
    %s94 = sadd.s32 %s93, 1
    %p97 = scmp.eq.s32.totalorder %s17, 7
    %p98 = scmp.ne.s32.totalorder %s93, %s95
    %p99 = scmp.eq.s32.totalorder %s17, 0
    %p100 = por %p98, %p99
    %p101 = scmp.ne.s32.totalorder %s93, %s95
    %p102 = scmp.eq.s32.totalorder %s22, 7
    %p103 = por %p101, %p102
    %p104 = scmp.ne.s32.totalorder %s95, %s96
    %p105 = scmp.eq.s32.totalorder %s22, 0
    %p106 = por %p104, %p105
    %p107 = scmp.ne.s32.totalorder %s95, %s96
    %p108 = scmp.eq.s32.totalorder %s23, 7
    %p109 = por %p107, %p108
    %p111 = scmp.ne.s32.totalorder %s96, %s110
    %p112 = scmp.eq.s32.totalorder %s23, 0
    %p113 = por %p111, %p112
    %s115 = sadd.s32 %s114, 1
    %p118 = scmp.eq.s32.totalorder %s17, 7
    %p119 = scmp.ne.s32.totalorder %s114, %s116
    %p120 = scmp.eq.s32.totalorder %s17, 0
    %p121 = por %p119, %p120
    %p122 = scmp.ne.s32.totalorder %s114, %s116
    %p123 = scmp.eq.s32.totalorder %s22, 7
    %p124 = por %p122, %p123
    %p125 = scmp.ne.s32.totalorder %s116, %s117
    %p126 = scmp.eq.s32.totalorder %s22, 0
    %p127 = por %p125, %p126
    %p128 = scmp.ne.s32.totalorder %s116, %s117
    %p129 = scmp.eq.s32.totalorder %s23, 7
    %p130 = por %p128, %p129
    %p132 = scmp.ne.s32.totalorder %s117, %s131
    %p133 = scmp.eq.s32.totalorder %s23, 0
    %p134 = por %p132, %p133
    %s136 = sadd.s32 %s135, 1
    %p139 = scmp.eq.s32.totalorder %s17, 7
    %p140 = scmp.ne.s32.totalorder %s135, %s137
    %p141 = scmp.eq.s32.totalorder %s17, 0
    %p142 = por %p140, %p141
    %p143 = scmp.ne.s32.totalorder %s135, %s137
    %p144 = scmp.eq.s32.totalorder %s22, 7
    %p145 = por %p143, %p144
    %p146 = scmp.ne.s32.totalorder %s137, %s138
    %p147 = scmp.eq.s32.totalorder %s22, 0
    %p148 = por %p146, %p147
    %p149 = scmp.ne.s32.totalorder %s137, %s138
    %p150 = scmp.eq.s32.totalorder %s23, 7
    %p151 = por %p149, %p150
    %p153 = scmp.ne.s32.totalorder %s138, %s152
    %p154 = scmp.eq.s32.totalorder %s23, 0
    %p155 = por %p153, %p154
    %s157 = sadd.s32 %s156, 1
    %p160 = scmp.eq.s32.totalorder %s17, 7
    %p161 = scmp.ne.s32.totalorder %s156, %s158
    %p162 = scmp.eq.s32.totalorder %s17, 0
    %p163 = por %p161, %p162
    %p164 = scmp.ne.s32.totalorder %s156, %s158
    %p165 = scmp.eq.s32.totalorder %s22, 7
    %p166 = por %p164, %p165
    %p167 = scmp.ne.s32.totalorder %s158, %s159
    %p168 = scmp.eq.s32.totalorder %s22, 0
    %p169 = por %p167, %p168
    %p170 = scmp.ne.s32.totalorder %s158, %s159
    %p171 = scmp.eq.s32.totalorder %s23, 7
    %p172 = por %p170, %p171
    %p174 = scmp.ne.s32.totalorder %s159, %s173
    %p175 = scmp.eq.s32.totalorder %s23, 0
    %p176 = por %p174, %p175
    %s178 = sadd.s32 %s177, 1
    %p181 = scmp.eq.s32.totalorder %s17, 7
    %p182 = scmp.ne.s32.totalorder %s177, %s179
    %p183 = scmp.eq.s32.totalorder %s17, 0
    %p184 = por %p182, %p183
    %p185 = scmp.ne.s32.totalorder %s177, %s179
    %p186 = scmp.eq.s32.totalorder %s22, 7
    %p187 = por %p185, %p186
    %p188 = scmp.ne.s32.totalorder %s179, %s180
    %p189 = scmp.eq.s32.totalorder %s22, 0
    %p190 = por %p188, %p189
    %p191 = scmp.ne.s32.totalorder %s179, %s180
    %p192 = scmp.eq.s32.totalorder %s23, 7
    %p193 = por %p191, %p192
    %p195 = scmp.ne.s32.totalorder %s180, %s194
    %p196 = scmp.eq.s32.totalorder %s23, 0
    %p197 = por %p195, %p196
    %s199 = sadd.s32 %s198, 1
    %p202 = scmp.eq.s32.totalorder %s17, 7
    %p203 = scmp.ne.s32.totalorder %s198, %s200
    %p204 = scmp.eq.s32.totalorder %s17, 0
    %p205 = por %p203, %p204
    %p206 = scmp.ne.s32.totalorder %s198, %s200
    %p207 = scmp.eq.s32.totalorder %s22, 7
    %p208 = por %p206, %p207
    %p209 = scmp.ne.s32.totalorder %s200, %s201
    %p210 = scmp.eq.s32.totalorder %s22, 0
    %p211 = por %p209, %p210
    %p212 = scmp.ne.s32.totalorder %s200, %s201
    %p213 = scmp.eq.s32.totalorder %s23, 7
    %p214 = por %p212, %p213
    %p216 = scmp.ne.s32.totalorder %s201, %s215
    %p217 = scmp.eq.s32.totalorder %s23, 0
    %p218 = por %p216, %p217
    %s219 = ssub.s32 %s17, %s24
    %p220 = scmp.eq.s32.totalorder %s219, 0
    %s222 = sadd.s32 %s221, 1
    %s223 = scalar_select %p220, %s221, %s222
    %p226 = pneg %p220
    %p227 = scmp.eq.s32.totalorder %s17, 7
    %p228 = por %p226, %p227
    %p229 = scmp.ne.s32.totalorder %s221, %s224
    %p230 = scmp.eq.s32.totalorder %s17, 0
    %p231 = por %p229, %p230
    %p232 = scmp.ne.s32.totalorder %s221, %s224
    %p233 = scmp.eq.s32.totalorder %s22, 7
    %p234 = por %p232, %p233
    %p235 = scmp.ne.s32.totalorder %s224, %s225
    %p236 = scmp.eq.s32.totalorder %s22, 0
    %p237 = por %p235, %p236
    %p238 = scmp.ne.s32.totalorder %s224, %s225
    %p239 = scmp.eq.s32.totalorder %s23, 7
    %p240 = por %p238, %p239
    %p242 = scmp.ne.s32.totalorder %s225, %s241
    %p243 = scmp.eq.s32.totalorder %s23, 0
    %p244 = por %p242, %p243
    %p245 = scmp.le.s32.totalorder 1, %s17
    %p246 = scmp.lt.s32.totalorder %s17, 9
    %p247 = pnand %p245, %p246
    %p248 = pneg %p247
    // Predicated region
    $region9: #{_lambda_.4} parent=5 // pred_check
      _
    $region10: #{_lambda_.4} parent=5 // pred_check_branch
      %250 = sbr.rel (%p247) target = $region12
    $region11: #{_lambda_.4} parent=5 // pred_region
      %s251 = ssub.s32 %s17, 1
      // Predicated region
      $region13: #{_lambda_.4} parent=11 // pred_check
        %p252 = pneg %p64
      $region14: #{_lambda_.4} parent=11 // pred_check_branch
        %254 = sbr.rel (%p252) target = $region16
      $region15: #{_lambda_.4} parent=11 // pred_region
        _
      $region16: #{_lambda_.4} parent=11 // pred_fallthru
        _
      // Predicated region
      $region17: #{_lambda_.4} parent=11 // pred_check
        %p255 = pneg %p85
      $region18: #{_lambda_.4} parent=11 // pred_check_branch
        %257 = sbr.rel (%p255) target = $region20
      $region19: #{_lambda_.4} parent=11 // pred_region
        _
      $region20: #{_lambda_.4} parent=11 // pred_fallthru
        _
      // Predicated region
      $region21: #{_lambda_.4} parent=11 // pred_check
        %p258 = pneg %p106
      $region22: #{_lambda_.4} parent=11 // pred_check_branch
        %260 = sbr.rel (%p258) target = $region24
      $region23: #{_lambda_.4} parent=11 // pred_region
        _
      $region24: #{_lambda_.4} parent=11 // pred_fallthru
        _
      // Predicated region
      $region25: #{_lambda_.4} parent=11 // pred_check
        %p261 = pneg %p127
      $region26: #{_lambda_.4} parent=11 // pred_check_branch
        %263 = sbr.rel (%p261) target = $region28
      $region27: #{_lambda_.4} parent=11 // pred_region
        _
      $region28: #{_lambda_.4} parent=11 // pred_fallthru
        _
      // Predicated region
      $region29: #{_lambda_.4} parent=11 // pred_check
        %p264 = pneg %p148
      $region30: #{_lambda_.4} parent=11 // pred_check_branch
        %266 = sbr.rel (%p264) target = $region32
      $region31: #{_lambda_.4} parent=11 // pred_region
        _
      $region32: #{_lambda_.4} parent=11 // pred_fallthru
        _
      // Predicated region
      $region33: #{_lambda_.4} parent=11 // pred_check
        %p267 = pneg %p169
      $region34: #{_lambda_.4} parent=11 // pred_check_branch
        %269 = sbr.rel (%p267) target = $region36
      $region35: #{_lambda_.4} parent=11 // pred_region
        _
      $region36: #{_lambda_.4} parent=11 // pred_fallthru
        _
      // Predicated region
      $region37: #{_lambda_.4} parent=11 // pred_check
        %p270 = pneg %p190
      $region38: #{_lambda_.4} parent=11 // pred_check_branch
        %272 = sbr.rel (%p270) target = $region40
      $region39: #{_lambda_.4} parent=11 // pred_region
        _
      $region40: #{_lambda_.4} parent=11 // pred_fallthru
        _
      // Predicated region
      $region41: #{_lambda_.4} parent=11 // pred_check
        %p273 = pneg %p211
      $region42: #{_lambda_.4} parent=11 // pred_check_branch
        %275 = sbr.rel (%p273) target = $region44
      $region43: #{_lambda_.4} parent=11 // pred_region
        _
      $region44: #{_lambda_.4} parent=11 // pred_fallthru
        _
    $region12: #{_lambda_.4} parent=5 // pred_fallthru
      _
    %p276 = scmp.lt.s32.totalorder %s17, 8
    // Predicated region
    $region45: #{_lambda_.4} parent=5 // pred_check
      %p277 = pneg %p276
    $region46: #{_lambda_.4} parent=5 // pred_check_branch
      %279 = sbr.rel (%p277) target = $region48
    $region47: #{_lambda_.4} parent=5 // pred_region
      // Predicated region
      $region49: #{_lambda_.4} parent=47 // pred_check
        %p280 = pneg %p37
      $region50: #{_lambda_.4} parent=47 // pred_check_branch
        %282 = sbr.rel (%p280) target = $region52
      $region51: #{_lambda_.4} parent=47 // pred_region
        %s283 = smul.u32 8, %s17
        %p284 = scmp.lt.s32.totalorder %s283, 63
        %s285 = scalar_select %p284, %s283, 63
        %s286 = smul.addr %s285, 4
        %s287 = scalar_lea.vmem %s0, %s286
        %s288 = smul.u32 8, %s17
      $region52: #{_lambda_.4} parent=47 // pred_fallthru
        _
    $region48: #{_lambda_.4} parent=5 // pred_fallthru
      _
    %p289 = scmp.le.s32.totalorder 1, %s17
    %p290 = scmp.lt.s32.totalorder %s17, 9
    %p291 = pnand %p289, %p290
    %p292 = pneg %p291
    // Predicated region
    $region53: #{_lambda_.4} parent=5 // pred_check
      _
    $region54: #{_lambda_.4} parent=5 // pred_check_branch
      %294 = sbr.rel (%p291) target = $region56
    $region55: #{_lambda_.4} parent=5 // pred_region
      %s295 = ssub.s32 %s17, 1
      %s296 = smul.u32 8, %s22
      %p297 = scmp.lt.s32.totalorder %s296, 63
      %s298 = scalar_select %p297, %s296, 63
      %s299 = smul.addr %s298, 4
      %s300 = scalar_lea.vmem %s0, %s299
      %p301 = pneg %p43
      %p302 = pneg %p40
      %p303 = pneg %p64
      %p304 = pneg %p61
      %p305 = pneg %p85
      %p306 = pneg %p82
      %p307 = pneg %p106
      %p308 = pneg %p103
      %p309 = pneg %p127
      %p310 = pneg %p124
      %p311 = pneg %p148
      %p312 = pneg %p145
      %p313 = pneg %p169
      %p314 = pneg %p166
      %p315 = pneg %p190
      %p316 = pneg %p187
      %p317 = pneg %p211
      %p318 = pneg %p208
      %p319 = pneg %p237
      %p320 = pneg %p234
      %s321 = smul.u32 8, %s22
      %p322 = scmp.lt.s32.totalorder %s321, 63
      %s323 = scalar_select %p322, %s321, 63
      %s324 = scalar_lea.vmem %s9, %s323
      %s325 = smul.u32 8, %s22
      %p326 = scmp.lt.s32.totalorder %s325, 63
      %s327 = scalar_select %p326, %s325, 63
      %s328 = smul.addr %s327, 4
      %s329 = scalar_lea.vmem %s0, %s328
      %s330 = smul.u32 8, %s22
      %s331 = smul.u32 8, %s22
      %p332 = scmp.lt.s32.totalorder %s331, 63
      %s333 = scalar_select %p332, %s331, 63
      %s334 = scalar_lea.vmem %s9, %s333
      %s335 = smul.u32 8, %s22
      %v337 = vld [vmem:[%s329] sm:$0x77]
      %v338 = vld [vmem:[%s329 + $0x8] sm:$0x77]
      %v339 = vld [vmem:[%s329 + $0x10] sm:$0x77]
      %v340 = vld [vmem:[%s329 + $0x18] sm:$0x77]
      %v341 = vld [vmem:[%s1] sm:$0xf]
      %v342 = vld [vmem:[%s1 + $0x4] sm:$0xf]
      %v343 = vld [vmem:[%s1 + $0x8] sm:$0xf]
      %v344 = vld [vmem:[%s1 + $0xc] sm:$0xf]
      %v345 = vld [vmem:[%s1 + $0x10] sm:$0xf]
      %v346 = vld [vmem:[%s1 + $0x14] sm:$0xf]
      %v347 = vld [vmem:[%s1 + $0x18] sm:$0xf]
      %v348 = vld [vmem:[%s1 + $0x1c] sm:$0xf]
      %353 = vst [vmem:[#allocation1] ss:$2 sm:$0xff] %v337
      %s354 = scalar_lea.vmem [#allocation1], 16
      %355 = vst [vmem:[%s354] ss:$2 sm:$0xff] %v338
      %s356 = scalar_lea.vmem [#allocation1], 32
      %357 = vst [vmem:[%s356] ss:$2 sm:$0xff] %v339
      %s358 = scalar_lea.vmem [#allocation1], 48
      %359 = vst [vmem:[%s358] ss:$2 sm:$0xff] %v340
      %v360 = vld.sshfl [vmem:[#allocation1] sm:$0xff pattern:$0x75316420]
      %v361 = vld.sshfl [vmem:[#allocation1 + $0x8] sm:$0xff pattern:$0x75316420]
      %v362 = vld.sshfl [vmem:[#allocation1 + $0x10] sm:$0xff pattern:$0x75316420]
      %v363 = vld.sshfl [vmem:[#allocation1 + $0x18] sm:$0xff pattern:$0x75316420]
      %v364 = vld.sshfl [vmem:[#allocation1 + $0x20] sm:$0xff pattern:$0x75316420]
      %v365 = vld.sshfl [vmem:[#allocation1 + $0x28] sm:$0xff pattern:$0x75316420]
      %v366 = vld.sshfl [vmem:[#allocation1 + $0x30] sm:$0xff pattern:$0x75316420]
      %v367 = vld.sshfl [vmem:[#allocation1 + $0x38] sm:$0xff pattern:$0x75316420]
      %v376 = vpack.c.bf16 %v360, %v360
      %v377 = vpack.c.bf16 %v361, %v361
      %v378 = vpack.c.bf16 %v362, %v362
      %v379 = vpack.c.bf16 %v363, %v363
      %v380 = vpack.c.bf16 %v364, %v364
      %v381 = vpack.c.bf16 %v365, %v365
      %v382 = vpack.c.bf16 %v366, %v366
      %v383 = vpack.c.bf16 %v367, %v367
      %v384 = vld [vmem:[%s2] sm:$0xff]
      %v385 = vld [vmem:[%s2 + $0x8] sm:$0xff]
      %v386 = vld [vmem:[%s2 + $0x10] sm:$0xff]
      %v387 = vld [vmem:[%s2 + $0x18] sm:$0xff]
      %v388 = vld [vmem:[%s2 + $0x20] sm:$0xff]
      %v389 = vld [vmem:[%s2 + $0x28] sm:$0xff]
      %v390 = vld [vmem:[%s2 + $0x30] sm:$0xff]
      %v391 = vld [vmem:[%s2 + $0x38] sm:$0xff]
      %393 = vset.pattern.permute.xlu0 0
      %394 = vperm.xlu0 %393, %v384
      %v395 = vpop.permute.xlu0 %394
      %398 = vset.pattern.permute.xlu0 0
      %399 = vperm.xlu0 %398, %v385
      %v400 = vpop.permute.xlu0 %399
      %403 = vset.pattern.permute.xlu0 0
      %404 = vperm.xlu0 %403, %v386
      %v405 = vpop.permute.xlu0 %404
      %408 = vset.pattern.permute.xlu0 0
      %409 = vperm.xlu0 %408, %v387
      %v410 = vpop.permute.xlu0 %409
      %413 = vset.pattern.permute.xlu0 0
      %414 = vperm.xlu0 %413, %v388
      %v415 = vpop.permute.xlu0 %414
      %418 = vset.pattern.permute.xlu0 0
      %419 = vperm.xlu0 %418, %v389
      %v420 = vpop.permute.xlu0 %419
      %423 = vset.pattern.permute.xlu0 0
      %424 = vperm.xlu0 %423, %v390
      %v425 = vpop.permute.xlu0 %424
      %428 = vset.pattern.permute.xlu0 0
      %429 = vperm.xlu0 %428, %v391
      %v430 = vpop.permute.xlu0 %429
      %v440 = vunpack.c.l.b16 %v341
      %v441 = vunpack.c.l.b16 %v342
      %v442 = vunpack.c.l.b16 %v343
      %v443 = vunpack.c.l.b16 %v344
      %v444 = vunpack.c.l.b16 %v345
      %v445 = vunpack.c.l.b16 %v346
      %v446 = vunpack.c.l.b16 %v347
      %v447 = vunpack.c.l.b16 %v348
      %v448 = vpack.c.b16 %v441, %v440
      %v449 = vpack.c.b16 %v443, %v442
      %v450 = vpack.c.b16 %v445, %v444
      %v451 = vpack.c.b16 %v447, %v446
      %vm452 = vcmask 23552
      %v454 = vsel %vm452, %v448, 0
      %v457 = vsel %vm452, %v449, 0
      %v460 = vsel %vm452, %v450, 0
      %v463 = vsel %vm452, %v451, 0
      %vm465 = vcmask 1040384
      %vm466 = vcmask 1041408
      %v467 = vsel %vm465, 4294967295, 65535
      %v468 = vsel %vm466, %v467, 0
      %v470 = vand.u32 %v376, %v468
      %v473 = vand.u32 %v377, %v468
      %v476 = vand.u32 %v378, %v468
      %v479 = vand.u32 %v379, %v468
      %v482 = vand.u32 %v380, %v468
      %v485 = vand.u32 %v381, %v468
      %v488 = vand.u32 %v382, %v468
      %v491 = vand.u32 %v383, %v468
      %493 = vmatpush.bf16.msra.mxu0 0
      %494 = vmatpush.bf16.msra.mxu0 0
      %495 = vmatpush.bf16.msra.mxu0 0
      %496 = vmatpush.bf16.msra.mxu0 0
      %497 = vmatpush.bf16.msra.mxu0 0
      %498 = vmatpush.bf16.msra.mxu0 0
      %499 = vmatpush.bf16.msra.mxu0 0
      %500 = vmatpush.bf16.msra.mxu0 %v470
      %501 = vmatmul.bf16.gmra.mxu0 %v454
      %v502 = vpop.f32.mrf.mxu0
      %v503 = vadd.f32 %v395, %v502
      %v504 = vpop.f32.mrf.mxu0
      %v505 = vadd.f32 %v400, %v504
      %506 = vmatmul.bf16.gmra.mxu0 %v457
      %v507 = vpop.f32.mrf.mxu0
      %v508 = vadd.f32 %v405, %v507
      %v509 = vpop.f32.mrf.mxu0
      %v510 = vadd.f32 %v410, %v509
      %511 = vmatmul.bf16.gmra.mxu0 %v460
      %v512 = vpop.f32.mrf.mxu0
      %v513 = vadd.f32 %v415, %v512
      %v514 = vpop.f32.mrf.mxu0
      %v515 = vadd.f32 %v420, %v514
      %516 = vmatmul.bf16.gmra.mxu0 %v463
      %v517 = vpop.f32.mrf.mxu0
      %v518 = vadd.f32 %v425, %v517
      %v519 = vpop.f32.mrf.mxu0
      %v520 = vadd.f32 %v430, %v519
      %521 = vdwg.mxu0
      %522 = vmatpush.bf16.msra.mxu0 0
      %523 = vmatpush.bf16.msra.mxu0 0
      %524 = vmatpush.bf16.msra.mxu0 0
      %525 = vmatpush.bf16.msra.mxu0 0
      %526 = vmatpush.bf16.msra.mxu0 0
      %527 = vmatpush.bf16.msra.mxu0 0
      %528 = vmatpush.bf16.msra.mxu0 0
      %529 = vmatpush.bf16.msra.mxu0 %v473
      %530 = vmatmul.bf16.gmra.mxu0 %v454
      %v531 = vpop.f32.mrf.mxu0
      %v532 = vadd.f32 %v395, %v531
      %v533 = vpop.f32.mrf.mxu0
      %v534 = vadd.f32 %v400, %v533
      %535 = vmatmul.bf16.gmra.mxu0 %v457
      %v536 = vpop.f32.mrf.mxu0
      %v537 = vadd.f32 %v405, %v536
      %v538 = vpop.f32.mrf.mxu0
      %v539 = vadd.f32 %v410, %v538
      %540 = vmatmul.bf16.gmra.mxu0 %v460
      %v541 = vpop.f32.mrf.mxu0
      %v542 = vadd.f32 %v415, %v541
      %v543 = vpop.f32.mrf.mxu0
      %v544 = vadd.f32 %v420, %v543
      %545 = vmatmul.bf16.gmra.mxu0 %v463
      %v546 = vpop.f32.mrf.mxu0
      %v547 = vadd.f32 %v425, %v546
      %v548 = vpop.f32.mrf.mxu0
      %v549 = vadd.f32 %v430, %v548
      %550 = vdwg.mxu0
      %551 = vmatpush.bf16.msra.mxu0 0
      %552 = vmatpush.bf16.msra.mxu0 0
      %553 = vmatpush.bf16.msra.mxu0 0
      %554 = vmatpush.bf16.msra.mxu0 0
      %555 = vmatpush.bf16.msra.mxu0 0
      %556 = vmatpush.bf16.msra.mxu0 0
      %557 = vmatpush.bf16.msra.mxu0 0
      %558 = vmatpush.bf16.msra.mxu0 %v476
      %559 = vmatmul.bf16.gmra.mxu0 %v454
      %v560 = vpop.f32.mrf.mxu0
      %v561 = vadd.f32 %v395, %v560
      %v562 = vpop.f32.mrf.mxu0
      %v563 = vadd.f32 %v400, %v562
      %564 = vmatmul.bf16.gmra.mxu0 %v457
      %v565 = vpop.f32.mrf.mxu0
      %v566 = vadd.f32 %v405, %v565
      %v567 = vpop.f32.mrf.mxu0
      %v568 = vadd.f32 %v410, %v567
      %569 = vmatmul.bf16.gmra.mxu0 %v460
      %v570 = vpop.f32.mrf.mxu0
      %v571 = vadd.f32 %v415, %v570
      %v572 = vpop.f32.mrf.mxu0
      %v573 = vadd.f32 %v420, %v572
      %574 = vmatmul.bf16.gmra.mxu0 %v463
      %v575 = vpop.f32.mrf.mxu0
      %v576 = vadd.f32 %v425, %v575
      %v577 = vpop.f32.mrf.mxu0
      %v578 = vadd.f32 %v430, %v577
      %579 = vdwg.mxu0
      %580 = vmatpush.bf16.msra.mxu0 0
      %581 = vmatpush.bf16.msra.mxu0 0
      %582 = vmatpush.bf16.msra.mxu0 0
      %583 = vmatpush.bf16.msra.mxu0 0
      %584 = vmatpush.bf16.msra.mxu0 0
      %585 = vmatpush.bf16.msra.mxu0 0
      %586 = vmatpush.bf16.msra.mxu0 0
      %587 = vmatpush.bf16.msra.mxu0 %v479
      %588 = vmatmul.bf16.gmra.mxu0 %v454
      %v589 = vpop.f32.mrf.mxu0
      %v590 = vadd.f32 %v395, %v589
      %v591 = vpop.f32.mrf.mxu0
      %v592 = vadd.f32 %v400, %v591
      %593 = vmatmul.bf16.gmra.mxu0 %v457
      %v594 = vpop.f32.mrf.mxu0
      %v595 = vadd.f32 %v405, %v594
      %v596 = vpop.f32.mrf.mxu0
      %v597 = vadd.f32 %v410, %v596
      %598 = vmatmul.bf16.gmra.mxu0 %v460
      %v599 = vpop.f32.mrf.mxu0
      %v600 = vadd.f32 %v415, %v599
      %v601 = vpop.f32.mrf.mxu0
      %v602 = vadd.f32 %v420, %v601
      %603 = vmatmul.bf16.gmra.mxu0 %v463
      %v604 = vpop.f32.mrf.mxu0
      %v605 = vadd.f32 %v425, %v604
      %v606 = vpop.f32.mrf.mxu0
      %v607 = vadd.f32 %v430, %v606
      %608 = vdwg.mxu0
      %609 = vmatpush.bf16.msra.mxu0 0
      %610 = vmatpush.bf16.msra.mxu0 0
      %611 = vmatpush.bf16.msra.mxu0 0
      %612 = vmatpush.bf16.msra.mxu0 0
      %613 = vmatpush.bf16.msra.mxu0 0
      %614 = vmatpush.bf16.msra.mxu0 0
      %615 = vmatpush.bf16.msra.mxu0 0
      %616 = vmatpush.bf16.msra.mxu0 %v482
      %617 = vmatmul.bf16.gmra.mxu0 %v454
      %v618 = vpop.f32.mrf.mxu0
      %v619 = vadd.f32 %v395, %v618
      %v620 = vpop.f32.mrf.mxu0
      %v621 = vadd.f32 %v400, %v620
      %622 = vmatmul.bf16.gmra.mxu0 %v457
      %v623 = vpop.f32.mrf.mxu0
      %v624 = vadd.f32 %v405, %v623
      %v625 = vpop.f32.mrf.mxu0
      %v626 = vadd.f32 %v410, %v625
      %627 = vmatmul.bf16.gmra.mxu0 %v460
      %v628 = vpop.f32.mrf.mxu0
      %v629 = vadd.f32 %v415, %v628
      %v630 = vpop.f32.mrf.mxu0
      %v631 = vadd.f32 %v420, %v630
      %632 = vmatmul.bf16.gmra.mxu0 %v463
      %v633 = vpop.f32.mrf.mxu0
      %v634 = vadd.f32 %v425, %v633
      %v635 = vpop.f32.mrf.mxu0
      %v636 = vadd.f32 %v430, %v635
      %637 = vdwg.mxu0
      %638 = vmatpush.bf16.msra.mxu0 0
      %639 = vmatpush.bf16.msra.mxu0 0
      %640 = vmatpush.bf16.msra.mxu0 0
      %641 = vmatpush.bf16.msra.mxu0 0
      %642 = vmatpush.bf16.msra.mxu0 0
      %643 = vmatpush.bf16.msra.mxu0 0
      %644 = vmatpush.bf16.msra.mxu0 0
      %645 = vmatpush.bf16.msra.mxu0 %v485
      %646 = vmatmul.bf16.gmra.mxu0 %v454
      %v647 = vpop.f32.mrf.mxu0
      %v648 = vadd.f32 %v395, %v647
      %v649 = vpop.f32.mrf.mxu0
      %v650 = vadd.f32 %v400, %v649
      %651 = vmatmul.bf16.gmra.mxu0 %v457
      %v652 = vpop.f32.mrf.mxu0
      %v653 = vadd.f32 %v405, %v652
      %v654 = vpop.f32.mrf.mxu0
      %v655 = vadd.f32 %v410, %v654
      %656 = vmatmul.bf16.gmra.mxu0 %v460
      %v657 = vpop.f32.mrf.mxu0
      %v658 = vadd.f32 %v415, %v657
      %v659 = vpop.f32.mrf.mxu0
      %v660 = vadd.f32 %v420, %v659
      %661 = vmatmul.bf16.gmra.mxu0 %v463
      %v662 = vpop.f32.mrf.mxu0
      %v663 = vadd.f32 %v425, %v662
      %v664 = vpop.f32.mrf.mxu0
      %v665 = vadd.f32 %v430, %v664
      %666 = vdwg.mxu0
      %667 = vmatpush.bf16.msra.mxu0 0
      %668 = vmatpush.bf16.msra.mxu0 0
      %669 = vmatpush.bf16.msra.mxu0 0
      %670 = vmatpush.bf16.msra.mxu0 0
      %671 = vmatpush.bf16.msra.mxu0 0
      %672 = vmatpush.bf16.msra.mxu0 0
      %673 = vmatpush.bf16.msra.mxu0 0
      %674 = vmatpush.bf16.msra.mxu0 %v488
      %675 = vmatmul.bf16.gmra.mxu0 %v454
      %v676 = vpop.f32.mrf.mxu0
      %v677 = vadd.f32 %v395, %v676
      %v678 = vpop.f32.mrf.mxu0
      %v679 = vadd.f32 %v400, %v678
      %680 = vmatmul.bf16.gmra.mxu0 %v457
      %v681 = vpop.f32.mrf.mxu0
      %v682 = vadd.f32 %v405, %v681
      %v683 = vpop.f32.mrf.mxu0
      %v684 = vadd.f32 %v410, %v683
      %685 = vmatmul.bf16.gmra.mxu0 %v460
      %v686 = vpop.f32.mrf.mxu0
      %v687 = vadd.f32 %v415, %v686
      %v688 = vpop.f32.mrf.mxu0
      %v689 = vadd.f32 %v420, %v688
      %690 = vmatmul.bf16.gmra.mxu0 %v463
      %v691 = vpop.f32.mrf.mxu0
      %v692 = vadd.f32 %v425, %v691
      %v693 = vpop.f32.mrf.mxu0
      %v694 = vadd.f32 %v430, %v693
      %695 = vdwg.mxu0
      %696 = vmatpush.bf16.msra.mxu0 0
      %697 = vmatpush.bf16.msra.mxu0 0
      %698 = vmatpush.bf16.msra.mxu0 0
      %699 = vmatpush.bf16.msra.mxu0 0
      %700 = vmatpush.bf16.msra.mxu0 0
      %701 = vmatpush.bf16.msra.mxu0 0
      %702 = vmatpush.bf16.msra.mxu0 0
      %703 = vmatpush.bf16.msra.mxu0 %v491
      %704 = vmatmul.bf16.gmra.mxu0 %v454
      %v705 = vpop.f32.mrf.mxu0
      %v706 = vadd.f32 %v395, %v705
      %v707 = vpop.f32.mrf.mxu0
      %v708 = vadd.f32 %v400, %v707
      %709 = vmatmul.bf16.gmra.mxu0 %v457
      %v710 = vpop.f32.mrf.mxu0
      %v711 = vadd.f32 %v405, %v710
      %v712 = vpop.f32.mrf.mxu0
      %v713 = vadd.f32 %v410, %v712
      %714 = vmatmul.bf16.gmra.mxu0 %v460
      %v715 = vpop.f32.mrf.mxu0
      %v716 = vadd.f32 %v415, %v715
      %v717 = vpop.f32.mrf.mxu0
      %v718 = vadd.f32 %v420, %v717
      %719 = vmatmul.bf16.gmra.mxu0 %v463
      %v720 = vpop.f32.mrf.mxu0
      %v721 = vadd.f32 %v425, %v720
      %v722 = vpop.f32.mrf.mxu0
      %v723 = vadd.f32 %v430, %v722
      %724 = vdwg.mxu0
      %v725 = vmul.f32 %v503, 100.0
      %v726 = vmul.f32 %v532, 100.0
      %v727 = vmul.f32 %v561, 100.0
      %v728 = vmul.f32 %v590, 100.0
      %v729 = vmul.f32 %v619, 100.0
      %v730 = vmul.f32 %v648, 100.0
      %v731 = vmul.f32 %v677, 100.0
      %v732 = vmul.f32 %v706, 100.0
      %v733 = vmul.f32 %v505, 100.0
      %v734 = vmul.f32 %v534, 100.0
      %v735 = vmul.f32 %v563, 100.0
      %v736 = vmul.f32 %v592, 100.0
      %v737 = vmul.f32 %v621, 100.0
      %v738 = vmul.f32 %v650, 100.0
      %v739 = vmul.f32 %v679, 100.0
      %v740 = vmul.f32 %v708, 100.0
      %v741 = vmul.f32 %v508, 100.0
      %v742 = vmul.f32 %v537, 100.0
      %v743 = vmul.f32 %v566, 100.0
      %v744 = vmul.f32 %v595, 100.0
      %v745 = vmul.f32 %v624, 100.0
      %v746 = vmul.f32 %v653, 100.0
      %v747 = vmul.f32 %v682, 100.0
      %v748 = vmul.f32 %v711, 100.0
      %v749 = vmul.f32 %v510, 100.0
      %v750 = vmul.f32 %v539, 100.0
      %v751 = vmul.f32 %v568, 100.0
      %v752 = vmul.f32 %v597, 100.0
      %v753 = vmul.f32 %v626, 100.0
      %v754 = vmul.f32 %v655, 100.0
      %v755 = vmul.f32 %v684, 100.0
      %v756 = vmul.f32 %v713, 100.0
      %v757 = vmul.f32 %v513, 100.0
      %v758 = vmul.f32 %v542, 100.0
      %v759 = vmul.f32 %v571, 100.0
      %v760 = vmul.f32 %v600, 100.0
      %v761 = vmul.f32 %v629, 100.0
      %v762 = vmul.f32 %v658, 100.0
      %v763 = vmul.f32 %v687, 100.0
      %v764 = vmul.f32 %v716, 100.0
      %v765 = vmul.f32 %v515, 100.0
      %v766 = vmul.f32 %v544, 100.0
      %v767 = vmul.f32 %v573, 100.0
      %v768 = vmul.f32 %v602, 100.0
      %v769 = vmul.f32 %v631, 100.0
      %v770 = vmul.f32 %v660, 100.0
      %v771 = vmul.f32 %v689, 100.0
      %v772 = vmul.f32 %v718, 100.0
      %v773 = vmul.f32 %v518, 100.0
      %v774 = vmul.f32 %v547, 100.0
      %v775 = vmul.f32 %v576, 100.0
      %v776 = vmul.f32 %v605, 100.0
      %v777 = vmul.f32 %v634, 100.0
      %v778 = vmul.f32 %v663, 100.0
      %v779 = vmul.f32 %v692, 100.0
      %v780 = vmul.f32 %v721, 100.0
      %v781 = vmul.f32 %v520, 100.0
      %v782 = vmul.f32 %v549, 100.0
      %v783 = vmul.f32 %v578, 100.0
      %v784 = vmul.f32 %v607, 100.0
      %v785 = vmul.f32 %v636, 100.0
      %v786 = vmul.f32 %v665, 100.0
      %v787 = vmul.f32 %v694, 100.0
      %v788 = vmul.f32 %v723, 100.0
      %v789 = vmin.f32 %v725, 20.0
      %v790 = vmin.f32 %v726, 20.0
      %v791 = vmin.f32 %v727, 20.0
      %v792 = vmin.f32 %v728, 20.0
      %v793 = vmin.f32 %v729, 20.0
      %v794 = vmin.f32 %v730, 20.0
      %v795 = vmin.f32 %v731, 20.0
      %v796 = vmin.f32 %v732, 20.0
      %v797 = vmin.f32 %v733, 20.0
      %v798 = vmin.f32 %v734, 20.0
      %v799 = vmin.f32 %v735, 20.0
      %v800 = vmin.f32 %v736, 20.0
      %v801 = vmin.f32 %v737, 20.0
      %v802 = vmin.f32 %v738, 20.0
      %v803 = vmin.f32 %v739, 20.0
      %v804 = vmin.f32 %v740, 20.0
      %v805 = vmin.f32 %v741, 20.0
      %v806 = vmin.f32 %v742, 20.0
      %v807 = vmin.f32 %v743, 20.0
      %v808 = vmin.f32 %v744, 20.0
      %v809 = vmin.f32 %v745, 20.0
      %v810 = vmin.f32 %v746, 20.0
      %v811 = vmin.f32 %v747, 20.0
      %v812 = vmin.f32 %v748, 20.0
      %v813 = vmin.f32 %v749, 20.0
      %v814 = vmin.f32 %v750, 20.0
      %v815 = vmin.f32 %v751, 20.0
      %v816 = vmin.f32 %v752, 20.0
      %v817 = vmin.f32 %v753, 20.0
      %v818 = vmin.f32 %v754, 20.0
      %v819 = vmin.f32 %v755, 20.0
      %v820 = vmin.f32 %v756, 20.0
      %v821 = vmin.f32 %v757, 20.0
      %v822 = vmin.f32 %v758, 20.0
      %v823 = vmin.f32 %v759, 20.0
      %v824 = vmin.f32 %v760, 20.0
      %v825 = vmin.f32 %v761, 20.0
      %v826 = vmin.f32 %v762, 20.0
      %v827 = vmin.f32 %v763, 20.0
      %v828 = vmin.f32 %v764, 20.0
      %v829 = vmin.f32 %v765, 20.0
      %v830 = vmin.f32 %v766, 20.0
      %v831 = vmin.f32 %v767, 20.0
      %v832 = vmin.f32 %v768, 20.0
      %v833 = vmin.f32 %v769, 20.0
      %v834 = vmin.f32 %v770, 20.0
      %v835 = vmin.f32 %v771, 20.0
      %v836 = vmin.f32 %v772, 20.0
      %v837 = vmin.f32 %v773, 20.0
      %v838 = vmin.f32 %v774, 20.0
      %v839 = vmin.f32 %v775, 20.0
      %v840 = vmin.f32 %v776, 20.0
      %v841 = vmin.f32 %v777, 20.0
      %v842 = vmin.f32 %v778, 20.0
      %v843 = vmin.f32 %v779, 20.0
      %v844 = vmin.f32 %v780, 20.0
      %v845 = vmin.f32 %v781, 20.0
      %v846 = vmin.f32 %v782, 20.0
      %v847 = vmin.f32 %v783, 20.0
      %v848 = vmin.f32 %v784, 20.0
      %v849 = vmin.f32 %v785, 20.0
      %v850 = vmin.f32 %v786, 20.0
      %v851 = vmin.f32 %v787, 20.0
      %v852 = vmin.f32 %v788, 20.0
      %v853 = vmul.f32 %v789, 1.442695
      %v854 = vpow.pop %v853
      %v855 = vmul.f32 %v790, 1.442695
      %v856 = vpow.pop %v855
      %v857 = vmul.f32 %v791, 1.442695
      %v858 = vpow.pop %v857
      %v859 = vmul.f32 %v792, 1.442695
      %v860 = vpow.pop %v859
      %v861 = vmul.f32 %v793, 1.442695
      %v862 = vpow.pop %v861
      %v863 = vmul.f32 %v794, 1.442695
      %v864 = vpow.pop %v863
      %v865 = vmul.f32 %v795, 1.442695
      %v866 = vpow.pop %v865
      %v867 = vmul.f32 %v796, 1.442695
      %v868 = vpow.pop %v867
      %v869 = vmul.f32 %v797, 1.442695
      %v870 = vpow.pop %v869
      %v871 = vmul.f32 %v798, 1.442695
      %v872 = vpow.pop %v871
      %v873 = vmul.f32 %v799, 1.442695
      %v874 = vpow.pop %v873
      %v875 = vmul.f32 %v800, 1.442695
      %v876 = vpow.pop %v875
      %v877 = vmul.f32 %v801, 1.442695
      %v878 = vpow.pop %v877
      %v879 = vmul.f32 %v802, 1.442695
      %v880 = vpow.pop %v879
      %v881 = vmul.f32 %v803, 1.442695
      %v882 = vpow.pop %v881
      %v883 = vmul.f32 %v804, 1.442695
      %v884 = vpow.pop %v883
      %v885 = vmul.f32 %v805, 1.442695
      %v886 = vpow.pop %v885
      %v887 = vmul.f32 %v806, 1.442695
      %v888 = vpow.pop %v887
      %v889 = vmul.f32 %v807, 1.442695
      %v890 = vpow.pop %v889
      %v891 = vmul.f32 %v808, 1.442695
      %v892 = vpow.pop %v891
      %v893 = vmul.f32 %v809, 1.442695
      %v894 = vpow.pop %v893
      %v895 = vmul.f32 %v810, 1.442695
      %v896 = vpow.pop %v895
      %v897 = vmul.f32 %v811, 1.442695
      %v898 = vpow.pop %v897
      %v899 = vmul.f32 %v812, 1.442695
      %v900 = vpow.pop %v899
      %v901 = vmul.f32 %v813, 1.442695
      %v902 = vpow.pop %v901
      %v903 = vmul.f32 %v814, 1.442695
      %v904 = vpow.pop %v903
      %v905 = vmul.f32 %v815, 1.442695
      %v906 = vpow.pop %v905
      %v907 = vmul.f32 %v816, 1.442695
      %v908 = vpow.pop %v907
      %v909 = vmul.f32 %v817, 1.442695
      %v910 = vpow.pop %v909
      %v911 = vmul.f32 %v818, 1.442695
      %v912 = vpow.pop %v911
      %v913 = vmul.f32 %v819, 1.442695
      %v914 = vpow.pop %v913
      %v915 = vmul.f32 %v820, 1.442695
      %v916 = vpow.pop %v915
      %v917 = vmul.f32 %v821, 1.442695
      %v918 = vpow.pop %v917
      %v919 = vmul.f32 %v822, 1.442695
      %v920 = vpow.pop %v919
      %v921 = vmul.f32 %v823, 1.442695
      %v922 = vpow.pop %v921
      %v923 = vmul.f32 %v824, 1.442695
      %v924 = vpow.pop %v923
      %v925 = vmul.f32 %v825, 1.442695
      %v926 = vpow.pop %v925
      %v927 = vmul.f32 %v826, 1.442695
      %v928 = vpow.pop %v927
      %v929 = vmul.f32 %v827, 1.442695
      %v930 = vpow.pop %v929
      %v931 = vmul.f32 %v828, 1.442695
      %v932 = vpow.pop %v931
      %v933 = vmul.f32 %v829, 1.442695
      %v934 = vpow.pop %v933
      %v935 = vmul.f32 %v830, 1.442695
      %v936 = vpow.pop %v935
      %v937 = vmul.f32 %v831, 1.442695
      %v938 = vpow.pop %v937
      %v939 = vmul.f32 %v832, 1.442695
      %v940 = vpow.pop %v939
      %v941 = vmul.f32 %v833, 1.442695
      %v942 = vpow.pop %v941
      %v943 = vmul.f32 %v834, 1.442695
      %v944 = vpow.pop %v943
      %v945 = vmul.f32 %v835, 1.442695
      %v946 = vpow.pop %v945
      %v947 = vmul.f32 %v836, 1.442695
      %v948 = vpow.pop %v947
      %v949 = vmul.f32 %v837, 1.442695
      %v950 = vpow.pop %v949
      %v951 = vmul.f32 %v838, 1.442695
      %v952 = vpow.pop %v951
      %v953 = vmul.f32 %v839, 1.442695
      %v954 = vpow.pop %v953
      %v955 = vmul.f32 %v840, 1.442695
      %v956 = vpow.pop %v955
      %v957 = vmul.f32 %v841, 1.442695
      %v958 = vpow.pop %v957
      %v959 = vmul.f32 %v842, 1.442695
      %v960 = vpow.pop %v959
      %v961 = vmul.f32 %v843, 1.442695
      %v962 = vpow.pop %v961
      %v963 = vmul.f32 %v844, 1.442695
      %v964 = vpow.pop %v963
      %v965 = vmul.f32 %v845, 1.442695
      %v966 = vpow.pop %v965
      %v967 = vmul.f32 %v846, 1.442695
      %v968 = vpow.pop %v967
      %v969 = vmul.f32 %v847, 1.442695
      %v970 = vpow.pop %v969
      %v971 = vmul.f32 %v848, 1.442695
      %v972 = vpow.pop %v971
      %v973 = vmul.f32 %v849, 1.442695
      %v974 = vpow.pop %v973
      %v975 = vmul.f32 %v850, 1.442695
      %v976 = vpow.pop %v975
      %v977 = vmul.f32 %v851, 1.442695
      %v978 = vpow.pop %v977
      %v979 = vmul.f32 %v852, 1.442695
      %v980 = vpow.pop %v979
      %vm981 = vcmp.gt.f32.partialorder %v725, 20.0
      %vm982 = vcmp.gt.f32.partialorder %v726, 20.0
      %vm983 = vcmp.gt.f32.partialorder %v727, 20.0
      %vm984 = vcmp.gt.f32.partialorder %v728, 20.0
      %vm985 = vcmp.gt.f32.partialorder %v729, 20.0
      %vm986 = vcmp.gt.f32.partialorder %v730, 20.0
      %vm987 = vcmp.gt.f32.partialorder %v731, 20.0
      %vm988 = vcmp.gt.f32.partialorder %v732, 20.0
      %vm989 = vcmp.gt.f32.partialorder %v733, 20.0
      %vm990 = vcmp.gt.f32.partialorder %v734, 20.0
      %vm991 = vcmp.gt.f32.partialorder %v735, 20.0
      %vm992 = vcmp.gt.f32.partialorder %v736, 20.0
      %vm993 = vcmp.gt.f32.partialorder %v737, 20.0
      %vm994 = vcmp.gt.f32.partialorder %v738, 20.0
      %vm995 = vcmp.gt.f32.partialorder %v739, 20.0
      %vm996 = vcmp.gt.f32.partialorder %v740, 20.0
      %vm997 = vcmp.gt.f32.partialorder %v741, 20.0
      %vm998 = vcmp.gt.f32.partialorder %v742, 20.0
      %vm999 = vcmp.gt.f32.partialorder %v743, 20.0
      %vm1000 = vcmp.gt.f32.partialorder %v744, 20.0
      %vm1001 = vcmp.gt.f32.partialorder %v745, 20.0
      %vm1002 = vcmp.gt.f32.partialorder %v746, 20.0
      %vm1003 = vcmp.gt.f32.partialorder %v747, 20.0
      %vm1004 = vcmp.gt.f32.partialorder %v748, 20.0
      %vm1005 = vcmp.gt.f32.partialorder %v749, 20.0
      %vm1006 = vcmp.gt.f32.partialorder %v750, 20.0
      %vm1007 = vcmp.gt.f32.partialorder %v751, 20.0
      %vm1008 = vcmp.gt.f32.partialorder %v752, 20.0
      %vm1009 = vcmp.gt.f32.partialorder %v753, 20.0
      %vm1010 = vcmp.gt.f32.partialorder %v754, 20.0
      %vm1011 = vcmp.gt.f32.partialorder %v755, 20.0
      %vm1012 = vcmp.gt.f32.partialorder %v756, 20.0
      %vm1013 = vcmp.gt.f32.partialorder %v757, 20.0
      %vm1014 = vcmp.gt.f32.partialorder %v758, 20.0
      %vm1015 = vcmp.gt.f32.partialorder %v759, 20.0
      %vm1016 = vcmp.gt.f32.partialorder %v760, 20.0
      %vm1017 = vcmp.gt.f32.partialorder %v761, 20.0
      %vm1018 = vcmp.gt.f32.partialorder %v762, 20.0
      %vm1019 = vcmp.gt.f32.partialorder %v763, 20.0
      %vm1020 = vcmp.gt.f32.partialorder %v764, 20.0
      %vm1021 = vcmp.gt.f32.partialorder %v765, 20.0
      %vm1022 = vcmp.gt.f32.partialorder %v766, 20.0
      %vm1023 = vcmp.gt.f32.partialorder %v767, 20.0
      %vm1024 = vcmp.gt.f32.partialorder %v768, 20.0
      %vm1025 = vcmp.gt.f32.partialorder %v769, 20.0
      %vm1026 = vcmp.gt.f32.partialorder %v770, 20.0
      %vm1027 = vcmp.gt.f32.partialorder %v771, 20.0
      %vm1028 = vcmp.gt.f32.partialorder %v772, 20.0
      %vm1029 = vcmp.gt.f32.partialorder %v773, 20.0
      %vm1030 = vcmp.gt.f32.partialorder %v774, 20.0
      %vm1031 = vcmp.gt.f32.partialorder %v775, 20.0
      %vm1032 = vcmp.gt.f32.partialorder %v776, 20.0
      %vm1033 = vcmp.gt.f32.partialorder %v777, 20.0
      %vm1034 = vcmp.gt.f32.partialorder %v778, 20.0
      %vm1035 = vcmp.gt.f32.partialorder %v779, 20.0
      %vm1036 = vcmp.gt.f32.partialorder %v780, 20.0
      %vm1037 = vcmp.gt.f32.partialorder %v781, 20.0
      %vm1038 = vcmp.gt.f32.partialorder %v782, 20.0
      %vm1039 = vcmp.gt.f32.partialorder %v783, 20.0
      %vm1040 = vcmp.gt.f32.partialorder %v784, 20.0
      %vm1041 = vcmp.gt.f32.partialorder %v785, 20.0
      %vm1042 = vcmp.gt.f32.partialorder %v786, 20.0
      %vm1043 = vcmp.gt.f32.partialorder %v787, 20.0
      %vm1044 = vcmp.gt.f32.partialorder %v788, 20.0
      %v1045 = vadd.f32 %v854, 1.0
      %v1046 = vadd.f32 %v856, 1.0
      %v1047 = vadd.f32 %v858, 1.0
      %v1048 = vadd.f32 %v860, 1.0
      %v1049 = vadd.f32 %v862, 1.0
      %v1050 = vadd.f32 %v864, 1.0
      %v1051 = vadd.f32 %v866, 1.0
      %v1052 = vadd.f32 %v868, 1.0
      %v1053 = vadd.f32 %v870, 1.0
      %v1054 = vadd.f32 %v872, 1.0
      %v1055 = vadd.f32 %v874, 1.0
      %v1056 = vadd.f32 %v876, 1.0
      %v1057 = vadd.f32 %v878, 1.0
      %v1058 = vadd.f32 %v880, 1.0
      %v1059 = vadd.f32 %v882, 1.0
      %v1060 = vadd.f32 %v884, 1.0
      %v1061 = vadd.f32 %v886, 1.0
      %v1062 = vadd.f32 %v888, 1.0
      %v1063 = vadd.f32 %v890, 1.0
      %v1064 = vadd.f32 %v892, 1.0
      %v1065 = vadd.f32 %v894, 1.0
      %v1066 = vadd.f32 %v896, 1.0
      %v1067 = vadd.f32 %v898, 1.0
      %v1068 = vadd.f32 %v900, 1.0
      %v1069 = vadd.f32 %v902, 1.0
      %v1070 = vadd.f32 %v904, 1.0
      %v1071 = vadd.f32 %v906, 1.0
      %v1072 = vadd.f32 %v908, 1.0
      %v1073 = vadd.f32 %v910, 1.0
      %v1074 = vadd.f32 %v912, 1.0
      %v1075 = vadd.f32 %v914, 1.0
      %v1076 = vadd.f32 %v916, 1.0
      %v1077 = vadd.f32 %v918, 1.0
      %v1078 = vadd.f32 %v920, 1.0
      %v1079 = vadd.f32 %v922, 1.0
      %v1080 = vadd.f32 %v924, 1.0
      %v1081 = vadd.f32 %v926, 1.0
      %v1082 = vadd.f32 %v928, 1.0
      %v1083 = vadd.f32 %v930, 1.0
      %v1084 = vadd.f32 %v932, 1.0
      %v1085 = vadd.f32 %v934, 1.0
      %v1086 = vadd.f32 %v936, 1.0
      %v1087 = vadd.f32 %v938, 1.0
      %v1088 = vadd.f32 %v940, 1.0
      %v1089 = vadd.f32 %v942, 1.0
      %v1090 = vadd.f32 %v944, 1.0
      %v1091 = vadd.f32 %v946, 1.0
      %v1092 = vadd.f32 %v948, 1.0
      %v1093 = vadd.f32 %v950, 1.0
      %v1094 = vadd.f32 %v952, 1.0
      %v1095 = vadd.f32 %v954, 1.0
      %v1096 = vadd.f32 %v956, 1.0
      %v1097 = vadd.f32 %v958, 1.0
      %v1098 = vadd.f32 %v960, 1.0
      %v1099 = vadd.f32 %v962, 1.0
      %v1100 = vadd.f32 %v964, 1.0
      %v1101 = vadd.f32 %v966, 1.0
      %v1102 = vadd.f32 %v968, 1.0
      %v1103 = vadd.f32 %v970, 1.0
      %v1104 = vadd.f32 %v972, 1.0
      %v1105 = vadd.f32 %v974, 1.0
      %v1106 = vadd.f32 %v976, 1.0
      %v1107 = vadd.f32 %v978, 1.0
      %v1108 = vadd.f32 %v980, 1.0
      %v1109 = vlog2.pop %v1045
      %v1110 = vmul.f32 %v1109, 0.6931472
      %v1111 = vlog2.pop %v1046
      %v1112 = vmul.f32 %v1111, 0.6931472
      %v1113 = vlog2.pop %v1047
      %v1114 = vmul.f32 %v1113, 0.6931472
      %v1115 = vlog2.pop %v1048
      %v1116 = vmul.f32 %v1115, 0.6931472
      %v1117 = vlog2.pop %v1049
      %v1118 = vmul.f32 %v1117, 0.6931472
      %v1119 = vlog2.pop %v1050
      %v1120 = vmul.f32 %v1119, 0.6931472
      %v1121 = vlog2.pop %v1051
      %v1122 = vmul.f32 %v1121, 0.6931472
      %v1123 = vlog2.pop %v1052
      %v1124 = vmul.f32 %v1123, 0.6931472
      %v1125 = vlog2.pop %v1053
      %v1126 = vmul.f32 %v1125, 0.6931472
      %v1127 = vlog2.pop %v1054
      %v1128 = vmul.f32 %v1127, 0.6931472
      %v1129 = vlog2.pop %v1055
      %v1130 = vmul.f32 %v1129, 0.6931472
      %v1131 = vlog2.pop %v1056
      %v1132 = vmul.f32 %v1131, 0.6931472
      %v1133 = vlog2.pop %v1057
      %v1134 = vmul.f32 %v1133, 0.6931472
      %v1135 = vlog2.pop %v1058
      %v1136 = vmul.f32 %v1135, 0.6931472
      %v1137 = vlog2.pop %v1059
      %v1138 = vmul.f32 %v1137, 0.6931472
      %v1139 = vlog2.pop %v1060
      %v1140 = vmul.f32 %v1139, 0.6931472
      %v1141 = vlog2.pop %v1061
      %v1142 = vmul.f32 %v1141, 0.6931472
      %v1143 = vlog2.pop %v1062
      %v1144 = vmul.f32 %v1143, 0.6931472
      %v1145 = vlog2.pop %v1063
      %v1146 = vmul.f32 %v1145, 0.6931472
      %v1147 = vlog2.pop %v1064
      %v1148 = vmul.f32 %v1147, 0.6931472
      %v1149 = vlog2.pop %v1065
      %v1150 = vmul.f32 %v1149, 0.6931472
      %v1151 = vlog2.pop %v1066
      %v1152 = vmul.f32 %v1151, 0.6931472
      %v1153 = vlog2.pop %v1067
      %v1154 = vmul.f32 %v1153, 0.6931472
      %v1155 = vlog2.pop %v1068
      %v1156 = vmul.f32 %v1155, 0.6931472
      %v1157 = vlog2.pop %v1069
      %v1158 = vmul.f32 %v1157, 0.6931472
      %v1159 = vlog2.pop %v1070
      %v1160 = vmul.f32 %v1159, 0.6931472
      %v1161 = vlog2.pop %v1071
      %v1162 = vmul.f32 %v1161, 0.6931472
      %v1163 = vlog2.pop %v1072
      %v1164 = vmul.f32 %v1163, 0.6931472
      %v1165 = vlog2.pop %v1073
      %v1166 = vmul.f32 %v1165, 0.6931472
      %v1167 = vlog2.pop %v1074
      %v1168 = vmul.f32 %v1167, 0.6931472
      %v1169 = vlog2.pop %v1075
      %v1170 = vmul.f32 %v1169, 0.6931472
      %v1171 = vlog2.pop %v1076
      %v1172 = vmul.f32 %v1171, 0.6931472
      %v1173 = vlog2.pop %v1077
      %v1174 = vmul.f32 %v1173, 0.6931472
      %v1175 = vlog2.pop %v1078
      %v1176 = vmul.f32 %v1175, 0.6931472
      %v1177 = vlog2.pop %v1079
      %v1178 = vmul.f32 %v1177, 0.6931472
      %v1179 = vlog2.pop %v1080
      %v1180 = vmul.f32 %v1179, 0.6931472
      %v1181 = vlog2.pop %v1081
      %v1182 = vmul.f32 %v1181, 0.6931472
      %v1183 = vlog2.pop %v1082
      %v1184 = vmul.f32 %v1183, 0.6931472
      %v1185 = vlog2.pop %v1083
      %v1186 = vmul.f32 %v1185, 0.6931472
      %v1187 = vlog2.pop %v1084
      %v1188 = vmul.f32 %v1187, 0.6931472
      %v1189 = vlog2.pop %v1085
      %v1190 = vmul.f32 %v1189, 0.6931472
      %v1191 = vlog2.pop %v1086
      %v1192 = vmul.f32 %v1191, 0.6931472
      %v1193 = vlog2.pop %v1087
      %v1194 = vmul.f32 %v1193, 0.6931472
      %v1195 = vlog2.pop %v1088
      %v1196 = vmul.f32 %v1195, 0.6931472
      %v1197 = vlog2.pop %v1089
      %v1198 = vmul.f32 %v1197, 0.6931472
      %v1199 = vlog2.pop %v1090
      %v1200 = vmul.f32 %v1199, 0.6931472
      %v1201 = vlog2.pop %v1091
      %v1202 = vmul.f32 %v1201, 0.6931472
      %v1203 = vlog2.pop %v1092
      %v1204 = vmul.f32 %v1203, 0.6931472
      %v1205 = vlog2.pop %v1093
      %v1206 = vmul.f32 %v1205, 0.6931472
      %v1207 = vlog2.pop %v1094
      %v1208 = vmul.f32 %v1207, 0.6931472
      %v1209 = vlog2.pop %v1095
      %v1210 = vmul.f32 %v1209, 0.6931472
      %v1211 = vlog2.pop %v1096
      %v1212 = vmul.f32 %v1211, 0.6931472
      %v1213 = vlog2.pop %v1097
      %v1214 = vmul.f32 %v1213, 0.6931472
      %v1215 = vlog2.pop %v1098
      %v1216 = vmul.f32 %v1215, 0.6931472
      %v1217 = vlog2.pop %v1099
      %v1218 = vmul.f32 %v1217, 0.6931472
      %v1219 = vlog2.pop %v1100
      %v1220 = vmul.f32 %v1219, 0.6931472
      %v1221 = vlog2.pop %v1101
      %v1222 = vmul.f32 %v1221, 0.6931472
      %v1223 = vlog2.pop %v1102
      %v1224 = vmul.f32 %v1223, 0.6931472
      %v1225 = vlog2.pop %v1103
      %v1226 = vmul.f32 %v1225, 0.6931472
      %v1227 = vlog2.pop %v1104
      %v1228 = vmul.f32 %v1227, 0.6931472
      %v1229 = vlog2.pop %v1105
      %v1230 = vmul.f32 %v1229, 0.6931472
      %v1231 = vlog2.pop %v1106
      %v1232 = vmul.f32 %v1231, 0.6931472
      %v1233 = vlog2.pop %v1107
      %v1234 = vmul.f32 %v1233, 0.6931472
      %v1235 = vlog2.pop %v1108
      %v1236 = vmul.f32 %v1235, 0.6931472
      %v1237 = vmul.f32 %v1110, 0.01
      %v1238 = vmul.f32 %v1112, 0.01
      %v1239 = vmul.f32 %v1114, 0.01
      %v1240 = vmul.f32 %v1116, 0.01
      %v1241 = vmul.f32 %v1118, 0.01
      %v1242 = vmul.f32 %v1120, 0.01
      %v1243 = vmul.f32 %v1122, 0.01
      %v1244 = vmul.f32 %v1124, 0.01
      %v1245 = vmul.f32 %v1126, 0.01
      %v1246 = vmul.f32 %v1128, 0.01
      %v1247 = vmul.f32 %v1130, 0.01
      %v1248 = vmul.f32 %v1132, 0.01
      %v1249 = vmul.f32 %v1134, 0.01
      %v1250 = vmul.f32 %v1136, 0.01
      %v1251 = vmul.f32 %v1138, 0.01
      %v1252 = vmul.f32 %v1140, 0.01
      %v1253 = vmul.f32 %v1142, 0.01
      %v1254 = vmul.f32 %v1144, 0.01
      %v1255 = vmul.f32 %v1146, 0.01
      %v1256 = vmul.f32 %v1148, 0.01
      %v1257 = vmul.f32 %v1150, 0.01
      %v1258 = vmul.f32 %v1152, 0.01
      %v1259 = vmul.f32 %v1154, 0.01
      %v1260 = vmul.f32 %v1156, 0.01
      %v1261 = vmul.f32 %v1158, 0.01
      %v1262 = vmul.f32 %v1160, 0.01
      %v1263 = vmul.f32 %v1162, 0.01
      %v1264 = vmul.f32 %v1164, 0.01
      %v1265 = vmul.f32 %v1166, 0.01
      %v1266 = vmul.f32 %v1168, 0.01
      %v1267 = vmul.f32 %v1170, 0.01
      %v1268 = vmul.f32 %v1172, 0.01
      %v1269 = vmul.f32 %v1174, 0.01
      %v1270 = vmul.f32 %v1176, 0.01
      %v1271 = vmul.f32 %v1178, 0.01
      %v1272 = vmul.f32 %v1180, 0.01
      %v1273 = vmul.f32 %v1182, 0.01
      %v1274 = vmul.f32 %v1184, 0.01
      %v1275 = vmul.f32 %v1186, 0.01
      %v1276 = vmul.f32 %v1188, 0.01
      %v1277 = vmul.f32 %v1190, 0.01
      %v1278 = vmul.f32 %v1192, 0.01
      %v1279 = vmul.f32 %v1194, 0.01
      %v1280 = vmul.f32 %v1196, 0.01
      %v1281 = vmul.f32 %v1198, 0.01
      %v1282 = vmul.f32 %v1200, 0.01
      %v1283 = vmul.f32 %v1202, 0.01
      %v1284 = vmul.f32 %v1204, 0.01
      %v1285 = vmul.f32 %v1206, 0.01
      %v1286 = vmul.f32 %v1208, 0.01
      %v1287 = vmul.f32 %v1210, 0.01
      %v1288 = vmul.f32 %v1212, 0.01
      %v1289 = vmul.f32 %v1214, 0.01
      %v1290 = vmul.f32 %v1216, 0.01
      %v1291 = vmul.f32 %v1218, 0.01
      %v1292 = vmul.f32 %v1220, 0.01
      %v1293 = vmul.f32 %v1222, 0.01
      %v1294 = vmul.f32 %v1224, 0.01
      %v1295 = vmul.f32 %v1226, 0.01
      %v1296 = vmul.f32 %v1228, 0.01
      %v1297 = vmul.f32 %v1230, 0.01
      %v1298 = vmul.f32 %v1232, 0.01
      %v1299 = vmul.f32 %v1234, 0.01
      %v1300 = vmul.f32 %v1236, 0.01
      %v1301 = vsel %vm981, %v503, %v1237
      %v1302 = vsel %vm982, %v532, %v1238
      %v1303 = vsel %vm983, %v561, %v1239
      %v1304 = vsel %vm984, %v590, %v1240
      %v1305 = vsel %vm985, %v619, %v1241
      %v1306 = vsel %vm986, %v648, %v1242
      %v1307 = vsel %vm987, %v677, %v1243
      %v1308 = vsel %vm988, %v706, %v1244
      %v1309 = vsel %vm989, %v505, %v1245
      %v1310 = vsel %vm990, %v534, %v1246
      %v1311 = vsel %vm991, %v563, %v1247
      %v1312 = vsel %vm992, %v592, %v1248
      %v1313 = vsel %vm993, %v621, %v1249
      %v1314 = vsel %vm994, %v650, %v1250
      %v1315 = vsel %vm995, %v679, %v1251
      %v1316 = vsel %vm996, %v708, %v1252
      %v1317 = vsel %vm997, %v508, %v1253
      %v1318 = vsel %vm998, %v537, %v1254
      %v1319 = vsel %vm999, %v566, %v1255
      %v1320 = vsel %vm1000, %v595, %v1256
      %v1321 = vsel %vm1001, %v624, %v1257
      %v1322 = vsel %vm1002, %v653, %v1258
      %v1323 = vsel %vm1003, %v682, %v1259
      %v1324 = vsel %vm1004, %v711, %v1260
      %v1325 = vsel %vm1005, %v510, %v1261
      %v1326 = vsel %vm1006, %v539, %v1262
      %v1327 = vsel %vm1007, %v568, %v1263
      %v1328 = vsel %vm1008, %v597, %v1264
      %v1329 = vsel %vm1009, %v626, %v1265
      %v1330 = vsel %vm1010, %v655, %v1266
      %v1331 = vsel %vm1011, %v684, %v1267
      %v1332 = vsel %vm1012, %v713, %v1268
      %v1333 = vsel %vm1013, %v513, %v1269
      %v1334 = vsel %vm1014, %v542, %v1270
      %v1335 = vsel %vm1015, %v571, %v1271
      %v1336 = vsel %vm1016, %v600, %v1272
      %v1337 = vsel %vm1017, %v629, %v1273
      %v1338 = vsel %vm1018, %v658, %v1274
      %v1339 = vsel %vm1019, %v687, %v1275
      %v1340 = vsel %vm1020, %v716, %v1276
      %v1341 = vsel %vm1021, %v515, %v1277
      %v1342 = vsel %vm1022, %v544, %v1278
      %v1343 = vsel %vm1023, %v573, %v1279
      %v1344 = vsel %vm1024, %v602, %v1280
      %v1345 = vsel %vm1025, %v631, %v1281
      %v1346 = vsel %vm1026, %v660, %v1282
      %v1347 = vsel %vm1027, %v689, %v1283
      %v1348 = vsel %vm1028, %v718, %v1284
      %v1349 = vsel %vm1029, %v518, %v1285
      %v1350 = vsel %vm1030, %v547, %v1286
      %v1351 = vsel %vm1031, %v576, %v1287
      %v1352 = vsel %vm1032, %v605, %v1288
      %v1353 = vsel %vm1033, %v634, %v1289
      %v1354 = vsel %vm1034, %v663, %v1290
      %v1355 = vsel %vm1035, %v692, %v1291
      %v1356 = vsel %vm1036, %v721, %v1292
      %v1357 = vsel %vm1037, %v520, %v1293
      %v1358 = vsel %vm1038, %v549, %v1294
      %v1359 = vsel %vm1039, %v578, %v1295
      %v1360 = vsel %vm1040, %v607, %v1296
      %v1361 = vsel %vm1041, %v636, %v1297
      %v1362 = vsel %vm1042, %v665, %v1298
      %v1363 = vsel %vm1043, %v694, %v1299
      %v1364 = vsel %vm1044, %v723, %v1300
      %v1365 = vld [vmem:[%s3] sm:$0xf]
      %v1366 = vld [vmem:[%s3 + $0x4] sm:$0xf]
      %v1367 = vld [vmem:[%s3 + $0x8] sm:$0xf]
      %v1368 = vld [vmem:[%s3 + $0xc] sm:$0xf]
      %v1369 = vld [vmem:[%s3 + $0x10] sm:$0xf]
      %v1370 = vld [vmem:[%s3 + $0x14] sm:$0xf]
      %v1371 = vld [vmem:[%s3 + $0x18] sm:$0xf]
      %v1372 = vld [vmem:[%s3 + $0x1c] sm:$0xf]
      %v1373 = vpack.c.bf16 %v1309, %v1301
      %v1374 = vpack.c.bf16 %v1310, %v1302
      %v1375 = vpack.c.bf16 %v1311, %v1303
      %v1376 = vpack.c.bf16 %v1312, %v1304
      %v1377 = vpack.c.bf16 %v1313, %v1305
      %v1378 = vpack.c.bf16 %v1314, %v1306
      %v1379 = vpack.c.bf16 %v1315, %v1307
      %v1380 = vpack.c.bf16 %v1316, %v1308
      %v1381 = vpack.c.bf16 %v1325, %v1317
      %v1382 = vpack.c.bf16 %v1326, %v1318
      %v1383 = vpack.c.bf16 %v1327, %v1319
      %v1384 = vpack.c.bf16 %v1328, %v1320
      %v1385 = vpack.c.bf16 %v1329, %v1321
      %v1386 = vpack.c.bf16 %v1330, %v1322
      %v1387 = vpack.c.bf16 %v1331, %v1323
      %v1388 = vpack.c.bf16 %v1332, %v1324
      %v1389 = vpack.c.bf16 %v1341, %v1333
      %v1390 = vpack.c.bf16 %v1342, %v1334
      %v1391 = vpack.c.bf16 %v1343, %v1335
      %v1392 = vpack.c.bf16 %v1344, %v1336
      %v1393 = vpack.c.bf16 %v1345, %v1337
      %v1394 = vpack.c.bf16 %v1346, %v1338
      %v1395 = vpack.c.bf16 %v1347, %v1339
      %v1396 = vpack.c.bf16 %v1348, %v1340
      %v1397 = vpack.c.bf16 %v1357, %v1349
      %v1398 = vpack.c.bf16 %v1358, %v1350
      %v1399 = vpack.c.bf16 %v1359, %v1351
      %v1400 = vpack.c.bf16 %v1360, %v1352
      %v1401 = vpack.c.bf16 %v1361, %v1353
      %v1402 = vpack.c.bf16 %v1362, %v1354
      %v1403 = vpack.c.bf16 %v1363, %v1355
      %v1404 = vpack.c.bf16 %v1364, %v1356
      %v1405 = vld [vmem:[%s4] sm:$0xff]
      %v1406 = vld [vmem:[%s4 + $0x8] sm:$0xff]
      %v1407 = vld [vmem:[%s4 + $0x10] sm:$0xff]
      %v1408 = vld [vmem:[%s4 + $0x18] sm:$0xff]
      %v1409 = vld [vmem:[%s4 + $0x20] sm:$0xff]
      %v1410 = vld [vmem:[%s4 + $0x28] sm:$0xff]
      %v1411 = vld [vmem:[%s4 + $0x30] sm:$0xff]
      %v1412 = vld [vmem:[%s4 + $0x38] sm:$0xff]
      %1414 = vset.pattern.permute.xlu0 0
      %1415 = vperm.xlu0 %1414, %v1405
      %v1416 = vpop.permute.xlu0 %1415
      %1419 = vset.pattern.permute.xlu0 0
      %1420 = vperm.xlu0 %1419, %v1406
      %v1421 = vpop.permute.xlu0 %1420
      %1424 = vset.pattern.permute.xlu0 0
      %1425 = vperm.xlu0 %1424, %v1407
      %v1426 = vpop.permute.xlu0 %1425
      %1429 = vset.pattern.permute.xlu0 0
      %1430 = vperm.xlu0 %1429, %v1408
      %v1431 = vpop.permute.xlu0 %1430
      %1434 = vset.pattern.permute.xlu0 0
      %1435 = vperm.xlu0 %1434, %v1409
      %v1436 = vpop.permute.xlu0 %1435
      %1439 = vset.pattern.permute.xlu0 0
      %1440 = vperm.xlu0 %1439, %v1410
      %v1441 = vpop.permute.xlu0 %1440
      %1444 = vset.pattern.permute.xlu0 0
      %1445 = vperm.xlu0 %1444, %v1411
      %v1446 = vpop.permute.xlu0 %1445
      %1449 = vset.pattern.permute.xlu0 0
      %1450 = vperm.xlu0 %1449, %v1412
      %v1451 = vpop.permute.xlu0 %1450
      %v1461 = vunpack.c.l.b16 %v1365
      %v1462 = vunpack.c.l.b16 %v1366
      %v1463 = vunpack.c.l.b16 %v1367
      %v1464 = vunpack.c.l.b16 %v1368
      %v1465 = vunpack.c.l.b16 %v1369
      %v1466 = vunpack.c.l.b16 %v1370
      %v1467 = vunpack.c.l.b16 %v1371
      %v1468 = vunpack.c.l.b16 %v1372
      %v1469 = vpack.c.b16 %v1462, %v1461
      %v1470 = vpack.c.b16 %v1464, %v1463
      %v1471 = vpack.c.b16 %v1466, %v1465
      %v1472 = vpack.c.b16 %v1468, %v1467
      %vm1473 = vcmask 523264
      %v1475 = vsel %vm1473, %v1469, 0
      %v1478 = vsel %vm1473, %v1470, 0
      %v1481 = vsel %vm1473, %v1471, 0
      %v1484 = vsel %vm1473, %v1472, 0
      %1486 = vmatpush.bf16.msra.mxu0 0
      %1487 = vmatpush.bf16.msra.mxu0 0
      %1488 = vmatpush.bf16.msra.mxu0 0
      %1489 = vmatpush.bf16.msra.mxu0 0
      %1490 = vmatpush.bf16.msra.mxu0 %v1397
      %1491 = vmatpush.bf16.msra.mxu0 %v1389
      %1492 = vmatpush.bf16.msra.mxu0 %v1381
      %1493 = vmatpush.bf16.msra.mxu0 %v1373
      %1494 = vmatmul.bf16.gmra.mxu0 %v1475
      %v1495 = vpop.f32.mrf.mxu0
      %v1496 = vadd.f32 %v1416, %v1495
      %v1497 = vpop.f32.mrf.mxu0
      %v1498 = vadd.f32 %v1421, %v1497
      %1499 = vmatmul.bf16.gmra.mxu0 %v1478
      %v1500 = vpop.f32.mrf.mxu0
      %v1501 = vadd.f32 %v1426, %v1500
      %v1502 = vpop.f32.mrf.mxu0
      %v1503 = vadd.f32 %v1431, %v1502
      %1504 = vmatmul.bf16.gmra.mxu0 %v1481
      %v1505 = vpop.f32.mrf.mxu0
      %v1506 = vadd.f32 %v1436, %v1505
      %v1507 = vpop.f32.mrf.mxu0
      %v1508 = vadd.f32 %v1441, %v1507
      %1509 = vmatmul.bf16.gmra.mxu0 %v1484
      %v1510 = vpop.f32.mrf.mxu0
      %v1511 = vadd.f32 %v1446, %v1510
      %v1512 = vpop.f32.mrf.mxu0
      %v1513 = vadd.f32 %v1451, %v1512
      %1514 = vdwg.mxu0
      %1515 = vmatpush.bf16.msra.mxu0 0
      %1516 = vmatpush.bf16.msra.mxu0 0
      %1517 = vmatpush.bf16.msra.mxu0 0
      %1518 = vmatpush.bf16.msra.mxu0 0
      %1519 = vmatpush.bf16.msra.mxu0 %v1398
      %1520 = vmatpush.bf16.msra.mxu0 %v1390
      %1521 = vmatpush.bf16.msra.mxu0 %v1382
      %1522 = vmatpush.bf16.msra.mxu0 %v1374
      %1523 = vmatmul.bf16.gmra.mxu0 %v1475
      %v1524 = vpop.f32.mrf.mxu0
      %v1525 = vadd.f32 %v1416, %v1524
      %v1526 = vpop.f32.mrf.mxu0
      %v1527 = vadd.f32 %v1421, %v1526
      %1528 = vmatmul.bf16.gmra.mxu0 %v1478
      %v1529 = vpop.f32.mrf.mxu0
      %v1530 = vadd.f32 %v1426, %v1529
      %v1531 = vpop.f32.mrf.mxu0
      %v1532 = vadd.f32 %v1431, %v1531
      %1533 = vmatmul.bf16.gmra.mxu0 %v1481
      %v1534 = vpop.f32.mrf.mxu0
      %v1535 = vadd.f32 %v1436, %v1534
      %v1536 = vpop.f32.mrf.mxu0
      %v1537 = vadd.f32 %v1441, %v1536
      %1538 = vmatmul.bf16.gmra.mxu0 %v1484
      %v1539 = vpop.f32.mrf.mxu0
      %v1540 = vadd.f32 %v1446, %v1539
      %v1541 = vpop.f32.mrf.mxu0
      %v1542 = vadd.f32 %v1451, %v1541
      %1543 = vdwg.mxu0
      %1544 = vmatpush.bf16.msra.mxu0 0
      %1545 = vmatpush.bf16.msra.mxu0 0
      %1546 = vmatpush.bf16.msra.mxu0 0
      %1547 = vmatpush.bf16.msra.mxu0 0
      %1548 = vmatpush.bf16.msra.mxu0 %v1399
      %1549 = vmatpush.bf16.msra.mxu0 %v1391
      %1550 = vmatpush.bf16.msra.mxu0 %v1383
      %1551 = vmatpush.bf16.msra.mxu0 %v1375
      %1552 = vmatmul.bf16.gmra.mxu0 %v1475
      %v1553 = vpop.f32.mrf.mxu0
      %v1554 = vadd.f32 %v1416, %v1553
      %v1555 = vpop.f32.mrf.mxu0
      %v1556 = vadd.f32 %v1421, %v1555
      %1557 = vmatmul.bf16.gmra.mxu0 %v1478
      %v1558 = vpop.f32.mrf.mxu0
      %v1559 = vadd.f32 %v1426, %v1558
      %v1560 = vpop.f32.mrf.mxu0
      %v1561 = vadd.f32 %v1431, %v1560
      %1562 = vmatmul.bf16.gmra.mxu0 %v1481
      %v1563 = vpop.f32.mrf.mxu0
      %v1564 = vadd.f32 %v1436, %v1563
      %v1565 = vpop.f32.mrf.mxu0
      %v1566 = vadd.f32 %v1441, %v1565
      %1567 = vmatmul.bf16.gmra.mxu0 %v1484
      %v1568 = vpop.f32.mrf.mxu0
      %v1569 = vadd.f32 %v1446, %v1568
      %v1570 = vpop.f32.mrf.mxu0
      %v1571 = vadd.f32 %v1451, %v1570
      %1572 = vdwg.mxu0
      %1573 = vmatpush.bf16.msra.mxu0 0
      %1574 = vmatpush.bf16.msra.mxu0 0
      %1575 = vmatpush.bf16.msra.mxu0 0
      %1576 = vmatpush.bf16.msra.mxu0 0
      %1577 = vmatpush.bf16.msra.mxu0 %v1400
      %1578 = vmatpush.bf16.msra.mxu0 %v1392
      %1579 = vmatpush.bf16.msra.mxu0 %v1384
      %1580 = vmatpush.bf16.msra.mxu0 %v1376
      %1581 = vmatmul.bf16.gmra.mxu0 %v1475
      %v1582 = vpop.f32.mrf.mxu0
      %v1583 = vadd.f32 %v1416, %v1582
      %v1584 = vpop.f32.mrf.mxu0
      %v1585 = vadd.f32 %v1421, %v1584
      %1586 = vmatmul.bf16.gmra.mxu0 %v1478
      %v1587 = vpop.f32.mrf.mxu0
      %v1588 = vadd.f32 %v1426, %v1587
      %v1589 = vpop.f32.mrf.mxu0
      %v1590 = vadd.f32 %v1431, %v1589
      %1591 = vmatmul.bf16.gmra.mxu0 %v1481
      %v1592 = vpop.f32.mrf.mxu0
      %v1593 = vadd.f32 %v1436, %v1592
      %v1594 = vpop.f32.mrf.mxu0
      %v1595 = vadd.f32 %v1441, %v1594
      %1596 = vmatmul.bf16.gmra.mxu0 %v1484
      %v1597 = vpop.f32.mrf.mxu0
      %v1598 = vadd.f32 %v1446, %v1597
      %v1599 = vpop.f32.mrf.mxu0
      %v1600 = vadd.f32 %v1451, %v1599
      %1601 = vdwg.mxu0
      %1602 = vmatpush.bf16.msra.mxu0 0
      %1603 = vmatpush.bf16.msra.mxu0 0
      %1604 = vmatpush.bf16.msra.mxu0 0
      %1605 = vmatpush.bf16.msra.mxu0 0
      %1606 = vmatpush.bf16.msra.mxu0 %v1401
      %1607 = vmatpush.bf16.msra.mxu0 %v1393
      %1608 = vmatpush.bf16.msra.mxu0 %v1385
      %1609 = vmatpush.bf16.msra.mxu0 %v1377
      %1610 = vmatmul.bf16.gmra.mxu0 %v1475
      %v1611 = vpop.f32.mrf.mxu0
      %v1612 = vadd.f32 %v1416, %v1611
      %v1613 = vpop.f32.mrf.mxu0
      %v1614 = vadd.f32 %v1421, %v1613
      %1615 = vmatmul.bf16.gmra.mxu0 %v1478
      %v1616 = vpop.f32.mrf.mxu0
      %v1617 = vadd.f32 %v1426, %v1616
      %v1618 = vpop.f32.mrf.mxu0
      %v1619 = vadd.f32 %v1431, %v1618
      %1620 = vmatmul.bf16.gmra.mxu0 %v1481
      %v1621 = vpop.f32.mrf.mxu0
      %v1622 = vadd.f32 %v1436, %v1621
      %v1623 = vpop.f32.mrf.mxu0
      %v1624 = vadd.f32 %v1441, %v1623
      %1625 = vmatmul.bf16.gmra.mxu0 %v1484
      %v1626 = vpop.f32.mrf.mxu0
      %v1627 = vadd.f32 %v1446, %v1626
      %v1628 = vpop.f32.mrf.mxu0
      %v1629 = vadd.f32 %v1451, %v1628
      %1630 = vdwg.mxu0
      %1631 = vmatpush.bf16.msra.mxu0 0
      %1632 = vmatpush.bf16.msra.mxu0 0
      %1633 = vmatpush.bf16.msra.mxu0 0
      %1634 = vmatpush.bf16.msra.mxu0 0
      %1635 = vmatpush.bf16.msra.mxu0 %v1402
      %1636 = vmatpush.bf16.msra.mxu0 %v1394
      %1637 = vmatpush.bf16.msra.mxu0 %v1386
      %1638 = vmatpush.bf16.msra.mxu0 %v1378
      %1639 = vmatmul.bf16.gmra.mxu0 %v1475
      %v1640 = vpop.f32.mrf.mxu0
      %v1641 = vadd.f32 %v1416, %v1640
      %v1642 = vpop.f32.mrf.mxu0
      %v1643 = vadd.f32 %v1421, %v1642
      %1644 = vmatmul.bf16.gmra.mxu0 %v1478
      %v1645 = vpop.f32.mrf.mxu0
      %v1646 = vadd.f32 %v1426, %v1645
      %v1647 = vpop.f32.mrf.mxu0
      %v1648 = vadd.f32 %v1431, %v1647
      %1649 = vmatmul.bf16.gmra.mxu0 %v1481
      %v1650 = vpop.f32.mrf.mxu0
      %v1651 = vadd.f32 %v1436, %v1650
      %v1652 = vpop.f32.mrf.mxu0
      %v1653 = vadd.f32 %v1441, %v1652
      %1654 = vmatmul.bf16.gmra.mxu0 %v1484
      %v1655 = vpop.f32.mrf.mxu0
      %v1656 = vadd.f32 %v1446, %v1655
      %v1657 = vpop.f32.mrf.mxu0
      %v1658 = vadd.f32 %v1451, %v1657
      %1659 = vdwg.mxu0
      %1660 = vmatpush.bf16.msra.mxu0 0
      %1661 = vmatpush.bf16.msra.mxu0 0
      %1662 = vmatpush.bf16.msra.mxu0 0
      %1663 = vmatpush.bf16.msra.mxu0 0
      %1664 = vmatpush.bf16.msra.mxu0 %v1403
      %1665 = vmatpush.bf16.msra.mxu0 %v1395
      %1666 = vmatpush.bf16.msra.mxu0 %v1387
      %1667 = vmatpush.bf16.msra.mxu0 %v1379
      %1668 = vmatmul.bf16.gmra.mxu0 %v1475
      %v1669 = vpop.f32.mrf.mxu0
      %v1670 = vadd.f32 %v1416, %v1669
      %v1671 = vpop.f32.mrf.mxu0
      %v1672 = vadd.f32 %v1421, %v1671
      %1673 = vmatmul.bf16.gmra.mxu0 %v1478
      %v1674 = vpop.f32.mrf.mxu0
      %v1675 = vadd.f32 %v1426, %v1674
      %v1676 = vpop.f32.mrf.mxu0
      %v1677 = vadd.f32 %v1431, %v1676
      %1678 = vmatmul.bf16.gmra.mxu0 %v1481
      %v1679 = vpop.f32.mrf.mxu0
      %v1680 = vadd.f32 %v1436, %v1679
      %v1681 = vpop.f32.mrf.mxu0
      %v1682 = vadd.f32 %v1441, %v1681
      %1683 = vmatmul.bf16.gmra.mxu0 %v1484
      %v1684 = vpop.f32.mrf.mxu0
      %v1685 = vadd.f32 %v1446, %v1684
      %v1686 = vpop.f32.mrf.mxu0
      %v1687 = vadd.f32 %v1451, %v1686
      %1688 = vdwg.mxu0
      %1689 = vmatpush.bf16.msra.mxu0 0
      %1690 = vmatpush.bf16.msra.mxu0 0
      %1691 = vmatpush.bf16.msra.mxu0 0
      %1692 = vmatpush.bf16.msra.mxu0 0
      %1693 = vmatpush.bf16.msra.mxu0 %v1404
      %1694 = vmatpush.bf16.msra.mxu0 %v1396
      %1695 = vmatpush.bf16.msra.mxu0 %v1388
      %1696 = vmatpush.bf16.msra.mxu0 %v1380
      %1697 = vmatmul.bf16.gmra.mxu0 %v1475
      %v1698 = vpop.f32.mrf.mxu0
      %v1699 = vadd.f32 %v1416, %v1698
      %v1700 = vpop.f32.mrf.mxu0
      %v1701 = vadd.f32 %v1421, %v1700
      %1702 = vmatmul.bf16.gmra.mxu0 %v1478
      %v1703 = vpop.f32.mrf.mxu0
      %v1704 = vadd.f32 %v1426, %v1703
      %v1705 = vpop.f32.mrf.mxu0
      %v1706 = vadd.f32 %v1431, %v1705
      %1707 = vmatmul.bf16.gmra.mxu0 %v1481
      %v1708 = vpop.f32.mrf.mxu0
      %v1709 = vadd.f32 %v1436, %v1708
      %v1710 = vpop.f32.mrf.mxu0
      %v1711 = vadd.f32 %v1441, %v1710
      %1712 = vmatmul.bf16.gmra.mxu0 %v1484
      %v1713 = vpop.f32.mrf.mxu0
      %v1714 = vadd.f32 %v1446, %v1713
      %v1715 = vpop.f32.mrf.mxu0
      %v1716 = vadd.f32 %v1451, %v1715
      %1717 = vdwg.mxu0
      %v1718 = vmul.f32 %v1496, 100.0
      %v1719 = vmul.f32 %v1525, 100.0
      %v1720 = vmul.f32 %v1554, 100.0
      %v1721 = vmul.f32 %v1583, 100.0
      %v1722 = vmul.f32 %v1612, 100.0
      %v1723 = vmul.f32 %v1641, 100.0
      %v1724 = vmul.f32 %v1670, 100.0
      %v1725 = vmul.f32 %v1699, 100.0
      %v1726 = vmul.f32 %v1498, 100.0
      %v1727 = vmul.f32 %v1527, 100.0
      %v1728 = vmul.f32 %v1556, 100.0
      %v1729 = vmul.f32 %v1585, 100.0
      %v1730 = vmul.f32 %v1614, 100.0
      %v1731 = vmul.f32 %v1643, 100.0
      %v1732 = vmul.f32 %v1672, 100.0
      %v1733 = vmul.f32 %v1701, 100.0
      %v1734 = vmul.f32 %v1501, 100.0
      %v1735 = vmul.f32 %v1530, 100.0
      %v1736 = vmul.f32 %v1559, 100.0
      %v1737 = vmul.f32 %v1588, 100.0
      %v1738 = vmul.f32 %v1617, 100.0
      %v1739 = vmul.f32 %v1646, 100.0
      %v1740 = vmul.f32 %v1675, 100.0
      %v1741 = vmul.f32 %v1704, 100.0
      %v1742 = vmul.f32 %v1503, 100.0
      %v1743 = vmul.f32 %v1532, 100.0
      %v1744 = vmul.f32 %v1561, 100.0
      %v1745 = vmul.f32 %v1590, 100.0
      %v1746 = vmul.f32 %v1619, 100.0
      %v1747 = vmul.f32 %v1648, 100.0
      %v1748 = vmul.f32 %v1677, 100.0
      %v1749 = vmul.f32 %v1706, 100.0
      %v1750 = vmul.f32 %v1506, 100.0
      %v1751 = vmul.f32 %v1535, 100.0
      %v1752 = vmul.f32 %v1564, 100.0
      %v1753 = vmul.f32 %v1593, 100.0
      %v1754 = vmul.f32 %v1622, 100.0
      %v1755 = vmul.f32 %v1651, 100.0
      %v1756 = vmul.f32 %v1680, 100.0
      %v1757 = vmul.f32 %v1709, 100.0
      %v1758 = vmul.f32 %v1508, 100.0
      %v1759 = vmul.f32 %v1537, 100.0
      %v1760 = vmul.f32 %v1566, 100.0
      %v1761 = vmul.f32 %v1595, 100.0
      %v1762 = vmul.f32 %v1624, 100.0
      %v1763 = vmul.f32 %v1653, 100.0
      %v1764 = vmul.f32 %v1682, 100.0
      %v1765 = vmul.f32 %v1711, 100.0
      %v1766 = vmul.f32 %v1511, 100.0
      %v1767 = vmul.f32 %v1540, 100.0
      %v1768 = vmul.f32 %v1569, 100.0
      %v1769 = vmul.f32 %v1598, 100.0
      %v1770 = vmul.f32 %v1627, 100.0
      %v1771 = vmul.f32 %v1656, 100.0
      %v1772 = vmul.f32 %v1685, 100.0
      %v1773 = vmul.f32 %v1714, 100.0
      %v1774 = vmul.f32 %v1513, 100.0
      %v1775 = vmul.f32 %v1542, 100.0
      %v1776 = vmul.f32 %v1571, 100.0
      %v1777 = vmul.f32 %v1600, 100.0
      %v1778 = vmul.f32 %v1629, 100.0
      %v1779 = vmul.f32 %v1658, 100.0
      %v1780 = vmul.f32 %v1687, 100.0
      %v1781 = vmul.f32 %v1716, 100.0
      %v1782 = vmin.f32 %v1718, 20.0
      %v1783 = vmin.f32 %v1719, 20.0
      %v1784 = vmin.f32 %v1720, 20.0
      %v1785 = vmin.f32 %v1721, 20.0
      %v1786 = vmin.f32 %v1722, 20.0
      %v1787 = vmin.f32 %v1723, 20.0
      %v1788 = vmin.f32 %v1724, 20.0
      %v1789 = vmin.f32 %v1725, 20.0
      %v1790 = vmin.f32 %v1726, 20.0
      %v1791 = vmin.f32 %v1727, 20.0
      %v1792 = vmin.f32 %v1728, 20.0
      %v1793 = vmin.f32 %v1729, 20.0
      %v1794 = vmin.f32 %v1730, 20.0
      %v1795 = vmin.f32 %v1731, 20.0
      %v1796 = vmin.f32 %v1732, 20.0
      %v1797 = vmin.f32 %v1733, 20.0
      %v1798 = vmin.f32 %v1734, 20.0
      %v1799 = vmin.f32 %v1735, 20.0
      %v1800 = vmin.f32 %v1736, 20.0
      %v1801 = vmin.f32 %v1737, 20.0
      %v1802 = vmin.f32 %v1738, 20.0
      %v1803 = vmin.f32 %v1739, 20.0
      %v1804 = vmin.f32 %v1740, 20.0
      %v1805 = vmin.f32 %v1741, 20.0
      %v1806 = vmin.f32 %v1742, 20.0
      %v1807 = vmin.f32 %v1743, 20.0
      %v1808 = vmin.f32 %v1744, 20.0
      %v1809 = vmin.f32 %v1745, 20.0
      %v1810 = vmin.f32 %v1746, 20.0
      %v1811 = vmin.f32 %v1747, 20.0
      %v1812 = vmin.f32 %v1748, 20.0
      %v1813 = vmin.f32 %v1749, 20.0
      %v1814 = vmin.f32 %v1750, 20.0
      %v1815 = vmin.f32 %v1751, 20.0
      %v1816 = vmin.f32 %v1752, 20.0
      %v1817 = vmin.f32 %v1753, 20.0
      %v1818 = vmin.f32 %v1754, 20.0
      %v1819 = vmin.f32 %v1755, 20.0
      %v1820 = vmin.f32 %v1756, 20.0
      %v1821 = vmin.f32 %v1757, 20.0
      %v1822 = vmin.f32 %v1758, 20.0
      %v1823 = vmin.f32 %v1759, 20.0
      %v1824 = vmin.f32 %v1760, 20.0
      %v1825 = vmin.f32 %v1761, 20.0
      %v1826 = vmin.f32 %v1762, 20.0
      %v1827 = vmin.f32 %v1763, 20.0
      %v1828 = vmin.f32 %v1764, 20.0
      %v1829 = vmin.f32 %v1765, 20.0
      %v1830 = vmin.f32 %v1766, 20.0
      %v1831 = vmin.f32 %v1767, 20.0
      %v1832 = vmin.f32 %v1768, 20.0
      %v1833 = vmin.f32 %v1769, 20.0
      %v1834 = vmin.f32 %v1770, 20.0
      %v1835 = vmin.f32 %v1771, 20.0
      %v1836 = vmin.f32 %v1772, 20.0
      %v1837 = vmin.f32 %v1773, 20.0
      %v1838 = vmin.f32 %v1774, 20.0
      %v1839 = vmin.f32 %v1775, 20.0
      %v1840 = vmin.f32 %v1776, 20.0
      %v1841 = vmin.f32 %v1777, 20.0
      %v1842 = vmin.f32 %v1778, 20.0
      %v1843 = vmin.f32 %v1779, 20.0
      %v1844 = vmin.f32 %v1780, 20.0
      %v1845 = vmin.f32 %v1781, 20.0
      %v1846 = vmul.f32 %v1782, 1.442695
      %v1847 = vpow.pop %v1846
      %v1848 = vmul.f32 %v1783, 1.442695
      %v1849 = vpow.pop %v1848
      %v1850 = vmul.f32 %v1784, 1.442695
      %v1851 = vpow.pop %v1850
      %v1852 = vmul.f32 %v1785, 1.442695
      %v1853 = vpow.pop %v1852
      %v1854 = vmul.f32 %v1786, 1.442695
      %v1855 = vpow.pop %v1854
      %v1856 = vmul.f32 %v1787, 1.442695
      %v1857 = vpow.pop %v1856
      %v1858 = vmul.f32 %v1788, 1.442695
      %v1859 = vpow.pop %v1858
      %v1860 = vmul.f32 %v1789, 1.442695
      %v1861 = vpow.pop %v1860
      %v1862 = vmul.f32 %v1790, 1.442695
      %v1863 = vpow.pop %v1862
      %v1864 = vmul.f32 %v1791, 1.442695
      %v1865 = vpow.pop %v1864
      %v1866 = vmul.f32 %v1792, 1.442695
      %v1867 = vpow.pop %v1866
      %v1868 = vmul.f32 %v1793, 1.442695
      %v1869 = vpow.pop %v1868
      %v1870 = vmul.f32 %v1794, 1.442695
      %v1871 = vpow.pop %v1870
      %v1872 = vmul.f32 %v1795, 1.442695
      %v1873 = vpow.pop %v1872
      %v1874 = vmul.f32 %v1796, 1.442695
      %v1875 = vpow.pop %v1874
      %v1876 = vmul.f32 %v1797, 1.442695
      %v1877 = vpow.pop %v1876
      %v1878 = vmul.f32 %v1798, 1.442695
      %v1879 = vpow.pop %v1878
      %v1880 = vmul.f32 %v1799, 1.442695
      %v1881 = vpow.pop %v1880
      %v1882 = vmul.f32 %v1800, 1.442695
      %v1883 = vpow.pop %v1882
      %v1884 = vmul.f32 %v1801, 1.442695
      %v1885 = vpow.pop %v1884
      %v1886 = vmul.f32 %v1802, 1.442695
      %v1887 = vpow.pop %v1886
      %v1888 = vmul.f32 %v1803, 1.442695
      %v1889 = vpow.pop %v1888
      %v1890 = vmul.f32 %v1804, 1.442695
      %v1891 = vpow.pop %v1890
      %v1892 = vmul.f32 %v1805, 1.442695
      %v1893 = vpow.pop %v1892
      %v1894 = vmul.f32 %v1806, 1.442695
      %v1895 = vpow.pop %v1894
      %v1896 = vmul.f32 %v1807, 1.442695
      %v1897 = vpow.pop %v1896
      %v1898 = vmul.f32 %v1808, 1.442695
      %v1899 = vpow.pop %v1898
      %v1900 = vmul.f32 %v1809, 1.442695
      %v1901 = vpow.pop %v1900
      %v1902 = vmul.f32 %v1810, 1.442695
      %v1903 = vpow.pop %v1902
      %v1904 = vmul.f32 %v1811, 1.442695
      %v1905 = vpow.pop %v1904
      %v1906 = vmul.f32 %v1812, 1.442695
      %v1907 = vpow.pop %v1906
      %v1908 = vmul.f32 %v1813, 1.442695
      %v1909 = vpow.pop %v1908
      %v1910 = vmul.f32 %v1814, 1.442695
      %v1911 = vpow.pop %v1910
      %v1912 = vmul.f32 %v1815, 1.442695
      %v1913 = vpow.pop %v1912
      %v1914 = vmul.f32 %v1816, 1.442695
      %v1915 = vpow.pop %v1914
      %v1916 = vmul.f32 %v1817, 1.442695
      %v1917 = vpow.pop %v1916
      %v1918 = vmul.f32 %v1818, 1.442695
      %v1919 = vpow.pop %v1918
      %v1920 = vmul.f32 %v1819, 1.442695
      %v1921 = vpow.pop %v1920
      %v1922 = vmul.f32 %v1820, 1.442695
      %v1923 = vpow.pop %v1922
      %v1924 = vmul.f32 %v1821, 1.442695
      %v1925 = vpow.pop %v1924
      %v1926 = vmul.f32 %v1822, 1.442695
      %v1927 = vpow.pop %v1926
      %v1928 = vmul.f32 %v1823, 1.442695
      %v1929 = vpow.pop %v1928
      %v1930 = vmul.f32 %v1824, 1.442695
      %v1931 = vpow.pop %v1930
      %v1932 = vmul.f32 %v1825, 1.442695
      %v1933 = vpow.pop %v1932
      %v1934 = vmul.f32 %v1826, 1.442695
      %v1935 = vpow.pop %v1934
      %v1936 = vmul.f32 %v1827, 1.442695
      %v1937 = vpow.pop %v1936
      %v1938 = vmul.f32 %v1828, 1.442695
      %v1939 = vpow.pop %v1938
      %v1940 = vmul.f32 %v1829, 1.442695
      %v1941 = vpow.pop %v1940
      %v1942 = vmul.f32 %v1830, 1.442695
      %v1943 = vpow.pop %v1942
      %v1944 = vmul.f32 %v1831, 1.442695
      %v1945 = vpow.pop %v1944
      %v1946 = vmul.f32 %v1832, 1.442695
      %v1947 = vpow.pop %v1946
      %v1948 = vmul.f32 %v1833, 1.442695
      %v1949 = vpow.pop %v1948
      %v1950 = vmul.f32 %v1834, 1.442695
      %v1951 = vpow.pop %v1950
      %v1952 = vmul.f32 %v1835, 1.442695
      %v1953 = vpow.pop %v1952
      %v1954 = vmul.f32 %v1836, 1.442695
      %v1955 = vpow.pop %v1954
      %v1956 = vmul.f32 %v1837, 1.442695
      %v1957 = vpow.pop %v1956
      %v1958 = vmul.f32 %v1838, 1.442695
      %v1959 = vpow.pop %v1958
      %v1960 = vmul.f32 %v1839, 1.442695
      %v1961 = vpow.pop %v1960
      %v1962 = vmul.f32 %v1840, 1.442695
      %v1963 = vpow.pop %v1962
      %v1964 = vmul.f32 %v1841, 1.442695
      %v1965 = vpow.pop %v1964
      %v1966 = vmul.f32 %v1842, 1.442695
      %v1967 = vpow.pop %v1966
      %v1968 = vmul.f32 %v1843, 1.442695
      %v1969 = vpow.pop %v1968
      %v1970 = vmul.f32 %v1844, 1.442695
      %v1971 = vpow.pop %v1970
      %v1972 = vmul.f32 %v1845, 1.442695
      %v1973 = vpow.pop %v1972
      %vm1974 = vcmp.gt.f32.partialorder %v1718, 20.0
      %vm1975 = vcmp.gt.f32.partialorder %v1719, 20.0
      %vm1976 = vcmp.gt.f32.partialorder %v1720, 20.0
      %vm1977 = vcmp.gt.f32.partialorder %v1721, 20.0
      %vm1978 = vcmp.gt.f32.partialorder %v1722, 20.0
      %vm1979 = vcmp.gt.f32.partialorder %v1723, 20.0
      %vm1980 = vcmp.gt.f32.partialorder %v1724, 20.0
      %vm1981 = vcmp.gt.f32.partialorder %v1725, 20.0
      %vm1982 = vcmp.gt.f32.partialorder %v1726, 20.0
      %vm1983 = vcmp.gt.f32.partialorder %v1727, 20.0
      %vm1984 = vcmp.gt.f32.partialorder %v1728, 20.0
      %vm1985 = vcmp.gt.f32.partialorder %v1729, 20.0
      %vm1986 = vcmp.gt.f32.partialorder %v1730, 20.0
      %vm1987 = vcmp.gt.f32.partialorder %v1731, 20.0
      %vm1988 = vcmp.gt.f32.partialorder %v1732, 20.0
      %vm1989 = vcmp.gt.f32.partialorder %v1733, 20.0
      %vm1990 = vcmp.gt.f32.partialorder %v1734, 20.0
      %vm1991 = vcmp.gt.f32.partialorder %v1735, 20.0
      %vm1992 = vcmp.gt.f32.partialorder %v1736, 20.0
      %vm1993 = vcmp.gt.f32.partialorder %v1737, 20.0
      %vm1994 = vcmp.gt.f32.partialorder %v1738, 20.0
      %vm1995 = vcmp.gt.f32.partialorder %v1739, 20.0
      %vm1996 = vcmp.gt.f32.partialorder %v1740, 20.0
      %vm1997 = vcmp.gt.f32.partialorder %v1741, 20.0
      %vm1998 = vcmp.gt.f32.partialorder %v1742, 20.0
      %vm1999 = vcmp.gt.f32.partialorder %v1743, 20.0
      %vm2000 = vcmp.gt.f32.partialorder %v1744, 20.0
      %vm2001 = vcmp.gt.f32.partialorder %v1745, 20.0
      %vm2002 = vcmp.gt.f32.partialorder %v1746, 20.0
      %vm2003 = vcmp.gt.f32.partialorder %v1747, 20.0
      %vm2004 = vcmp.gt.f32.partialorder %v1748, 20.0
      %vm2005 = vcmp.gt.f32.partialorder %v1749, 20.0
      %vm2006 = vcmp.gt.f32.partialorder %v1750, 20.0
      %vm2007 = vcmp.gt.f32.partialorder %v1751, 20.0
      %vm2008 = vcmp.gt.f32.partialorder %v1752, 20.0
      %vm2009 = vcmp.gt.f32.partialorder %v1753, 20.0
      %vm2010 = vcmp.gt.f32.partialorder %v1754, 20.0
      %vm2011 = vcmp.gt.f32.partialorder %v1755, 20.0
      %vm2012 = vcmp.gt.f32.partialorder %v1756, 20.0
      %vm2013 = vcmp.gt.f32.partialorder %v1757, 20.0
      %vm2014 = vcmp.gt.f32.partialorder %v1758, 20.0
      %vm2015 = vcmp.gt.f32.partialorder %v1759, 20.0
      %vm2016 = vcmp.gt.f32.partialorder %v1760, 20.0
      %vm2017 = vcmp.gt.f32.partialorder %v1761, 20.0
      %vm2018 = vcmp.gt.f32.partialorder %v1762, 20.0
      %vm2019 = vcmp.gt.f32.partialorder %v1763, 20.0
      %vm2020 = vcmp.gt.f32.partialorder %v1764, 20.0
      %vm2021 = vcmp.gt.f32.partialorder %v1765, 20.0
      %vm2022 = vcmp.gt.f32.partialorder %v1766, 20.0
      %vm2023 = vcmp.gt.f32.partialorder %v1767, 20.0
      %vm2024 = vcmp.gt.f32.partialorder %v1768, 20.0
      %vm2025 = vcmp.gt.f32.partialorder %v1769, 20.0
      %vm2026 = vcmp.gt.f32.partialorder %v1770, 20.0
      %vm2027 = vcmp.gt.f32.partialorder %v1771, 20.0
      %vm2028 = vcmp.gt.f32.partialorder %v1772, 20.0
      %vm2029 = vcmp.gt.f32.partialorder %v1773, 20.0
      %vm2030 = vcmp.gt.f32.partialorder %v1774, 20.0
      %vm2031 = vcmp.gt.f32.partialorder %v1775, 20.0
      %vm2032 = vcmp.gt.f32.partialorder %v1776, 20.0
      %vm2033 = vcmp.gt.f32.partialorder %v1777, 20.0
      %vm2034 = vcmp.gt.f32.partialorder %v1778, 20.0
      %vm2035 = vcmp.gt.f32.partialorder %v1779, 20.0
      %vm2036 = vcmp.gt.f32.partialorder %v1780, 20.0
      %vm2037 = vcmp.gt.f32.partialorder %v1781, 20.0
      %v2038 = vadd.f32 %v1847, 1.0
      %v2039 = vadd.f32 %v1849, 1.0
      %v2040 = vadd.f32 %v1851, 1.0
      %v2041 = vadd.f32 %v1853, 1.0
      %v2042 = vadd.f32 %v1855, 1.0
      %v2043 = vadd.f32 %v1857, 1.0
      %v2044 = vadd.f32 %v1859, 1.0
      %v2045 = vadd.f32 %v1861, 1.0
      %v2046 = vadd.f32 %v1863, 1.0
      %v2047 = vadd.f32 %v1865, 1.0
      %v2048 = vadd.f32 %v1867, 1.0
      %v2049 = vadd.f32 %v1869, 1.0
      %v2050 = vadd.f32 %v1871, 1.0
      %v2051 = vadd.f32 %v1873, 1.0
      %v2052 = vadd.f32 %v1875, 1.0
      %v2053 = vadd.f32 %v1877, 1.0
      %v2054 = vadd.f32 %v1879, 1.0
      %v2055 = vadd.f32 %v1881, 1.0
      %v2056 = vadd.f32 %v1883, 1.0
      %v2057 = vadd.f32 %v1885, 1.0
      %v2058 = vadd.f32 %v1887, 1.0
      %v2059 = vadd.f32 %v1889, 1.0
      %v2060 = vadd.f32 %v1891, 1.0
      %v2061 = vadd.f32 %v1893, 1.0
      %v2062 = vadd.f32 %v1895, 1.0
      %v2063 = vadd.f32 %v1897, 1.0
      %v2064 = vadd.f32 %v1899, 1.0
      %v2065 = vadd.f32 %v1901, 1.0
      %v2066 = vadd.f32 %v1903, 1.0
      %v2067 = vadd.f32 %v1905, 1.0
      %v2068 = vadd.f32 %v1907, 1.0
      %v2069 = vadd.f32 %v1909, 1.0
      %v2070 = vadd.f32 %v1911, 1.0
      %v2071 = vadd.f32 %v1913, 1.0
      %v2072 = vadd.f32 %v1915, 1.0
      %v2073 = vadd.f32 %v1917, 1.0
      %v2074 = vadd.f32 %v1919, 1.0
      %v2075 = vadd.f32 %v1921, 1.0
      %v2076 = vadd.f32 %v1923, 1.0
      %v2077 = vadd.f32 %v1925, 1.0
      %v2078 = vadd.f32 %v1927, 1.0
      %v2079 = vadd.f32 %v1929, 1.0
      %v2080 = vadd.f32 %v1931, 1.0
      %v2081 = vadd.f32 %v1933, 1.0
      %v2082 = vadd.f32 %v1935, 1.0
      %v2083 = vadd.f32 %v1937, 1.0
      %v2084 = vadd.f32 %v1939, 1.0
      %v2085 = vadd.f32 %v1941, 1.0
      %v2086 = vadd.f32 %v1943, 1.0
      %v2087 = vadd.f32 %v1945, 1.0
      %v2088 = vadd.f32 %v1947, 1.0
      %v2089 = vadd.f32 %v1949, 1.0
      %v2090 = vadd.f32 %v1951, 1.0
      %v2091 = vadd.f32 %v1953, 1.0
      %v2092 = vadd.f32 %v1955, 1.0
      %v2093 = vadd.f32 %v1957, 1.0
      %v2094 = vadd.f32 %v1959, 1.0
      %v2095 = vadd.f32 %v1961, 1.0
      %v2096 = vadd.f32 %v1963, 1.0
      %v2097 = vadd.f32 %v1965, 1.0
      %v2098 = vadd.f32 %v1967, 1.0
      %v2099 = vadd.f32 %v1969, 1.0
      %v2100 = vadd.f32 %v1971, 1.0
      %v2101 = vadd.f32 %v1973, 1.0
      %v2102 = vlog2.pop %v2038
      %v2103 = vmul.f32 %v2102, 0.6931472
      %v2104 = vlog2.pop %v2039
      %v2105 = vmul.f32 %v2104, 0.6931472
      %v2106 = vlog2.pop %v2040
      %v2107 = vmul.f32 %v2106, 0.6931472
      %v2108 = vlog2.pop %v2041
      %v2109 = vmul.f32 %v2108, 0.6931472
      %v2110 = vlog2.pop %v2042
      %v2111 = vmul.f32 %v2110, 0.6931472
      %v2112 = vlog2.pop %v2043
      %v2113 = vmul.f32 %v2112, 0.6931472
      %v2114 = vlog2.pop %v2044
      %v2115 = vmul.f32 %v2114, 0.6931472
      %v2116 = vlog2.pop %v2045
      %v2117 = vmul.f32 %v2116, 0.6931472
      %v2118 = vlog2.pop %v2046
      %v2119 = vmul.f32 %v2118, 0.6931472
      %v2120 = vlog2.pop %v2047
      %v2121 = vmul.f32 %v2120, 0.6931472
      %v2122 = vlog2.pop %v2048
      %v2123 = vmul.f32 %v2122, 0.6931472
      %v2124 = vlog2.pop %v2049
      %v2125 = vmul.f32 %v2124, 0.6931472
      %v2126 = vlog2.pop %v2050
      %v2127 = vmul.f32 %v2126, 0.6931472
      %v2128 = vlog2.pop %v2051
      %v2129 = vmul.f32 %v2128, 0.6931472
      %v2130 = vlog2.pop %v2052
      %v2131 = vmul.f32 %v2130, 0.6931472
      %v2132 = vlog2.pop %v2053
      %v2133 = vmul.f32 %v2132, 0.6931472
      %v2134 = vlog2.pop %v2054
      %v2135 = vmul.f32 %v2134, 0.6931472
      %v2136 = vlog2.pop %v2055
      %v2137 = vmul.f32 %v2136, 0.6931472
      %v2138 = vlog2.pop %v2056
      %v2139 = vmul.f32 %v2138, 0.6931472
      %v2140 = vlog2.pop %v2057
      %v2141 = vmul.f32 %v2140, 0.6931472
      %v2142 = vlog2.pop %v2058
      %v2143 = vmul.f32 %v2142, 0.6931472
      %v2144 = vlog2.pop %v2059
      %v2145 = vmul.f32 %v2144, 0.6931472
      %v2146 = vlog2.pop %v2060
      %v2147 = vmul.f32 %v2146, 0.6931472
      %v2148 = vlog2.pop %v2061
      %v2149 = vmul.f32 %v2148, 0.6931472
      %v2150 = vlog2.pop %v2062
      %v2151 = vmul.f32 %v2150, 0.6931472
      %v2152 = vlog2.pop %v2063
      %v2153 = vmul.f32 %v2152, 0.6931472
      %v2154 = vlog2.pop %v2064
      %v2155 = vmul.f32 %v2154, 0.6931472
      %v2156 = vlog2.pop %v2065
      %v2157 = vmul.f32 %v2156, 0.6931472
      %v2158 = vlog2.pop %v2066
      %v2159 = vmul.f32 %v2158, 0.6931472
      %v2160 = vlog2.pop %v2067
      %v2161 = vmul.f32 %v2160, 0.6931472
      %v2162 = vlog2.pop %v2068
      %v2163 = vmul.f32 %v2162, 0.6931472
      %v2164 = vlog2.pop %v2069
      %v2165 = vmul.f32 %v2164, 0.6931472
      %v2166 = vlog2.pop %v2070
      %v2167 = vmul.f32 %v2166, 0.6931472
      %v2168 = vlog2.pop %v2071
      %v2169 = vmul.f32 %v2168, 0.6931472
      %v2170 = vlog2.pop %v2072
      %v2171 = vmul.f32 %v2170, 0.6931472
      %v2172 = vlog2.pop %v2073
      %v2173 = vmul.f32 %v2172, 0.6931472
      %v2174 = vlog2.pop %v2074
      %v2175 = vmul.f32 %v2174, 0.6931472
      %v2176 = vlog2.pop %v2075
      %v2177 = vmul.f32 %v2176, 0.6931472
      %v2178 = vlog2.pop %v2076
      %v2179 = vmul.f32 %v2178, 0.6931472
      %v2180 = vlog2.pop %v2077
      %v2181 = vmul.f32 %v2180, 0.6931472
      %v2182 = vlog2.pop %v2078
      %v2183 = vmul.f32 %v2182, 0.6931472
      %v2184 = vlog2.pop %v2079
      %v2185 = vmul.f32 %v2184, 0.6931472
      %v2186 = vlog2.pop %v2080
      %v2187 = vmul.f32 %v2186, 0.6931472
      %v2188 = vlog2.pop %v2081
      %v2189 = vmul.f32 %v2188, 0.6931472
      %v2190 = vlog2.pop %v2082
      %v2191 = vmul.f32 %v2190, 0.6931472
      %v2192 = vlog2.pop %v2083
      %v2193 = vmul.f32 %v2192, 0.6931472
      %v2194 = vlog2.pop %v2084
      %v2195 = vmul.f32 %v2194, 0.6931472
      %v2196 = vlog2.pop %v2085
      %v2197 = vmul.f32 %v2196, 0.6931472
      %v2198 = vlog2.pop %v2086
      %v2199 = vmul.f32 %v2198, 0.6931472
      %v2200 = vlog2.pop %v2087
      %v2201 = vmul.f32 %v2200, 0.6931472
      %v2202 = vlog2.pop %v2088
      %v2203 = vmul.f32 %v2202, 0.6931472
      %v2204 = vlog2.pop %v2089
      %v2205 = vmul.f32 %v2204, 0.6931472
      %v2206 = vlog2.pop %v2090
      %v2207 = vmul.f32 %v2206, 0.6931472
      %v2208 = vlog2.pop %v2091
      %v2209 = vmul.f32 %v2208, 0.6931472
      %v2210 = vlog2.pop %v2092
      %v2211 = vmul.f32 %v2210, 0.6931472
      %v2212 = vlog2.pop %v2093
      %v2213 = vmul.f32 %v2212, 0.6931472
      %v2214 = vlog2.pop %v2094
      %v2215 = vmul.f32 %v2214, 0.6931472
      %v2216 = vlog2.pop %v2095
      %v2217 = vmul.f32 %v2216, 0.6931472
      %v2218 = vlog2.pop %v2096
      %v2219 = vmul.f32 %v2218, 0.6931472
      %v2220 = vlog2.pop %v2097
      %v2221 = vmul.f32 %v2220, 0.6931472
      %v2222 = vlog2.pop %v2098
      %v2223 = vmul.f32 %v2222, 0.6931472
      %v2224 = vlog2.pop %v2099
      %v2225 = vmul.f32 %v2224, 0.6931472
      %v2226 = vlog2.pop %v2100
      %v2227 = vmul.f32 %v2226, 0.6931472
      %v2228 = vlog2.pop %v2101
      %v2229 = vmul.f32 %v2228, 0.6931472
      %v2230 = vmul.f32 %v2103, 0.01
      %v2231 = vmul.f32 %v2105, 0.01
      %v2232 = vmul.f32 %v2107, 0.01
      %v2233 = vmul.f32 %v2109, 0.01
      %v2234 = vmul.f32 %v2111, 0.01
      %v2235 = vmul.f32 %v2113, 0.01
      %v2236 = vmul.f32 %v2115, 0.01
      %v2237 = vmul.f32 %v2117, 0.01
      %v2238 = vmul.f32 %v2119, 0.01
      %v2239 = vmul.f32 %v2121, 0.01
      %v2240 = vmul.f32 %v2123, 0.01
      %v2241 = vmul.f32 %v2125, 0.01
      %v2242 = vmul.f32 %v2127, 0.01
      %v2243 = vmul.f32 %v2129, 0.01
      %v2244 = vmul.f32 %v2131, 0.01
      %v2245 = vmul.f32 %v2133, 0.01
      %v2246 = vmul.f32 %v2135, 0.01
      %v2247 = vmul.f32 %v2137, 0.01
      %v2248 = vmul.f32 %v2139, 0.01
      %v2249 = vmul.f32 %v2141, 0.01
      %v2250 = vmul.f32 %v2143, 0.01
      %v2251 = vmul.f32 %v2145, 0.01
      %v2252 = vmul.f32 %v2147, 0.01
      %v2253 = vmul.f32 %v2149, 0.01
      %v2254 = vmul.f32 %v2151, 0.01
      %v2255 = vmul.f32 %v2153, 0.01
      %v2256 = vmul.f32 %v2155, 0.01
      %v2257 = vmul.f32 %v2157, 0.01
      %v2258 = vmul.f32 %v2159, 0.01
      %v2259 = vmul.f32 %v2161, 0.01
      %v2260 = vmul.f32 %v2163, 0.01
      %v2261 = vmul.f32 %v2165, 0.01
      %v2262 = vmul.f32 %v2167, 0.01
      %v2263 = vmul.f32 %v2169, 0.01
      %v2264 = vmul.f32 %v2171, 0.01
      %v2265 = vmul.f32 %v2173, 0.01
      %v2266 = vmul.f32 %v2175, 0.01
      %v2267 = vmul.f32 %v2177, 0.01
      %v2268 = vmul.f32 %v2179, 0.01
      %v2269 = vmul.f32 %v2181, 0.01
      %v2270 = vmul.f32 %v2183, 0.01
      %v2271 = vmul.f32 %v2185, 0.01
      %v2272 = vmul.f32 %v2187, 0.01
      %v2273 = vmul.f32 %v2189, 0.01
      %v2274 = vmul.f32 %v2191, 0.01
      %v2275 = vmul.f32 %v2193, 0.01
      %v2276 = vmul.f32 %v2195, 0.01
      %v2277 = vmul.f32 %v2197, 0.01
      %v2278 = vmul.f32 %v2199, 0.01
      %v2279 = vmul.f32 %v2201, 0.01
      %v2280 = vmul.f32 %v2203, 0.01
      %v2281 = vmul.f32 %v2205, 0.01
      %v2282 = vmul.f32 %v2207, 0.01
      %v2283 = vmul.f32 %v2209, 0.01
      %v2284 = vmul.f32 %v2211, 0.01
      %v2285 = vmul.f32 %v2213, 0.01
      %v2286 = vmul.f32 %v2215, 0.01
      %v2287 = vmul.f32 %v2217, 0.01
      %v2288 = vmul.f32 %v2219, 0.01
      %v2289 = vmul.f32 %v2221, 0.01
      %v2290 = vmul.f32 %v2223, 0.01
      %v2291 = vmul.f32 %v2225, 0.01
      %v2292 = vmul.f32 %v2227, 0.01
      %v2293 = vmul.f32 %v2229, 0.01
      %v2294 = vsel %vm1974, %v1496, %v2230
      %v2295 = vsel %vm1975, %v1525, %v2231
      %v2296 = vsel %vm1976, %v1554, %v2232
      %v2297 = vsel %vm1977, %v1583, %v2233
      %v2298 = vsel %vm1978, %v1612, %v2234
      %v2299 = vsel %vm1979, %v1641, %v2235
      %v2300 = vsel %vm1980, %v1670, %v2236
      %v2301 = vsel %vm1981, %v1699, %v2237
      %v2302 = vsel %vm1982, %v1498, %v2238
      %v2303 = vsel %vm1983, %v1527, %v2239
      %v2304 = vsel %vm1984, %v1556, %v2240
      %v2305 = vsel %vm1985, %v1585, %v2241
      %v2306 = vsel %vm1986, %v1614, %v2242
      %v2307 = vsel %vm1987, %v1643, %v2243
      %v2308 = vsel %vm1988, %v1672, %v2244
      %v2309 = vsel %vm1989, %v1701, %v2245
      %v2310 = vsel %vm1990, %v1501, %v2246
      %v2311 = vsel %vm1991, %v1530, %v2247
      %v2312 = vsel %vm1992, %v1559, %v2248
      %v2313 = vsel %vm1993, %v1588, %v2249
      %v2314 = vsel %vm1994, %v1617, %v2250
      %v2315 = vsel %vm1995, %v1646, %v2251
      %v2316 = vsel %vm1996, %v1675, %v2252
      %v2317 = vsel %vm1997, %v1704, %v2253
      %v2318 = vsel %vm1998, %v1503, %v2254
      %v2319 = vsel %vm1999, %v1532, %v2255
      %v2320 = vsel %vm2000, %v1561, %v2256
      %v2321 = vsel %vm2001, %v1590, %v2257
      %v2322 = vsel %vm2002, %v1619, %v2258
      %v2323 = vsel %vm2003, %v1648, %v2259
      %v2324 = vsel %vm2004, %v1677, %v2260
      %v2325 = vsel %vm2005, %v1706, %v2261
      %v2326 = vsel %vm2006, %v1506, %v2262
      %v2327 = vsel %vm2007, %v1535, %v2263
      %v2328 = vsel %vm2008, %v1564, %v2264
      %v2329 = vsel %vm2009, %v1593, %v2265
      %v2330 = vsel %vm2010, %v1622, %v2266
      %v2331 = vsel %vm2011, %v1651, %v2267
      %v2332 = vsel %vm2012, %v1680, %v2268
      %v2333 = vsel %vm2013, %v1709, %v2269
      %v2334 = vsel %vm2014, %v1508, %v2270
      %v2335 = vsel %vm2015, %v1537, %v2271
      %v2336 = vsel %vm2016, %v1566, %v2272
      %v2337 = vsel %vm2017, %v1595, %v2273
      %v2338 = vsel %vm2018, %v1624, %v2274
      %v2339 = vsel %vm2019, %v1653, %v2275
      %v2340 = vsel %vm2020, %v1682, %v2276
      %v2341 = vsel %vm2021, %v1711, %v2277
      %v2342 = vsel %vm2022, %v1511, %v2278
      %v2343 = vsel %vm2023, %v1540, %v2279
      %v2344 = vsel %vm2024, %v1569, %v2280
      %v2345 = vsel %vm2025, %v1598, %v2281
      %v2346 = vsel %vm2026, %v1627, %v2282
      %v2347 = vsel %vm2027, %v1656, %v2283
      %v2348 = vsel %vm2028, %v1685, %v2284
      %v2349 = vsel %vm2029, %v1714, %v2285
      %v2350 = vsel %vm2030, %v1513, %v2286
      %v2351 = vsel %vm2031, %v1542, %v2287
      %v2352 = vsel %vm2032, %v1571, %v2288
      %v2353 = vsel %vm2033, %v1600, %v2289
      %v2354 = vsel %vm2034, %v1629, %v2290
      %v2355 = vsel %vm2035, %v1658, %v2291
      %v2356 = vsel %vm2036, %v1687, %v2292
      %v2357 = vsel %vm2037, %v1716, %v2293
      %v2358 = vld [vmem:[%s5] sm:$0xf]
      %v2359 = vld [vmem:[%s5 + $0x4] sm:$0xf]
      %v2360 = vld [vmem:[%s5 + $0x8] sm:$0xf]
      %v2361 = vld [vmem:[%s5 + $0xc] sm:$0xf]
      %v2362 = vld [vmem:[%s5 + $0x10] sm:$0xf]
      %v2363 = vld [vmem:[%s5 + $0x14] sm:$0xf]
      %v2364 = vld [vmem:[%s5 + $0x18] sm:$0xf]
      %v2365 = vld [vmem:[%s5 + $0x1c] sm:$0xf]
      %v2366 = vpack.c.bf16 %v2302, %v2294
      %v2367 = vpack.c.bf16 %v2303, %v2295
      %v2368 = vpack.c.bf16 %v2304, %v2296
      %v2369 = vpack.c.bf16 %v2305, %v2297
      %v2370 = vpack.c.bf16 %v2306, %v2298
      %v2371 = vpack.c.bf16 %v2307, %v2299
      %v2372 = vpack.c.bf16 %v2308, %v2300
      %v2373 = vpack.c.bf16 %v2309, %v2301
      %v2374 = vpack.c.bf16 %v2318, %v2310
      %v2375 = vpack.c.bf16 %v2319, %v2311
      %v2376 = vpack.c.bf16 %v2320, %v2312
      %v2377 = vpack.c.bf16 %v2321, %v2313
      %v2378 = vpack.c.bf16 %v2322, %v2314
      %v2379 = vpack.c.bf16 %v2323, %v2315
      %v2380 = vpack.c.bf16 %v2324, %v2316
      %v2381 = vpack.c.bf16 %v2325, %v2317
      %v2382 = vpack.c.bf16 %v2334, %v2326
      %v2383 = vpack.c.bf16 %v2335, %v2327
      %v2384 = vpack.c.bf16 %v2336, %v2328
      %v2385 = vpack.c.bf16 %v2337, %v2329
      %v2386 = vpack.c.bf16 %v2338, %v2330
      %v2387 = vpack.c.bf16 %v2339, %v2331
      %v2388 = vpack.c.bf16 %v2340, %v2332
      %v2389 = vpack.c.bf16 %v2341, %v2333
      %v2390 = vpack.c.bf16 %v2350, %v2342
      %v2391 = vpack.c.bf16 %v2351, %v2343
      %v2392 = vpack.c.bf16 %v2352, %v2344
      %v2393 = vpack.c.bf16 %v2353, %v2345
      %v2394 = vpack.c.bf16 %v2354, %v2346
      %v2395 = vpack.c.bf16 %v2355, %v2347
      %v2396 = vpack.c.bf16 %v2356, %v2348
      %v2397 = vpack.c.bf16 %v2357, %v2349
      %v2398 = vld [vmem:[%s6] sm:$0xff]
      %v2399 = vld [vmem:[%s6 + $0x8] sm:$0xff]
      %v2400 = vld [vmem:[%s6 + $0x10] sm:$0xff]
      %v2401 = vld [vmem:[%s6 + $0x18] sm:$0xff]
      %v2402 = vld [vmem:[%s6 + $0x20] sm:$0xff]
      %v2403 = vld [vmem:[%s6 + $0x28] sm:$0xff]
      %v2404 = vld [vmem:[%s6 + $0x30] sm:$0xff]
      %v2405 = vld [vmem:[%s6 + $0x38] sm:$0xff]
      %2407 = vset.pattern.permute.xlu0 0
      %2408 = vperm.xlu0 %2407, %v2398
      %v2409 = vpop.permute.xlu0 %2408
      %2412 = vset.pattern.permute.xlu0 0
      %2413 = vperm.xlu0 %2412, %v2399
      %v2414 = vpop.permute.xlu0 %2413
      %2417 = vset.pattern.permute.xlu0 0
      %2418 = vperm.xlu0 %2417, %v2400
      %v2419 = vpop.permute.xlu0 %2418
      %2422 = vset.pattern.permute.xlu0 0
      %2423 = vperm.xlu0 %2422, %v2401
      %v2424 = vpop.permute.xlu0 %2423
      %2427 = vset.pattern.permute.xlu0 0
      %2428 = vperm.xlu0 %2427, %v2402
      %v2429 = vpop.permute.xlu0 %2428
      %2432 = vset.pattern.permute.xlu0 0
      %2433 = vperm.xlu0 %2432, %v2403
      %v2434 = vpop.permute.xlu0 %2433
      %2437 = vset.pattern.permute.xlu0 0
      %2438 = vperm.xlu0 %2437, %v2404
      %v2439 = vpop.permute.xlu0 %2438
      %2442 = vset.pattern.permute.xlu0 0
      %2443 = vperm.xlu0 %2442, %v2405
      %v2444 = vpop.permute.xlu0 %2443
      %v2454 = vunpack.c.l.b16 %v2358
      %v2455 = vunpack.c.l.b16 %v2359
      %v2456 = vunpack.c.l.b16 %v2360
      %v2457 = vunpack.c.l.b16 %v2361
      %v2458 = vunpack.c.l.b16 %v2362
      %v2459 = vunpack.c.l.b16 %v2363
      %v2460 = vunpack.c.l.b16 %v2364
      %v2461 = vunpack.c.l.b16 %v2365
      %v2462 = vpack.c.b16 %v2455, %v2454
      %v2463 = vpack.c.b16 %v2457, %v2456
      %v2464 = vpack.c.b16 %v2459, %v2458
      %v2465 = vpack.c.b16 %v2461, %v2460
      %v2467 = vsel %vm1473, %v2462, 0
      %v2470 = vsel %vm1473, %v2463, 0
      %v2473 = vsel %vm1473, %v2464, 0
      %v2476 = vsel %vm1473, %v2465, 0
      %2478 = vmatpush.bf16.msra.mxu0 0
      %2479 = vmatpush.bf16.msra.mxu0 0
      %2480 = vmatpush.bf16.msra.mxu0 0
      %2481 = vmatpush.bf16.msra.mxu0 0
      %2482 = vmatpush.bf16.msra.mxu0 %v2390
      %2483 = vmatpush.bf16.msra.mxu0 %v2382
      %2484 = vmatpush.bf16.msra.mxu0 %v2374
      %2485 = vmatpush.bf16.msra.mxu0 %v2366
      %2486 = vmatmul.bf16.gmra.mxu0 %v2467
      %v2487 = vpop.f32.mrf.mxu0
      %v2488 = vadd.f32 %v2409, %v2487
      %v2489 = vpop.f32.mrf.mxu0
      %v2490 = vadd.f32 %v2414, %v2489
      %2491 = vmatmul.bf16.gmra.mxu0 %v2470
      %v2492 = vpop.f32.mrf.mxu0
      %v2493 = vadd.f32 %v2419, %v2492
      %v2494 = vpop.f32.mrf.mxu0
      %v2495 = vadd.f32 %v2424, %v2494
      %2496 = vmatmul.bf16.gmra.mxu0 %v2473
      %v2497 = vpop.f32.mrf.mxu0
      %v2498 = vadd.f32 %v2429, %v2497
      %v2499 = vpop.f32.mrf.mxu0
      %v2500 = vadd.f32 %v2434, %v2499
      %2501 = vmatmul.bf16.gmra.mxu0 %v2476
      %v2502 = vpop.f32.mrf.mxu0
      %v2503 = vadd.f32 %v2439, %v2502
      %v2504 = vpop.f32.mrf.mxu0
      %v2505 = vadd.f32 %v2444, %v2504
      %2506 = vdwg.mxu0
      %2507 = vmatpush.bf16.msra.mxu0 0
      %2508 = vmatpush.bf16.msra.mxu0 0
      %2509 = vmatpush.bf16.msra.mxu0 0
      %2510 = vmatpush.bf16.msra.mxu0 0
      %2511 = vmatpush.bf16.msra.mxu0 %v2391
      %2512 = vmatpush.bf16.msra.mxu0 %v2383
      %2513 = vmatpush.bf16.msra.mxu0 %v2375
      %2514 = vmatpush.bf16.msra.mxu0 %v2367
      %2515 = vmatmul.bf16.gmra.mxu0 %v2467
      %v2516 = vpop.f32.mrf.mxu0
      %v2517 = vadd.f32 %v2409, %v2516
      %v2518 = vpop.f32.mrf.mxu0
      %v2519 = vadd.f32 %v2414, %v2518
      %2520 = vmatmul.bf16.gmra.mxu0 %v2470
      %v2521 = vpop.f32.mrf.mxu0
      %v2522 = vadd.f32 %v2419, %v2521
      %v2523 = vpop.f32.mrf.mxu0
      %v2524 = vadd.f32 %v2424, %v2523
      %2525 = vmatmul.bf16.gmra.mxu0 %v2473
      %v2526 = vpop.f32.mrf.mxu0
      %v2527 = vadd.f32 %v2429, %v2526
      %v2528 = vpop.f32.mrf.mxu0
      %v2529 = vadd.f32 %v2434, %v2528
      %2530 = vmatmul.bf16.gmra.mxu0 %v2476
      %v2531 = vpop.f32.mrf.mxu0
      %v2532 = vadd.f32 %v2439, %v2531
      %v2533 = vpop.f32.mrf.mxu0
      %v2534 = vadd.f32 %v2444, %v2533
      %2535 = vdwg.mxu0
      %2536 = vmatpush.bf16.msra.mxu0 0
      %2537 = vmatpush.bf16.msra.mxu0 0
      %2538 = vmatpush.bf16.msra.mxu0 0
      %2539 = vmatpush.bf16.msra.mxu0 0
      %2540 = vmatpush.bf16.msra.mxu0 %v2392
      %2541 = vmatpush.bf16.msra.mxu0 %v2384
      %2542 = vmatpush.bf16.msra.mxu0 %v2376
      %2543 = vmatpush.bf16.msra.mxu0 %v2368
      %2544 = vmatmul.bf16.gmra.mxu0 %v2467
      %v2545 = vpop.f32.mrf.mxu0
      %v2546 = vadd.f32 %v2409, %v2545
      %v2547 = vpop.f32.mrf.mxu0
      %v2548 = vadd.f32 %v2414, %v2547
      %2549 = vmatmul.bf16.gmra.mxu0 %v2470
      %v2550 = vpop.f32.mrf.mxu0
      %v2551 = vadd.f32 %v2419, %v2550
      %v2552 = vpop.f32.mrf.mxu0
      %v2553 = vadd.f32 %v2424, %v2552
      %2554 = vmatmul.bf16.gmra.mxu0 %v2473
      %v2555 = vpop.f32.mrf.mxu0
      %v2556 = vadd.f32 %v2429, %v2555
      %v2557 = vpop.f32.mrf.mxu0
      %v2558 = vadd.f32 %v2434, %v2557
      %2559 = vmatmul.bf16.gmra.mxu0 %v2476
      %v2560 = vpop.f32.mrf.mxu0
      %v2561 = vadd.f32 %v2439, %v2560
      %v2562 = vpop.f32.mrf.mxu0
      %v2563 = vadd.f32 %v2444, %v2562
      %2564 = vdwg.mxu0
      %2565 = vmatpush.bf16.msra.mxu0 0
      %2566 = vmatpush.bf16.msra.mxu0 0
      %2567 = vmatpush.bf16.msra.mxu0 0
      %2568 = vmatpush.bf16.msra.mxu0 0
      %2569 = vmatpush.bf16.msra.mxu0 %v2393
      %2570 = vmatpush.bf16.msra.mxu0 %v2385
      %2571 = vmatpush.bf16.msra.mxu0 %v2377
      %2572 = vmatpush.bf16.msra.mxu0 %v2369
      %2573 = vmatmul.bf16.gmra.mxu0 %v2467
      %v2574 = vpop.f32.mrf.mxu0
      %v2575 = vadd.f32 %v2409, %v2574
      %v2576 = vpop.f32.mrf.mxu0
      %v2577 = vadd.f32 %v2414, %v2576
      %2578 = vmatmul.bf16.gmra.mxu0 %v2470
      %v2579 = vpop.f32.mrf.mxu0
      %v2580 = vadd.f32 %v2419, %v2579
      %v2581 = vpop.f32.mrf.mxu0
      %v2582 = vadd.f32 %v2424, %v2581
      %2583 = vmatmul.bf16.gmra.mxu0 %v2473
      %v2584 = vpop.f32.mrf.mxu0
      %v2585 = vadd.f32 %v2429, %v2584
      %v2586 = vpop.f32.mrf.mxu0
      %v2587 = vadd.f32 %v2434, %v2586
      %2588 = vmatmul.bf16.gmra.mxu0 %v2476
      %v2589 = vpop.f32.mrf.mxu0
      %v2590 = vadd.f32 %v2439, %v2589
      %v2591 = vpop.f32.mrf.mxu0
      %v2592 = vadd.f32 %v2444, %v2591
      %2593 = vdwg.mxu0
      %2594 = vmatpush.bf16.msra.mxu0 0
      %2595 = vmatpush.bf16.msra.mxu0 0
      %2596 = vmatpush.bf16.msra.mxu0 0
      %2597 = vmatpush.bf16.msra.mxu0 0
      %2598 = vmatpush.bf16.msra.mxu0 %v2394
      %2599 = vmatpush.bf16.msra.mxu0 %v2386
      %2600 = vmatpush.bf16.msra.mxu0 %v2378
      %2601 = vmatpush.bf16.msra.mxu0 %v2370
      %2602 = vmatmul.bf16.gmra.mxu0 %v2467
      %v2603 = vpop.f32.mrf.mxu0
      %v2604 = vadd.f32 %v2409, %v2603
      %v2605 = vpop.f32.mrf.mxu0
      %v2606 = vadd.f32 %v2414, %v2605
      %2607 = vmatmul.bf16.gmra.mxu0 %v2470
      %v2608 = vpop.f32.mrf.mxu0
      %v2609 = vadd.f32 %v2419, %v2608
      %v2610 = vpop.f32.mrf.mxu0
      %v2611 = vadd.f32 %v2424, %v2610
      %2612 = vmatmul.bf16.gmra.mxu0 %v2473
      %v2613 = vpop.f32.mrf.mxu0
      %v2614 = vadd.f32 %v2429, %v2613
      %v2615 = vpop.f32.mrf.mxu0
      %v2616 = vadd.f32 %v2434, %v2615
      %2617 = vmatmul.bf16.gmra.mxu0 %v2476
      %v2618 = vpop.f32.mrf.mxu0
      %v2619 = vadd.f32 %v2439, %v2618
      %v2620 = vpop.f32.mrf.mxu0
      %v2621 = vadd.f32 %v2444, %v2620
      %2622 = vdwg.mxu0
      %2623 = vmatpush.bf16.msra.mxu0 0
      %2624 = vmatpush.bf16.msra.mxu0 0
      %2625 = vmatpush.bf16.msra.mxu0 0
      %2626 = vmatpush.bf16.msra.mxu0 0
      %2627 = vmatpush.bf16.msra.mxu0 %v2395
      %2628 = vmatpush.bf16.msra.mxu0 %v2387
      %2629 = vmatpush.bf16.msra.mxu0 %v2379
      %2630 = vmatpush.bf16.msra.mxu0 %v2371
      %2631 = vmatmul.bf16.gmra.mxu0 %v2467
      %v2632 = vpop.f32.mrf.mxu0
      %v2633 = vadd.f32 %v2409, %v2632
      %v2634 = vpop.f32.mrf.mxu0
      %v2635 = vadd.f32 %v2414, %v2634
      %2636 = vmatmul.bf16.gmra.mxu0 %v2470
      %v2637 = vpop.f32.mrf.mxu0
      %v2638 = vadd.f32 %v2419, %v2637
      %v2639 = vpop.f32.mrf.mxu0
      %v2640 = vadd.f32 %v2424, %v2639
      %2641 = vmatmul.bf16.gmra.mxu0 %v2473
      %v2642 = vpop.f32.mrf.mxu0
      %v2643 = vadd.f32 %v2429, %v2642
      %v2644 = vpop.f32.mrf.mxu0
      %v2645 = vadd.f32 %v2434, %v2644
      %2646 = vmatmul.bf16.gmra.mxu0 %v2476
      %v2647 = vpop.f32.mrf.mxu0
      %v2648 = vadd.f32 %v2439, %v2647
      %v2649 = vpop.f32.mrf.mxu0
      %v2650 = vadd.f32 %v2444, %v2649
      %2651 = vdwg.mxu0
      %2652 = vmatpush.bf16.msra.mxu0 0
      %2653 = vmatpush.bf16.msra.mxu0 0
      %2654 = vmatpush.bf16.msra.mxu0 0
      %2655 = vmatpush.bf16.msra.mxu0 0
      %2656 = vmatpush.bf16.msra.mxu0 %v2396
      %2657 = vmatpush.bf16.msra.mxu0 %v2388
      %2658 = vmatpush.bf16.msra.mxu0 %v2380
      %2659 = vmatpush.bf16.msra.mxu0 %v2372
      %2660 = vmatmul.bf16.gmra.mxu0 %v2467
      %v2661 = vpop.f32.mrf.mxu0
      %v2662 = vadd.f32 %v2409, %v2661
      %v2663 = vpop.f32.mrf.mxu0
      %v2664 = vadd.f32 %v2414, %v2663
      %2665 = vmatmul.bf16.gmra.mxu0 %v2470
      %v2666 = vpop.f32.mrf.mxu0
      %v2667 = vadd.f32 %v2419, %v2666
      %v2668 = vpop.f32.mrf.mxu0
      %v2669 = vadd.f32 %v2424, %v2668
      %2670 = vmatmul.bf16.gmra.mxu0 %v2473
      %v2671 = vpop.f32.mrf.mxu0
      %v2672 = vadd.f32 %v2429, %v2671
      %v2673 = vpop.f32.mrf.mxu0
      %v2674 = vadd.f32 %v2434, %v2673
      %2675 = vmatmul.bf16.gmra.mxu0 %v2476
      %v2676 = vpop.f32.mrf.mxu0
      %v2677 = vadd.f32 %v2439, %v2676
      %v2678 = vpop.f32.mrf.mxu0
      %v2679 = vadd.f32 %v2444, %v2678
      %2680 = vdwg.mxu0
      %2681 = vmatpush.bf16.msra.mxu0 0
      %2682 = vmatpush.bf16.msra.mxu0 0
      %2683 = vmatpush.bf16.msra.mxu0 0
      %2684 = vmatpush.bf16.msra.mxu0 0
      %2685 = vmatpush.bf16.msra.mxu0 %v2397
      %2686 = vmatpush.bf16.msra.mxu0 %v2389
      %2687 = vmatpush.bf16.msra.mxu0 %v2381
      %2688 = vmatpush.bf16.msra.mxu0 %v2373
      %2689 = vmatmul.bf16.gmra.mxu0 %v2467
      %v2690 = vpop.f32.mrf.mxu0
      %v2691 = vadd.f32 %v2409, %v2690
      %v2692 = vpop.f32.mrf.mxu0
      %v2693 = vadd.f32 %v2414, %v2692
      %2694 = vmatmul.bf16.gmra.mxu0 %v2470
      %v2695 = vpop.f32.mrf.mxu0
      %v2696 = vadd.f32 %v2419, %v2695
      %v2697 = vpop.f32.mrf.mxu0
      %v2698 = vadd.f32 %v2424, %v2697
      %2699 = vmatmul.bf16.gmra.mxu0 %v2473
      %v2700 = vpop.f32.mrf.mxu0
      %v2701 = vadd.f32 %v2429, %v2700
      %v2702 = vpop.f32.mrf.mxu0
      %v2703 = vadd.f32 %v2434, %v2702
      %2704 = vmatmul.bf16.gmra.mxu0 %v2476
      %v2705 = vpop.f32.mrf.mxu0
      %v2706 = vadd.f32 %v2439, %v2705
      %v2707 = vpop.f32.mrf.mxu0
      %v2708 = vadd.f32 %v2444, %v2707
      %2709 = vdwg.mxu0
      %v2710 = vmul.f32 %v2488, 100.0
      %v2711 = vmul.f32 %v2517, 100.0
      %v2712 = vmul.f32 %v2546, 100.0
      %v2713 = vmul.f32 %v2575, 100.0
      %v2714 = vmul.f32 %v2604, 100.0
      %v2715 = vmul.f32 %v2633, 100.0
      %v2716 = vmul.f32 %v2662, 100.0
      %v2717 = vmul.f32 %v2691, 100.0
      %v2718 = vmul.f32 %v2490, 100.0
      %v2719 = vmul.f32 %v2519, 100.0
      %v2720 = vmul.f32 %v2548, 100.0
      %v2721 = vmul.f32 %v2577, 100.0
      %v2722 = vmul.f32 %v2606, 100.0
      %v2723 = vmul.f32 %v2635, 100.0
      %v2724 = vmul.f32 %v2664, 100.0
      %v2725 = vmul.f32 %v2693, 100.0
      %v2726 = vmul.f32 %v2493, 100.0
      %v2727 = vmul.f32 %v2522, 100.0
      %v2728 = vmul.f32 %v2551, 100.0
      %v2729 = vmul.f32 %v2580, 100.0
      %v2730 = vmul.f32 %v2609, 100.0
      %v2731 = vmul.f32 %v2638, 100.0
      %v2732 = vmul.f32 %v2667, 100.0
      %v2733 = vmul.f32 %v2696, 100.0
      %v2734 = vmul.f32 %v2495, 100.0
      %v2735 = vmul.f32 %v2524, 100.0
      %v2736 = vmul.f32 %v2553, 100.0
      %v2737 = vmul.f32 %v2582, 100.0
      %v2738 = vmul.f32 %v2611, 100.0
      %v2739 = vmul.f32 %v2640, 100.0
      %v2740 = vmul.f32 %v2669, 100.0
      %v2741 = vmul.f32 %v2698, 100.0
      %v2742 = vmul.f32 %v2498, 100.0
      %v2743 = vmul.f32 %v2527, 100.0
      %v2744 = vmul.f32 %v2556, 100.0
      %v2745 = vmul.f32 %v2585, 100.0
      %v2746 = vmul.f32 %v2614, 100.0
      %v2747 = vmul.f32 %v2643, 100.0
      %v2748 = vmul.f32 %v2672, 100.0
      %v2749 = vmul.f32 %v2701, 100.0
      %v2750 = vmul.f32 %v2500, 100.0
      %v2751 = vmul.f32 %v2529, 100.0
      %v2752 = vmul.f32 %v2558, 100.0
      %v2753 = vmul.f32 %v2587, 100.0
      %v2754 = vmul.f32 %v2616, 100.0
      %v2755 = vmul.f32 %v2645, 100.0
      %v2756 = vmul.f32 %v2674, 100.0
      %v2757 = vmul.f32 %v2703, 100.0
      %v2758 = vmul.f32 %v2503, 100.0
      %v2759 = vmul.f32 %v2532, 100.0
      %v2760 = vmul.f32 %v2561, 100.0
      %v2761 = vmul.f32 %v2590, 100.0
      %v2762 = vmul.f32 %v2619, 100.0
      %v2763 = vmul.f32 %v2648, 100.0
      %v2764 = vmul.f32 %v2677, 100.0
      %v2765 = vmul.f32 %v2706, 100.0
      %v2766 = vmul.f32 %v2505, 100.0
      %v2767 = vmul.f32 %v2534, 100.0
      %v2768 = vmul.f32 %v2563, 100.0
      %v2769 = vmul.f32 %v2592, 100.0
      %v2770 = vmul.f32 %v2621, 100.0
      %v2771 = vmul.f32 %v2650, 100.0
      %v2772 = vmul.f32 %v2679, 100.0
      %v2773 = vmul.f32 %v2708, 100.0
      %v2774 = vmin.f32 %v2710, 20.0
      %v2775 = vmin.f32 %v2711, 20.0
      %v2776 = vmin.f32 %v2712, 20.0
      %v2777 = vmin.f32 %v2713, 20.0
      %v2778 = vmin.f32 %v2714, 20.0
      %v2779 = vmin.f32 %v2715, 20.0
      %v2780 = vmin.f32 %v2716, 20.0
      %v2781 = vmin.f32 %v2717, 20.0
      %v2782 = vmin.f32 %v2718, 20.0
      %v2783 = vmin.f32 %v2719, 20.0
      %v2784 = vmin.f32 %v2720, 20.0
      %v2785 = vmin.f32 %v2721, 20.0
      %v2786 = vmin.f32 %v2722, 20.0
      %v2787 = vmin.f32 %v2723, 20.0
      %v2788 = vmin.f32 %v2724, 20.0
      %v2789 = vmin.f32 %v2725, 20.0
      %v2790 = vmin.f32 %v2726, 20.0
      %v2791 = vmin.f32 %v2727, 20.0
      %v2792 = vmin.f32 %v2728, 20.0
      %v2793 = vmin.f32 %v2729, 20.0
      %v2794 = vmin.f32 %v2730, 20.0
      %v2795 = vmin.f32 %v2731, 20.0
      %v2796 = vmin.f32 %v2732, 20.0
      %v2797 = vmin.f32 %v2733, 20.0
      %v2798 = vmin.f32 %v2734, 20.0
      %v2799 = vmin.f32 %v2735, 20.0
      %v2800 = vmin.f32 %v2736, 20.0
      %v2801 = vmin.f32 %v2737, 20.0
      %v2802 = vmin.f32 %v2738, 20.0
      %v2803 = vmin.f32 %v2739, 20.0
      %v2804 = vmin.f32 %v2740, 20.0
      %v2805 = vmin.f32 %v2741, 20.0
      %v2806 = vmin.f32 %v2742, 20.0
      %v2807 = vmin.f32 %v2743, 20.0
      %v2808 = vmin.f32 %v2744, 20.0
      %v2809 = vmin.f32 %v2745, 20.0
      %v2810 = vmin.f32 %v2746, 20.0
      %v2811 = vmin.f32 %v2747, 20.0
      %v2812 = vmin.f32 %v2748, 20.0
      %v2813 = vmin.f32 %v2749, 20.0
      %v2814 = vmin.f32 %v2750, 20.0
      %v2815 = vmin.f32 %v2751, 20.0
      %v2816 = vmin.f32 %v2752, 20.0
      %v2817 = vmin.f32 %v2753, 20.0
      %v2818 = vmin.f32 %v2754, 20.0
      %v2819 = vmin.f32 %v2755, 20.0
      %v2820 = vmin.f32 %v2756, 20.0
      %v2821 = vmin.f32 %v2757, 20.0
      %v2822 = vmin.f32 %v2758, 20.0
      %v2823 = vmin.f32 %v2759, 20.0
      %v2824 = vmin.f32 %v2760, 20.0
      %v2825 = vmin.f32 %v2761, 20.0
      %v2826 = vmin.f32 %v2762, 20.0
      %v2827 = vmin.f32 %v2763, 20.0
      %v2828 = vmin.f32 %v2764, 20.0
      %v2829 = vmin.f32 %v2765, 20.0
      %v2830 = vmin.f32 %v2766, 20.0
      %v2831 = vmin.f32 %v2767, 20.0
      %v2832 = vmin.f32 %v2768, 20.0
      %v2833 = vmin.f32 %v2769, 20.0
      %v2834 = vmin.f32 %v2770, 20.0
      %v2835 = vmin.f32 %v2771, 20.0
      %v2836 = vmin.f32 %v2772, 20.0
      %v2837 = vmin.f32 %v2773, 20.0
      %v2838 = vmul.f32 %v2774, 1.442695
      %v2839 = vpow.pop %v2838
      %v2840 = vmul.f32 %v2775, 1.442695
      %v2841 = vpow.pop %v2840
      %v2842 = vmul.f32 %v2776, 1.442695
      %v2843 = vpow.pop %v2842
      %v2844 = vmul.f32 %v2777, 1.442695
      %v2845 = vpow.pop %v2844
      %v2846 = vmul.f32 %v2778, 1.442695
      %v2847 = vpow.pop %v2846
      %v2848 = vmul.f32 %v2779, 1.442695
      %v2849 = vpow.pop %v2848
      %v2850 = vmul.f32 %v2780, 1.442695
      %v2851 = vpow.pop %v2850
      %v2852 = vmul.f32 %v2781, 1.442695
      %v2853 = vpow.pop %v2852
      %v2854 = vmul.f32 %v2782, 1.442695
      %v2855 = vpow.pop %v2854
      %v2856 = vmul.f32 %v2783, 1.442695
      %v2857 = vpow.pop %v2856
      %v2858 = vmul.f32 %v2784, 1.442695
      %v2859 = vpow.pop %v2858
      %v2860 = vmul.f32 %v2785, 1.442695
      %v2861 = vpow.pop %v2860
      %v2862 = vmul.f32 %v2786, 1.442695
      %v2863 = vpow.pop %v2862
      %v2864 = vmul.f32 %v2787, 1.442695
      %v2865 = vpow.pop %v2864
      %v2866 = vmul.f32 %v2788, 1.442695
      %v2867 = vpow.pop %v2866
      %v2868 = vmul.f32 %v2789, 1.442695
      %v2869 = vpow.pop %v2868
      %v2870 = vmul.f32 %v2790, 1.442695
      %v2871 = vpow.pop %v2870
      %v2872 = vmul.f32 %v2791, 1.442695
      %v2873 = vpow.pop %v2872
      %v2874 = vmul.f32 %v2792, 1.442695
      %v2875 = vpow.pop %v2874
      %v2876 = vmul.f32 %v2793, 1.442695
      %v2877 = vpow.pop %v2876
      %v2878 = vmul.f32 %v2794, 1.442695
      %v2879 = vpow.pop %v2878
      %v2880 = vmul.f32 %v2795, 1.442695
      %v2881 = vpow.pop %v2880
      %v2882 = vmul.f32 %v2796, 1.442695
      %v2883 = vpow.pop %v2882
      %v2884 = vmul.f32 %v2797, 1.442695
      %v2885 = vpow.pop %v2884
      %v2886 = vmul.f32 %v2798, 1.442695
      %v2887 = vpow.pop %v2886
      %v2888 = vmul.f32 %v2799, 1.442695
      %v2889 = vpow.pop %v2888
      %v2890 = vmul.f32 %v2800, 1.442695
      %v2891 = vpow.pop %v2890
      %v2892 = vmul.f32 %v2801, 1.442695
      %v2893 = vpow.pop %v2892
      %v2894 = vmul.f32 %v2802, 1.442695
      %v2895 = vpow.pop %v2894
      %v2896 = vmul.f32 %v2803, 1.442695
      %v2897 = vpow.pop %v2896
      %v2898 = vmul.f32 %v2804, 1.442695
      %v2899 = vpow.pop %v2898
      %v2900 = vmul.f32 %v2805, 1.442695
      %v2901 = vpow.pop %v2900
      %v2902 = vmul.f32 %v2806, 1.442695
      %v2903 = vpow.pop %v2902
      %v2904 = vmul.f32 %v2807, 1.442695
      %v2905 = vpow.pop %v2904
      %v2906 = vmul.f32 %v2808, 1.442695
      %v2907 = vpow.pop %v2906
      %v2908 = vmul.f32 %v2809, 1.442695
      %v2909 = vpow.pop %v2908
      %v2910 = vmul.f32 %v2810, 1.442695
      %v2911 = vpow.pop %v2910
      %v2912 = vmul.f32 %v2811, 1.442695
      %v2913 = vpow.pop %v2912
      %v2914 = vmul.f32 %v2812, 1.442695
      %v2915 = vpow.pop %v2914
      %v2916 = vmul.f32 %v2813, 1.442695
      %v2917 = vpow.pop %v2916
      %v2918 = vmul.f32 %v2814, 1.442695
      %v2919 = vpow.pop %v2918
      %v2920 = vmul.f32 %v2815, 1.442695
      %v2921 = vpow.pop %v2920
      %v2922 = vmul.f32 %v2816, 1.442695
      %v2923 = vpow.pop %v2922
      %v2924 = vmul.f32 %v2817, 1.442695
      %v2925 = vpow.pop %v2924
      %v2926 = vmul.f32 %v2818, 1.442695
      %v2927 = vpow.pop %v2926
      %v2928 = vmul.f32 %v2819, 1.442695
      %v2929 = vpow.pop %v2928
      %v2930 = vmul.f32 %v2820, 1.442695
      %v2931 = vpow.pop %v2930
      %v2932 = vmul.f32 %v2821, 1.442695
      %v2933 = vpow.pop %v2932
      %v2934 = vmul.f32 %v2822, 1.442695
      %v2935 = vpow.pop %v2934
      %v2936 = vmul.f32 %v2823, 1.442695
      %v2937 = vpow.pop %v2936
      %v2938 = vmul.f32 %v2824, 1.442695
      %v2939 = vpow.pop %v2938
      %v2940 = vmul.f32 %v2825, 1.442695
      %v2941 = vpow.pop %v2940
      %v2942 = vmul.f32 %v2826, 1.442695
      %v2943 = vpow.pop %v2942
      %v2944 = vmul.f32 %v2827, 1.442695
      %v2945 = vpow.pop %v2944
      %v2946 = vmul.f32 %v2828, 1.442695
      %v2947 = vpow.pop %v2946
      %v2948 = vmul.f32 %v2829, 1.442695
      %v2949 = vpow.pop %v2948
      %v2950 = vmul.f32 %v2830, 1.442695
      %v2951 = vpow.pop %v2950
      %v2952 = vmul.f32 %v2831, 1.442695
      %v2953 = vpow.pop %v2952
      %v2954 = vmul.f32 %v2832, 1.442695
      %v2955 = vpow.pop %v2954
      %v2956 = vmul.f32 %v2833, 1.442695
      %v2957 = vpow.pop %v2956
      %v2958 = vmul.f32 %v2834, 1.442695
      %v2959 = vpow.pop %v2958
      %v2960 = vmul.f32 %v2835, 1.442695
      %v2961 = vpow.pop %v2960
      %v2962 = vmul.f32 %v2836, 1.442695
      %v2963 = vpow.pop %v2962
      %v2964 = vmul.f32 %v2837, 1.442695
      %v2965 = vpow.pop %v2964
      %vm2966 = vcmp.gt.f32.partialorder %v2710, 20.0
      %vm2967 = vcmp.gt.f32.partialorder %v2711, 20.0
      %vm2968 = vcmp.gt.f32.partialorder %v2712, 20.0
      %vm2969 = vcmp.gt.f32.partialorder %v2713, 20.0
      %vm2970 = vcmp.gt.f32.partialorder %v2714, 20.0
      %vm2971 = vcmp.gt.f32.partialorder %v2715, 20.0
      %vm2972 = vcmp.gt.f32.partialorder %v2716, 20.0
      %vm2973 = vcmp.gt.f32.partialorder %v2717, 20.0
      %vm2974 = vcmp.gt.f32.partialorder %v2718, 20.0
      %vm2975 = vcmp.gt.f32.partialorder %v2719, 20.0
      %vm2976 = vcmp.gt.f32.partialorder %v2720, 20.0
      %vm2977 = vcmp.gt.f32.partialorder %v2721, 20.0
      %vm2978 = vcmp.gt.f32.partialorder %v2722, 20.0
      %vm2979 = vcmp.gt.f32.partialorder %v2723, 20.0
      %vm2980 = vcmp.gt.f32.partialorder %v2724, 20.0
      %vm2981 = vcmp.gt.f32.partialorder %v2725, 20.0
      %vm2982 = vcmp.gt.f32.partialorder %v2726, 20.0
      %vm2983 = vcmp.gt.f32.partialorder %v2727, 20.0
      %vm2984 = vcmp.gt.f32.partialorder %v2728, 20.0
      %vm2985 = vcmp.gt.f32.partialorder %v2729, 20.0
      %vm2986 = vcmp.gt.f32.partialorder %v2730, 20.0
      %vm2987 = vcmp.gt.f32.partialorder %v2731, 20.0
      %vm2988 = vcmp.gt.f32.partialorder %v2732, 20.0
      %vm2989 = vcmp.gt.f32.partialorder %v2733, 20.0
      %vm2990 = vcmp.gt.f32.partialorder %v2734, 20.0
      %vm2991 = vcmp.gt.f32.partialorder %v2735, 20.0
      %vm2992 = vcmp.gt.f32.partialorder %v2736, 20.0
      %vm2993 = vcmp.gt.f32.partialorder %v2737, 20.0
      %vm2994 = vcmp.gt.f32.partialorder %v2738, 20.0
      %vm2995 = vcmp.gt.f32.partialorder %v2739, 20.0
      %vm2996 = vcmp.gt.f32.partialorder %v2740, 20.0
      %vm2997 = vcmp.gt.f32.partialorder %v2741, 20.0
      %vm2998 = vcmp.gt.f32.partialorder %v2742, 20.0
      %vm2999 = vcmp.gt.f32.partialorder %v2743, 20.0
      %vm3000 = vcmp.gt.f32.partialorder %v2744, 20.0
      %vm3001 = vcmp.gt.f32.partialorder %v2745, 20.0
      %vm3002 = vcmp.gt.f32.partialorder %v2746, 20.0
      %vm3003 = vcmp.gt.f32.partialorder %v2747, 20.0
      %vm3004 = vcmp.gt.f32.partialorder %v2748, 20.0
      %vm3005 = vcmp.gt.f32.partialorder %v2749, 20.0
      %vm3006 = vcmp.gt.f32.partialorder %v2750, 20.0
      %vm3007 = vcmp.gt.f32.partialorder %v2751, 20.0
      %vm3008 = vcmp.gt.f32.partialorder %v2752, 20.0
      %vm3009 = vcmp.gt.f32.partialorder %v2753, 20.0
      %vm3010 = vcmp.gt.f32.partialorder %v2754, 20.0
      %vm3011 = vcmp.gt.f32.partialorder %v2755, 20.0
      %vm3012 = vcmp.gt.f32.partialorder %v2756, 20.0
      %vm3013 = vcmp.gt.f32.partialorder %v2757, 20.0
      %vm3014 = vcmp.gt.f32.partialorder %v2758, 20.0
      %vm3015 = vcmp.gt.f32.partialorder %v2759, 20.0
      %vm3016 = vcmp.gt.f32.partialorder %v2760, 20.0
      %vm3017 = vcmp.gt.f32.partialorder %v2761, 20.0
      %vm3018 = vcmp.gt.f32.partialorder %v2762, 20.0
      %vm3019 = vcmp.gt.f32.partialorder %v2763, 20.0
      %vm3020 = vcmp.gt.f32.partialorder %v2764, 20.0
      %vm3021 = vcmp.gt.f32.partialorder %v2765, 20.0
      %vm3022 = vcmp.gt.f32.partialorder %v2766, 20.0
      %vm3023 = vcmp.gt.f32.partialorder %v2767, 20.0
      %vm3024 = vcmp.gt.f32.partialorder %v2768, 20.0
      %vm3025 = vcmp.gt.f32.partialorder %v2769, 20.0
      %vm3026 = vcmp.gt.f32.partialorder %v2770, 20.0
      %vm3027 = vcmp.gt.f32.partialorder %v2771, 20.0
      %vm3028 = vcmp.gt.f32.partialorder %v2772, 20.0
      %vm3029 = vcmp.gt.f32.partialorder %v2773, 20.0
      %v3030 = vadd.f32 %v2839, 1.0
      %v3031 = vadd.f32 %v2841, 1.0
      %v3032 = vadd.f32 %v2843, 1.0
      %v3033 = vadd.f32 %v2845, 1.0
      %v3034 = vadd.f32 %v2847, 1.0
      %v3035 = vadd.f32 %v2849, 1.0
      %v3036 = vadd.f32 %v2851, 1.0
      %v3037 = vadd.f32 %v2853, 1.0
      %v3038 = vadd.f32 %v2855, 1.0
      %v3039 = vadd.f32 %v2857, 1.0
      %v3040 = vadd.f32 %v2859, 1.0
      %v3041 = vadd.f32 %v2861, 1.0
      %v3042 = vadd.f32 %v2863, 1.0
      %v3043 = vadd.f32 %v2865, 1.0
      %v3044 = vadd.f32 %v2867, 1.0
      %v3045 = vadd.f32 %v2869, 1.0
      %v3046 = vadd.f32 %v2871, 1.0
      %v3047 = vadd.f32 %v2873, 1.0
      %v3048 = vadd.f32 %v2875, 1.0
      %v3049 = vadd.f32 %v2877, 1.0
      %v3050 = vadd.f32 %v2879, 1.0
      %v3051 = vadd.f32 %v2881, 1.0
      %v3052 = vadd.f32 %v2883, 1.0
      %v3053 = vadd.f32 %v2885, 1.0
      %v3054 = vadd.f32 %v2887, 1.0
      %v3055 = vadd.f32 %v2889, 1.0
      %v3056 = vadd.f32 %v2891, 1.0
      %v3057 = vadd.f32 %v2893, 1.0
      %v3058 = vadd.f32 %v2895, 1.0
      %v3059 = vadd.f32 %v2897, 1.0
      %v3060 = vadd.f32 %v2899, 1.0
      %v3061 = vadd.f32 %v2901, 1.0
      %v3062 = vadd.f32 %v2903, 1.0
      %v3063 = vadd.f32 %v2905, 1.0
      %v3064 = vadd.f32 %v2907, 1.0
      %v3065 = vadd.f32 %v2909, 1.0
      %v3066 = vadd.f32 %v2911, 1.0
      %v3067 = vadd.f32 %v2913, 1.0
      %v3068 = vadd.f32 %v2915, 1.0
      %v3069 = vadd.f32 %v2917, 1.0
      %v3070 = vadd.f32 %v2919, 1.0
      %v3071 = vadd.f32 %v2921, 1.0
      %v3072 = vadd.f32 %v2923, 1.0
      %v3073 = vadd.f32 %v2925, 1.0
      %v3074 = vadd.f32 %v2927, 1.0
      %v3075 = vadd.f32 %v2929, 1.0
      %v3076 = vadd.f32 %v2931, 1.0
      %v3077 = vadd.f32 %v2933, 1.0
      %v3078 = vadd.f32 %v2935, 1.0
      %v3079 = vadd.f32 %v2937, 1.0
      %v3080 = vadd.f32 %v2939, 1.0
      %v3081 = vadd.f32 %v2941, 1.0
      %v3082 = vadd.f32 %v2943, 1.0
      %v3083 = vadd.f32 %v2945, 1.0
      %v3084 = vadd.f32 %v2947, 1.0
      %v3085 = vadd.f32 %v2949, 1.0
      %v3086 = vadd.f32 %v2951, 1.0
      %v3087 = vadd.f32 %v2953, 1.0
      %v3088 = vadd.f32 %v2955, 1.0
      %v3089 = vadd.f32 %v2957, 1.0
      %v3090 = vadd.f32 %v2959, 1.0
      %v3091 = vadd.f32 %v2961, 1.0
      %v3092 = vadd.f32 %v2963, 1.0
      %v3093 = vadd.f32 %v2965, 1.0
      %v3094 = vlog2.pop %v3030
      %v3095 = vmul.f32 %v3094, 0.6931472
      %v3096 = vlog2.pop %v3031
      %v3097 = vmul.f32 %v3096, 0.6931472
      %v3098 = vlog2.pop %v3032
      %v3099 = vmul.f32 %v3098, 0.6931472
      %v3100 = vlog2.pop %v3033
      %v3101 = vmul.f32 %v3100, 0.6931472
      %v3102 = vlog2.pop %v3034
      %v3103 = vmul.f32 %v3102, 0.6931472
      %v3104 = vlog2.pop %v3035
      %v3105 = vmul.f32 %v3104, 0.6931472
      %v3106 = vlog2.pop %v3036
      %v3107 = vmul.f32 %v3106, 0.6931472
      %v3108 = vlog2.pop %v3037
      %v3109 = vmul.f32 %v3108, 0.6931472
      %v3110 = vlog2.pop %v3038
      %v3111 = vmul.f32 %v3110, 0.6931472
      %v3112 = vlog2.pop %v3039
      %v3113 = vmul.f32 %v3112, 0.6931472
      %v3114 = vlog2.pop %v3040
      %v3115 = vmul.f32 %v3114, 0.6931472
      %v3116 = vlog2.pop %v3041
      %v3117 = vmul.f32 %v3116, 0.6931472
      %v3118 = vlog2.pop %v3042
      %v3119 = vmul.f32 %v3118, 0.6931472
      %v3120 = vlog2.pop %v3043
      %v3121 = vmul.f32 %v3120, 0.6931472
      %v3122 = vlog2.pop %v3044
      %v3123 = vmul.f32 %v3122, 0.6931472
      %v3124 = vlog2.pop %v3045
      %v3125 = vmul.f32 %v3124, 0.6931472
      %v3126 = vlog2.pop %v3046
      %v3127 = vmul.f32 %v3126, 0.6931472
      %v3128 = vlog2.pop %v3047
      %v3129 = vmul.f32 %v3128, 0.6931472
      %v3130 = vlog2.pop %v3048
      %v3131 = vmul.f32 %v3130, 0.6931472
      %v3132 = vlog2.pop %v3049
      %v3133 = vmul.f32 %v3132, 0.6931472
      %v3134 = vlog2.pop %v3050
      %v3135 = vmul.f32 %v3134, 0.6931472
      %v3136 = vlog2.pop %v3051
      %v3137 = vmul.f32 %v3136, 0.6931472
      %v3138 = vlog2.pop %v3052
      %v3139 = vmul.f32 %v3138, 0.6931472
      %v3140 = vlog2.pop %v3053
      %v3141 = vmul.f32 %v3140, 0.6931472
      %v3142 = vlog2.pop %v3054
      %v3143 = vmul.f32 %v3142, 0.6931472
      %v3144 = vlog2.pop %v3055
      %v3145 = vmul.f32 %v3144, 0.6931472
      %v3146 = vlog2.pop %v3056
      %v3147 = vmul.f32 %v3146, 0.6931472
      %v3148 = vlog2.pop %v3057
      %v3149 = vmul.f32 %v3148, 0.6931472
      %v3150 = vlog2.pop %v3058
      %v3151 = vmul.f32 %v3150, 0.6931472
      %v3152 = vlog2.pop %v3059
      %v3153 = vmul.f32 %v3152, 0.6931472
      %v3154 = vlog2.pop %v3060
      %v3155 = vmul.f32 %v3154, 0.6931472
      %v3156 = vlog2.pop %v3061
      %v3157 = vmul.f32 %v3156, 0.6931472
      %v3158 = vlog2.pop %v3062
      %v3159 = vmul.f32 %v3158, 0.6931472
      %v3160 = vlog2.pop %v3063
      %v3161 = vmul.f32 %v3160, 0.6931472
      %v3162 = vlog2.pop %v3064
      %v3163 = vmul.f32 %v3162, 0.6931472
      %v3164 = vlog2.pop %v3065
      %v3165 = vmul.f32 %v3164, 0.6931472
      %v3166 = vlog2.pop %v3066
      %v3167 = vmul.f32 %v3166, 0.6931472
      %v3168 = vlog2.pop %v3067
      %v3169 = vmul.f32 %v3168, 0.6931472
      %v3170 = vlog2.pop %v3068
      %v3171 = vmul.f32 %v3170, 0.6931472
      %v3172 = vlog2.pop %v3069
      %v3173 = vmul.f32 %v3172, 0.6931472
      %v3174 = vlog2.pop %v3070
      %v3175 = vmul.f32 %v3174, 0.6931472
      %v3176 = vlog2.pop %v3071
      %v3177 = vmul.f32 %v3176, 0.6931472
      %v3178 = vlog2.pop %v3072
      %v3179 = vmul.f32 %v3178, 0.6931472
      %v3180 = vlog2.pop %v3073
      %v3181 = vmul.f32 %v3180, 0.6931472
      %v3182 = vlog2.pop %v3074
      %v3183 = vmul.f32 %v3182, 0.6931472
      %v3184 = vlog2.pop %v3075
      %v3185 = vmul.f32 %v3184, 0.6931472
      %v3186 = vlog2.pop %v3076
      %v3187 = vmul.f32 %v3186, 0.6931472
      %v3188 = vlog2.pop %v3077
      %v3189 = vmul.f32 %v3188, 0.6931472
      %v3190 = vlog2.pop %v3078
      %v3191 = vmul.f32 %v3190, 0.6931472
      %v3192 = vlog2.pop %v3079
      %v3193 = vmul.f32 %v3192, 0.6931472
      %v3194 = vlog2.pop %v3080
      %v3195 = vmul.f32 %v3194, 0.6931472
      %v3196 = vlog2.pop %v3081
      %v3197 = vmul.f32 %v3196, 0.6931472
      %v3198 = vlog2.pop %v3082
      %v3199 = vmul.f32 %v3198, 0.6931472
      %v3200 = vlog2.pop %v3083
      %v3201 = vmul.f32 %v3200, 0.6931472
      %v3202 = vlog2.pop %v3084
      %v3203 = vmul.f32 %v3202, 0.6931472
      %v3204 = vlog2.pop %v3085
      %v3205 = vmul.f32 %v3204, 0.6931472
      %v3206 = vlog2.pop %v3086
      %v3207 = vmul.f32 %v3206, 0.6931472
      %v3208 = vlog2.pop %v3087
      %v3209 = vmul.f32 %v3208, 0.6931472
      %v3210 = vlog2.pop %v3088
      %v3211 = vmul.f32 %v3210, 0.6931472
      %v3212 = vlog2.pop %v3089
      %v3213 = vmul.f32 %v3212, 0.6931472
      %v3214 = vlog2.pop %v3090
      %v3215 = vmul.f32 %v3214, 0.6931472
      %v3216 = vlog2.pop %v3091
      %v3217 = vmul.f32 %v3216, 0.6931472
      %v3218 = vlog2.pop %v3092
      %v3219 = vmul.f32 %v3218, 0.6931472
      %v3220 = vlog2.pop %v3093
      %v3221 = vmul.f32 %v3220, 0.6931472
      %v3222 = vmul.f32 %v3095, 0.01
      %v3223 = vmul.f32 %v3097, 0.01
      %v3224 = vmul.f32 %v3099, 0.01
      %v3225 = vmul.f32 %v3101, 0.01
      %v3226 = vmul.f32 %v3103, 0.01
      %v3227 = vmul.f32 %v3105, 0.01
      %v3228 = vmul.f32 %v3107, 0.01
      %v3229 = vmul.f32 %v3109, 0.01
      %v3230 = vmul.f32 %v3111, 0.01
      %v3231 = vmul.f32 %v3113, 0.01
      %v3232 = vmul.f32 %v3115, 0.01
      %v3233 = vmul.f32 %v3117, 0.01
      %v3234 = vmul.f32 %v3119, 0.01
      %v3235 = vmul.f32 %v3121, 0.01
      %v3236 = vmul.f32 %v3123, 0.01
      %v3237 = vmul.f32 %v3125, 0.01
      %v3238 = vmul.f32 %v3127, 0.01
      %v3239 = vmul.f32 %v3129, 0.01
      %v3240 = vmul.f32 %v3131, 0.01
      %v3241 = vmul.f32 %v3133, 0.01
      %v3242 = vmul.f32 %v3135, 0.01
      %v3243 = vmul.f32 %v3137, 0.01
      %v3244 = vmul.f32 %v3139, 0.01
      %v3245 = vmul.f32 %v3141, 0.01
      %v3246 = vmul.f32 %v3143, 0.01
      %v3247 = vmul.f32 %v3145, 0.01
      %v3248 = vmul.f32 %v3147, 0.01
      %v3249 = vmul.f32 %v3149, 0.01
      %v3250 = vmul.f32 %v3151, 0.01
      %v3251 = vmul.f32 %v3153, 0.01
      %v3252 = vmul.f32 %v3155, 0.01
      %v3253 = vmul.f32 %v3157, 0.01
      %v3254 = vmul.f32 %v3159, 0.01
      %v3255 = vmul.f32 %v3161, 0.01
      %v3256 = vmul.f32 %v3163, 0.01
      %v3257 = vmul.f32 %v3165, 0.01
      %v3258 = vmul.f32 %v3167, 0.01
      %v3259 = vmul.f32 %v3169, 0.01
      %v3260 = vmul.f32 %v3171, 0.01
      %v3261 = vmul.f32 %v3173, 0.01
      %v3262 = vmul.f32 %v3175, 0.01
      %v3263 = vmul.f32 %v3177, 0.01
      %v3264 = vmul.f32 %v3179, 0.01
      %v3265 = vmul.f32 %v3181, 0.01
      %v3266 = vmul.f32 %v3183, 0.01
      %v3267 = vmul.f32 %v3185, 0.01
      %v3268 = vmul.f32 %v3187, 0.01
      %v3269 = vmul.f32 %v3189, 0.01
      %v3270 = vmul.f32 %v3191, 0.01
      %v3271 = vmul.f32 %v3193, 0.01
      %v3272 = vmul.f32 %v3195, 0.01
      %v3273 = vmul.f32 %v3197, 0.01
      %v3274 = vmul.f32 %v3199, 0.01
      %v3275 = vmul.f32 %v3201, 0.01
      %v3276 = vmul.f32 %v3203, 0.01
      %v3277 = vmul.f32 %v3205, 0.01
      %v3278 = vmul.f32 %v3207, 0.01
      %v3279 = vmul.f32 %v3209, 0.01
      %v3280 = vmul.f32 %v3211, 0.01
      %v3281 = vmul.f32 %v3213, 0.01
      %v3282 = vmul.f32 %v3215, 0.01
      %v3283 = vmul.f32 %v3217, 0.01
      %v3284 = vmul.f32 %v3219, 0.01
      %v3285 = vmul.f32 %v3221, 0.01
      %v3286 = vsel %vm2966, %v2488, %v3222
      %v3287 = vsel %vm2967, %v2517, %v3223
      %v3288 = vsel %vm2968, %v2546, %v3224
      %v3289 = vsel %vm2969, %v2575, %v3225
      %v3290 = vsel %vm2970, %v2604, %v3226
      %v3291 = vsel %vm2971, %v2633, %v3227
      %v3292 = vsel %vm2972, %v2662, %v3228
      %v3293 = vsel %vm2973, %v2691, %v3229
      %v3294 = vsel %vm2974, %v2490, %v3230
      %v3295 = vsel %vm2975, %v2519, %v3231
      %v3296 = vsel %vm2976, %v2548, %v3232
      %v3297 = vsel %vm2977, %v2577, %v3233
      %v3298 = vsel %vm2978, %v2606, %v3234
      %v3299 = vsel %vm2979, %v2635, %v3235
      %v3300 = vsel %vm2980, %v2664, %v3236
      %v3301 = vsel %vm2981, %v2693, %v3237
      %v3302 = vsel %vm2982, %v2493, %v3238
      %v3303 = vsel %vm2983, %v2522, %v3239
      %v3304 = vsel %vm2984, %v2551, %v3240
      %v3305 = vsel %vm2985, %v2580, %v3241
      %v3306 = vsel %vm2986, %v2609, %v3242
      %v3307 = vsel %vm2987, %v2638, %v3243
      %v3308 = vsel %vm2988, %v2667, %v3244
      %v3309 = vsel %vm2989, %v2696, %v3245
      %v3310 = vsel %vm2990, %v2495, %v3246
      %v3311 = vsel %vm2991, %v2524, %v3247
      %v3312 = vsel %vm2992, %v2553, %v3248
      %v3313 = vsel %vm2993, %v2582, %v3249
      %v3314 = vsel %vm2994, %v2611, %v3250
      %v3315 = vsel %vm2995, %v2640, %v3251
      %v3316 = vsel %vm2996, %v2669, %v3252
      %v3317 = vsel %vm2997, %v2698, %v3253
      %v3318 = vsel %vm2998, %v2498, %v3254
      %v3319 = vsel %vm2999, %v2527, %v3255
      %v3320 = vsel %vm3000, %v2556, %v3256
      %v3321 = vsel %vm3001, %v2585, %v3257
      %v3322 = vsel %vm3002, %v2614, %v3258
      %v3323 = vsel %vm3003, %v2643, %v3259
      %v3324 = vsel %vm3004, %v2672, %v3260
      %v3325 = vsel %vm3005, %v2701, %v3261
      %v3326 = vsel %vm3006, %v2500, %v3262
      %v3327 = vsel %vm3007, %v2529, %v3263
      %v3328 = vsel %vm3008, %v2558, %v3264
      %v3329 = vsel %vm3009, %v2587, %v3265
      %v3330 = vsel %vm3010, %v2616, %v3266
      %v3331 = vsel %vm3011, %v2645, %v3267
      %v3332 = vsel %vm3012, %v2674, %v3268
      %v3333 = vsel %vm3013, %v2703, %v3269
      %v3334 = vsel %vm3014, %v2503, %v3270
      %v3335 = vsel %vm3015, %v2532, %v3271
      %v3336 = vsel %vm3016, %v2561, %v3272
      %v3337 = vsel %vm3017, %v2590, %v3273
      %v3338 = vsel %vm3018, %v2619, %v3274
      %v3339 = vsel %vm3019, %v2648, %v3275
      %v3340 = vsel %vm3020, %v2677, %v3276
      %v3341 = vsel %vm3021, %v2706, %v3277
      %v3342 = vsel %vm3022, %v2505, %v3278
      %v3343 = vsel %vm3023, %v2534, %v3279
      %v3344 = vsel %vm3024, %v2563, %v3280
      %v3345 = vsel %vm3025, %v2592, %v3281
      %v3346 = vsel %vm3026, %v2621, %v3282
      %v3347 = vsel %vm3027, %v2650, %v3283
      %v3348 = vsel %vm3028, %v2679, %v3284
      %v3349 = vsel %vm3029, %v2708, %v3285
      %v3350 = vld [vmem:[%s7] sm:$0x1]
      %v3351 = vpack.c.bf16 %v3294, %v3286
      %v3352 = vpack.c.bf16 %v3295, %v3287
      %v3353 = vpack.c.bf16 %v3296, %v3288
      %v3354 = vpack.c.bf16 %v3297, %v3289
      %v3355 = vpack.c.bf16 %v3298, %v3290
      %v3356 = vpack.c.bf16 %v3299, %v3291
      %v3357 = vpack.c.bf16 %v3300, %v3292
      %v3358 = vpack.c.bf16 %v3301, %v3293
      %v3359 = vpack.c.bf16 %v3310, %v3302
      %v3360 = vpack.c.bf16 %v3311, %v3303
      %v3361 = vpack.c.bf16 %v3312, %v3304
      %v3362 = vpack.c.bf16 %v3313, %v3305
      %v3363 = vpack.c.bf16 %v3314, %v3306
      %v3364 = vpack.c.bf16 %v3315, %v3307
      %v3365 = vpack.c.bf16 %v3316, %v3308
      %v3366 = vpack.c.bf16 %v3317, %v3309
      %v3367 = vpack.c.bf16 %v3326, %v3318
      %v3368 = vpack.c.bf16 %v3327, %v3319
      %v3369 = vpack.c.bf16 %v3328, %v3320
      %v3370 = vpack.c.bf16 %v3329, %v3321
      %v3371 = vpack.c.bf16 %v3330, %v3322
      %v3372 = vpack.c.bf16 %v3331, %v3323
      %v3373 = vpack.c.bf16 %v3332, %v3324
      %v3374 = vpack.c.bf16 %v3333, %v3325
      %v3375 = vpack.c.bf16 %v3342, %v3334
      %v3376 = vpack.c.bf16 %v3343, %v3335
      %v3377 = vpack.c.bf16 %v3344, %v3336
      %v3378 = vpack.c.bf16 %v3345, %v3337
      %v3379 = vpack.c.bf16 %v3346, %v3338
      %v3380 = vpack.c.bf16 %v3347, %v3339
      %v3381 = vpack.c.bf16 %v3348, %v3340
      %v3382 = vpack.c.bf16 %v3349, %v3341
      %v3383 = vld [vmem:[#allocation2] sm:$0x1]
      %3385 = vset.pattern.permute.xlu0 0
      %3386 = vperm.xlu0 %3385, %v3383
      %v3387 = vpop.permute.xlu0 %3386
      %v3389 = vperm.slane %v3387, 0
      %v3391 = vsel %vm1473, %v3350, 0
      %3393 = vmatpush.bf16.msra.mxu0 0
      %3394 = vmatpush.bf16.msra.mxu0 0
      %3395 = vmatpush.bf16.msra.mxu0 0
      %3396 = vmatpush.bf16.msra.mxu0 0
      %3397 = vmatpush.bf16.msra.mxu0 %v3375
      %3398 = vmatpush.bf16.msra.mxu0 %v3367
      %3399 = vmatpush.bf16.msra.mxu0 %v3359
      %3400 = vmatpush.bf16.msra.mxu0 %v3351
      %3401 = vmatmul.bf16.gmra.mxu0 %v3391
      %v3402 = vpop.f32.mrf.mxu0
      %v3403 = vadd.f32 %v3389, %v3402
      %v3404 = vpop.f32.mrf.mxu0
      %3405 = vdwg.mxu0
      %3406 = vmatpush.bf16.msra.mxu0 0
      %3407 = vmatpush.bf16.msra.mxu0 0
      %3408 = vmatpush.bf16.msra.mxu0 0
      %3409 = vmatpush.bf16.msra.mxu0 0
      %3410 = vmatpush.bf16.msra.mxu0 %v3376
      %3411 = vmatpush.bf16.msra.mxu0 %v3368
      %3412 = vmatpush.bf16.msra.mxu0 %v3360
      %3413 = vmatpush.bf16.msra.mxu0 %v3352
      %3414 = vmatmul.bf16.gmra.mxu0 %v3391
      %v3415 = vpop.f32.mrf.mxu0
      %v3416 = vadd.f32 %v3389, %v3415
      %v3417 = vpop.f32.mrf.mxu0
      %3418 = vdwg.mxu0
      %3419 = vmatpush.bf16.msra.mxu0 0
      %3420 = vmatpush.bf16.msra.mxu0 0
      %3421 = vmatpush.bf16.msra.mxu0 0
      %3422 = vmatpush.bf16.msra.mxu0 0
      %3423 = vmatpush.bf16.msra.mxu0 %v3377
      %3424 = vmatpush.bf16.msra.mxu0 %v3369
      %3425 = vmatpush.bf16.msra.mxu0 %v3361
      %3426 = vmatpush.bf16.msra.mxu0 %v3353
      %3427 = vmatmul.bf16.gmra.mxu0 %v3391
      %v3428 = vpop.f32.mrf.mxu0
      %v3429 = vadd.f32 %v3389, %v3428
      %v3430 = vpop.f32.mrf.mxu0
      %3431 = vdwg.mxu0
      %3432 = vmatpush.bf16.msra.mxu0 0
      %3433 = vmatpush.bf16.msra.mxu0 0
      %3434 = vmatpush.bf16.msra.mxu0 0
      %3435 = vmatpush.bf16.msra.mxu0 0
      %3436 = vmatpush.bf16.msra.mxu0 %v3378
      %3437 = vmatpush.bf16.msra.mxu0 %v3370
      %3438 = vmatpush.bf16.msra.mxu0 %v3362
      %3439 = vmatpush.bf16.msra.mxu0 %v3354
      %3440 = vmatmul.bf16.gmra.mxu0 %v3391
      %v3441 = vpop.f32.mrf.mxu0
      %v3442 = vadd.f32 %v3389, %v3441
      %v3443 = vpop.f32.mrf.mxu0
      %3444 = vdwg.mxu0
      %3445 = vmatpush.bf16.msra.mxu0 0
      %3446 = vmatpush.bf16.msra.mxu0 0
      %3447 = vmatpush.bf16.msra.mxu0 0
      %3448 = vmatpush.bf16.msra.mxu0 0
      %3449 = vmatpush.bf16.msra.mxu0 %v3379
      %3450 = vmatpush.bf16.msra.mxu0 %v3371
      %3451 = vmatpush.bf16.msra.mxu0 %v3363
      %3452 = vmatpush.bf16.msra.mxu0 %v3355
      %3453 = vmatmul.bf16.gmra.mxu0 %v3391
      %v3454 = vpop.f32.mrf.mxu0
      %v3455 = vadd.f32 %v3389, %v3454
      %v3456 = vpop.f32.mrf.mxu0
      %3457 = vdwg.mxu0
      %3458 = vmatpush.bf16.msra.mxu0 0
      %3459 = vmatpush.bf16.msra.mxu0 0
      %3460 = vmatpush.bf16.msra.mxu0 0
      %3461 = vmatpush.bf16.msra.mxu0 0
      %3462 = vmatpush.bf16.msra.mxu0 %v3380
      %3463 = vmatpush.bf16.msra.mxu0 %v3372
      %3464 = vmatpush.bf16.msra.mxu0 %v3364
      %3465 = vmatpush.bf16.msra.mxu0 %v3356
      %3466 = vmatmul.bf16.gmra.mxu0 %v3391
      %v3467 = vpop.f32.mrf.mxu0
      %v3468 = vadd.f32 %v3389, %v3467
      %v3469 = vpop.f32.mrf.mxu0
      %3470 = vdwg.mxu0
      %3471 = vmatpush.bf16.msra.mxu0 0
      %3472 = vmatpush.bf16.msra.mxu0 0
      %3473 = vmatpush.bf16.msra.mxu0 0
      %3474 = vmatpush.bf16.msra.mxu0 0
      %3475 = vmatpush.bf16.msra.mxu0 %v3381
      %3476 = vmatpush.bf16.msra.mxu0 %v3373
      %3477 = vmatpush.bf16.msra.mxu0 %v3365
      %3478 = vmatpush.bf16.msra.mxu0 %v3357
      %3479 = vmatmul.bf16.gmra.mxu0 %v3391
      %v3480 = vpop.f32.mrf.mxu0
      %v3481 = vadd.f32 %v3389, %v3480
      %v3482 = vpop.f32.mrf.mxu0
      %3483 = vdwg.mxu0
      %3484 = vmatpush.bf16.msra.mxu0 0
      %3485 = vmatpush.bf16.msra.mxu0 0
      %3486 = vmatpush.bf16.msra.mxu0 0
      %3487 = vmatpush.bf16.msra.mxu0 0
      %3488 = vmatpush.bf16.msra.mxu0 %v3382
      %3489 = vmatpush.bf16.msra.mxu0 %v3374
      %3490 = vmatpush.bf16.msra.mxu0 %v3366
      %3491 = vmatpush.bf16.msra.mxu0 %v3358
      %3492 = vmatmul.bf16.gmra.mxu0 %v3391
      %v3493 = vpop.f32.mrf.mxu0
      %v3494 = vadd.f32 %v3389, %v3493
      %v3495 = vpop.f32.mrf.mxu0
      %3496 = vdwg.mxu0
      %v3497 = vmul.f32 %v337, %v337
      %v3498 = vmul.f32 %v338, %v338
      %v3499 = vmul.f32 %v339, %v339
      %v3500 = vmul.f32 %v340, %v340
      %3505 = vst [vmem:[#allocation1] ss:$2 sm:$0xff] %v3497
      %s3506 = scalar_lea.vmem [#allocation1], 16
      %3507 = vst [vmem:[%s3506] ss:$2 sm:$0xff] %v3498
      %s3508 = scalar_lea.vmem [#allocation1], 32
      %3509 = vst [vmem:[%s3508] ss:$2 sm:$0xff] %v3499
      %s3510 = scalar_lea.vmem [#allocation1], 48
      %3511 = vst [vmem:[%s3510] ss:$2 sm:$0xff] %v3500
      %v3512 = vld.sshfl [vmem:[#allocation1] sm:$0xff pattern:$0x75316420]
      %v3513 = vld.sshfl [vmem:[#allocation1 + $0x8] sm:$0xff pattern:$0x75316420]
      %v3514 = vld.sshfl [vmem:[#allocation1 + $0x10] sm:$0xff pattern:$0x75316420]
      %v3515 = vld.sshfl [vmem:[#allocation1 + $0x18] sm:$0xff pattern:$0x75316420]
      %v3516 = vld.sshfl [vmem:[#allocation1 + $0x20] sm:$0xff pattern:$0x75316420]
      %v3517 = vld.sshfl [vmem:[#allocation1 + $0x28] sm:$0xff pattern:$0x75316420]
      %v3518 = vld.sshfl [vmem:[#allocation1 + $0x30] sm:$0xff pattern:$0x75316420]
      %v3519 = vld.sshfl [vmem:[#allocation1 + $0x38] sm:$0xff pattern:$0x75316420]
      %vm3528 = vcmask 1042432
      %v3529 = vsel %vm3528, %v3512, 0.0
      %v3530 = vrot.slane %v3529, 4
      %v3531 = vadd.f32 %v3529, %v3530
      %v3532 = vrot.slane %v3531, 2
      %v3533 = vadd.f32 %v3531, %v3532
      %v3534 = vrot.slane %v3533, 1
      %v3535 = vadd.f32 %v3533, %v3534
      %v3536 = vsel %vm3528, %v3513, 0.0
      %v3537 = vrot.slane %v3536, 4
      %v3538 = vadd.f32 %v3536, %v3537
      %v3539 = vrot.slane %v3538, 2
      %v3540 = vadd.f32 %v3538, %v3539
      %v3541 = vrot.slane %v3540, 1
      %v3542 = vadd.f32 %v3540, %v3541
      %v3543 = vsel %vm3528, %v3514, 0.0
      %v3544 = vrot.slane %v3543, 4
      %v3545 = vadd.f32 %v3543, %v3544
      %v3546 = vrot.slane %v3545, 2
      %v3547 = vadd.f32 %v3545, %v3546
      %v3548 = vrot.slane %v3547, 1
      %v3549 = vadd.f32 %v3547, %v3548
      %v3550 = vsel %vm3528, %v3515, 0.0
      %v3551 = vrot.slane %v3550, 4
      %v3552 = vadd.f32 %v3550, %v3551
      %v3553 = vrot.slane %v3552, 2
      %v3554 = vadd.f32 %v3552, %v3553
      %v3555 = vrot.slane %v3554, 1
      %v3556 = vadd.f32 %v3554, %v3555
      %v3557 = vsel %vm3528, %v3516, 0.0
      %v3558 = vrot.slane %v3557, 4
      %v3559 = vadd.f32 %v3557, %v3558
      %v3560 = vrot.slane %v3559, 2
      %v3561 = vadd.f32 %v3559, %v3560
      %v3562 = vrot.slane %v3561, 1
      %v3563 = vadd.f32 %v3561, %v3562
      %v3564 = vsel %vm3528, %v3517, 0.0
      %v3565 = vrot.slane %v3564, 4
      %v3566 = vadd.f32 %v3564, %v3565
      %v3567 = vrot.slane %v3566, 2
      %v3568 = vadd.f32 %v3566, %v3567
      %v3569 = vrot.slane %v3568, 1
      %v3570 = vadd.f32 %v3568, %v3569
      %v3571 = vsel %vm3528, %v3518, 0.0
      %v3572 = vrot.slane %v3571, 4
      %v3573 = vadd.f32 %v3571, %v3572
      %v3574 = vrot.slane %v3573, 2
      %v3575 = vadd.f32 %v3573, %v3574
      %v3576 = vrot.slane %v3575, 1
      %v3577 = vadd.f32 %v3575, %v3576
      %v3578 = vsel %vm3528, %v3519, 0.0
      %v3579 = vrot.slane %v3578, 4
      %v3580 = vadd.f32 %v3578, %v3579
      %v3581 = vrot.slane %v3580, 2
      %v3582 = vadd.f32 %v3580, %v3581
      %v3583 = vrot.slane %v3582, 1
      %v3584 = vadd.f32 %v3582, %v3583
      %v3585 = vrsqrt.pop %v3535
      %v3586 = vmul.f32 %v3585, %v3535
      %v3587 = vmul.f32 %v3586, %v3585
      %v3588 = vmul.f32 0.5, %v3587
      %v3589 = vsub.f32 1.5, %v3588
      %v3590 = vmul.f32 %v3585, %v3589
      %v3591 = vmul.f32 %v3535, %v3590
      %vm3592 = vcmp.eq.f32.partialorder %v3535, inf
      %v3593 = vsel %vm3592, %v3535, %v3591
      %vm3594 = vcmp.eq.f32.partialorder %v3535, 0.0
      %v3595 = vand.u32 %v3535, 2147483648
      %v3596 = vsel %vm3594, %v3595, %v3593
      %v3597 = vrsqrt.pop %v3542
      %v3598 = vmul.f32 %v3597, %v3542
      %v3599 = vmul.f32 %v3598, %v3597
      %v3600 = vmul.f32 0.5, %v3599
      %v3601 = vsub.f32 1.5, %v3600
      %v3602 = vmul.f32 %v3597, %v3601
      %v3603 = vmul.f32 %v3542, %v3602
      %vm3604 = vcmp.eq.f32.partialorder %v3542, inf
      %v3605 = vsel %vm3604, %v3542, %v3603
      %vm3606 = vcmp.eq.f32.partialorder %v3542, 0.0
      %v3607 = vand.u32 %v3542, 2147483648
      %v3608 = vsel %vm3606, %v3607, %v3605
      %v3609 = vrsqrt.pop %v3549
      %v3610 = vmul.f32 %v3609, %v3549
      %v3611 = vmul.f32 %v3610, %v3609
      %v3612 = vmul.f32 0.5, %v3611
      %v3613 = vsub.f32 1.5, %v3612
      %v3614 = vmul.f32 %v3609, %v3613
      %v3615 = vmul.f32 %v3549, %v3614
      %vm3616 = vcmp.eq.f32.partialorder %v3549, inf
      %v3617 = vsel %vm3616, %v3549, %v3615
      %vm3618 = vcmp.eq.f32.partialorder %v3549, 0.0
      %v3619 = vand.u32 %v3549, 2147483648
      %v3620 = vsel %vm3618, %v3619, %v3617
      %v3621 = vrsqrt.pop %v3556
      %v3622 = vmul.f32 %v3621, %v3556
      %v3623 = vmul.f32 %v3622, %v3621
      %v3624 = vmul.f32 0.5, %v3623
      %v3625 = vsub.f32 1.5, %v3624
      %v3626 = vmul.f32 %v3621, %v3625
      %v3627 = vmul.f32 %v3556, %v3626
      %vm3628 = vcmp.eq.f32.partialorder %v3556, inf
      %v3629 = vsel %vm3628, %v3556, %v3627
      %vm3630 = vcmp.eq.f32.partialorder %v3556, 0.0
      %v3631 = vand.u32 %v3556, 2147483648
      %v3632 = vsel %vm3630, %v3631, %v3629
      %v3633 = vrsqrt.pop %v3563
      %v3634 = vmul.f32 %v3633, %v3563
      %v3635 = vmul.f32 %v3634, %v3633
      %v3636 = vmul.f32 0.5, %v3635
      %v3637 = vsub.f32 1.5, %v3636
      %v3638 = vmul.f32 %v3633, %v3637
      %v3639 = vmul.f32 %v3563, %v3638
      %vm3640 = vcmp.eq.f32.partialorder %v3563, inf
      %v3641 = vsel %vm3640, %v3563, %v3639
      %vm3642 = vcmp.eq.f32.partialorder %v3563, 0.0
      %v3643 = vand.u32 %v3563, 2147483648
      %v3644 = vsel %vm3642, %v3643, %v3641
      %v3645 = vrsqrt.pop %v3570
      %v3646 = vmul.f32 %v3645, %v3570
      %v3647 = vmul.f32 %v3646, %v3645
      %v3648 = vmul.f32 0.5, %v3647
      %v3649 = vsub.f32 1.5, %v3648
      %v3650 = vmul.f32 %v3645, %v3649
      %v3651 = vmul.f32 %v3570, %v3650
      %vm3652 = vcmp.eq.f32.partialorder %v3570, inf
      %v3653 = vsel %vm3652, %v3570, %v3651
      %vm3654 = vcmp.eq.f32.partialorder %v3570, 0.0
      %v3655 = vand.u32 %v3570, 2147483648
      %v3656 = vsel %vm3654, %v3655, %v3653
      %v3657 = vrsqrt.pop %v3577
      %v3658 = vmul.f32 %v3657, %v3577
      %v3659 = vmul.f32 %v3658, %v3657
      %v3660 = vmul.f32 0.5, %v3659
      %v3661 = vsub.f32 1.5, %v3660
      %v3662 = vmul.f32 %v3657, %v3661
      %v3663 = vmul.f32 %v3577, %v3662
      %vm3664 = vcmp.eq.f32.partialorder %v3577, inf
      %v3665 = vsel %vm3664, %v3577, %v3663
      %vm3666 = vcmp.eq.f32.partialorder %v3577, 0.0
      %v3667 = vand.u32 %v3577, 2147483648
      %v3668 = vsel %vm3666, %v3667, %v3665
      %v3669 = vrsqrt.pop %v3584
      %v3670 = vmul.f32 %v3669, %v3584
      %v3671 = vmul.f32 %v3670, %v3669
      %v3672 = vmul.f32 0.5, %v3671
      %v3673 = vsub.f32 1.5, %v3672
      %v3674 = vmul.f32 %v3669, %v3673
      %v3675 = vmul.f32 %v3584, %v3674
      %vm3676 = vcmp.eq.f32.partialorder %v3584, inf
      %v3677 = vsel %vm3676, %v3584, %v3675
      %vm3678 = vcmp.eq.f32.partialorder %v3584, 0.0
      %v3679 = vand.u32 %v3584, 2147483648
      %v3680 = vsel %vm3678, %v3679, %v3677
      %v3681 = vsub.f32 3.0, %v3596
      %v3682 = vsub.f32 3.0, %v3608
      %v3683 = vsub.f32 3.0, %v3620
      %v3684 = vsub.f32 3.0, %v3632
      %v3685 = vsub.f32 3.0, %v3644
      %v3686 = vsub.f32 3.0, %v3656
      %v3687 = vsub.f32 3.0, %v3668
      %v3688 = vsub.f32 3.0, %v3680
      %v3689 = vmin.f32 %v3403, %v3681
      %v3690 = vmin.f32 %v3416, %v3682
      %v3691 = vmin.f32 %v3429, %v3683
      %v3692 = vmin.f32 %v3442, %v3684
      %v3693 = vmin.f32 %v3455, %v3685
      %v3694 = vmin.f32 %v3468, %v3686
      %v3695 = vmin.f32 %v3481, %v3687
      %v3696 = vmin.f32 %v3494, %v3688
      %v3705 = vrot.slane %v3690, 7
      %v3706 = vrot.slane %v3691, 6
      %v3707 = vrot.slane %v3692, 5
      %v3708 = vrot.slane %v3693, 4
      %v3709 = vrot.slane %v3694, 3
      %v3710 = vrot.slane %v3695, 2
      %v3711 = vrot.slane %v3696, 1
      %v3712 = vsel %vm465, %v3689, %v3705
      %vm3713 = vcmask 1042434
      %v3714 = vsel %vm3713, %v3706, %v3707
      %v3715 = vsel %vm466, %v3712, %v3714
      %vm3716 = vcmask 1044484
      %v3717 = vsel %vm3716, %v3708, %v3709
      %vm3718 = vcmask 1046534
      %v3719 = vsel %vm3718, %v3710, %v3711
      %vm3720 = vcmask 1045508
      %v3721 = vsel %vm3720, %v3717, %v3719
      %vm3722 = vcmask 1043456
      %v3723 = vsel %vm3722, %v3715, %v3721
      %3725 = vst [vmem:[%s334] sm:$0xff] %v3723
      %s3726 = smul.u32 8, %s22
      %p3727 = scmp.lt.s32.totalorder %s3726, 63
      %s3728 = scalar_select %p3727, %s3726, 63
      %s3729 = scalar_lea.vmem %s9, %s3728
      // Predicated region
      $region57: #{_lambda_.4} parent=55 // pred_check
        %p3730 = pneg %p234
      $region58: #{_lambda_.4} parent=55 // pred_check_branch
        %3732 = sbr.rel (%p3730) target = $region60
      $region59: #{_lambda_.4} parent=55 // pred_region
        %s3733 = smul.u32 8, %s22
      $region60: #{_lambda_.4} parent=55 // pred_fallthru
        _
    $region56: #{_lambda_.4} parent=5 // pred_fallthru
      _
    %p3734 = scmp.le.s32.totalorder 2, %s17
    // Predicated region
    $region61: #{_lambda_.4} parent=5 // pred_check
      %p3735 = pneg %p3734
    $region62: #{_lambda_.4} parent=5 // pred_check_branch
      %3737 = sbr.rel (%p3735) target = $region64
    $region63: #{_lambda_.4} parent=5 // pred_region
      %s3738 = ssub.s32 %s17, 2
      // Predicated region
      $region65: #{_lambda_.4} parent=63 // pred_check
        %p3739 = pneg %p240
      $region66: #{_lambda_.4} parent=63 // pred_check_branch
        %3741 = sbr.rel (%p3739) target = $region68
      $region67: #{_lambda_.4} parent=63 // pred_region
        %s3742 = smul.u32 8, %s23
        %p3743 = scmp.lt.s32.totalorder %s3742, 63
        %s3744 = scalar_select %p3743, %s3742, 63
        %s3745 = scalar_lea.vmem %s9, %s3744
      $region68: #{_lambda_.4} parent=63 // pred_fallthru
        _
    $region64: #{_lambda_.4} parent=5 // pred_fallthru
      _
  $region6: #{_lambda_.4} parent=0 // loop_footer
    %s21 = sadd.s32 1, %s17
  $region7: #{_lambda_.4} parent=0 // loop_footer_branch
    %16 = sbr.rel target = $region3
  $region8: #{_lambda_.4} parent=0 // loop_exit
    _

// kernel: squeeze.8
$region0: #{squeeze.8}
  %s0 = inlined_call_operand.vmem [shape: f32[3072], index: 0, kind: input, shape index: {}]
  %s1 = inlined_call_operand.vmem [shape: f32[64,48], index: 1, kind: output, shape index: {}]
  %v2 = vld [vmem:[%s0] ss:$3 sm:$0xff]
  %vm3 = vcmask 392192
  %4 = vst.msk [vmem:[%s1] ss:$8 sm:$0xf] %vm3, %v2
  %5 = vst.msk [vmem:[%s1] ss:$8 sm:$0xf0] %vm3, %v2
  %s6 = scalar_lea.vmem %s0, 1
  %v7 = vld [vmem:[%s6] ss:$3 sm:$0xff]
  %8 = vrot.lane.b32.xlu0 %v7, 112
  %v9 = vpop.permute.xlu0 %8
  %vm10 = vcmask 392192
  %s11 = scalar_lea.vmem %s1, 3
  %12 = vst.msk [vmem:[%s11] ss:$8 sm:$0xf] %vm10, %v9
  %s13 = scalar_lea.vmem %s1, 3
  %14 = vst.msk [vmem:[%s13] ss:$8 sm:$0xf0] %vm10, %v9
  %s15 = scalar_lea.vmem %s0, 2
  %v16 = vld [vmem:[%s15] ss:$3 sm:$0xff]
  %17 = vrot.lane.b32.xlu0 %v16, 96
  %v18 = vpop.permute.xlu0 %17
  %vm19 = vcmask 392192
  %s20 = scalar_lea.vmem %s1, 6
  %21 = vst.msk [vmem:[%s20] ss:$8 sm:$0xf] %vm19, %v18
  %s22 = scalar_lea.vmem %s1, 6
  %23 = vst.msk [vmem:[%s22] ss:$8 sm:$0xf0] %vm19, %v18
  %v24 = vld [vmem:[%s0] ss:$3 sm:$0xff]
  %25 = vrot.lane.b32.xlu0 %v24, 80
  %v26 = vpop.permute.xlu0 %25
  %vm27 = vcmask 392192
  %s28 = scalar_lea.vmem %s1, 1
  %29 = vst.msk [vmem:[%s28] ss:$8 sm:$0xf] %vm27, %v26
  %s30 = scalar_lea.vmem %s1, 1
  %31 = vst.msk [vmem:[%s30] ss:$8 sm:$0xf0] %vm27, %v26
  %s32 = scalar_lea.vmem %s0, 1
  %v33 = vld [vmem:[%s32] ss:$3 sm:$0xff]
  %34 = vrot.lane.b32.xlu0 %v33, 64
  %v35 = vpop.permute.xlu0 %34
  %vm36 = vcmask 392192
  %s37 = scalar_lea.vmem %s1, 4
  %38 = vst.msk [vmem:[%s37] ss:$8 sm:$0xf] %vm36, %v35
  %s39 = scalar_lea.vmem %s1, 4
  %40 = vst.msk [vmem:[%s39] ss:$8 sm:$0xf0] %vm36, %v35
  %s41 = scalar_lea.vmem %s0, 2
  %v42 = vld [vmem:[%s41] ss:$3 sm:$0xff]
  %43 = vrot.lane.b32.xlu0 %v42, 48
  %v44 = vpop.permute.xlu0 %43
  %vm45 = vcmask 392192
  %s46 = scalar_lea.vmem %s1, 7
  %47 = vst.msk [vmem:[%s46] ss:$8 sm:$0xf] %vm45, %v44
  %s48 = scalar_lea.vmem %s1, 7
  %49 = vst.msk [vmem:[%s48] ss:$8 sm:$0xf0] %vm45, %v44
  %v50 = vld [vmem:[%s0] ss:$3 sm:$0xff]
  %s51 = scalar_lea.vmem %s0, 1
  %v52 = vld [vmem:[%s51] ss:$3 sm:$0xff]
  %vm53 = vcmask 785408
  %v54 = vsel %vm53, %v52, %v50
  %55 = vrot.lane.b32.xlu0 %v54, 32
  %v56 = vpop.permute.xlu0 %55
  %vm57 = vcmask 261120
  %s58 = scalar_lea.vmem %s1, 2
  %59 = vst.msk [vmem:[%s58] ss:$8 sm:$0xf] %vm57, %v56
  %s60 = scalar_lea.vmem %s1, 2
  %61 = vst.msk [vmem:[%s60] ss:$8 sm:$0xf0] %vm57, %v56
  %vm62 = vcmask 392448
  %s63 = scalar_lea.vmem %s1, 2
  %64 = vst.msk [vmem:[%s63] ss:$8 sm:$0xf] %vm62, %v56
  %s65 = scalar_lea.vmem %s1, 2
  %66 = vst.msk [vmem:[%s65] ss:$8 sm:$0xf0] %vm62, %v56
  %s67 = scalar_lea.vmem %s0, 1
  %v68 = vld [vmem:[%s67] ss:$3 sm:$0xff]
  %s69 = scalar_lea.vmem %s0, 2
  %v70 = vld [vmem:[%s69] ss:$3 sm:$0xff]
  %vm71 = vcmask 916480
  %v72 = vsel %vm71, %v70, %v68
  %73 = vrot.lane.b32.xlu0 %v72, 16
  %v74 = vpop.permute.xlu0 %73
  %vm75 = vcmask 130048
  %s76 = scalar_lea.vmem %s1, 5
  %77 = vst.msk [vmem:[%s76] ss:$8 sm:$0xf] %vm75, %v74
  %s78 = scalar_lea.vmem %s1, 5
  %79 = vst.msk [vmem:[%s78] ss:$8 sm:$0xf0] %vm75, %v74
  %vm80 = vcmask 392320
  %s81 = scalar_lea.vmem %s1, 5
  %82 = vst.msk [vmem:[%s81] ss:$8 sm:$0xf] %vm80, %v74
  %s83 = scalar_lea.vmem %s1, 5
  %84 = vst.msk [vmem:[%s83] ss:$8 sm:$0xf0] %vm80, %v74

// kernel: _lambda_.7
$region0: #{_lambda_.7}
  #allocation0 [shape = 'u32[]', space=smem, size = 0x4, offset = 0x4, fixed_abs, tag = 'smem constant byte address 0x4 - core index']
  #allocation1 [shape = 'u32[72,128]{1,0:T(1,128)}', space=vmem, size = 0x9000, scoped, tag = 'internal scratch']
  %s0 = inlined_call_operand.vmem [shape: f32[1,2], index: 0, kind: input, shape index: {}]
  %s1 = inlined_call_operand.vmem [shape: f32[47,47], index: 1, kind: input, shape index: {}]
  %s2 = inlined_call_operand.vmem [shape: f32[64,48], index: 2, kind: input, shape index: {}]
  %s3 = inlined_call_operand.vmem [shape: f32[64,48], index: 3, kind: input, shape index: {}]
  %s4 = inlined_call_operand.vmem [shape: f32[64,48], index: 4, kind: input, shape index: {}]
  %s5 = inlined_call_operand.vmem [shape: f32[64,48], index: 5, kind: input, shape index: {}]
  %s6 = inlined_call_operand.vmem [shape: f32[64,48], index: 6, kind: input, shape index: {}]
  %s7 = inlined_call_operand.vmem [shape: f32[64,8], index: 7, kind: output, shape index: {0}]
  %s8 = inlined_call_operand.vmem [shape: f32[64,47], index: 8, kind: output, shape index: {1}]
  %s9 = inlined_call_operand.vmem [shape: f32[64,48], index: 9, kind: output, shape index: {2}]
  %10 = xla_tuple %s7, %s8, %s9
  %s11 = sld [smem:[#allocation0]]
  $region81: #{_lambda_.7} parent=0
    _
  %s13 = ssub.s32 1, %s11
  %s14 = scalar_select 0, %s13, %s11
  $region1: #{_lambda_.7} parent=0
    #allocation2 [shape = 'u8[512]{0}', space=smem, size = 0x200, scoped, tag = 'input window, operand 0, single buffered']
    #allocation3 [shape = 's32[2]{0}', space=sflag, size = 0x8, scoped, tag = 'scoped memory for _lambda_.7']
    %15 = vsyncpa [#allocation3], 0
    loop: start=0, step=1, limit=4
    $region2: #{_lambda_.7} parent=1 // loop_pre_header
      _
    $region3: #{_lambda_.7} parent=1 // loop_header
      %s17 = sphi 0, %s21
      %p18 = scmp.ge.s32.totalorder %s17, 4
      %s25 = sphi 0, %s25
      %s27 = sphi 0, %s25
      %s28 = sphi 0, %s27
      %s42 = sphi 0, %s28
      %s46 = sphi 0, %s46
      %s48 = sphi 0, %s46
      %s49 = sphi 0, %s48
      %s63 = sphi 0, %s49
      %s69 = sphi 0, %s71
      %s72 = sphi 0, %s69
      %s73 = sphi 0, %s72
      %s89 = sphi 0, %s73
      %s95 = sphi 0, %s97
      %s98 = sphi 0, %s95
      %s99 = sphi 0, %s98
      %s115 = sphi 0, %s99
      %s121 = sphi 0, %s123
      %s124 = sphi 0, %s121
      %s125 = sphi 0, %s124
      %s141 = sphi 0, %s125
      %s147 = sphi 0, %s149
      %s150 = sphi 0, %s147
      %s151 = sphi 0, %s150
      %s167 = sphi 0, %s151
      %s173 = sphi 0, %s175
      %s176 = sphi 0, %s173
      %s177 = sphi 0, %s176
      %s193 = sphi 0, %s177
      %s199 = sphi 0, %s201
      %s202 = sphi 0, %s199
      %s203 = sphi 0, %s202
      %s219 = sphi 0, %s203
      %s225 = sphi 0, %s227
      %s228 = sphi 0, %s225
      %s229 = sphi 0, %s228
      %s245 = sphi 0, %s229
      %s251 = sphi 0, %s253
      %s254 = sphi 0, %s251
      %s255 = sphi 0, %s254
      %s271 = sphi 0, %s255
    $region4: #{_lambda_.7} parent=1 // loop_header_branch
      %20 = sbr.rel (%p18) target = $region8
    $region5: #{_lambda_.7} parent=1 // loop_body
      %s22 = ssub.s32 %s17, 1
      %s23 = ssub.s32 %s17, 2
      %s24 = sadd.s32 %s17, 1
      %s26 = sadd.s32 %s25, 1
      %p29 = scmp.eq.s32.totalorder %s17, 1
      %p30 = scmp.ne.s32.totalorder %s25, %s27
      %p31 = scmp.eq.s32.totalorder %s17, 0
      %p32 = por %p30, %p31
      %p33 = scmp.ne.s32.totalorder %s25, %s27
      %p34 = scmp.eq.s32.totalorder %s22, 1
      %p35 = por %p33, %p34
      %p36 = scmp.ne.s32.totalorder %s27, %s28
      %p37 = scmp.eq.s32.totalorder %s22, 0
      %p38 = por %p36, %p37
      %p39 = scmp.ne.s32.totalorder %s27, %s28
      %p40 = scmp.eq.s32.totalorder %s23, 1
      %p41 = por %p39, %p40
      %p43 = scmp.ne.s32.totalorder %s28, %s42
      %p44 = scmp.eq.s32.totalorder %s23, 0
      %p45 = por %p43, %p44
      %s47 = sadd.s32 %s46, 1
      %p50 = scmp.eq.s32.totalorder %s17, 1
      %p51 = scmp.ne.s32.totalorder %s46, %s48
      %p52 = scmp.eq.s32.totalorder %s17, 0
      %p53 = por %p51, %p52
      %p54 = scmp.ne.s32.totalorder %s46, %s48
      %p55 = scmp.eq.s32.totalorder %s22, 1
      %p56 = por %p54, %p55
      %p57 = scmp.ne.s32.totalorder %s48, %s49
      %p58 = scmp.eq.s32.totalorder %s22, 0
      %p59 = por %p57, %p58
      %p60 = scmp.ne.s32.totalorder %s48, %s49
      %p61 = scmp.eq.s32.totalorder %s23, 1
      %p62 = por %p60, %p61
      %p64 = scmp.ne.s32.totalorder %s49, %s63
      %p65 = scmp.eq.s32.totalorder %s23, 0
      %p66 = por %p64, %p65
      %s67 = ssub.s32 %s17, %s24
      %p68 = scmp.eq.s32.totalorder %s67, 0
      %s70 = sadd.s32 %s69, 1
      %s71 = scalar_select %p68, %s69, %s70
      %p74 = pneg %p68
      %p75 = scmp.eq.s32.totalorder %s17, 1
      %p76 = por %p74, %p75
      %p77 = scmp.ne.s32.totalorder %s69, %s72
      %p78 = scmp.eq.s32.totalorder %s17, 0
      %p79 = por %p77, %p78
      %p80 = scmp.ne.s32.totalorder %s69, %s72
      %p81 = scmp.eq.s32.totalorder %s22, 1
      %p82 = por %p80, %p81
      %p83 = scmp.ne.s32.totalorder %s72, %s73
      %p84 = scmp.eq.s32.totalorder %s22, 0
      %p85 = por %p83, %p84
      %p86 = scmp.ne.s32.totalorder %s72, %s73
      %p87 = scmp.eq.s32.totalorder %s23, 1
      %p88 = por %p86, %p87
      %p90 = scmp.ne.s32.totalorder %s73, %s89
      %p91 = scmp.eq.s32.totalorder %s23, 0
      %p92 = por %p90, %p91
      %s93 = ssub.s32 %s17, %s24
      %p94 = scmp.eq.s32.totalorder %s93, 0
      %s96 = sadd.s32 %s95, 1
      %s97 = scalar_select %p94, %s95, %s96
      %p100 = pneg %p94
      %p101 = scmp.eq.s32.totalorder %s17, 1
      %p102 = por %p100, %p101
      %p103 = scmp.ne.s32.totalorder %s95, %s98
      %p104 = scmp.eq.s32.totalorder %s17, 0
      %p105 = por %p103, %p104
      %p106 = scmp.ne.s32.totalorder %s95, %s98
      %p107 = scmp.eq.s32.totalorder %s22, 1
      %p108 = por %p106, %p107
      %p109 = scmp.ne.s32.totalorder %s98, %s99
      %p110 = scmp.eq.s32.totalorder %s22, 0
      %p111 = por %p109, %p110
      %p112 = scmp.ne.s32.totalorder %s98, %s99
      %p113 = scmp.eq.s32.totalorder %s23, 1
      %p114 = por %p112, %p113
      %p116 = scmp.ne.s32.totalorder %s99, %s115
      %p117 = scmp.eq.s32.totalorder %s23, 0
      %p118 = por %p116, %p117
      %s119 = ssub.s32 %s17, %s24
      %p120 = scmp.eq.s32.totalorder %s119, 0
      %s122 = sadd.s32 %s121, 1
      %s123 = scalar_select %p120, %s121, %s122
      %p126 = pneg %p120
      %p127 = scmp.eq.s32.totalorder %s17, 1
      %p128 = por %p126, %p127
      %p129 = scmp.ne.s32.totalorder %s121, %s124
      %p130 = scmp.eq.s32.totalorder %s17, 0
      %p131 = por %p129, %p130
      %p132 = scmp.ne.s32.totalorder %s121, %s124
      %p133 = scmp.eq.s32.totalorder %s22, 1
      %p134 = por %p132, %p133
      %p135 = scmp.ne.s32.totalorder %s124, %s125
      %p136 = scmp.eq.s32.totalorder %s22, 0
      %p137 = por %p135, %p136
      %p138 = scmp.ne.s32.totalorder %s124, %s125
      %p139 = scmp.eq.s32.totalorder %s23, 1
      %p140 = por %p138, %p139
      %p142 = scmp.ne.s32.totalorder %s125, %s141
      %p143 = scmp.eq.s32.totalorder %s23, 0
      %p144 = por %p142, %p143
      %s145 = ssub.s32 %s17, %s24
      %p146 = scmp.eq.s32.totalorder %s145, 0
      %s148 = sadd.s32 %s147, 1
      %s149 = scalar_select %p146, %s147, %s148
      %p152 = pneg %p146
      %p153 = scmp.eq.s32.totalorder %s17, 1
      %p154 = por %p152, %p153
      %p155 = scmp.ne.s32.totalorder %s147, %s150
      %p156 = scmp.eq.s32.totalorder %s17, 0
      %p157 = por %p155, %p156
      %p158 = scmp.ne.s32.totalorder %s147, %s150
      %p159 = scmp.eq.s32.totalorder %s22, 1
      %p160 = por %p158, %p159
      %p161 = scmp.ne.s32.totalorder %s150, %s151
      %p162 = scmp.eq.s32.totalorder %s22, 0
      %p163 = por %p161, %p162
      %p164 = scmp.ne.s32.totalorder %s150, %s151
      %p165 = scmp.eq.s32.totalorder %s23, 1
      %p166 = por %p164, %p165
      %p168 = scmp.ne.s32.totalorder %s151, %s167
      %p169 = scmp.eq.s32.totalorder %s23, 0
      %p170 = por %p168, %p169
      %s171 = ssub.s32 %s17, %s24
      %p172 = scmp.eq.s32.totalorder %s171, 0
      %s174 = sadd.s32 %s173, 1
      %s175 = scalar_select %p172, %s173, %s174
      %p178 = pneg %p172
      %p179 = scmp.eq.s32.totalorder %s17, 1
      %p180 = por %p178, %p179
      %p181 = scmp.ne.s32.totalorder %s173, %s176
      %p182 = scmp.eq.s32.totalorder %s17, 0
      %p183 = por %p181, %p182
      %p184 = scmp.ne.s32.totalorder %s173, %s176
      %p185 = scmp.eq.s32.totalorder %s22, 1
      %p186 = por %p184, %p185
      %p187 = scmp.ne.s32.totalorder %s176, %s177
      %p188 = scmp.eq.s32.totalorder %s22, 0
      %p189 = por %p187, %p188
      %p190 = scmp.ne.s32.totalorder %s176, %s177
      %p191 = scmp.eq.s32.totalorder %s23, 1
      %p192 = por %p190, %p191
      %p194 = scmp.ne.s32.totalorder %s177, %s193
      %p195 = scmp.eq.s32.totalorder %s23, 0
      %p196 = por %p194, %p195
      %s197 = ssub.s32 %s17, %s24
      %p198 = scmp.eq.s32.totalorder %s197, 0
      %s200 = sadd.s32 %s199, 1
      %s201 = scalar_select %p198, %s199, %s200
      %p204 = pneg %p198
      %p205 = scmp.eq.s32.totalorder %s17, 1
      %p206 = por %p204, %p205
      %p207 = scmp.ne.s32.totalorder %s199, %s202
      %p208 = scmp.eq.s32.totalorder %s17, 0
      %p209 = por %p207, %p208
      %p210 = scmp.ne.s32.totalorder %s199, %s202
      %p211 = scmp.eq.s32.totalorder %s22, 1
      %p212 = por %p210, %p211
      %p213 = scmp.ne.s32.totalorder %s202, %s203
      %p214 = scmp.eq.s32.totalorder %s22, 0
      %p215 = por %p213, %p214
      %p216 = scmp.ne.s32.totalorder %s202, %s203
      %p217 = scmp.eq.s32.totalorder %s23, 1
      %p218 = por %p216, %p217
      %p220 = scmp.ne.s32.totalorder %s203, %s219
      %p221 = scmp.eq.s32.totalorder %s23, 0
      %p222 = por %p220, %p221
      %s223 = ssub.s32 %s17, %s24
      %p224 = scmp.eq.s32.totalorder %s223, 0
      %s226 = sadd.s32 %s225, 1
      %s227 = scalar_select %p224, %s225, %s226
      %p230 = pneg %p224
      %p231 = scmp.eq.s32.totalorder %s17, 1
      %p232 = por %p230, %p231
      %p233 = scmp.ne.s32.totalorder %s225, %s228
      %p234 = scmp.eq.s32.totalorder %s17, 0
      %p235 = por %p233, %p234
      %p236 = scmp.ne.s32.totalorder %s225, %s228
      %p237 = scmp.eq.s32.totalorder %s22, 1
      %p238 = por %p236, %p237
      %p239 = scmp.ne.s32.totalorder %s228, %s229
      %p240 = scmp.eq.s32.totalorder %s22, 0
      %p241 = por %p239, %p240
      %p242 = scmp.ne.s32.totalorder %s228, %s229
      %p243 = scmp.eq.s32.totalorder %s23, 1
      %p244 = por %p242, %p243
      %p246 = scmp.ne.s32.totalorder %s229, %s245
      %p247 = scmp.eq.s32.totalorder %s23, 0
      %p248 = por %p246, %p247
      %s249 = ssub.s32 %s17, %s24
      %p250 = scmp.eq.s32.totalorder %s249, 0
      %s252 = sadd.s32 %s251, 1
      %s253 = scalar_select %p250, %s251, %s252
      %p256 = pneg %p250
      %p257 = scmp.eq.s32.totalorder %s17, 1
      %p258 = por %p256, %p257
      %p259 = scmp.ne.s32.totalorder %s251, %s254
      %p260 = scmp.eq.s32.totalorder %s17, 0
      %p261 = por %p259, %p260
      %p262 = scmp.ne.s32.totalorder %s251, %s254
      %p263 = scmp.eq.s32.totalorder %s22, 1
      %p264 = por %p262, %p263
      %p265 = scmp.ne.s32.totalorder %s254, %s255
      %p266 = scmp.eq.s32.totalorder %s22, 0
      %p267 = por %p265, %p266
      %p268 = scmp.ne.s32.totalorder %s254, %s255
      %p269 = scmp.eq.s32.totalorder %s23, 1
      %p270 = por %p268, %p269
      %p272 = scmp.ne.s32.totalorder %s255, %s271
      %p273 = scmp.eq.s32.totalorder %s23, 0
      %p274 = por %p272, %p273
      %p275 = scmp.le.s32.totalorder 1, %s17
      %p276 = scmp.lt.s32.totalorder %s17, 3
      %p277 = pnand %p275, %p276
      %p278 = pneg %p277
      // Predicated region
      $region9: #{_lambda_.7} parent=5 // pred_check
        _
      $region10: #{_lambda_.7} parent=5 // pred_check_branch
        %280 = sbr.rel (%p277) target = $region12
      $region11: #{_lambda_.7} parent=5 // pred_region
        %s281 = ssub.s32 %s17, 1
        // Predicated region
        $region13: #{_lambda_.7} parent=11 // pred_check
          %p282 = pneg %p38
        $region14: #{_lambda_.7} parent=11 // pred_check_branch
          %284 = sbr.rel (%p282) target = $region16
        $region15: #{_lambda_.7} parent=11 // pred_region
          %286 = vsyncadd [#allocation3], 0
          %s288 = sshll.u32 %s0, 4
          %s289 = int_to_ptr.vmem [resolvable:$true] %s288
          %291 = dma.vmem_to_smem %s289, 16, [#allocation2], [#allocation3]
        $region16: #{_lambda_.7} parent=11 // pred_fallthru
          _
        // Predicated region
        $region17: #{_lambda_.7} parent=11 // pred_check
          %p292 = pneg %p59
        $region18: #{_lambda_.7} parent=11 // pred_check_branch
          %294 = sbr.rel (%p292) target = $region20
        $region19: #{_lambda_.7} parent=11 // pred_region
          _
        $region20: #{_lambda_.7} parent=11 // pred_fallthru
          _
      $region12: #{_lambda_.7} parent=5 // pred_fallthru
        _
      %p295 = scmp.lt.s32.totalorder %s17, 2
      // Predicated region
      $region21: #{_lambda_.7} parent=5 // pred_check
        %p296 = pneg %p295
      $region22: #{_lambda_.7} parent=5 // pred_check_branch
        %298 = sbr.rel (%p296) target = $region24
      $region23: #{_lambda_.7} parent=5 // pred_region
        // Predicated region
        $region25: #{_lambda_.7} parent=23 // pred_check
          %p299 = pneg %p79
        $region26: #{_lambda_.7} parent=23 // pred_check_branch
          %301 = sbr.rel (%p299) target = $region28
        $region27: #{_lambda_.7} parent=23 // pred_region
          %s302 = smul.u32 4, %s17
          %p303 = scmp.lt.s32.totalorder %s302, 7
          %s304 = scalar_select %p303, %s302, 7
          %s305 = smul.addr %s304, 8
          %s306 = scalar_lea.vmem %s2, %s305
          %s307 = smul.u32 4, %s17
        $region28: #{_lambda_.7} parent=23 // pred_fallthru
          _
        // Predicated region
        $region29: #{_lambda_.7} parent=23 // pred_check
          %p308 = pneg %p105
        $region30: #{_lambda_.7} parent=23 // pred_check_branch
          %310 = sbr.rel (%p308) target = $region32
        $region31: #{_lambda_.7} parent=23 // pred_region
          %s311 = smul.u32 4, %s17
          %p312 = scmp.lt.s32.totalorder %s311, 7
          %s313 = scalar_select %p312, %s311, 7
          %s314 = smul.addr %s313, 8
          %s315 = scalar_lea.vmem %s3, %s314
          %s316 = smul.u32 4, %s17
        $region32: #{_lambda_.7} parent=23 // pred_fallthru
          _
        // Predicated region
        $region33: #{_lambda_.7} parent=23 // pred_check
          %p317 = pneg %p131
        $region34: #{_lambda_.7} parent=23 // pred_check_branch
          %319 = sbr.rel (%p317) target = $region36
        $region35: #{_lambda_.7} parent=23 // pred_region
          %s320 = smul.u32 4, %s17
          %p321 = scmp.lt.s32.totalorder %s320, 7
          %s322 = scalar_select %p321, %s320, 7
          %s323 = smul.addr %s322, 8
          %s324 = scalar_lea.vmem %s4, %s323
          %s325 = smul.u32 4, %s17
        $region36: #{_lambda_.7} parent=23 // pred_fallthru
          _
        // Predicated region
        $region37: #{_lambda_.7} parent=23 // pred_check
          %p326 = pneg %p157
        $region38: #{_lambda_.7} parent=23 // pred_check_branch
          %328 = sbr.rel (%p326) target = $region40
        $region39: #{_lambda_.7} parent=23 // pred_region
          %s329 = smul.u32 4, %s17
          %p330 = scmp.lt.s32.totalorder %s329, 7
          %s331 = scalar_select %p330, %s329, 7
          %s332 = smul.addr %s331, 8
          %s333 = scalar_lea.vmem %s5, %s332
          %s334 = smul.u32 4, %s17
        $region40: #{_lambda_.7} parent=23 // pred_fallthru
          _
        // Predicated region
        $region41: #{_lambda_.7} parent=23 // pred_check
          %p335 = pneg %p183
        $region42: #{_lambda_.7} parent=23 // pred_check_branch
          %337 = sbr.rel (%p335) target = $region44
        $region43: #{_lambda_.7} parent=23 // pred_region
          %s338 = smul.u32 4, %s17
          %p339 = scmp.lt.s32.totalorder %s338, 7
          %s340 = scalar_select %p339, %s338, 7
          %s341 = smul.addr %s340, 8
          %s342 = scalar_lea.vmem %s6, %s341
          %s343 = smul.u32 4, %s17
        $region44: #{_lambda_.7} parent=23 // pred_fallthru
          _
      $region24: #{_lambda_.7} parent=5 // pred_fallthru
        _
      %p344 = scmp.le.s32.totalorder 1, %s17
      %p345 = scmp.lt.s32.totalorder %s17, 3
      %p346 = pnand %p344, %p345
      %p347 = pneg %p346
      // Predicated region
      $region45: #{_lambda_.7} parent=5 // pred_check
        _
      $region46: #{_lambda_.7} parent=5 // pred_check_branch
        %349 = sbr.rel (%p346) target = $region48
      $region47: #{_lambda_.7} parent=5 // pred_region
        %s350 = ssub.s32 %s17, 1
        // Predicated region
        $region49: #{_lambda_.7} parent=47 // pred_check
          %p351 = pneg %p38
        $region50: #{_lambda_.7} parent=47 // pred_check_branch
          %353 = sbr.rel (%p351) target = $region52
        $region51: #{_lambda_.7} parent=47 // pred_region
          %355 = dma.done [#allocation3], 16
        $region52: #{_lambda_.7} parent=47 // pred_fallthru
          _
        %356 = sfence
        %p357 = pneg %p38
        %p358 = pneg %p35
        %p359 = pneg %p59
        %p360 = pneg %p56
        %s361 = smul.u32 4, %s22
        %p362 = scmp.lt.s32.totalorder %s361, 7
        %s363 = scalar_select %p362, %s361, 7
        %s364 = smul.addr %s363, 8
        %s365 = scalar_lea.vmem %s2, %s364
        %p366 = pneg %p85
        %p367 = pneg %p82
        %s368 = smul.u32 4, %s22
        %p369 = scmp.lt.s32.totalorder %s368, 7
        %s370 = scalar_select %p369, %s368, 7
        %s371 = smul.addr %s370, 8
        %s372 = scalar_lea.vmem %s3, %s371
        %p373 = pneg %p111
        %p374 = pneg %p108
        %s375 = smul.u32 4, %s22
        %p376 = scmp.lt.s32.totalorder %s375, 7
        %s377 = scalar_select %p376, %s375, 7
        %s378 = smul.addr %s377, 8
        %s379 = scalar_lea.vmem %s4, %s378
        %p380 = pneg %p137
        %p381 = pneg %p134
        %s382 = smul.u32 4, %s22
        %p383 = scmp.lt.s32.totalorder %s382, 7
        %s384 = scalar_select %p383, %s382, 7
        %s385 = smul.addr %s384, 8
        %s386 = scalar_lea.vmem %s5, %s385
        %p387 = pneg %p163
        %p388 = pneg %p160
        %s389 = smul.u32 4, %s22
        %p390 = scmp.lt.s32.totalorder %s389, 7
        %s391 = scalar_select %p390, %s389, 7
        %s392 = smul.addr %s391, 8
        %s393 = scalar_lea.vmem %s6, %s392
        %p394 = pneg %p189
        %p395 = pneg %p186
        %p396 = pneg %p215
        %p397 = pneg %p212
        %s398 = smul.u32 4, %s22
        %p399 = scmp.lt.s32.totalorder %s398, 7
        %s400 = scalar_select %p399, %s398, 7
        %s401 = smul.addr %s400, 8
        %s402 = scalar_lea.vmem %s7, %s401
        %p403 = pneg %p241
        %p404 = pneg %p238
        %s405 = smul.u32 4, %s22
        %p406 = scmp.lt.s32.totalorder %s405, 7
        %s407 = scalar_select %p406, %s405, 7
        %s408 = smul.addr %s407, 8
        %s409 = scalar_lea.vmem %s8, %s408
        %p410 = pneg %p267
        %p411 = pneg %p264
        %s412 = smul.u32 4, %s22
        %p413 = scmp.lt.s32.totalorder %s412, 7
        %s414 = scalar_select %p413, %s412, 7
        %s415 = smul.addr %s414, 8
        %s416 = scalar_lea.vmem %s9, %s415
        %s417 = smul.u32 4, %s22
        %p418 = scmp.lt.s32.totalorder %s417, 7
        %s419 = scalar_select %p418, %s417, 7
        %s420 = smul.addr %s419, 8
        %s421 = scalar_lea.vmem %s2, %s420
        %s422 = smul.u32 4, %s22
        %s423 = smul.u32 4, %s22
        %p424 = scmp.lt.s32.totalorder %s423, 7
        %s425 = scalar_select %p424, %s423, 7
        %s426 = smul.addr %s425, 8
        %s427 = scalar_lea.vmem %s3, %s426
        %s428 = smul.u32 4, %s22
        %s429 = smul.u32 4, %s22
        %p430 = scmp.lt.s32.totalorder %s429, 7
        %s431 = scalar_select %p430, %s429, 7
        %s432 = smul.addr %s431, 8
        %s433 = scalar_lea.vmem %s4, %s432
        %s434 = smul.u32 4, %s22
        %s435 = smul.u32 4, %s22
        %p436 = scmp.lt.s32.totalorder %s435, 7
        %s437 = scalar_select %p436, %s435, 7
        %s438 = smul.addr %s437, 8
        %s439 = scalar_lea.vmem %s5, %s438
        %s440 = smul.u32 4, %s22
        %s441 = smul.u32 4, %s22
        %p442 = scmp.lt.s32.totalorder %s441, 7
        %s443 = scalar_select %p442, %s441, 7
        %s444 = smul.addr %s443, 8
        %s445 = scalar_lea.vmem %s6, %s444
        %s446 = smul.u32 4, %s22
        %s447 = smul.u32 4, %s22
        %p448 = scmp.lt.s32.totalorder %s447, 7
        %s449 = scalar_select %p448, %s447, 7
        %s450 = smul.addr %s449, 8
        %s451 = scalar_lea.vmem %s7, %s450
        %s452 = smul.u32 4, %s22
        %s453 = smul.u32 4, %s22
        %p454 = scmp.lt.s32.totalorder %s453, 7
        %s455 = scalar_select %p454, %s453, 7
        %s456 = smul.addr %s455, 8
        %s457 = scalar_lea.vmem %s8, %s456
        %s458 = smul.u32 4, %s22
        %s459 = smul.u32 4, %s22
        %p460 = scmp.lt.s32.totalorder %s459, 7
        %s461 = scalar_select %p460, %s459, 7
        %s462 = smul.addr %s461, 8
        %s463 = scalar_lea.vmem %s9, %s462
        %s464 = smul.u32 4, %s22
        %s465 = sld [smem:[#allocation2]]
        %s466 = sld [smem:[#allocation2 + $0x1]]
        %v467 = vstv %s466
        %v468 = vrcp.pop %v467
        %v469 = vmul.f32 %v467, %v468
        %v470 = vsub.f32 1.0, %v469
        %v471 = vmul.f32 %v468, %v470
        %v472 = vadd.f32 %v468, %v471
        %vm473 = vweird.f32 %v467
        %vm474 = vweird.f32 %v468
        %vm475 = vmor %vm473, %vm474
        %v476 = vsel %vm475, %v468, %v472
        %v477 = vand.u32 2147483647, %v467
        %vm478 = vcmp.eq.f32.partialorder %v477, 8.507059e+37
        %v479 = vand.u32 %v467, 2147483648
        %v480 = vor.u32 1.1754944e-38, %v479
        %v481 = vsel %vm478, %v480, %v476
        %s482 = vtos %v481
        %v483 = vld [vmem:[%s421] sm:$0xff]
        %v484 = vld [vmem:[%s421 + $0x8] sm:$0xff]
        %v485 = vld [vmem:[%s421 + $0x10] sm:$0xff]
        %v486 = vld [vmem:[%s421 + $0x18] sm:$0xff]
        %v487 = vld [vmem:[%s427] sm:$0xff]
        %v488 = vld [vmem:[%s427 + $0x8] sm:$0xff]
        %v489 = vld [vmem:[%s427 + $0x10] sm:$0xff]
        %v490 = vld [vmem:[%s427 + $0x18] sm:$0xff]
        %v491 = vand.u32 2147483647, %v487
        %v492 = vand.u32 2147483647, %v488
        %v493 = vand.u32 2147483647, %v489
        %v494 = vand.u32 2147483647, %v490
        %v495 = vsub.f32 0.0, %v491
        %v496 = vsub.f32 0.0, %v492
        %v497 = vsub.f32 0.0, %v493
        %v498 = vsub.f32 0.0, %v494
        %v499 = vstv %s482
        %v500 = vmul.f32 %v495, %v499
        %v501 = vmul.f32 %v496, %v499
        %v502 = vmul.f32 %v497, %v499
        %v503 = vmul.f32 %v498, %v499
        %v504 = vmul.f32 %v500, 1.442695
        %v505 = vpow.pop %v504
        %v506 = vmul.f32 %v501, 1.442695
        %v507 = vpow.pop %v506
        %v508 = vmul.f32 %v502, 1.442695
        %v509 = vpow.pop %v508
        %v510 = vmul.f32 %v503, 1.442695
        %v511 = vpow.pop %v510
        %v512 = vmul.f32 %v505, 0.5
        %v513 = vmul.f32 %v507, 0.5
        %v514 = vmul.f32 %v509, 0.5
        %v515 = vmul.f32 %v511, 0.5
        %vm516 = vcmp.ge.f32.partialorder %v487, 0.0
        %vm517 = vcmp.ge.f32.partialorder %v488, 0.0
        %vm518 = vcmp.ge.f32.partialorder %v489, 0.0
        %vm519 = vcmp.ge.f32.partialorder %v490, 0.0
        %v520 = vsub.f32 1.0, %v512
        %v521 = vsub.f32 1.0, %v513
        %v522 = vsub.f32 1.0, %v514
        %v523 = vsub.f32 1.0, %v515
        %v524 = vsel %vm516, %v512, %v520
        %v525 = vsel %vm517, %v513, %v521
        %v526 = vsel %vm518, %v514, %v522
        %v527 = vsel %vm519, %v515, %v523
        %v528 = vstv %s465
        %v529 = vmul.f32 %v528, %v524
        %v530 = vmul.f32 %v528, %v525
        %v531 = vmul.f32 %v528, %v526
        %v532 = vmul.f32 %v528, %v527
        %537 = vrot.lane.b32.xlu0 %v483, 1
        %v538 = vpop.permute.xlu0 %537
        %539 = vrot.lane.b32.xlu0 %v484, 1
        %v540 = vpop.permute.xlu0 %539
        %541 = vrot.lane.b32.xlu0 %v485, 1
        %v542 = vpop.permute.xlu0 %541
        %543 = vrot.lane.b32.xlu0 %v486, 1
        %v544 = vpop.permute.xlu0 %543
        %v549 = vsub.f32 %v483, %v538
        %v550 = vsub.f32 %v484, %v540
        %v551 = vsub.f32 %v485, %v542
        %v552 = vsub.f32 %v486, %v544
        %557 = vrot.lane.b32.xlu0 %v549, 127
        %v558 = vpop.permute.xlu0 %557
        %559 = vrot.lane.b32.xlu0 %v550, 127
        %v560 = vpop.permute.xlu0 %559
        %561 = vrot.lane.b32.xlu0 %v551, 127
        %v562 = vpop.permute.xlu0 %561
        %563 = vrot.lane.b32.xlu0 %v552, 127
        %v564 = vpop.permute.xlu0 %563
        %v569 = vmul.f32 %v529, %v558
        %v570 = vmul.f32 %v530, %v560
        %v571 = vmul.f32 %v531, %v562
        %v572 = vmul.f32 %v532, %v564
        %v573 = vmax.f32 %v569, 0.0
        %v574 = vmax.f32 %v570, 0.0
        %v575 = vmax.f32 %v571, 0.0
        %v576 = vmax.f32 %v572, 0.0
        %v577 = vsub.f32 0.0, %v573
        %v578 = vsub.f32 0.0, %v574
        %v579 = vsub.f32 0.0, %v575
        %v580 = vsub.f32 0.0, %v576
        %v581 = vmul.f32 %v577, 1.442695
        %v582 = vpow.pop %v581
        %v583 = vmul.f32 %v578, 1.442695
        %v584 = vpow.pop %v583
        %v585 = vmul.f32 %v579, 1.442695
        %v586 = vpow.pop %v585
        %v587 = vmul.f32 %v580, 1.442695
        %v588 = vpow.pop %v587
        %v589 = vld [vmem:[%s1] sm:$0xff]
        %v590 = vld [vmem:[%s1 + $0x8] sm:$0xff]
        %v591 = vld [vmem:[%s1 + $0x10] sm:$0xff]
        %v592 = vld [vmem:[%s1 + $0x18] sm:$0xff]
        %v593 = vld [vmem:[%s1 + $0x20] sm:$0xff]
        %v594 = vld [vmem:[%s1 + $0x28] sm:$0x7f]
        %vm595 = vcmask 384000
        %v597 = vsel %vm595, %v573, 0
        %v600 = vsel %vm595, %v574, 0
        %v603 = vsel %vm595, %v575, 0
        %v606 = vsel %vm595, %v576, 0
        %vm608 = vcmask 1046528
        %v610 = vsel %vm608, %v594, 0
        %612 = vmatpush.msra.mxu0 0.0
        %613 = vmatpush.msra.mxu0 0.0
        %614 = vmatpush.msra.mxu0 0.0
        %615 = vmatpush.msra.mxu0 0.0
        %616 = vmatpush.msra.mxu0 0.0
        %617 = vmatpush.msra.mxu0 0.0
        %618 = vmatpush.msra.mxu0 0.0
        %619 = vmatpush.msra.mxu0 0.0
        %620 = vmatpush.msra.mxu0 0.0
        %621 = vmatpush.msra.mxu0 0.0
        %622 = vmatpush.msra.mxu0 %v610
        %623 = vmatpush.msra.mxu0 %v593
        %624 = vmatpush.msra.mxu0 %v592
        %625 = vmatpush.msra.mxu0 %v591
        %626 = vmatpush.msra.mxu0 %v590
        %627 = vmatpush.msra.mxu0 %v589
        %628 = vmatmul.f32.gmra.mxu0 %v597
        %v629 = vpop.f32.mrf.mxu0
        %v630 = vadd.f32 0.0, %v629
        %631 = vmatmul.f32.gmra.mxu0 %v600
        %v632 = vpop.f32.mrf.mxu0
        %v633 = vadd.f32 0.0, %v632
        %634 = vmatmul.f32.gmra.mxu0 %v603
        %v635 = vpop.f32.mrf.mxu0
        %v636 = vadd.f32 0.0, %v635
        %637 = vmatmul.f32.gmra.mxu0 %v606
        %v638 = vpop.f32.mrf.mxu0
        %v639 = vadd.f32 0.0, %v638
        %640 = vdwg.mxu0
        %v641 = vsub.f32 1.0, %v582
        %v642 = vsub.f32 1.0, %v584
        %v643 = vsub.f32 1.0, %v586
        %v644 = vsub.f32 1.0, %v588
        %v645 = vadd.f32 %v641, 1e-10
        %v646 = vadd.f32 %v642, 1e-10
        %v647 = vadd.f32 %v643, 1e-10
        %v648 = vadd.f32 %v644, 1e-10
        %v649 = vsub.f32 0.0, %v630
        %v650 = vsub.f32 0.0, %v633
        %v651 = vsub.f32 0.0, %v636
        %v652 = vsub.f32 0.0, %v639
        %v653 = vmul.f32 %v649, 1.442695
        %v654 = vpow.pop %v653
        %v655 = vmul.f32 %v650, 1.442695
        %v656 = vpow.pop %v655
        %v657 = vmul.f32 %v651, 1.442695
        %v658 = vpow.pop %v657
        %v659 = vmul.f32 %v652, 1.442695
        %v660 = vpow.pop %v659
        %v661 = vmul.f32 %v645, %v654
        %v662 = vmul.f32 %v646, %v656
        %v663 = vmul.f32 %v647, %v658
        %v664 = vmul.f32 %v648, %v660
        %v665 = vld [vmem:[%s433] sm:$0xff]
        %v666 = vld [vmem:[%s433 + $0x8] sm:$0xff]
        %v667 = vld [vmem:[%s433 + $0x10] sm:$0xff]
        %v668 = vld [vmem:[%s433 + $0x18] sm:$0xff]
        %v669 = vmul.f32 %v661, %v665
        %v670 = vmul.f32 %v662, %v666
        %v671 = vmul.f32 %v663, %v667
        %v672 = vmul.f32 %v664, %v668
        %v673 = vsel %vm595, %v669, 0.0
        %674 = vadd.xlane.f32.xlu0 %v673
        %v675 = vpop.xlane.xlu0 %674
        %v676 = vsel %vm595, %v670, 0.0
        %677 = vadd.xlane.f32.xlu0 %v676
        %v678 = vpop.xlane.xlu0 %677
        %v679 = vsel %vm595, %v671, 0.0
        %680 = vadd.xlane.f32.xlu0 %v679
        %v681 = vpop.xlane.xlu0 %680
        %v682 = vsel %vm595, %v672, 0.0
        %683 = vadd.xlane.f32.xlu0 %v682
        %v684 = vpop.xlane.xlu0 %683
        %v685 = vld [vmem:[%s439] sm:$0xff]
        %v686 = vld [vmem:[%s439 + $0x8] sm:$0xff]
        %v687 = vld [vmem:[%s439 + $0x10] sm:$0xff]
        %v688 = vld [vmem:[%s439 + $0x18] sm:$0xff]
        %v689 = vmul.f32 %v661, %v685
        %v690 = vmul.f32 %v662, %v686
        %v691 = vmul.f32 %v663, %v687
        %v692 = vmul.f32 %v664, %v688
        %v693 = vsel %vm595, %v689, 0.0
        %694 = vadd.xlane.f32.xlu0 %v693
        %v695 = vpop.xlane.xlu0 %694
        %v696 = vsel %vm595, %v690, 0.0
        %697 = vadd.xlane.f32.xlu0 %v696
        %v698 = vpop.xlane.xlu0 %697
        %v699 = vsel %vm595, %v691, 0.0
        %700 = vadd.xlane.f32.xlu0 %v699
        %v701 = vpop.xlane.xlu0 %700
        %v702 = vsel %vm595, %v692, 0.0
        %703 = vadd.xlane.f32.xlu0 %v702
        %v704 = vpop.xlane.xlu0 %703
        %v705 = vld [vmem:[%s445] sm:$0xff]
        %v706 = vld [vmem:[%s445 + $0x8] sm:$0xff]
        %v707 = vld [vmem:[%s445 + $0x10] sm:$0xff]
        %v708 = vld [vmem:[%s445 + $0x18] sm:$0xff]
        %v709 = vmul.f32 %v661, %v705
        %v710 = vmul.f32 %v662, %v706
        %v711 = vmul.f32 %v663, %v707
        %v712 = vmul.f32 %v664, %v708
        %v713 = vsel %vm595, %v709, 0.0
        %714 = vadd.xlane.f32.xlu0 %v713
        %v715 = vpop.xlane.xlu0 %714
        %v716 = vsel %vm595, %v710, 0.0
        %717 = vadd.xlane.f32.xlu0 %v716
        %v718 = vpop.xlane.xlu0 %717
        %v719 = vsel %vm595, %v711, 0.0
        %720 = vadd.xlane.f32.xlu0 %v719
        %v721 = vpop.xlane.xlu0 %720
        %v722 = vsel %vm595, %v712, 0.0
        %723 = vadd.xlane.f32.xlu0 %v722
        %v724 = vpop.xlane.xlu0 %723
        %v725 = vsel %vm595, %v661, 0.0
        %726 = vadd.xlane.f32.xlu0 %v725
        %v727 = vpop.xlane.xlu0 %726
        %v728 = vsel %vm595, %v662, 0.0
        %729 = vadd.xlane.f32.xlu0 %v728
        %v730 = vpop.xlane.xlu0 %729
        %v731 = vsel %vm595, %v663, 0.0
        %732 = vadd.xlane.f32.xlu0 %v731
        %v733 = vpop.xlane.xlu0 %732
        %v734 = vsel %vm595, %v664, 0.0
        %735 = vadd.xlane.f32.xlu0 %v734
        %v736 = vpop.xlane.xlu0 %735
        %v737 = vadd.f32 %v727, 1e-10
        %v738 = vadd.f32 %v730, 1e-10
        %v739 = vadd.f32 %v733, 1e-10
        %v740 = vadd.f32 %v736, 1e-10
        %v741 = vrcp.pop %v737
        %v742 = vrcp.pop %v738
        %v743 = vrcp.pop %v739
        %v744 = vrcp.pop %v740
        %v745 = vmul.f32 %v661, %v741
        %v746 = vmul.f32 %v662, %v742
        %v747 = vmul.f32 %v663, %v743
        %v748 = vmul.f32 %v664, %v744
        %v749 = vmul.f32 %v745, %v483
        %v750 = vmul.f32 %v746, %v484
        %v751 = vmul.f32 %v747, %v485
        %v752 = vmul.f32 %v748, %v486
        %v753 = vsel %vm595, %v749, 0.0
        %754 = vadd.xlane.f32.xlu0 %v753
        %v755 = vpop.xlane.xlu0 %754
        %v756 = vsel %vm595, %v750, 0.0
        %757 = vadd.xlane.f32.xlu0 %v756
        %v758 = vpop.xlane.xlu0 %757
        %v759 = vsel %vm595, %v751, 0.0
        %760 = vadd.xlane.f32.xlu0 %v759
        %v761 = vpop.xlane.xlu0 %760
        %v762 = vsel %vm595, %v752, 0.0
        %763 = vadd.xlane.f32.xlu0 %v762
        %v764 = vpop.xlane.xlu0 %763
        %vm765 = vcmask 7168
        %v766 = vsel %vm765, %v675, %v695
        %v767 = vsel %vm765, %v678, %v698
        %v768 = vsel %vm765, %v681, %v701
        %v769 = vsel %vm765, %v684, %v704
        %vm770 = vcmask 15360
        %v771 = vsel %vm770, %v766, %v715
        %v772 = vsel %vm770, %v767, %v718
        %v773 = vsel %vm770, %v768, %v721
        %v774 = vsel %vm770, %v769, %v724
        %vm775 = vcmask 23552
        %v776 = vsel %vm775, %v771, %v755
        %v777 = vsel %vm775, %v772, %v758
        %v778 = vsel %vm775, %v773, %v761
        %v779 = vsel %vm775, %v774, %v764
        %vm780 = vcmask 31744
        %v781 = vsel %vm780, %v776, %v727
        %v782 = vsel %vm780, %v777, %v730
        %v783 = vsel %vm780, %v778, %v733
        %v784 = vsel %vm780, %v779, %v736
        %vm785 = vcmask 39936
        %v786 = vsel %vm785, %v781, 0.0
        %v787 = vsel %vm785, %v782, 0.0
        %v788 = vsel %vm785, %v783, 0.0
        %v789 = vsel %vm785, %v784, 0.0
        %vm790 = vcmask 64512
        %791 = vst.msk [vmem:[%s451] sm:$0xff] %vm790, %v786
        %792 = vst.msk [vmem:[%s451 + $0x8] sm:$0xff] %vm790, %v787
        %793 = vst.msk [vmem:[%s451 + $0x10] sm:$0xff] %vm790, %v788
        %794 = vst.msk [vmem:[%s451 + $0x18] sm:$0xff] %vm790, %v789
        %795 = vst.msk [vmem:[%s457] sm:$0xff] %vm595, %v661
        %796 = vst.msk [vmem:[%s457 + $0x8] sm:$0xff] %vm595, %v662
        %797 = vst.msk [vmem:[%s457 + $0x10] sm:$0xff] %vm595, %v663
        %798 = vst.msk [vmem:[%s457 + $0x18] sm:$0xff] %vm595, %v664
        %vm799 = vcmask 392192
        %800 = vst.msk [vmem:[%s463] sm:$0xff] %vm799, %v529
        %801 = vst.msk [vmem:[%s463 + $0x8] sm:$0xff] %vm799, %v530
        %802 = vst.msk [vmem:[%s463 + $0x10] sm:$0xff] %vm799, %v531
        %803 = vst.msk [vmem:[%s463 + $0x18] sm:$0xff] %vm799, %v532
        %s804 = smul.u32 4, %s22
        %p805 = scmp.lt.s32.totalorder %s804, 7
        %s806 = scalar_select %p805, %s804, 7
        %s807 = smul.addr %s806, 8
        %s808 = scalar_lea.vmem %s7, %s807
        %s809 = smul.u32 4, %s22
        %p810 = scmp.lt.s32.totalorder %s809, 7
        %s811 = scalar_select %p810, %s809, 7
        %s812 = smul.addr %s811, 8
        %s813 = scalar_lea.vmem %s8, %s812
        %s814 = smul.u32 4, %s22
        %p815 = scmp.lt.s32.totalorder %s814, 7
        %s816 = scalar_select %p815, %s814, 7
        %s817 = smul.addr %s816, 8
        %s818 = scalar_lea.vmem %s9, %s817
        // Predicated region
        $region53: #{_lambda_.7} parent=47 // pred_check
          %p819 = pneg %p212
        $region54: #{_lambda_.7} parent=47 // pred_check_branch
          %821 = sbr.rel (%p819) target = $region56
        $region55: #{_lambda_.7} parent=47 // pred_region
          %s822 = smul.u32 4, %s22
        $region56: #{_lambda_.7} parent=47 // pred_fallthru
          _
        // Predicated region
        $region57: #{_lambda_.7} parent=47 // pred_check
          %p823 = pneg %p238
        $region58: #{_lambda_.7} parent=47 // pred_check_branch
          %825 = sbr.rel (%p823) target = $region60
        $region59: #{_lambda_.7} parent=47 // pred_region
          %s826 = smul.u32 4, %s22
        $region60: #{_lambda_.7} parent=47 // pred_fallthru
          _
        // Predicated region
        $region61: #{_lambda_.7} parent=47 // pred_check
          %p827 = pneg %p264
        $region62: #{_lambda_.7} parent=47 // pred_check_branch
          %829 = sbr.rel (%p827) target = $region64
        $region63: #{_lambda_.7} parent=47 // pred_region
          %s830 = smul.u32 4, %s22
        $region64: #{_lambda_.7} parent=47 // pred_fallthru
          _
      $region48: #{_lambda_.7} parent=5 // pred_fallthru
        _
      %p831 = scmp.le.s32.totalorder 2, %s17
      // Predicated region
      $region65: #{_lambda_.7} parent=5 // pred_check
        %p832 = pneg %p831
      $region66: #{_lambda_.7} parent=5 // pred_check_branch
        %834 = sbr.rel (%p832) target = $region68
      $region67: #{_lambda_.7} parent=5 // pred_region
        %s835 = ssub.s32 %s17, 2
        // Predicated region
        $region69: #{_lambda_.7} parent=67 // pred_check
          %p836 = pneg %p218
        $region70: #{_lambda_.7} parent=67 // pred_check_branch
          %838 = sbr.rel (%p836) target = $region72
        $region71: #{_lambda_.7} parent=67 // pred_region
          %s839 = smul.u32 4, %s23
          %p840 = scmp.lt.s32.totalorder %s839, 7
          %s841 = scalar_select %p840, %s839, 7
          %s842 = smul.addr %s841, 8
          %s843 = scalar_lea.vmem %s7, %s842
        $region72: #{_lambda_.7} parent=67 // pred_fallthru
          _
        // Predicated region
        $region73: #{_lambda_.7} parent=67 // pred_check
          %p844 = pneg %p244
        $region74: #{_lambda_.7} parent=67 // pred_check_branch
          %846 = sbr.rel (%p844) target = $region76
        $region75: #{_lambda_.7} parent=67 // pred_region
          %s847 = smul.u32 4, %s23
          %p848 = scmp.lt.s32.totalorder %s847, 7
          %s849 = scalar_select %p848, %s847, 7
          %s850 = smul.addr %s849, 8
          %s851 = scalar_lea.vmem %s8, %s850
        $region76: #{_lambda_.7} parent=67 // pred_fallthru
          _
        // Predicated region
        $region77: #{_lambda_.7} parent=67 // pred_check
          %p852 = pneg %p270
        $region78: #{_lambda_.7} parent=67 // pred_check_branch
          %854 = sbr.rel (%p852) target = $region80
        $region79: #{_lambda_.7} parent=67 // pred_region
          %s855 = smul.u32 4, %s23
          %p856 = scmp.lt.s32.totalorder %s855, 7
          %s857 = scalar_select %p856, %s855, 7
          %s858 = smul.addr %s857, 8
          %s859 = scalar_lea.vmem %s9, %s858
        $region80: #{_lambda_.7} parent=67 // pred_fallthru
          _
      $region68: #{_lambda_.7} parent=5 // pred_fallthru
        _
    $region6: #{_lambda_.7} parent=1 // loop_footer
      %s21 = sadd.s32 1, %s17
    $region7: #{_lambda_.7} parent=1 // loop_footer_branch
      %16 = sbr.rel target = $region3
    $region8: #{_lambda_.7} parent=1 // loop_exit
      _
    %860 = vsyncpa [#allocation3], 1
    %s861 = scalar_lea.sflag [#allocation3], 1
    %862 = vsyncpa %s861, 1

// kernel: _lambda_.6
$region0: #{_lambda_.6}
  #allocation0 [shape = 'u32[]', space=smem, size = 0x4, offset = 0x4, fixed_abs, tag = 'smem constant byte address 0x4 - core index']
  #allocation1 [shape = 'u32[72,128]{1,0:T(1,128)}', space=vmem, size = 0x9000, scoped, tag = 'internal scratch']
  %s0 = inlined_call_operand.vmem [shape: f32[8,3072], index: 0, kind: input, shape index: {}]
  %s1 = inlined_call_operand.vmem [shape: bf16[64,8], index: 1, kind: input, shape index: {}]
  %s2 = inlined_call_operand.vmem [shape: f32[64,1], index: 2, kind: input, shape index: {}]
  %s3 = inlined_call_operand.vmem [shape: bf16[64,64], index: 3, kind: input, shape index: {}]
  %s4 = inlined_call_operand.vmem [shape: f32[64,1], index: 4, kind: input, shape index: {}]
  %s5 = inlined_call_operand.vmem [shape: bf16[64,64], index: 5, kind: input, shape index: {}]
  %s6 = inlined_call_operand.vmem [shape: f32[64,1], index: 6, kind: input, shape index: {}]
  %s7 = inlined_call_operand.vmem [shape: bf16[65,64], index: 7, kind: input, shape index: {}]
  %s8 = inlined_call_operand.vmem [shape: f32[65,1], index: 8, kind: input, shape index: {}]
  %s9 = inlined_call_operand.vmem [shape: bf16[3,64], index: 9, kind: input, shape index: {}]
  %s10 = inlined_call_operand.vmem [shape: bf16[64,64], index: 10, kind: input, shape index: {}]
  %s11 = inlined_call_operand.vmem [shape: bf16[64,64], index: 11, kind: input, shape index: {}]
  %s12 = inlined_call_operand.vmem [shape: bf16[64,1], index: 12, kind: input, shape index: {}]
  %s13 = inlined_call_operand.vmem [shape: bf16[64,8], index: 13, kind: input, shape index: {}]
  %s14 = inlined_call_operand.vmem [shape: bf16[64,3], index: 14, kind: input, shape index: {}]
  %s15 = inlined_call_operand.vmem [shape: bf16[64,64], index: 15, kind: input, shape index: {}]
  %s16 = inlined_call_operand.vmem [shape: f32[64,1], index: 16, kind: input, shape index: {}]
  %s17 = inlined_call_operand.vmem [shape: bf16[64,64], index: 17, kind: input, shape index: {}]
  %s18 = inlined_call_operand.vmem [shape: f32[64,1], index: 18, kind: input, shape index: {}]
  %s19 = inlined_call_operand.vmem [shape: bf16[3,64], index: 19, kind: input, shape index: {}]
  %s20 = inlined_call_operand.vmem [shape: f32[3,1], index: 20, kind: input, shape index: {}]
  %s21 = inlined_call_operand.vmem [shape: f32[8,3072], index: 21, kind: output, shape index: {}]
  %s22 = sld [smem:[#allocation0]]
  $region117: #{_lambda_.6} parent=0
    _
  %s24 = ssub.s32 1, %s22
  %s25 = scalar_select 0, %s24, %s22
  loop: start=0, step=1, limit=8
  $region2: #{_lambda_.6} parent=0 // loop_pre_header
    _
  $region3: #{_lambda_.6} parent=0 // loop_header
    %s27 = sphi 0, %s31
    %p28 = scmp.ge.s32.totalorder %s27, 8
    %s37 = sphi 0, %s39
    %s40 = sphi 0, %s37
    %s41 = sphi 0, %s40
    %s57 = sphi 0, %s41
    %s61 = sphi 0, %s61
    %s63 = sphi 0, %s61
    %s64 = sphi 0, %s63
    %s78 = sphi 0, %s64
    %s82 = sphi 0, %s82
    %s84 = sphi 0, %s82
    %s85 = sphi 0, %s84
    %s99 = sphi 0, %s85
    %s103 = sphi 0, %s103
    %s105 = sphi 0, %s103
    %s106 = sphi 0, %s105
    %s120 = sphi 0, %s106
    %s124 = sphi 0, %s124
    %s126 = sphi 0, %s124
    %s127 = sphi 0, %s126
    %s141 = sphi 0, %s127
    %s145 = sphi 0, %s145
    %s147 = sphi 0, %s145
    %s148 = sphi 0, %s147
    %s162 = sphi 0, %s148
    %s166 = sphi 0, %s166
    %s168 = sphi 0, %s166
    %s169 = sphi 0, %s168
    %s183 = sphi 0, %s169
    %s187 = sphi 0, %s187
    %s189 = sphi 0, %s187
    %s190 = sphi 0, %s189
    %s204 = sphi 0, %s190
    %s208 = sphi 0, %s208
    %s210 = sphi 0, %s208
    %s211 = sphi 0, %s210
    %s225 = sphi 0, %s211
    %s229 = sphi 0, %s229
    %s231 = sphi 0, %s229
    %s232 = sphi 0, %s231
    %s246 = sphi 0, %s232
    %s250 = sphi 0, %s250
    %s252 = sphi 0, %s250
    %s253 = sphi 0, %s252
    %s267 = sphi 0, %s253
    %s271 = sphi 0, %s271
    %s273 = sphi 0, %s271
    %s274 = sphi 0, %s273
    %s288 = sphi 0, %s274
    %s292 = sphi 0, %s292
    %s294 = sphi 0, %s292
    %s295 = sphi 0, %s294
    %s309 = sphi 0, %s295
    %s313 = sphi 0, %s313
    %s315 = sphi 0, %s313
    %s316 = sphi 0, %s315
    %s330 = sphi 0, %s316
    %s334 = sphi 0, %s334
    %s336 = sphi 0, %s334
    %s337 = sphi 0, %s336
    %s351 = sphi 0, %s337
    %s355 = sphi 0, %s355
    %s357 = sphi 0, %s355
    %s358 = sphi 0, %s357
    %s372 = sphi 0, %s358
    %s376 = sphi 0, %s376
    %s378 = sphi 0, %s376
    %s379 = sphi 0, %s378
    %s393 = sphi 0, %s379
    %s397 = sphi 0, %s397
    %s399 = sphi 0, %s397
    %s400 = sphi 0, %s399
    %s414 = sphi 0, %s400
    %s418 = sphi 0, %s418
    %s420 = sphi 0, %s418
    %s421 = sphi 0, %s420
    %s435 = sphi 0, %s421
    %s439 = sphi 0, %s439
    %s441 = sphi 0, %s439
    %s442 = sphi 0, %s441
    %s456 = sphi 0, %s442
    %s460 = sphi 0, %s460
    %s462 = sphi 0, %s460
    %s463 = sphi 0, %s462
    %s477 = sphi 0, %s463
    %s483 = sphi 0, %s485
    %s486 = sphi 0, %s483
    %s487 = sphi 0, %s486
    %s503 = sphi 0, %s487
  $region4: #{_lambda_.6} parent=0 // loop_header_branch
    %30 = sbr.rel (%p28) target = $region8
  $region5: #{_lambda_.6} parent=0 // loop_body
    %s32 = ssub.s32 %s27, 1
    %s33 = ssub.s32 %s27, 2
    %s34 = sadd.s32 %s27, 1
    %s35 = ssub.s32 %s27, %s34
    %p36 = scmp.eq.s32.totalorder %s35, 0
    %s38 = sadd.s32 %s37, 1
    %s39 = scalar_select %p36, %s37, %s38
    %p42 = pneg %p36
    %p43 = scmp.eq.s32.totalorder %s27, 5
    %p44 = por %p42, %p43
    %p45 = scmp.ne.s32.totalorder %s37, %s40
    %p46 = scmp.eq.s32.totalorder %s27, 0
    %p47 = por %p45, %p46
    %p48 = scmp.ne.s32.totalorder %s37, %s40
    %p49 = scmp.eq.s32.totalorder %s32, 5
    %p50 = por %p48, %p49
    %p51 = scmp.ne.s32.totalorder %s40, %s41
    %p52 = scmp.eq.s32.totalorder %s32, 0
    %p53 = por %p51, %p52
    %p54 = scmp.ne.s32.totalorder %s40, %s41
    %p55 = scmp.eq.s32.totalorder %s33, 5
    %p56 = por %p54, %p55
    %p58 = scmp.ne.s32.totalorder %s41, %s57
    %p59 = scmp.eq.s32.totalorder %s33, 0
    %p60 = por %p58, %p59
    %s62 = sadd.s32 %s61, 1
    %p65 = scmp.eq.s32.totalorder %s27, 5
    %p66 = scmp.ne.s32.totalorder %s61, %s63
    %p67 = scmp.eq.s32.totalorder %s27, 0
    %p68 = por %p66, %p67
    %p69 = scmp.ne.s32.totalorder %s61, %s63
    %p70 = scmp.eq.s32.totalorder %s32, 5
    %p71 = por %p69, %p70
    %p72 = scmp.ne.s32.totalorder %s63, %s64
    %p73 = scmp.eq.s32.totalorder %s32, 0
    %p74 = por %p72, %p73
    %p75 = scmp.ne.s32.totalorder %s63, %s64
    %p76 = scmp.eq.s32.totalorder %s33, 5
    %p77 = por %p75, %p76
    %p79 = scmp.ne.s32.totalorder %s64, %s78
    %p80 = scmp.eq.s32.totalorder %s33, 0
    %p81 = por %p79, %p80
    %s83 = sadd.s32 %s82, 1
    %p86 = scmp.eq.s32.totalorder %s27, 5
    %p87 = scmp.ne.s32.totalorder %s82, %s84
    %p88 = scmp.eq.s32.totalorder %s27, 0
    %p89 = por %p87, %p88
    %p90 = scmp.ne.s32.totalorder %s82, %s84
    %p91 = scmp.eq.s32.totalorder %s32, 5
    %p92 = por %p90, %p91
    %p93 = scmp.ne.s32.totalorder %s84, %s85
    %p94 = scmp.eq.s32.totalorder %s32, 0
    %p95 = por %p93, %p94
    %p96 = scmp.ne.s32.totalorder %s84, %s85
    %p97 = scmp.eq.s32.totalorder %s33, 5
    %p98 = por %p96, %p97
    %p100 = scmp.ne.s32.totalorder %s85, %s99
    %p101 = scmp.eq.s32.totalorder %s33, 0
    %p102 = por %p100, %p101
    %s104 = sadd.s32 %s103, 1
    %p107 = scmp.eq.s32.totalorder %s27, 5
    %p108 = scmp.ne.s32.totalorder %s103, %s105
    %p109 = scmp.eq.s32.totalorder %s27, 0
    %p110 = por %p108, %p109
    %p111 = scmp.ne.s32.totalorder %s103, %s105
    %p112 = scmp.eq.s32.totalorder %s32, 5
    %p113 = por %p111, %p112
    %p114 = scmp.ne.s32.totalorder %s105, %s106
    %p115 = scmp.eq.s32.totalorder %s32, 0
    %p116 = por %p114, %p115
    %p117 = scmp.ne.s32.totalorder %s105, %s106
    %p118 = scmp.eq.s32.totalorder %s33, 5
    %p119 = por %p117, %p118
    %p121 = scmp.ne.s32.totalorder %s106, %s120
    %p122 = scmp.eq.s32.totalorder %s33, 0
    %p123 = por %p121, %p122
    %s125 = sadd.s32 %s124, 1
    %p128 = scmp.eq.s32.totalorder %s27, 5
    %p129 = scmp.ne.s32.totalorder %s124, %s126
    %p130 = scmp.eq.s32.totalorder %s27, 0
    %p131 = por %p129, %p130
    %p132 = scmp.ne.s32.totalorder %s124, %s126
    %p133 = scmp.eq.s32.totalorder %s32, 5
    %p134 = por %p132, %p133
    %p135 = scmp.ne.s32.totalorder %s126, %s127
    %p136 = scmp.eq.s32.totalorder %s32, 0
    %p137 = por %p135, %p136
    %p138 = scmp.ne.s32.totalorder %s126, %s127
    %p139 = scmp.eq.s32.totalorder %s33, 5
    %p140 = por %p138, %p139
    %p142 = scmp.ne.s32.totalorder %s127, %s141
    %p143 = scmp.eq.s32.totalorder %s33, 0
    %p144 = por %p142, %p143
    %s146 = sadd.s32 %s145, 1
    %p149 = scmp.eq.s32.totalorder %s27, 5
    %p150 = scmp.ne.s32.totalorder %s145, %s147
    %p151 = scmp.eq.s32.totalorder %s27, 0
    %p152 = por %p150, %p151
    %p153 = scmp.ne.s32.totalorder %s145, %s147
    %p154 = scmp.eq.s32.totalorder %s32, 5
    %p155 = por %p153, %p154
    %p156 = scmp.ne.s32.totalorder %s147, %s148
    %p157 = scmp.eq.s32.totalorder %s32, 0
    %p158 = por %p156, %p157
    %p159 = scmp.ne.s32.totalorder %s147, %s148
    %p160 = scmp.eq.s32.totalorder %s33, 5
    %p161 = por %p159, %p160
    %p163 = scmp.ne.s32.totalorder %s148, %s162
    %p164 = scmp.eq.s32.totalorder %s33, 0
    %p165 = por %p163, %p164
    %s167 = sadd.s32 %s166, 1
    %p170 = scmp.eq.s32.totalorder %s27, 5
    %p171 = scmp.ne.s32.totalorder %s166, %s168
    %p172 = scmp.eq.s32.totalorder %s27, 0
    %p173 = por %p171, %p172
    %p174 = scmp.ne.s32.totalorder %s166, %s168
    %p175 = scmp.eq.s32.totalorder %s32, 5
    %p176 = por %p174, %p175
    %p177 = scmp.ne.s32.totalorder %s168, %s169
    %p178 = scmp.eq.s32.totalorder %s32, 0
    %p179 = por %p177, %p178
    %p180 = scmp.ne.s32.totalorder %s168, %s169
    %p181 = scmp.eq.s32.totalorder %s33, 5
    %p182 = por %p180, %p181
    %p184 = scmp.ne.s32.totalorder %s169, %s183
    %p185 = scmp.eq.s32.totalorder %s33, 0
    %p186 = por %p184, %p185
    %s188 = sadd.s32 %s187, 1
    %p191 = scmp.eq.s32.totalorder %s27, 5
    %p192 = scmp.ne.s32.totalorder %s187, %s189
    %p193 = scmp.eq.s32.totalorder %s27, 0
    %p194 = por %p192, %p193
    %p195 = scmp.ne.s32.totalorder %s187, %s189
    %p196 = scmp.eq.s32.totalorder %s32, 5
    %p197 = por %p195, %p196
    %p198 = scmp.ne.s32.totalorder %s189, %s190
    %p199 = scmp.eq.s32.totalorder %s32, 0
    %p200 = por %p198, %p199
    %p201 = scmp.ne.s32.totalorder %s189, %s190
    %p202 = scmp.eq.s32.totalorder %s33, 5
    %p203 = por %p201, %p202
    %p205 = scmp.ne.s32.totalorder %s190, %s204
    %p206 = scmp.eq.s32.totalorder %s33, 0
    %p207 = por %p205, %p206
    %s209 = sadd.s32 %s208, 1
    %p212 = scmp.eq.s32.totalorder %s27, 5
    %p213 = scmp.ne.s32.totalorder %s208, %s210
    %p214 = scmp.eq.s32.totalorder %s27, 0
    %p215 = por %p213, %p214
    %p216 = scmp.ne.s32.totalorder %s208, %s210
    %p217 = scmp.eq.s32.totalorder %s32, 5
    %p218 = por %p216, %p217
    %p219 = scmp.ne.s32.totalorder %s210, %s211
    %p220 = scmp.eq.s32.totalorder %s32, 0
    %p221 = por %p219, %p220
    %p222 = scmp.ne.s32.totalorder %s210, %s211
    %p223 = scmp.eq.s32.totalorder %s33, 5
    %p224 = por %p222, %p223
    %p226 = scmp.ne.s32.totalorder %s211, %s225
    %p227 = scmp.eq.s32.totalorder %s33, 0
    %p228 = por %p226, %p227
    %s230 = sadd.s32 %s229, 1
    %p233 = scmp.eq.s32.totalorder %s27, 5
    %p234 = scmp.ne.s32.totalorder %s229, %s231
    %p235 = scmp.eq.s32.totalorder %s27, 0
    %p236 = por %p234, %p235
    %p237 = scmp.ne.s32.totalorder %s229, %s231
    %p238 = scmp.eq.s32.totalorder %s32, 5
    %p239 = por %p237, %p238
    %p240 = scmp.ne.s32.totalorder %s231, %s232
    %p241 = scmp.eq.s32.totalorder %s32, 0
    %p242 = por %p240, %p241
    %p243 = scmp.ne.s32.totalorder %s231, %s232
    %p244 = scmp.eq.s32.totalorder %s33, 5
    %p245 = por %p243, %p244
    %p247 = scmp.ne.s32.totalorder %s232, %s246
    %p248 = scmp.eq.s32.totalorder %s33, 0
    %p249 = por %p247, %p248
    %s251 = sadd.s32 %s250, 1
    %p254 = scmp.eq.s32.totalorder %s27, 5
    %p255 = scmp.ne.s32.totalorder %s250, %s252
    %p256 = scmp.eq.s32.totalorder %s27, 0
    %p257 = por %p255, %p256
    %p258 = scmp.ne.s32.totalorder %s250, %s252
    %p259 = scmp.eq.s32.totalorder %s32, 5
    %p260 = por %p258, %p259
    %p261 = scmp.ne.s32.totalorder %s252, %s253
    %p262 = scmp.eq.s32.totalorder %s32, 0
    %p263 = por %p261, %p262
    %p264 = scmp.ne.s32.totalorder %s252, %s253
    %p265 = scmp.eq.s32.totalorder %s33, 5
    %p266 = por %p264, %p265
    %p268 = scmp.ne.s32.totalorder %s253, %s267
    %p269 = scmp.eq.s32.totalorder %s33, 0
    %p270 = por %p268, %p269
    %s272 = sadd.s32 %s271, 1
    %p275 = scmp.eq.s32.totalorder %s27, 5
    %p276 = scmp.ne.s32.totalorder %s271, %s273
    %p277 = scmp.eq.s32.totalorder %s27, 0
    %p278 = por %p276, %p277
    %p279 = scmp.ne.s32.totalorder %s271, %s273
    %p280 = scmp.eq.s32.totalorder %s32, 5
    %p281 = por %p279, %p280
    %p282 = scmp.ne.s32.totalorder %s273, %s274
    %p283 = scmp.eq.s32.totalorder %s32, 0
    %p284 = por %p282, %p283
    %p285 = scmp.ne.s32.totalorder %s273, %s274
    %p286 = scmp.eq.s32.totalorder %s33, 5
    %p287 = por %p285, %p286
    %p289 = scmp.ne.s32.totalorder %s274, %s288
    %p290 = scmp.eq.s32.totalorder %s33, 0
    %p291 = por %p289, %p290
    %s293 = sadd.s32 %s292, 1
    %p296 = scmp.eq.s32.totalorder %s27, 5
    %p297 = scmp.ne.s32.totalorder %s292, %s294
    %p298 = scmp.eq.s32.totalorder %s27, 0
    %p299 = por %p297, %p298
    %p300 = scmp.ne.s32.totalorder %s292, %s294
    %p301 = scmp.eq.s32.totalorder %s32, 5
    %p302 = por %p300, %p301
    %p303 = scmp.ne.s32.totalorder %s294, %s295
    %p304 = scmp.eq.s32.totalorder %s32, 0
    %p305 = por %p303, %p304
    %p306 = scmp.ne.s32.totalorder %s294, %s295
    %p307 = scmp.eq.s32.totalorder %s33, 5
    %p308 = por %p306, %p307
    %p310 = scmp.ne.s32.totalorder %s295, %s309
    %p311 = scmp.eq.s32.totalorder %s33, 0
    %p312 = por %p310, %p311
    %s314 = sadd.s32 %s313, 1
    %p317 = scmp.eq.s32.totalorder %s27, 5
    %p318 = scmp.ne.s32.totalorder %s313, %s315
    %p319 = scmp.eq.s32.totalorder %s27, 0
    %p320 = por %p318, %p319
    %p321 = scmp.ne.s32.totalorder %s313, %s315
    %p322 = scmp.eq.s32.totalorder %s32, 5
    %p323 = por %p321, %p322
    %p324 = scmp.ne.s32.totalorder %s315, %s316
    %p325 = scmp.eq.s32.totalorder %s32, 0
    %p326 = por %p324, %p325
    %p327 = scmp.ne.s32.totalorder %s315, %s316
    %p328 = scmp.eq.s32.totalorder %s33, 5
    %p329 = por %p327, %p328
    %p331 = scmp.ne.s32.totalorder %s316, %s330
    %p332 = scmp.eq.s32.totalorder %s33, 0
    %p333 = por %p331, %p332
    %s335 = sadd.s32 %s334, 1
    %p338 = scmp.eq.s32.totalorder %s27, 5
    %p339 = scmp.ne.s32.totalorder %s334, %s336
    %p340 = scmp.eq.s32.totalorder %s27, 0
    %p341 = por %p339, %p340
    %p342 = scmp.ne.s32.totalorder %s334, %s336
    %p343 = scmp.eq.s32.totalorder %s32, 5
    %p344 = por %p342, %p343
    %p345 = scmp.ne.s32.totalorder %s336, %s337
    %p346 = scmp.eq.s32.totalorder %s32, 0
    %p347 = por %p345, %p346
    %p348 = scmp.ne.s32.totalorder %s336, %s337
    %p349 = scmp.eq.s32.totalorder %s33, 5
    %p350 = por %p348, %p349
    %p352 = scmp.ne.s32.totalorder %s337, %s351
    %p353 = scmp.eq.s32.totalorder %s33, 0
    %p354 = por %p352, %p353
    %s356 = sadd.s32 %s355, 1
    %p359 = scmp.eq.s32.totalorder %s27, 5
    %p360 = scmp.ne.s32.totalorder %s355, %s357
    %p361 = scmp.eq.s32.totalorder %s27, 0
    %p362 = por %p360, %p361
    %p363 = scmp.ne.s32.totalorder %s355, %s357
    %p364 = scmp.eq.s32.totalorder %s32, 5
    %p365 = por %p363, %p364
    %p366 = scmp.ne.s32.totalorder %s357, %s358
    %p367 = scmp.eq.s32.totalorder %s32, 0
    %p368 = por %p366, %p367
    %p369 = scmp.ne.s32.totalorder %s357, %s358
    %p370 = scmp.eq.s32.totalorder %s33, 5
    %p371 = por %p369, %p370
    %p373 = scmp.ne.s32.totalorder %s358, %s372
    %p374 = scmp.eq.s32.totalorder %s33, 0
    %p375 = por %p373, %p374
    %s377 = sadd.s32 %s376, 1
    %p380 = scmp.eq.s32.totalorder %s27, 5
    %p381 = scmp.ne.s32.totalorder %s376, %s378
    %p382 = scmp.eq.s32.totalorder %s27, 0
    %p383 = por %p381, %p382
    %p384 = scmp.ne.s32.totalorder %s376, %s378
    %p385 = scmp.eq.s32.totalorder %s32, 5
    %p386 = por %p384, %p385
    %p387 = scmp.ne.s32.totalorder %s378, %s379
    %p388 = scmp.eq.s32.totalorder %s32, 0
    %p389 = por %p387, %p388
    %p390 = scmp.ne.s32.totalorder %s378, %s379
    %p391 = scmp.eq.s32.totalorder %s33, 5
    %p392 = por %p390, %p391
    %p394 = scmp.ne.s32.totalorder %s379, %s393
    %p395 = scmp.eq.s32.totalorder %s33, 0
    %p396 = por %p394, %p395
    %s398 = sadd.s32 %s397, 1
    %p401 = scmp.eq.s32.totalorder %s27, 5
    %p402 = scmp.ne.s32.totalorder %s397, %s399
    %p403 = scmp.eq.s32.totalorder %s27, 0
    %p404 = por %p402, %p403
    %p405 = scmp.ne.s32.totalorder %s397, %s399
    %p406 = scmp.eq.s32.totalorder %s32, 5
    %p407 = por %p405, %p406
    %p408 = scmp.ne.s32.totalorder %s399, %s400
    %p409 = scmp.eq.s32.totalorder %s32, 0
    %p410 = por %p408, %p409
    %p411 = scmp.ne.s32.totalorder %s399, %s400
    %p412 = scmp.eq.s32.totalorder %s33, 5
    %p413 = por %p411, %p412
    %p415 = scmp.ne.s32.totalorder %s400, %s414
    %p416 = scmp.eq.s32.totalorder %s33, 0
    %p417 = por %p415, %p416
    %s419 = sadd.s32 %s418, 1
    %p422 = scmp.eq.s32.totalorder %s27, 5
    %p423 = scmp.ne.s32.totalorder %s418, %s420
    %p424 = scmp.eq.s32.totalorder %s27, 0
    %p425 = por %p423, %p424
    %p426 = scmp.ne.s32.totalorder %s418, %s420
    %p427 = scmp.eq.s32.totalorder %s32, 5
    %p428 = por %p426, %p427
    %p429 = scmp.ne.s32.totalorder %s420, %s421
    %p430 = scmp.eq.s32.totalorder %s32, 0
    %p431 = por %p429, %p430
    %p432 = scmp.ne.s32.totalorder %s420, %s421
    %p433 = scmp.eq.s32.totalorder %s33, 5
    %p434 = por %p432, %p433
    %p436 = scmp.ne.s32.totalorder %s421, %s435
    %p437 = scmp.eq.s32.totalorder %s33, 0
    %p438 = por %p436, %p437
    %s440 = sadd.s32 %s439, 1
    %p443 = scmp.eq.s32.totalorder %s27, 5
    %p444 = scmp.ne.s32.totalorder %s439, %s441
    %p445 = scmp.eq.s32.totalorder %s27, 0
    %p446 = por %p444, %p445
    %p447 = scmp.ne.s32.totalorder %s439, %s441
    %p448 = scmp.eq.s32.totalorder %s32, 5
    %p449 = por %p447, %p448
    %p450 = scmp.ne.s32.totalorder %s441, %s442
    %p451 = scmp.eq.s32.totalorder %s32, 0
    %p452 = por %p450, %p451
    %p453 = scmp.ne.s32.totalorder %s441, %s442
    %p454 = scmp.eq.s32.totalorder %s33, 5
    %p455 = por %p453, %p454
    %p457 = scmp.ne.s32.totalorder %s442, %s456
    %p458 = scmp.eq.s32.totalorder %s33, 0
    %p459 = por %p457, %p458
    %s461 = sadd.s32 %s460, 1
    %p464 = scmp.eq.s32.totalorder %s27, 5
    %p465 = scmp.ne.s32.totalorder %s460, %s462
    %p466 = scmp.eq.s32.totalorder %s27, 0
    %p467 = por %p465, %p466
    %p468 = scmp.ne.s32.totalorder %s460, %s462
    %p469 = scmp.eq.s32.totalorder %s32, 5
    %p470 = por %p468, %p469
    %p471 = scmp.ne.s32.totalorder %s462, %s463
    %p472 = scmp.eq.s32.totalorder %s32, 0
    %p473 = por %p471, %p472
    %p474 = scmp.ne.s32.totalorder %s462, %s463
    %p475 = scmp.eq.s32.totalorder %s33, 5
    %p476 = por %p474, %p475
    %p478 = scmp.ne.s32.totalorder %s463, %s477
    %p479 = scmp.eq.s32.totalorder %s33, 0
    %p480 = por %p478, %p479
    %s481 = ssub.s32 %s27, %s34
    %p482 = scmp.eq.s32.totalorder %s481, 0
    %s484 = sadd.s32 %s483, 1
    %s485 = scalar_select %p482, %s483, %s484
    %p488 = pneg %p482
    %p489 = scmp.eq.s32.totalorder %s27, 5
    %p490 = por %p488, %p489
    %p491 = scmp.ne.s32.totalorder %s483, %s486
    %p492 = scmp.eq.s32.totalorder %s27, 0
    %p493 = por %p491, %p492
    %p494 = scmp.ne.s32.totalorder %s483, %s486
    %p495 = scmp.eq.s32.totalorder %s32, 5
    %p496 = por %p494, %p495
    %p497 = scmp.ne.s32.totalorder %s486, %s487
    %p498 = scmp.eq.s32.totalorder %s32, 0
    %p499 = por %p497, %p498
    %p500 = scmp.ne.s32.totalorder %s486, %s487
    %p501 = scmp.eq.s32.totalorder %s33, 5
    %p502 = por %p500, %p501
    %p504 = scmp.ne.s32.totalorder %s487, %s503
    %p505 = scmp.eq.s32.totalorder %s33, 0
    %p506 = por %p504, %p505
    %p507 = scmp.le.s32.totalorder 1, %s27
    %p508 = scmp.lt.s32.totalorder %s27, 7
    %p509 = pnand %p507, %p508
    %p510 = pneg %p509
    // Predicated region
    $region9: #{_lambda_.6} parent=5 // pred_check
      _
    $region10: #{_lambda_.6} parent=5 // pred_check_branch
      %512 = sbr.rel (%p509) target = $region12
    $region11: #{_lambda_.6} parent=5 // pred_region
      %s513 = ssub.s32 %s27, 1
      // Predicated region
      $region13: #{_lambda_.6} parent=11 // pred_check
        %p514 = pneg %p74
      $region14: #{_lambda_.6} parent=11 // pred_check_branch
        %516 = sbr.rel (%p514) target = $region16
      $region15: #{_lambda_.6} parent=11 // pred_region
        _
      $region16: #{_lambda_.6} parent=11 // pred_fallthru
        _
      // Predicated region
      $region17: #{_lambda_.6} parent=11 // pred_check
        %p517 = pneg %p95
      $region18: #{_lambda_.6} parent=11 // pred_check_branch
        %519 = sbr.rel (%p517) target = $region20
      $region19: #{_lambda_.6} parent=11 // pred_region
        _
      $region20: #{_lambda_.6} parent=11 // pred_fallthru
        _
      // Predicated region
      $region21: #{_lambda_.6} parent=11 // pred_check
        %p520 = pneg %p116
      $region22: #{_lambda_.6} parent=11 // pred_check_branch
        %522 = sbr.rel (%p520) target = $region24
      $region23: #{_lambda_.6} parent=11 // pred_region
        _
      $region24: #{_lambda_.6} parent=11 // pred_fallthru
        _
      // Predicated region
      $region25: #{_lambda_.6} parent=11 // pred_check
        %p523 = pneg %p137
      $region26: #{_lambda_.6} parent=11 // pred_check_branch
        %525 = sbr.rel (%p523) target = $region28
      $region27: #{_lambda_.6} parent=11 // pred_region
        _
      $region28: #{_lambda_.6} parent=11 // pred_fallthru
        _
      // Predicated region
      $region29: #{_lambda_.6} parent=11 // pred_check
        %p526 = pneg %p158
      $region30: #{_lambda_.6} parent=11 // pred_check_branch
        %528 = sbr.rel (%p526) target = $region32
      $region31: #{_lambda_.6} parent=11 // pred_region
        _
      $region32: #{_lambda_.6} parent=11 // pred_fallthru
        _
      // Predicated region
      $region33: #{_lambda_.6} parent=11 // pred_check
        %p529 = pneg %p179
      $region34: #{_lambda_.6} parent=11 // pred_check_branch
        %531 = sbr.rel (%p529) target = $region36
      $region35: #{_lambda_.6} parent=11 // pred_region
        _
      $region36: #{_lambda_.6} parent=11 // pred_fallthru
        _
      // Predicated region
      $region37: #{_lambda_.6} parent=11 // pred_check
        %p532 = pneg %p200
      $region38: #{_lambda_.6} parent=11 // pred_check_branch
        %534 = sbr.rel (%p532) target = $region40
      $region39: #{_lambda_.6} parent=11 // pred_region
        _
      $region40: #{_lambda_.6} parent=11 // pred_fallthru
        _
      // Predicated region
      $region41: #{_lambda_.6} parent=11 // pred_check
        %p535 = pneg %p221
      $region42: #{_lambda_.6} parent=11 // pred_check_branch
        %537 = sbr.rel (%p535) target = $region44
      $region43: #{_lambda_.6} parent=11 // pred_region
        _
      $region44: #{_lambda_.6} parent=11 // pred_fallthru
        _
      // Predicated region
      $region45: #{_lambda_.6} parent=11 // pred_check
        %p538 = pneg %p242
      $region46: #{_lambda_.6} parent=11 // pred_check_branch
        %540 = sbr.rel (%p538) target = $region48
      $region47: #{_lambda_.6} parent=11 // pred_region
        _
      $region48: #{_lambda_.6} parent=11 // pred_fallthru
        _
      // Predicated region
      $region49: #{_lambda_.6} parent=11 // pred_check
        %p541 = pneg %p263
      $region50: #{_lambda_.6} parent=11 // pred_check_branch
        %543 = sbr.rel (%p541) target = $region52
      $region51: #{_lambda_.6} parent=11 // pred_region
        _
      $region52: #{_lambda_.6} parent=11 // pred_fallthru
        _
      // Predicated region
      $region53: #{_lambda_.6} parent=11 // pred_check
        %p544 = pneg %p284
      $region54: #{_lambda_.6} parent=11 // pred_check_branch
        %546 = sbr.rel (%p544) target = $region56
      $region55: #{_lambda_.6} parent=11 // pred_region
        _
      $region56: #{_lambda_.6} parent=11 // pred_fallthru
        _
      // Predicated region
      $region57: #{_lambda_.6} parent=11 // pred_check
        %p547 = pneg %p305
      $region58: #{_lambda_.6} parent=11 // pred_check_branch
        %549 = sbr.rel (%p547) target = $region60
      $region59: #{_lambda_.6} parent=11 // pred_region
        _
      $region60: #{_lambda_.6} parent=11 // pred_fallthru
        _
      // Predicated region
      $region61: #{_lambda_.6} parent=11 // pred_check
        %p550 = pneg %p326
      $region62: #{_lambda_.6} parent=11 // pred_check_branch
        %552 = sbr.rel (%p550) target = $region64
      $region63: #{_lambda_.6} parent=11 // pred_region
        _
      $region64: #{_lambda_.6} parent=11 // pred_fallthru
        _
      // Predicated region
      $region65: #{_lambda_.6} parent=11 // pred_check
        %p553 = pneg %p347
      $region66: #{_lambda_.6} parent=11 // pred_check_branch
        %555 = sbr.rel (%p553) target = $region68
      $region67: #{_lambda_.6} parent=11 // pred_region
        _
      $region68: #{_lambda_.6} parent=11 // pred_fallthru
        _
      // Predicated region
      $region69: #{_lambda_.6} parent=11 // pred_check
        %p556 = pneg %p368
      $region70: #{_lambda_.6} parent=11 // pred_check_branch
        %558 = sbr.rel (%p556) target = $region72
      $region71: #{_lambda_.6} parent=11 // pred_region
        _
      $region72: #{_lambda_.6} parent=11 // pred_fallthru
        _
      // Predicated region
      $region73: #{_lambda_.6} parent=11 // pred_check
        %p559 = pneg %p389
      $region74: #{_lambda_.6} parent=11 // pred_check_branch
        %561 = sbr.rel (%p559) target = $region76
      $region75: #{_lambda_.6} parent=11 // pred_region
        _
      $region76: #{_lambda_.6} parent=11 // pred_fallthru
        _
      // Predicated region
      $region77: #{_lambda_.6} parent=11 // pred_check
        %p562 = pneg %p410
      $region78: #{_lambda_.6} parent=11 // pred_check_branch
        %564 = sbr.rel (%p562) target = $region80
      $region79: #{_lambda_.6} parent=11 // pred_region
        _
      $region80: #{_lambda_.6} parent=11 // pred_fallthru
        _
      // Predicated region
      $region81: #{_lambda_.6} parent=11 // pred_check
        %p565 = pneg %p431
      $region82: #{_lambda_.6} parent=11 // pred_check_branch
        %567 = sbr.rel (%p565) target = $region84
      $region83: #{_lambda_.6} parent=11 // pred_region
        _
      $region84: #{_lambda_.6} parent=11 // pred_fallthru
        _
      // Predicated region
      $region85: #{_lambda_.6} parent=11 // pred_check
        %p568 = pneg %p452
      $region86: #{_lambda_.6} parent=11 // pred_check_branch
        %570 = sbr.rel (%p568) target = $region88
      $region87: #{_lambda_.6} parent=11 // pred_region
        _
      $region88: #{_lambda_.6} parent=11 // pred_fallthru
        _
      // Predicated region
      $region89: #{_lambda_.6} parent=11 // pred_check
        %p571 = pneg %p473
      $region90: #{_lambda_.6} parent=11 // pred_check_branch
        %573 = sbr.rel (%p571) target = $region92
      $region91: #{_lambda_.6} parent=11 // pred_region
        _
      $region92: #{_lambda_.6} parent=11 // pred_fallthru
        _
    $region12: #{_lambda_.6} parent=5 // pred_fallthru
      _
    %p574 = scmp.lt.s32.totalorder %s27, 6
    // Predicated region
    $region93: #{_lambda_.6} parent=5 // pred_check
      %p575 = pneg %p574
    $region94: #{_lambda_.6} parent=5 // pred_check_branch
      %577 = sbr.rel (%p575) target = $region96
    $region95: #{_lambda_.6} parent=5 // pred_region
      // Predicated region
      $region97: #{_lambda_.6} parent=95 // pred_check
        %p578 = pneg %p47
      $region98: #{_lambda_.6} parent=95 // pred_check_branch
        %580 = sbr.rel (%p578) target = $region100
      $region99: #{_lambda_.6} parent=95 // pred_region
        %s581 = smul.u32 4, %s27
        %p582 = scmp.lt.s32.totalorder %s581, 23
        %s583 = scalar_select %p582, %s581, 23
        %s584 = smul.addr %s583, 8
        %s585 = scalar_lea.vmem %s0, %s584
        %s586 = smul.u32 4, %s27
      $region100: #{_lambda_.6} parent=95 // pred_fallthru
        _
    $region96: #{_lambda_.6} parent=5 // pred_fallthru
      _
    %p587 = scmp.le.s32.totalorder 1, %s27
    %p588 = scmp.lt.s32.totalorder %s27, 7
    %p589 = pnand %p587, %p588
    %p590 = pneg %p589
    // Predicated region
    $region101: #{_lambda_.6} parent=5 // pred_check
      _
    $region102: #{_lambda_.6} parent=5 // pred_check_branch
      %592 = sbr.rel (%p589) target = $region104
    $region103: #{_lambda_.6} parent=5 // pred_region
      %s593 = ssub.s32 %s27, 1
      %s594 = smul.u32 4, %s32
      %p595 = scmp.lt.s32.totalorder %s594, 23
      %s596 = scalar_select %p595, %s594, 23
      %s597 = smul.addr %s596, 8
      %s598 = scalar_lea.vmem %s0, %s597
      %p599 = pneg %p53
      %p600 = pneg %p50
      %p601 = pneg %p74
      %p602 = pneg %p71
      %p603 = pneg %p95
      %p604 = pneg %p92
      %p605 = pneg %p116
      %p606 = pneg %p113
      %p607 = pneg %p137
      %p608 = pneg %p134
      %p609 = pneg %p158
      %p610 = pneg %p155
      %p611 = pneg %p179
      %p612 = pneg %p176
      %p613 = pneg %p200
      %p614 = pneg %p197
      %p615 = pneg %p221
      %p616 = pneg %p218
      %p617 = pneg %p242
      %p618 = pneg %p239
      %p619 = pneg %p263
      %p620 = pneg %p260
      %p621 = pneg %p284
      %p622 = pneg %p281
      %p623 = pneg %p305
      %p624 = pneg %p302
      %p625 = pneg %p326
      %p626 = pneg %p323
      %p627 = pneg %p347
      %p628 = pneg %p344
      %p629 = pneg %p368
      %p630 = pneg %p365
      %p631 = pneg %p389
      %p632 = pneg %p386
      %p633 = pneg %p410
      %p634 = pneg %p407
      %p635 = pneg %p431
      %p636 = pneg %p428
      %p637 = pneg %p452
      %p638 = pneg %p449
      %p639 = pneg %p473
      %p640 = pneg %p470
      %p641 = pneg %p499
      %p642 = pneg %p496
      %s643 = smul.u32 4, %s32
      %p644 = scmp.lt.s32.totalorder %s643, 23
      %s645 = scalar_select %p644, %s643, 23
      %s646 = smul.addr %s645, 8
      %s647 = scalar_lea.vmem %s21, %s646
      %s648 = smul.u32 4, %s32
      %p649 = scmp.lt.s32.totalorder %s648, 23
      %s650 = scalar_select %p649, %s648, 23
      %s651 = smul.addr %s650, 8
      %s652 = scalar_lea.vmem %s0, %s651
      %s653 = smul.u32 4, %s32
      %s654 = smul.u32 4, %s32
      %p655 = scmp.lt.s32.totalorder %s654, 23
      %s656 = scalar_select %p655, %s654, 23
      %s657 = smul.addr %s656, 8
      %s658 = scalar_lea.vmem %s21, %s657
      %s659 = smul.u32 4, %s32
      %v661 = vld [vmem:[%s652] sm:$0xff]
      %v662 = vld [vmem:[%s652 + $0x8] sm:$0xff]
      %v663 = vld [vmem:[%s652 + $0x10] sm:$0xff]
      %v664 = vld [vmem:[%s652 + $0x18] sm:$0xff]
      %v665 = vpack.c.bf16 %v661, %v661
      %v666 = vpack.c.bf16 %v662, %v662
      %v667 = vpack.c.bf16 %v663, %v663
      %v668 = vpack.c.bf16 %v664, %v664
      %v669 = vld [vmem:[%s1] sm:$0xf]
      %v670 = vld [vmem:[%s1 + $0x4] sm:$0xf]
      %v671 = vld [vmem:[%s1 + $0x8] sm:$0xf]
      %v672 = vld [vmem:[%s1 + $0xc] sm:$0xf]
      %v673 = vld [vmem:[%s1 + $0x10] sm:$0xf]
      %v674 = vld [vmem:[%s1 + $0x14] sm:$0xf]
      %v675 = vld [vmem:[%s1 + $0x18] sm:$0xf]
      %v676 = vld [vmem:[%s1 + $0x1c] sm:$0xf]
      %v677 = vld [vmem:[%s2] sm:$0xff]
      %v678 = vld [vmem:[%s2 + $0x8] sm:$0xff]
      %v679 = vld [vmem:[%s2 + $0x10] sm:$0xff]
      %v680 = vld [vmem:[%s2 + $0x18] sm:$0xff]
      %v681 = vld [vmem:[%s2 + $0x20] sm:$0xff]
      %v682 = vld [vmem:[%s2 + $0x28] sm:$0xff]
      %v683 = vld [vmem:[%s2 + $0x30] sm:$0xff]
      %v684 = vld [vmem:[%s2 + $0x38] sm:$0xff]
      %686 = vset.pattern.permute.xlu0 0
      %687 = vperm.xlu0 %686, %v677
      %v688 = vpop.permute.xlu0 %687
      %691 = vset.pattern.permute.xlu0 0
      %692 = vperm.xlu0 %691, %v678
      %v693 = vpop.permute.xlu0 %692
      %696 = vset.pattern.permute.xlu0 0
      %697 = vperm.xlu0 %696, %v679
      %v698 = vpop.permute.xlu0 %697
      %701 = vset.pattern.permute.xlu0 0
      %702 = vperm.xlu0 %701, %v680
      %v703 = vpop.permute.xlu0 %702
      %706 = vset.pattern.permute.xlu0 0
      %707 = vperm.xlu0 %706, %v681
      %v708 = vpop.permute.xlu0 %707
      %711 = vset.pattern.permute.xlu0 0
      %712 = vperm.xlu0 %711, %v682
      %v713 = vpop.permute.xlu0 %712
      %716 = vset.pattern.permute.xlu0 0
      %717 = vperm.xlu0 %716, %v683
      %v718 = vpop.permute.xlu0 %717
      %721 = vset.pattern.permute.xlu0 0
      %722 = vperm.xlu0 %721, %v684
      %v723 = vpop.permute.xlu0 %722
      %v733 = vunpack.c.l.b16 %v669
      %v734 = vunpack.c.l.b16 %v670
      %v735 = vunpack.c.l.b16 %v671
      %v736 = vunpack.c.l.b16 %v672
      %v737 = vunpack.c.l.b16 %v673
      %v738 = vunpack.c.l.b16 %v674
      %v739 = vunpack.c.l.b16 %v675
      %v740 = vunpack.c.l.b16 %v676
      %v741 = vpack.c.b16 %v734, %v733
      %v742 = vpack.c.b16 %v736, %v735
      %v743 = vpack.c.b16 %v738, %v737
      %v744 = vpack.c.b16 %v740, %v739
      %vm745 = vcmask 64512
      %v747 = vsel %vm745, %v741, 0
      %v750 = vsel %vm745, %v742, 0
      %v753 = vsel %vm745, %v743, 0
      %v756 = vsel %vm745, %v744, 0
      %vm758 = vcmask 1043456
      %v760 = vsel %vm758, %v665, 0
      %v763 = vsel %vm758, %v666, 0
      %v766 = vsel %vm758, %v667, 0
      %v769 = vsel %vm758, %v668, 0
      %771 = vmatpush.bf16.msra.mxu0 0
      %772 = vmatpush.bf16.msra.mxu0 0
      %773 = vmatpush.bf16.msra.mxu0 0
      %774 = vmatpush.bf16.msra.mxu0 0
      %775 = vmatpush.bf16.msra.mxu0 0
      %776 = vmatpush.bf16.msra.mxu0 0
      %777 = vmatpush.bf16.msra.mxu0 0
      %778 = vmatpush.bf16.msra.mxu0 %v760
      %779 = vmatmul.bf16.gmra.mxu0 %v747
      %v780 = vpop.f32.mrf.mxu0
      %v781 = vadd.f32 %v688, %v780
      %v782 = vpop.f32.mrf.mxu0
      %v783 = vadd.f32 %v693, %v782
      %784 = vmatmul.bf16.gmra.mxu0 %v750
      %v785 = vpop.f32.mrf.mxu0
      %v786 = vadd.f32 %v698, %v785
      %v787 = vpop.f32.mrf.mxu0
      %v788 = vadd.f32 %v703, %v787
      %789 = vmatmul.bf16.gmra.mxu0 %v753
      %v790 = vpop.f32.mrf.mxu0
      %v791 = vadd.f32 %v708, %v790
      %v792 = vpop.f32.mrf.mxu0
      %v793 = vadd.f32 %v713, %v792
      %794 = vmatmul.bf16.gmra.mxu0 %v756
      %v795 = vpop.f32.mrf.mxu0
      %v796 = vadd.f32 %v718, %v795
      %v797 = vpop.f32.mrf.mxu0
      %v798 = vadd.f32 %v723, %v797
      %799 = vdwg.mxu0
      %800 = vmatpush.bf16.msra.mxu0 0
      %801 = vmatpush.bf16.msra.mxu0 0
      %802 = vmatpush.bf16.msra.mxu0 0
      %803 = vmatpush.bf16.msra.mxu0 0
      %804 = vmatpush.bf16.msra.mxu0 0
      %805 = vmatpush.bf16.msra.mxu0 0
      %806 = vmatpush.bf16.msra.mxu0 0
      %807 = vmatpush.bf16.msra.mxu0 %v763
      %808 = vmatmul.bf16.gmra.mxu0 %v747
      %v809 = vpop.f32.mrf.mxu0
      %v810 = vadd.f32 %v688, %v809
      %v811 = vpop.f32.mrf.mxu0
      %v812 = vadd.f32 %v693, %v811
      %813 = vmatmul.bf16.gmra.mxu0 %v750
      %v814 = vpop.f32.mrf.mxu0
      %v815 = vadd.f32 %v698, %v814
      %v816 = vpop.f32.mrf.mxu0
      %v817 = vadd.f32 %v703, %v816
      %818 = vmatmul.bf16.gmra.mxu0 %v753
      %v819 = vpop.f32.mrf.mxu0
      %v820 = vadd.f32 %v708, %v819
      %v821 = vpop.f32.mrf.mxu0
      %v822 = vadd.f32 %v713, %v821
      %823 = vmatmul.bf16.gmra.mxu0 %v756
      %v824 = vpop.f32.mrf.mxu0
      %v825 = vadd.f32 %v718, %v824
      %v826 = vpop.f32.mrf.mxu0
      %v827 = vadd.f32 %v723, %v826
      %828 = vdwg.mxu0
      %829 = vmatpush.bf16.msra.mxu0 0
      %830 = vmatpush.bf16.msra.mxu0 0
      %831 = vmatpush.bf16.msra.mxu0 0
      %832 = vmatpush.bf16.msra.mxu0 0
      %833 = vmatpush.bf16.msra.mxu0 0
      %834 = vmatpush.bf16.msra.mxu0 0
      %835 = vmatpush.bf16.msra.mxu0 0
      %836 = vmatpush.bf16.msra.mxu0 %v766
      %837 = vmatmul.bf16.gmra.mxu0 %v747
      %v838 = vpop.f32.mrf.mxu0
      %v839 = vadd.f32 %v688, %v838
      %v840 = vpop.f32.mrf.mxu0
      %v841 = vadd.f32 %v693, %v840
      %842 = vmatmul.bf16.gmra.mxu0 %v750
      %v843 = vpop.f32.mrf.mxu0
      %v844 = vadd.f32 %v698, %v843
      %v845 = vpop.f32.mrf.mxu0
      %v846 = vadd.f32 %v703, %v845
      %847 = vmatmul.bf16.gmra.mxu0 %v753
      %v848 = vpop.f32.mrf.mxu0
      %v849 = vadd.f32 %v708, %v848
      %v850 = vpop.f32.mrf.mxu0
      %v851 = vadd.f32 %v713, %v850
      %852 = vmatmul.bf16.gmra.mxu0 %v756
      %v853 = vpop.f32.mrf.mxu0
      %v854 = vadd.f32 %v718, %v853
      %v855 = vpop.f32.mrf.mxu0
      %v856 = vadd.f32 %v723, %v855
      %857 = vdwg.mxu0
      %858 = vmatpush.bf16.msra.mxu0 0
      %859 = vmatpush.bf16.msra.mxu0 0
      %860 = vmatpush.bf16.msra.mxu0 0
      %861 = vmatpush.bf16.msra.mxu0 0
      %862 = vmatpush.bf16.msra.mxu0 0
      %863 = vmatpush.bf16.msra.mxu0 0
      %864 = vmatpush.bf16.msra.mxu0 0
      %865 = vmatpush.bf16.msra.mxu0 %v769
      %866 = vmatmul.bf16.gmra.mxu0 %v747
      %v867 = vpop.f32.mrf.mxu0
      %v868 = vadd.f32 %v688, %v867
      %v869 = vpop.f32.mrf.mxu0
      %v870 = vadd.f32 %v693, %v869
      %871 = vmatmul.bf16.gmra.mxu0 %v750
      %v872 = vpop.f32.mrf.mxu0
      %v873 = vadd.f32 %v698, %v872
      %v874 = vpop.f32.mrf.mxu0
      %v875 = vadd.f32 %v703, %v874
      %876 = vmatmul.bf16.gmra.mxu0 %v753
      %v877 = vpop.f32.mrf.mxu0
      %v878 = vadd.f32 %v708, %v877
      %v879 = vpop.f32.mrf.mxu0
      %v880 = vadd.f32 %v713, %v879
      %881 = vmatmul.bf16.gmra.mxu0 %v756
      %v882 = vpop.f32.mrf.mxu0
      %v883 = vadd.f32 %v718, %v882
      %v884 = vpop.f32.mrf.mxu0
      %v885 = vadd.f32 %v723, %v884
      %886 = vdwg.mxu0
      %v887 = vmul.f32 %v781, 100.0
      %v888 = vmul.f32 %v810, 100.0
      %v889 = vmul.f32 %v839, 100.0
      %v890 = vmul.f32 %v868, 100.0
      %v891 = vmul.f32 %v783, 100.0
      %v892 = vmul.f32 %v812, 100.0
      %v893 = vmul.f32 %v841, 100.0
      %v894 = vmul.f32 %v870, 100.0
      %v895 = vmul.f32 %v786, 100.0
      %v896 = vmul.f32 %v815, 100.0
      %v897 = vmul.f32 %v844, 100.0
      %v898 = vmul.f32 %v873, 100.0
      %v899 = vmul.f32 %v788, 100.0
      %v900 = vmul.f32 %v817, 100.0
      %v901 = vmul.f32 %v846, 100.0
      %v902 = vmul.f32 %v875, 100.0
      %v903 = vmul.f32 %v791, 100.0
      %v904 = vmul.f32 %v820, 100.0
      %v905 = vmul.f32 %v849, 100.0
      %v906 = vmul.f32 %v878, 100.0
      %v907 = vmul.f32 %v793, 100.0
      %v908 = vmul.f32 %v822, 100.0
      %v909 = vmul.f32 %v851, 100.0
      %v910 = vmul.f32 %v880, 100.0
      %v911 = vmul.f32 %v796, 100.0
      %v912 = vmul.f32 %v825, 100.0
      %v913 = vmul.f32 %v854, 100.0
      %v914 = vmul.f32 %v883, 100.0
      %v915 = vmul.f32 %v798, 100.0
      %v916 = vmul.f32 %v827, 100.0
      %v917 = vmul.f32 %v856, 100.0
      %v918 = vmul.f32 %v885, 100.0
      %v919 = vmin.f32 %v887, 20.0
      %v920 = vmin.f32 %v888, 20.0
      %v921 = vmin.f32 %v889, 20.0
      %v922 = vmin.f32 %v890, 20.0
      %v923 = vmin.f32 %v891, 20.0
      %v924 = vmin.f32 %v892, 20.0
      %v925 = vmin.f32 %v893, 20.0
      %v926 = vmin.f32 %v894, 20.0
      %v927 = vmin.f32 %v895, 20.0
      %v928 = vmin.f32 %v896, 20.0
      %v929 = vmin.f32 %v897, 20.0
      %v930 = vmin.f32 %v898, 20.0
      %v931 = vmin.f32 %v899, 20.0
      %v932 = vmin.f32 %v900, 20.0
      %v933 = vmin.f32 %v901, 20.0
      %v934 = vmin.f32 %v902, 20.0
      %v935 = vmin.f32 %v903, 20.0
      %v936 = vmin.f32 %v904, 20.0
      %v937 = vmin.f32 %v905, 20.0
      %v938 = vmin.f32 %v906, 20.0
      %v939 = vmin.f32 %v907, 20.0
      %v940 = vmin.f32 %v908, 20.0
      %v941 = vmin.f32 %v909, 20.0
      %v942 = vmin.f32 %v910, 20.0
      %v943 = vmin.f32 %v911, 20.0
      %v944 = vmin.f32 %v912, 20.0
      %v945 = vmin.f32 %v913, 20.0
      %v946 = vmin.f32 %v914, 20.0
      %v947 = vmin.f32 %v915, 20.0
      %v948 = vmin.f32 %v916, 20.0
      %v949 = vmin.f32 %v917, 20.0
      %v950 = vmin.f32 %v918, 20.0
      %v951 = vmul.f32 %v919, 1.442695
      %v952 = vpow.pop %v951
      %v953 = vmul.f32 %v920, 1.442695
      %v954 = vpow.pop %v953
      %v955 = vmul.f32 %v921, 1.442695
      %v956 = vpow.pop %v955
      %v957 = vmul.f32 %v922, 1.442695
      %v958 = vpow.pop %v957
      %v959 = vmul.f32 %v923, 1.442695
      %v960 = vpow.pop %v959
      %v961 = vmul.f32 %v924, 1.442695
      %v962 = vpow.pop %v961
      %v963 = vmul.f32 %v925, 1.442695
      %v964 = vpow.pop %v963
      %v965 = vmul.f32 %v926, 1.442695
      %v966 = vpow.pop %v965
      %v967 = vmul.f32 %v927, 1.442695
      %v968 = vpow.pop %v967
      %v969 = vmul.f32 %v928, 1.442695
      %v970 = vpow.pop %v969
      %v971 = vmul.f32 %v929, 1.442695
      %v972 = vpow.pop %v971
      %v973 = vmul.f32 %v930, 1.442695
      %v974 = vpow.pop %v973
      %v975 = vmul.f32 %v931, 1.442695
      %v976 = vpow.pop %v975
      %v977 = vmul.f32 %v932, 1.442695
      %v978 = vpow.pop %v977
      %v979 = vmul.f32 %v933, 1.442695
      %v980 = vpow.pop %v979
      %v981 = vmul.f32 %v934, 1.442695
      %v982 = vpow.pop %v981
      %v983 = vmul.f32 %v935, 1.442695
      %v984 = vpow.pop %v983
      %v985 = vmul.f32 %v936, 1.442695
      %v986 = vpow.pop %v985
      %v987 = vmul.f32 %v937, 1.442695
      %v988 = vpow.pop %v987
      %v989 = vmul.f32 %v938, 1.442695
      %v990 = vpow.pop %v989
      %v991 = vmul.f32 %v939, 1.442695
      %v992 = vpow.pop %v991
      %v993 = vmul.f32 %v940, 1.442695
      %v994 = vpow.pop %v993
      %v995 = vmul.f32 %v941, 1.442695
      %v996 = vpow.pop %v995
      %v997 = vmul.f32 %v942, 1.442695
      %v998 = vpow.pop %v997
      %v999 = vmul.f32 %v943, 1.442695
      %v1000 = vpow.pop %v999
      %v1001 = vmul.f32 %v944, 1.442695
      %v1002 = vpow.pop %v1001
      %v1003 = vmul.f32 %v945, 1.442695
      %v1004 = vpow.pop %v1003
      %v1005 = vmul.f32 %v946, 1.442695
      %v1006 = vpow.pop %v1005
      %v1007 = vmul.f32 %v947, 1.442695
      %v1008 = vpow.pop %v1007
      %v1009 = vmul.f32 %v948, 1.442695
      %v1010 = vpow.pop %v1009
      %v1011 = vmul.f32 %v949, 1.442695
      %v1012 = vpow.pop %v1011
      %v1013 = vmul.f32 %v950, 1.442695
      %v1014 = vpow.pop %v1013
      %vm1015 = vcmp.gt.f32.partialorder %v887, 20.0
      %vm1016 = vcmp.gt.f32.partialorder %v888, 20.0
      %vm1017 = vcmp.gt.f32.partialorder %v889, 20.0
      %vm1018 = vcmp.gt.f32.partialorder %v890, 20.0
      %vm1019 = vcmp.gt.f32.partialorder %v891, 20.0
      %vm1020 = vcmp.gt.f32.partialorder %v892, 20.0
      %vm1021 = vcmp.gt.f32.partialorder %v893, 20.0
      %vm1022 = vcmp.gt.f32.partialorder %v894, 20.0
      %vm1023 = vcmp.gt.f32.partialorder %v895, 20.0
      %vm1024 = vcmp.gt.f32.partialorder %v896, 20.0
      %vm1025 = vcmp.gt.f32.partialorder %v897, 20.0
      %vm1026 = vcmp.gt.f32.partialorder %v898, 20.0
      %vm1027 = vcmp.gt.f32.partialorder %v899, 20.0
      %vm1028 = vcmp.gt.f32.partialorder %v900, 20.0
      %vm1029 = vcmp.gt.f32.partialorder %v901, 20.0
      %vm1030 = vcmp.gt.f32.partialorder %v902, 20.0
      %vm1031 = vcmp.gt.f32.partialorder %v903, 20.0
      %vm1032 = vcmp.gt.f32.partialorder %v904, 20.0
      %vm1033 = vcmp.gt.f32.partialorder %v905, 20.0
      %vm1034 = vcmp.gt.f32.partialorder %v906, 20.0
      %vm1035 = vcmp.gt.f32.partialorder %v907, 20.0
      %vm1036 = vcmp.gt.f32.partialorder %v908, 20.0
      %vm1037 = vcmp.gt.f32.partialorder %v909, 20.0
      %vm1038 = vcmp.gt.f32.partialorder %v910, 20.0
      %vm1039 = vcmp.gt.f32.partialorder %v911, 20.0
      %vm1040 = vcmp.gt.f32.partialorder %v912, 20.0
      %vm1041 = vcmp.gt.f32.partialorder %v913, 20.0
      %vm1042 = vcmp.gt.f32.partialorder %v914, 20.0
      %vm1043 = vcmp.gt.f32.partialorder %v915, 20.0
      %vm1044 = vcmp.gt.f32.partialorder %v916, 20.0
      %vm1045 = vcmp.gt.f32.partialorder %v917, 20.0
      %vm1046 = vcmp.gt.f32.partialorder %v918, 20.0
      %v1047 = vadd.f32 %v952, 1.0
      %v1048 = vadd.f32 %v954, 1.0
      %v1049 = vadd.f32 %v956, 1.0
      %v1050 = vadd.f32 %v958, 1.0
      %v1051 = vadd.f32 %v960, 1.0
      %v1052 = vadd.f32 %v962, 1.0
      %v1053 = vadd.f32 %v964, 1.0
      %v1054 = vadd.f32 %v966, 1.0
      %v1055 = vadd.f32 %v968, 1.0
      %v1056 = vadd.f32 %v970, 1.0
      %v1057 = vadd.f32 %v972, 1.0
      %v1058 = vadd.f32 %v974, 1.0
      %v1059 = vadd.f32 %v976, 1.0
      %v1060 = vadd.f32 %v978, 1.0
      %v1061 = vadd.f32 %v980, 1.0
      %v1062 = vadd.f32 %v982, 1.0
      %v1063 = vadd.f32 %v984, 1.0
      %v1064 = vadd.f32 %v986, 1.0
      %v1065 = vadd.f32 %v988, 1.0
      %v1066 = vadd.f32 %v990, 1.0
      %v1067 = vadd.f32 %v992, 1.0
      %v1068 = vadd.f32 %v994, 1.0
      %v1069 = vadd.f32 %v996, 1.0
      %v1070 = vadd.f32 %v998, 1.0
      %v1071 = vadd.f32 %v1000, 1.0
      %v1072 = vadd.f32 %v1002, 1.0
      %v1073 = vadd.f32 %v1004, 1.0
      %v1074 = vadd.f32 %v1006, 1.0
      %v1075 = vadd.f32 %v1008, 1.0
      %v1076 = vadd.f32 %v1010, 1.0
      %v1077 = vadd.f32 %v1012, 1.0
      %v1078 = vadd.f32 %v1014, 1.0
      %v1079 = vlog2.pop %v1047
      %v1080 = vmul.f32 %v1079, 0.6931472
      %v1081 = vlog2.pop %v1048
      %v1082 = vmul.f32 %v1081, 0.6931472
      %v1083 = vlog2.pop %v1049
      %v1084 = vmul.f32 %v1083, 0.6931472
      %v1085 = vlog2.pop %v1050
      %v1086 = vmul.f32 %v1085, 0.6931472
      %v1087 = vlog2.pop %v1051
      %v1088 = vmul.f32 %v1087, 0.6931472
      %v1089 = vlog2.pop %v1052
      %v1090 = vmul.f32 %v1089, 0.6931472
      %v1091 = vlog2.pop %v1053
      %v1092 = vmul.f32 %v1091, 0.6931472
      %v1093 = vlog2.pop %v1054
      %v1094 = vmul.f32 %v1093, 0.6931472
      %v1095 = vlog2.pop %v1055
      %v1096 = vmul.f32 %v1095, 0.6931472
      %v1097 = vlog2.pop %v1056
      %v1098 = vmul.f32 %v1097, 0.6931472
      %v1099 = vlog2.pop %v1057
      %v1100 = vmul.f32 %v1099, 0.6931472
      %v1101 = vlog2.pop %v1058
      %v1102 = vmul.f32 %v1101, 0.6931472
      %v1103 = vlog2.pop %v1059
      %v1104 = vmul.f32 %v1103, 0.6931472
      %v1105 = vlog2.pop %v1060
      %v1106 = vmul.f32 %v1105, 0.6931472
      %v1107 = vlog2.pop %v1061
      %v1108 = vmul.f32 %v1107, 0.6931472
      %v1109 = vlog2.pop %v1062
      %v1110 = vmul.f32 %v1109, 0.6931472
      %v1111 = vlog2.pop %v1063
      %v1112 = vmul.f32 %v1111, 0.6931472
      %v1113 = vlog2.pop %v1064
      %v1114 = vmul.f32 %v1113, 0.6931472
      %v1115 = vlog2.pop %v1065
      %v1116 = vmul.f32 %v1115, 0.6931472
      %v1117 = vlog2.pop %v1066
      %v1118 = vmul.f32 %v1117, 0.6931472
      %v1119 = vlog2.pop %v1067
      %v1120 = vmul.f32 %v1119, 0.6931472
      %v1121 = vlog2.pop %v1068
      %v1122 = vmul.f32 %v1121, 0.6931472
      %v1123 = vlog2.pop %v1069
      %v1124 = vmul.f32 %v1123, 0.6931472
      %v1125 = vlog2.pop %v1070
      %v1126 = vmul.f32 %v1125, 0.6931472
      %v1127 = vlog2.pop %v1071
      %v1128 = vmul.f32 %v1127, 0.6931472
      %v1129 = vlog2.pop %v1072
      %v1130 = vmul.f32 %v1129, 0.6931472
      %v1131 = vlog2.pop %v1073
      %v1132 = vmul.f32 %v1131, 0.6931472
      %v1133 = vlog2.pop %v1074
      %v1134 = vmul.f32 %v1133, 0.6931472
      %v1135 = vlog2.pop %v1075
      %v1136 = vmul.f32 %v1135, 0.6931472
      %v1137 = vlog2.pop %v1076
      %v1138 = vmul.f32 %v1137, 0.6931472
      %v1139 = vlog2.pop %v1077
      %v1140 = vmul.f32 %v1139, 0.6931472
      %v1141 = vlog2.pop %v1078
      %v1142 = vmul.f32 %v1141, 0.6931472
      %v1143 = vmul.f32 %v1080, 0.01
      %v1144 = vmul.f32 %v1082, 0.01
      %v1145 = vmul.f32 %v1084, 0.01
      %v1146 = vmul.f32 %v1086, 0.01
      %v1147 = vmul.f32 %v1088, 0.01
      %v1148 = vmul.f32 %v1090, 0.01
      %v1149 = vmul.f32 %v1092, 0.01
      %v1150 = vmul.f32 %v1094, 0.01
      %v1151 = vmul.f32 %v1096, 0.01
      %v1152 = vmul.f32 %v1098, 0.01
      %v1153 = vmul.f32 %v1100, 0.01
      %v1154 = vmul.f32 %v1102, 0.01
      %v1155 = vmul.f32 %v1104, 0.01
      %v1156 = vmul.f32 %v1106, 0.01
      %v1157 = vmul.f32 %v1108, 0.01
      %v1158 = vmul.f32 %v1110, 0.01
      %v1159 = vmul.f32 %v1112, 0.01
      %v1160 = vmul.f32 %v1114, 0.01
      %v1161 = vmul.f32 %v1116, 0.01
      %v1162 = vmul.f32 %v1118, 0.01
      %v1163 = vmul.f32 %v1120, 0.01
      %v1164 = vmul.f32 %v1122, 0.01
      %v1165 = vmul.f32 %v1124, 0.01
      %v1166 = vmul.f32 %v1126, 0.01
      %v1167 = vmul.f32 %v1128, 0.01
      %v1168 = vmul.f32 %v1130, 0.01
      %v1169 = vmul.f32 %v1132, 0.01
      %v1170 = vmul.f32 %v1134, 0.01
      %v1171 = vmul.f32 %v1136, 0.01
      %v1172 = vmul.f32 %v1138, 0.01
      %v1173 = vmul.f32 %v1140, 0.01
      %v1174 = vmul.f32 %v1142, 0.01
      %v1175 = vsel %vm1015, %v781, %v1143
      %v1176 = vsel %vm1016, %v810, %v1144
      %v1177 = vsel %vm1017, %v839, %v1145
      %v1178 = vsel %vm1018, %v868, %v1146
      %v1179 = vsel %vm1019, %v783, %v1147
      %v1180 = vsel %vm1020, %v812, %v1148
      %v1181 = vsel %vm1021, %v841, %v1149
      %v1182 = vsel %vm1022, %v870, %v1150
      %v1183 = vsel %vm1023, %v786, %v1151
      %v1184 = vsel %vm1024, %v815, %v1152
      %v1185 = vsel %vm1025, %v844, %v1153
      %v1186 = vsel %vm1026, %v873, %v1154
      %v1187 = vsel %vm1027, %v788, %v1155
      %v1188 = vsel %vm1028, %v817, %v1156
      %v1189 = vsel %vm1029, %v846, %v1157
      %v1190 = vsel %vm1030, %v875, %v1158
      %v1191 = vsel %vm1031, %v791, %v1159
      %v1192 = vsel %vm1032, %v820, %v1160
      %v1193 = vsel %vm1033, %v849, %v1161
      %v1194 = vsel %vm1034, %v878, %v1162
      %v1195 = vsel %vm1035, %v793, %v1163
      %v1196 = vsel %vm1036, %v822, %v1164
      %v1197 = vsel %vm1037, %v851, %v1165
      %v1198 = vsel %vm1038, %v880, %v1166
      %v1199 = vsel %vm1039, %v796, %v1167
      %v1200 = vsel %vm1040, %v825, %v1168
      %v1201 = vsel %vm1041, %v854, %v1169
      %v1202 = vsel %vm1042, %v883, %v1170
      %v1203 = vsel %vm1043, %v798, %v1171
      %v1204 = vsel %vm1044, %v827, %v1172
      %v1205 = vsel %vm1045, %v856, %v1173
      %v1206 = vsel %vm1046, %v885, %v1174
      %v1207 = vrcp.pop %v1047
      %v1208 = vrcp.pop %v1048
      %v1209 = vrcp.pop %v1049
      %v1210 = vrcp.pop %v1050
      %v1211 = vrcp.pop %v1051
      %v1212 = vrcp.pop %v1052
      %v1213 = vrcp.pop %v1053
      %v1214 = vrcp.pop %v1054
      %v1215 = vrcp.pop %v1055
      %v1216 = vrcp.pop %v1056
      %v1217 = vrcp.pop %v1057
      %v1218 = vrcp.pop %v1058
      %v1219 = vrcp.pop %v1059
      %v1220 = vrcp.pop %v1060
      %v1221 = vrcp.pop %v1061
      %v1222 = vrcp.pop %v1062
      %v1223 = vrcp.pop %v1063
      %v1224 = vrcp.pop %v1064
      %v1225 = vrcp.pop %v1065
      %v1226 = vrcp.pop %v1066
      %v1227 = vrcp.pop %v1067
      %v1228 = vrcp.pop %v1068
      %v1229 = vrcp.pop %v1069
      %v1230 = vrcp.pop %v1070
      %v1231 = vrcp.pop %v1071
      %v1232 = vrcp.pop %v1072
      %v1233 = vrcp.pop %v1073
      %v1234 = vrcp.pop %v1074
      %v1235 = vrcp.pop %v1075
      %v1236 = vrcp.pop %v1076
      %v1237 = vrcp.pop %v1077
      %v1238 = vrcp.pop %v1078
      %v1239 = vmul.f32 %v952, %v1207
      %v1240 = vmul.f32 %v954, %v1208
      %v1241 = vmul.f32 %v956, %v1209
      %v1242 = vmul.f32 %v958, %v1210
      %v1243 = vmul.f32 %v960, %v1211
      %v1244 = vmul.f32 %v962, %v1212
      %v1245 = vmul.f32 %v964, %v1213
      %v1246 = vmul.f32 %v966, %v1214
      %v1247 = vmul.f32 %v968, %v1215
      %v1248 = vmul.f32 %v970, %v1216
      %v1249 = vmul.f32 %v972, %v1217
      %v1250 = vmul.f32 %v974, %v1218
      %v1251 = vmul.f32 %v976, %v1219
      %v1252 = vmul.f32 %v978, %v1220
      %v1253 = vmul.f32 %v980, %v1221
      %v1254 = vmul.f32 %v982, %v1222
      %v1255 = vmul.f32 %v984, %v1223
      %v1256 = vmul.f32 %v986, %v1224
      %v1257 = vmul.f32 %v988, %v1225
      %v1258 = vmul.f32 %v990, %v1226
      %v1259 = vmul.f32 %v992, %v1227
      %v1260 = vmul.f32 %v994, %v1228
      %v1261 = vmul.f32 %v996, %v1229
      %v1262 = vmul.f32 %v998, %v1230
      %v1263 = vmul.f32 %v1000, %v1231
      %v1264 = vmul.f32 %v1002, %v1232
      %v1265 = vmul.f32 %v1004, %v1233
      %v1266 = vmul.f32 %v1006, %v1234
      %v1267 = vmul.f32 %v1008, %v1235
      %v1268 = vmul.f32 %v1010, %v1236
      %v1269 = vmul.f32 %v1012, %v1237
      %v1270 = vmul.f32 %v1014, %v1238
      %v1271 = vpack.c.bf16 %v1240, %v1239
      %v1272 = vpack.c.bf16 %v1242, %v1241
      %v1273 = vpack.c.bf16 %v1244, %v1243
      %v1274 = vpack.c.bf16 %v1246, %v1245
      %v1275 = vpack.c.bf16 %v1248, %v1247
      %v1276 = vpack.c.bf16 %v1250, %v1249
      %v1277 = vpack.c.bf16 %v1252, %v1251
      %v1278 = vpack.c.bf16 %v1254, %v1253
      %v1279 = vpack.c.bf16 %v1256, %v1255
      %v1280 = vpack.c.bf16 %v1258, %v1257
      %v1281 = vpack.c.bf16 %v1260, %v1259
      %v1282 = vpack.c.bf16 %v1262, %v1261
      %v1283 = vpack.c.bf16 %v1264, %v1263
      %v1284 = vpack.c.bf16 %v1266, %v1265
      %v1285 = vpack.c.bf16 %v1268, %v1267
      %v1286 = vpack.c.bf16 %v1270, %v1269
      %v1287 = vld [vmem:[%s3] sm:$0xf]
      %v1288 = vld [vmem:[%s3 + $0x4] sm:$0xf]
      %v1289 = vld [vmem:[%s3 + $0x8] sm:$0xf]
      %v1290 = vld [vmem:[%s3 + $0xc] sm:$0xf]
      %v1291 = vld [vmem:[%s3 + $0x10] sm:$0xf]
      %v1292 = vld [vmem:[%s3 + $0x14] sm:$0xf]
      %v1293 = vld [vmem:[%s3 + $0x18] sm:$0xf]
      %v1294 = vld [vmem:[%s3 + $0x1c] sm:$0xf]
      %v1295 = vpack.c.bf16 %v1179, %v1175
      %v1296 = vpack.c.bf16 %v1180, %v1176
      %v1297 = vpack.c.bf16 %v1181, %v1177
      %v1298 = vpack.c.bf16 %v1182, %v1178
      %v1299 = vpack.c.bf16 %v1187, %v1183
      %v1300 = vpack.c.bf16 %v1188, %v1184
      %v1301 = vpack.c.bf16 %v1189, %v1185
      %v1302 = vpack.c.bf16 %v1190, %v1186
      %v1303 = vpack.c.bf16 %v1195, %v1191
      %v1304 = vpack.c.bf16 %v1196, %v1192
      %v1305 = vpack.c.bf16 %v1197, %v1193
      %v1306 = vpack.c.bf16 %v1198, %v1194
      %v1307 = vpack.c.bf16 %v1203, %v1199
      %v1308 = vpack.c.bf16 %v1204, %v1200
      %v1309 = vpack.c.bf16 %v1205, %v1201
      %v1310 = vpack.c.bf16 %v1206, %v1202
      %v1311 = vld [vmem:[%s4] sm:$0xff]
      %v1312 = vld [vmem:[%s4 + $0x8] sm:$0xff]
      %v1313 = vld [vmem:[%s4 + $0x10] sm:$0xff]
      %v1314 = vld [vmem:[%s4 + $0x18] sm:$0xff]
      %v1315 = vld [vmem:[%s4 + $0x20] sm:$0xff]
      %v1316 = vld [vmem:[%s4 + $0x28] sm:$0xff]
      %v1317 = vld [vmem:[%s4 + $0x30] sm:$0xff]
      %v1318 = vld [vmem:[%s4 + $0x38] sm:$0xff]
      %1320 = vset.pattern.permute.xlu0 0
      %1321 = vperm.xlu0 %1320, %v1311
      %v1322 = vpop.permute.xlu0 %1321
      %1325 = vset.pattern.permute.xlu0 0
      %1326 = vperm.xlu0 %1325, %v1312
      %v1327 = vpop.permute.xlu0 %1326
      %1330 = vset.pattern.permute.xlu0 0
      %1331 = vperm.xlu0 %1330, %v1313
      %v1332 = vpop.permute.xlu0 %1331
      %1335 = vset.pattern.permute.xlu0 0
      %1336 = vperm.xlu0 %1335, %v1314
      %v1337 = vpop.permute.xlu0 %1336
      %1340 = vset.pattern.permute.xlu0 0
      %1341 = vperm.xlu0 %1340, %v1315
      %v1342 = vpop.permute.xlu0 %1341
      %1345 = vset.pattern.permute.xlu0 0
      %1346 = vperm.xlu0 %1345, %v1316
      %v1347 = vpop.permute.xlu0 %1346
      %1350 = vset.pattern.permute.xlu0 0
      %1351 = vperm.xlu0 %1350, %v1317
      %v1352 = vpop.permute.xlu0 %1351
      %1355 = vset.pattern.permute.xlu0 0
      %1356 = vperm.xlu0 %1355, %v1318
      %v1357 = vpop.permute.xlu0 %1356
      %v1367 = vunpack.c.l.b16 %v1287
      %v1368 = vunpack.c.l.b16 %v1288
      %v1369 = vunpack.c.l.b16 %v1289
      %v1370 = vunpack.c.l.b16 %v1290
      %v1371 = vunpack.c.l.b16 %v1291
      %v1372 = vunpack.c.l.b16 %v1292
      %v1373 = vunpack.c.l.b16 %v1293
      %v1374 = vunpack.c.l.b16 %v1294
      %v1375 = vpack.c.b16 %v1368, %v1367
      %v1376 = vpack.c.b16 %v1370, %v1369
      %v1377 = vpack.c.b16 %v1372, %v1371
      %v1378 = vpack.c.b16 %v1374, %v1373
      %vm1379 = vcmask 523264
      %v1381 = vsel %vm1379, %v1375, 0
      %v1384 = vsel %vm1379, %v1376, 0
      %v1387 = vsel %vm1379, %v1377, 0
      %v1390 = vsel %vm1379, %v1378, 0
      %1392 = vmatpush.bf16.msra.mxu0 0
      %1393 = vmatpush.bf16.msra.mxu0 0
      %1394 = vmatpush.bf16.msra.mxu0 0
      %1395 = vmatpush.bf16.msra.mxu0 0
      %1396 = vmatpush.bf16.msra.mxu0 %v1307
      %1397 = vmatpush.bf16.msra.mxu0 %v1303
      %1398 = vmatpush.bf16.msra.mxu0 %v1299
      %1399 = vmatpush.bf16.msra.mxu0 %v1295
      %1400 = vmatmul.bf16.gmra.mxu0 %v1381
      %v1401 = vpop.f32.mrf.mxu0
      %v1402 = vadd.f32 %v1322, %v1401
      %v1403 = vpop.f32.mrf.mxu0
      %v1404 = vadd.f32 %v1327, %v1403
      %1405 = vmatmul.bf16.gmra.mxu0 %v1384
      %v1406 = vpop.f32.mrf.mxu0
      %v1407 = vadd.f32 %v1332, %v1406
      %v1408 = vpop.f32.mrf.mxu0
      %v1409 = vadd.f32 %v1337, %v1408
      %1410 = vmatmul.bf16.gmra.mxu0 %v1387
      %v1411 = vpop.f32.mrf.mxu0
      %v1412 = vadd.f32 %v1342, %v1411
      %v1413 = vpop.f32.mrf.mxu0
      %v1414 = vadd.f32 %v1347, %v1413
      %1415 = vmatmul.bf16.gmra.mxu0 %v1390
      %v1416 = vpop.f32.mrf.mxu0
      %v1417 = vadd.f32 %v1352, %v1416
      %v1418 = vpop.f32.mrf.mxu0
      %v1419 = vadd.f32 %v1357, %v1418
      %1420 = vdwg.mxu0
      %1421 = vmatpush.bf16.msra.mxu0 0
      %1422 = vmatpush.bf16.msra.mxu0 0
      %1423 = vmatpush.bf16.msra.mxu0 0
      %1424 = vmatpush.bf16.msra.mxu0 0
      %1425 = vmatpush.bf16.msra.mxu0 %v1308
      %1426 = vmatpush.bf16.msra.mxu0 %v1304
      %1427 = vmatpush.bf16.msra.mxu0 %v1300
      %1428 = vmatpush.bf16.msra.mxu0 %v1296
      %1429 = vmatmul.bf16.gmra.mxu0 %v1381
      %v1430 = vpop.f32.mrf.mxu0
      %v1431 = vadd.f32 %v1322, %v1430
      %v1432 = vpop.f32.mrf.mxu0
      %v1433 = vadd.f32 %v1327, %v1432
      %1434 = vmatmul.bf16.gmra.mxu0 %v1384
      %v1435 = vpop.f32.mrf.mxu0
      %v1436 = vadd.f32 %v1332, %v1435
      %v1437 = vpop.f32.mrf.mxu0
      %v1438 = vadd.f32 %v1337, %v1437
      %1439 = vmatmul.bf16.gmra.mxu0 %v1387
      %v1440 = vpop.f32.mrf.mxu0
      %v1441 = vadd.f32 %v1342, %v1440
      %v1442 = vpop.f32.mrf.mxu0
      %v1443 = vadd.f32 %v1347, %v1442
      %1444 = vmatmul.bf16.gmra.mxu0 %v1390
      %v1445 = vpop.f32.mrf.mxu0
      %v1446 = vadd.f32 %v1352, %v1445
      %v1447 = vpop.f32.mrf.mxu0
      %v1448 = vadd.f32 %v1357, %v1447
      %1449 = vdwg.mxu0
      %1450 = vmatpush.bf16.msra.mxu0 0
      %1451 = vmatpush.bf16.msra.mxu0 0
      %1452 = vmatpush.bf16.msra.mxu0 0
      %1453 = vmatpush.bf16.msra.mxu0 0
      %1454 = vmatpush.bf16.msra.mxu0 %v1309
      %1455 = vmatpush.bf16.msra.mxu0 %v1305
      %1456 = vmatpush.bf16.msra.mxu0 %v1301
      %1457 = vmatpush.bf16.msra.mxu0 %v1297
      %1458 = vmatmul.bf16.gmra.mxu0 %v1381
      %v1459 = vpop.f32.mrf.mxu0
      %v1460 = vadd.f32 %v1322, %v1459
      %v1461 = vpop.f32.mrf.mxu0
      %v1462 = vadd.f32 %v1327, %v1461
      %1463 = vmatmul.bf16.gmra.mxu0 %v1384
      %v1464 = vpop.f32.mrf.mxu0
      %v1465 = vadd.f32 %v1332, %v1464
      %v1466 = vpop.f32.mrf.mxu0
      %v1467 = vadd.f32 %v1337, %v1466
      %1468 = vmatmul.bf16.gmra.mxu0 %v1387
      %v1469 = vpop.f32.mrf.mxu0
      %v1470 = vadd.f32 %v1342, %v1469
      %v1471 = vpop.f32.mrf.mxu0
      %v1472 = vadd.f32 %v1347, %v1471
      %1473 = vmatmul.bf16.gmra.mxu0 %v1390
      %v1474 = vpop.f32.mrf.mxu0
      %v1475 = vadd.f32 %v1352, %v1474
      %v1476 = vpop.f32.mrf.mxu0
      %v1477 = vadd.f32 %v1357, %v1476
      %1478 = vdwg.mxu0
      %1479 = vmatpush.bf16.msra.mxu0 0
      %1480 = vmatpush.bf16.msra.mxu0 0
      %1481 = vmatpush.bf16.msra.mxu0 0
      %1482 = vmatpush.bf16.msra.mxu0 0
      %1483 = vmatpush.bf16.msra.mxu0 %v1310
      %1484 = vmatpush.bf16.msra.mxu0 %v1306
      %1485 = vmatpush.bf16.msra.mxu0 %v1302
      %1486 = vmatpush.bf16.msra.mxu0 %v1298
      %1487 = vmatmul.bf16.gmra.mxu0 %v1381
      %v1488 = vpop.f32.mrf.mxu0
      %v1489 = vadd.f32 %v1322, %v1488
      %v1490 = vpop.f32.mrf.mxu0
      %v1491 = vadd.f32 %v1327, %v1490
      %1492 = vmatmul.bf16.gmra.mxu0 %v1384
      %v1493 = vpop.f32.mrf.mxu0
      %v1494 = vadd.f32 %v1332, %v1493
      %v1495 = vpop.f32.mrf.mxu0
      %v1496 = vadd.f32 %v1337, %v1495
      %1497 = vmatmul.bf16.gmra.mxu0 %v1387
      %v1498 = vpop.f32.mrf.mxu0
      %v1499 = vadd.f32 %v1342, %v1498
      %v1500 = vpop.f32.mrf.mxu0
      %v1501 = vadd.f32 %v1347, %v1500
      %1502 = vmatmul.bf16.gmra.mxu0 %v1390
      %v1503 = vpop.f32.mrf.mxu0
      %v1504 = vadd.f32 %v1352, %v1503
      %v1505 = vpop.f32.mrf.mxu0
      %v1506 = vadd.f32 %v1357, %v1505
      %1507 = vdwg.mxu0
      %v1508 = vmul.f32 %v1402, 100.0
      %v1509 = vmul.f32 %v1431, 100.0
      %v1510 = vmul.f32 %v1460, 100.0
      %v1511 = vmul.f32 %v1489, 100.0
      %v1512 = vmul.f32 %v1404, 100.0
      %v1513 = vmul.f32 %v1433, 100.0
      %v1514 = vmul.f32 %v1462, 100.0
      %v1515 = vmul.f32 %v1491, 100.0
      %v1516 = vmul.f32 %v1407, 100.0
      %v1517 = vmul.f32 %v1436, 100.0
      %v1518 = vmul.f32 %v1465, 100.0
      %v1519 = vmul.f32 %v1494, 100.0
      %v1520 = vmul.f32 %v1409, 100.0
      %v1521 = vmul.f32 %v1438, 100.0
      %v1522 = vmul.f32 %v1467, 100.0
      %v1523 = vmul.f32 %v1496, 100.0
      %v1524 = vmul.f32 %v1412, 100.0
      %v1525 = vmul.f32 %v1441, 100.0
      %v1526 = vmul.f32 %v1470, 100.0
      %v1527 = vmul.f32 %v1499, 100.0
      %v1528 = vmul.f32 %v1414, 100.0
      %v1529 = vmul.f32 %v1443, 100.0
      %v1530 = vmul.f32 %v1472, 100.0
      %v1531 = vmul.f32 %v1501, 100.0
      %v1532 = vmul.f32 %v1417, 100.0
      %v1533 = vmul.f32 %v1446, 100.0
      %v1534 = vmul.f32 %v1475, 100.0
      %v1535 = vmul.f32 %v1504, 100.0
      %v1536 = vmul.f32 %v1419, 100.0
      %v1537 = vmul.f32 %v1448, 100.0
      %v1538 = vmul.f32 %v1477, 100.0
      %v1539 = vmul.f32 %v1506, 100.0
      %v1540 = vmin.f32 %v1508, 20.0
      %v1541 = vmin.f32 %v1509, 20.0
      %v1542 = vmin.f32 %v1510, 20.0
      %v1543 = vmin.f32 %v1511, 20.0
      %v1544 = vmin.f32 %v1512, 20.0
      %v1545 = vmin.f32 %v1513, 20.0
      %v1546 = vmin.f32 %v1514, 20.0
      %v1547 = vmin.f32 %v1515, 20.0
      %v1548 = vmin.f32 %v1516, 20.0
      %v1549 = vmin.f32 %v1517, 20.0
      %v1550 = vmin.f32 %v1518, 20.0
      %v1551 = vmin.f32 %v1519, 20.0
      %v1552 = vmin.f32 %v1520, 20.0
      %v1553 = vmin.f32 %v1521, 20.0
      %v1554 = vmin.f32 %v1522, 20.0
      %v1555 = vmin.f32 %v1523, 20.0
      %v1556 = vmin.f32 %v1524, 20.0
      %v1557 = vmin.f32 %v1525, 20.0
      %v1558 = vmin.f32 %v1526, 20.0
      %v1559 = vmin.f32 %v1527, 20.0
      %v1560 = vmin.f32 %v1528, 20.0
      %v1561 = vmin.f32 %v1529, 20.0
      %v1562 = vmin.f32 %v1530, 20.0
      %v1563 = vmin.f32 %v1531, 20.0
      %v1564 = vmin.f32 %v1532, 20.0
      %v1565 = vmin.f32 %v1533, 20.0
      %v1566 = vmin.f32 %v1534, 20.0
      %v1567 = vmin.f32 %v1535, 20.0
      %v1568 = vmin.f32 %v1536, 20.0
      %v1569 = vmin.f32 %v1537, 20.0
      %v1570 = vmin.f32 %v1538, 20.0
      %v1571 = vmin.f32 %v1539, 20.0
      %v1572 = vmul.f32 %v1540, 1.442695
      %v1573 = vpow.pop %v1572
      %v1574 = vmul.f32 %v1541, 1.442695
      %v1575 = vpow.pop %v1574
      %v1576 = vmul.f32 %v1542, 1.442695
      %v1577 = vpow.pop %v1576
      %v1578 = vmul.f32 %v1543, 1.442695
      %v1579 = vpow.pop %v1578
      %v1580 = vmul.f32 %v1544, 1.442695
      %v1581 = vpow.pop %v1580
      %v1582 = vmul.f32 %v1545, 1.442695
      %v1583 = vpow.pop %v1582
      %v1584 = vmul.f32 %v1546, 1.442695
      %v1585 = vpow.pop %v1584
      %v1586 = vmul.f32 %v1547, 1.442695
      %v1587 = vpow.pop %v1586
      %v1588 = vmul.f32 %v1548, 1.442695
      %v1589 = vpow.pop %v1588
      %v1590 = vmul.f32 %v1549, 1.442695
      %v1591 = vpow.pop %v1590
      %v1592 = vmul.f32 %v1550, 1.442695
      %v1593 = vpow.pop %v1592
      %v1594 = vmul.f32 %v1551, 1.442695
      %v1595 = vpow.pop %v1594
      %v1596 = vmul.f32 %v1552, 1.442695
      %v1597 = vpow.pop %v1596
      %v1598 = vmul.f32 %v1553, 1.442695
      %v1599 = vpow.pop %v1598
      %v1600 = vmul.f32 %v1554, 1.442695
      %v1601 = vpow.pop %v1600
      %v1602 = vmul.f32 %v1555, 1.442695
      %v1603 = vpow.pop %v1602
      %v1604 = vmul.f32 %v1556, 1.442695
      %v1605 = vpow.pop %v1604
      %v1606 = vmul.f32 %v1557, 1.442695
      %v1607 = vpow.pop %v1606
      %v1608 = vmul.f32 %v1558, 1.442695
      %v1609 = vpow.pop %v1608
      %v1610 = vmul.f32 %v1559, 1.442695
      %v1611 = vpow.pop %v1610
      %v1612 = vmul.f32 %v1560, 1.442695
      %v1613 = vpow.pop %v1612
      %v1614 = vmul.f32 %v1561, 1.442695
      %v1615 = vpow.pop %v1614
      %v1616 = vmul.f32 %v1562, 1.442695
      %v1617 = vpow.pop %v1616
      %v1618 = vmul.f32 %v1563, 1.442695
      %v1619 = vpow.pop %v1618
      %v1620 = vmul.f32 %v1564, 1.442695
      %v1621 = vpow.pop %v1620
      %v1622 = vmul.f32 %v1565, 1.442695
      %v1623 = vpow.pop %v1622
      %v1624 = vmul.f32 %v1566, 1.442695
      %v1625 = vpow.pop %v1624
      %v1626 = vmul.f32 %v1567, 1.442695
      %v1627 = vpow.pop %v1626
      %v1628 = vmul.f32 %v1568, 1.442695
      %v1629 = vpow.pop %v1628
      %v1630 = vmul.f32 %v1569, 1.442695
      %v1631 = vpow.pop %v1630
      %v1632 = vmul.f32 %v1570, 1.442695
      %v1633 = vpow.pop %v1632
      %v1634 = vmul.f32 %v1571, 1.442695
      %v1635 = vpow.pop %v1634
      %vm1636 = vcmp.gt.f32.partialorder %v1508, 20.0
      %vm1637 = vcmp.gt.f32.partialorder %v1509, 20.0
      %vm1638 = vcmp.gt.f32.partialorder %v1510, 20.0
      %vm1639 = vcmp.gt.f32.partialorder %v1511, 20.0
      %vm1640 = vcmp.gt.f32.partialorder %v1512, 20.0
      %vm1641 = vcmp.gt.f32.partialorder %v1513, 20.0
      %vm1642 = vcmp.gt.f32.partialorder %v1514, 20.0
      %vm1643 = vcmp.gt.f32.partialorder %v1515, 20.0
      %vm1644 = vcmp.gt.f32.partialorder %v1516, 20.0
      %vm1645 = vcmp.gt.f32.partialorder %v1517, 20.0
      %vm1646 = vcmp.gt.f32.partialorder %v1518, 20.0
      %vm1647 = vcmp.gt.f32.partialorder %v1519, 20.0
      %vm1648 = vcmp.gt.f32.partialorder %v1520, 20.0
      %vm1649 = vcmp.gt.f32.partialorder %v1521, 20.0
      %vm1650 = vcmp.gt.f32.partialorder %v1522, 20.0
      %vm1651 = vcmp.gt.f32.partialorder %v1523, 20.0
      %vm1652 = vcmp.gt.f32.partialorder %v1524, 20.0
      %vm1653 = vcmp.gt.f32.partialorder %v1525, 20.0
      %vm1654 = vcmp.gt.f32.partialorder %v1526, 20.0
      %vm1655 = vcmp.gt.f32.partialorder %v1527, 20.0
      %vm1656 = vcmp.gt.f32.partialorder %v1528, 20.0
      %vm1657 = vcmp.gt.f32.partialorder %v1529, 20.0
      %vm1658 = vcmp.gt.f32.partialorder %v1530, 20.0
      %vm1659 = vcmp.gt.f32.partialorder %v1531, 20.0
      %vm1660 = vcmp.gt.f32.partialorder %v1532, 20.0
      %vm1661 = vcmp.gt.f32.partialorder %v1533, 20.0
      %vm1662 = vcmp.gt.f32.partialorder %v1534, 20.0
      %vm1663 = vcmp.gt.f32.partialorder %v1535, 20.0
      %vm1664 = vcmp.gt.f32.partialorder %v1536, 20.0
      %vm1665 = vcmp.gt.f32.partialorder %v1537, 20.0
      %vm1666 = vcmp.gt.f32.partialorder %v1538, 20.0
      %vm1667 = vcmp.gt.f32.partialorder %v1539, 20.0
      %v1668 = vadd.f32 %v1573, 1.0
      %v1669 = vadd.f32 %v1575, 1.0
      %v1670 = vadd.f32 %v1577, 1.0
      %v1671 = vadd.f32 %v1579, 1.0
      %v1672 = vadd.f32 %v1581, 1.0
      %v1673 = vadd.f32 %v1583, 1.0
      %v1674 = vadd.f32 %v1585, 1.0
      %v1675 = vadd.f32 %v1587, 1.0
      %v1676 = vadd.f32 %v1589, 1.0
      %v1677 = vadd.f32 %v1591, 1.0
      %v1678 = vadd.f32 %v1593, 1.0
      %v1679 = vadd.f32 %v1595, 1.0
      %v1680 = vadd.f32 %v1597, 1.0
      %v1681 = vadd.f32 %v1599, 1.0
      %v1682 = vadd.f32 %v1601, 1.0
      %v1683 = vadd.f32 %v1603, 1.0
      %v1684 = vadd.f32 %v1605, 1.0
      %v1685 = vadd.f32 %v1607, 1.0
      %v1686 = vadd.f32 %v1609, 1.0
      %v1687 = vadd.f32 %v1611, 1.0
      %v1688 = vadd.f32 %v1613, 1.0
      %v1689 = vadd.f32 %v1615, 1.0
      %v1690 = vadd.f32 %v1617, 1.0
      %v1691 = vadd.f32 %v1619, 1.0
      %v1692 = vadd.f32 %v1621, 1.0
      %v1693 = vadd.f32 %v1623, 1.0
      %v1694 = vadd.f32 %v1625, 1.0
      %v1695 = vadd.f32 %v1627, 1.0
      %v1696 = vadd.f32 %v1629, 1.0
      %v1697 = vadd.f32 %v1631, 1.0
      %v1698 = vadd.f32 %v1633, 1.0
      %v1699 = vadd.f32 %v1635, 1.0
      %v1700 = vlog2.pop %v1668
      %v1701 = vmul.f32 %v1700, 0.6931472
      %v1702 = vlog2.pop %v1669
      %v1703 = vmul.f32 %v1702, 0.6931472
      %v1704 = vlog2.pop %v1670
      %v1705 = vmul.f32 %v1704, 0.6931472
      %v1706 = vlog2.pop %v1671
      %v1707 = vmul.f32 %v1706, 0.6931472
      %v1708 = vlog2.pop %v1672
      %v1709 = vmul.f32 %v1708, 0.6931472
      %v1710 = vlog2.pop %v1673
      %v1711 = vmul.f32 %v1710, 0.6931472
      %v1712 = vlog2.pop %v1674
      %v1713 = vmul.f32 %v1712, 0.6931472
      %v1714 = vlog2.pop %v1675
      %v1715 = vmul.f32 %v1714, 0.6931472
      %v1716 = vlog2.pop %v1676
      %v1717 = vmul.f32 %v1716, 0.6931472
      %v1718 = vlog2.pop %v1677
      %v1719 = vmul.f32 %v1718, 0.6931472
      %v1720 = vlog2.pop %v1678
      %v1721 = vmul.f32 %v1720, 0.6931472
      %v1722 = vlog2.pop %v1679
      %v1723 = vmul.f32 %v1722, 0.6931472
      %v1724 = vlog2.pop %v1680
      %v1725 = vmul.f32 %v1724, 0.6931472
      %v1726 = vlog2.pop %v1681
      %v1727 = vmul.f32 %v1726, 0.6931472
      %v1728 = vlog2.pop %v1682
      %v1729 = vmul.f32 %v1728, 0.6931472
      %v1730 = vlog2.pop %v1683
      %v1731 = vmul.f32 %v1730, 0.6931472
      %v1732 = vlog2.pop %v1684
      %v1733 = vmul.f32 %v1732, 0.6931472
      %v1734 = vlog2.pop %v1685
      %v1735 = vmul.f32 %v1734, 0.6931472
      %v1736 = vlog2.pop %v1686
      %v1737 = vmul.f32 %v1736, 0.6931472
      %v1738 = vlog2.pop %v1687
      %v1739 = vmul.f32 %v1738, 0.6931472
      %v1740 = vlog2.pop %v1688
      %v1741 = vmul.f32 %v1740, 0.6931472
      %v1742 = vlog2.pop %v1689
      %v1743 = vmul.f32 %v1742, 0.6931472
      %v1744 = vlog2.pop %v1690
      %v1745 = vmul.f32 %v1744, 0.6931472
      %v1746 = vlog2.pop %v1691
      %v1747 = vmul.f32 %v1746, 0.6931472
      %v1748 = vlog2.pop %v1692
      %v1749 = vmul.f32 %v1748, 0.6931472
      %v1750 = vlog2.pop %v1693
      %v1751 = vmul.f32 %v1750, 0.6931472
      %v1752 = vlog2.pop %v1694
      %v1753 = vmul.f32 %v1752, 0.6931472
      %v1754 = vlog2.pop %v1695
      %v1755 = vmul.f32 %v1754, 0.6931472
      %v1756 = vlog2.pop %v1696
      %v1757 = vmul.f32 %v1756, 0.6931472
      %v1758 = vlog2.pop %v1697
      %v1759 = vmul.f32 %v1758, 0.6931472
      %v1760 = vlog2.pop %v1698
      %v1761 = vmul.f32 %v1760, 0.6931472
      %v1762 = vlog2.pop %v1699
      %v1763 = vmul.f32 %v1762, 0.6931472
      %v1764 = vmul.f32 %v1701, 0.01
      %v1765 = vmul.f32 %v1703, 0.01
      %v1766 = vmul.f32 %v1705, 0.01
      %v1767 = vmul.f32 %v1707, 0.01
      %v1768 = vmul.f32 %v1709, 0.01
      %v1769 = vmul.f32 %v1711, 0.01
      %v1770 = vmul.f32 %v1713, 0.01
      %v1771 = vmul.f32 %v1715, 0.01
      %v1772 = vmul.f32 %v1717, 0.01
      %v1773 = vmul.f32 %v1719, 0.01
      %v1774 = vmul.f32 %v1721, 0.01
      %v1775 = vmul.f32 %v1723, 0.01
      %v1776 = vmul.f32 %v1725, 0.01
      %v1777 = vmul.f32 %v1727, 0.01
      %v1778 = vmul.f32 %v1729, 0.01
      %v1779 = vmul.f32 %v1731, 0.01
      %v1780 = vmul.f32 %v1733, 0.01
      %v1781 = vmul.f32 %v1735, 0.01
      %v1782 = vmul.f32 %v1737, 0.01
      %v1783 = vmul.f32 %v1739, 0.01
      %v1784 = vmul.f32 %v1741, 0.01
      %v1785 = vmul.f32 %v1743, 0.01
      %v1786 = vmul.f32 %v1745, 0.01
      %v1787 = vmul.f32 %v1747, 0.01
      %v1788 = vmul.f32 %v1749, 0.01
      %v1789 = vmul.f32 %v1751, 0.01
      %v1790 = vmul.f32 %v1753, 0.01
      %v1791 = vmul.f32 %v1755, 0.01
      %v1792 = vmul.f32 %v1757, 0.01
      %v1793 = vmul.f32 %v1759, 0.01
      %v1794 = vmul.f32 %v1761, 0.01
      %v1795 = vmul.f32 %v1763, 0.01
      %v1796 = vsel %vm1636, %v1402, %v1764
      %v1797 = vsel %vm1637, %v1431, %v1765
      %v1798 = vsel %vm1638, %v1460, %v1766
      %v1799 = vsel %vm1639, %v1489, %v1767
      %v1800 = vsel %vm1640, %v1404, %v1768
      %v1801 = vsel %vm1641, %v1433, %v1769
      %v1802 = vsel %vm1642, %v1462, %v1770
      %v1803 = vsel %vm1643, %v1491, %v1771
      %v1804 = vsel %vm1644, %v1407, %v1772
      %v1805 = vsel %vm1645, %v1436, %v1773
      %v1806 = vsel %vm1646, %v1465, %v1774
      %v1807 = vsel %vm1647, %v1494, %v1775
      %v1808 = vsel %vm1648, %v1409, %v1776
      %v1809 = vsel %vm1649, %v1438, %v1777
      %v1810 = vsel %vm1650, %v1467, %v1778
      %v1811 = vsel %vm1651, %v1496, %v1779
      %v1812 = vsel %vm1652, %v1412, %v1780
      %v1813 = vsel %vm1653, %v1441, %v1781
      %v1814 = vsel %vm1654, %v1470, %v1782
      %v1815 = vsel %vm1655, %v1499, %v1783
      %v1816 = vsel %vm1656, %v1414, %v1784
      %v1817 = vsel %vm1657, %v1443, %v1785
      %v1818 = vsel %vm1658, %v1472, %v1786
      %v1819 = vsel %vm1659, %v1501, %v1787
      %v1820 = vsel %vm1660, %v1417, %v1788
      %v1821 = vsel %vm1661, %v1446, %v1789
      %v1822 = vsel %vm1662, %v1475, %v1790
      %v1823 = vsel %vm1663, %v1504, %v1791
      %v1824 = vsel %vm1664, %v1419, %v1792
      %v1825 = vsel %vm1665, %v1448, %v1793
      %v1826 = vsel %vm1666, %v1477, %v1794
      %v1827 = vsel %vm1667, %v1506, %v1795
      %v1828 = vrcp.pop %v1668
      %v1829 = vrcp.pop %v1669
      %v1830 = vrcp.pop %v1670
      %v1831 = vrcp.pop %v1671
      %v1832 = vrcp.pop %v1672
      %v1833 = vrcp.pop %v1673
      %v1834 = vrcp.pop %v1674
      %v1835 = vrcp.pop %v1675
      %v1836 = vrcp.pop %v1676
      %v1837 = vrcp.pop %v1677
      %v1838 = vrcp.pop %v1678
      %v1839 = vrcp.pop %v1679
      %v1840 = vrcp.pop %v1680
      %v1841 = vrcp.pop %v1681
      %v1842 = vrcp.pop %v1682
      %v1843 = vrcp.pop %v1683
      %v1844 = vrcp.pop %v1684
      %v1845 = vrcp.pop %v1685
      %v1846 = vrcp.pop %v1686
      %v1847 = vrcp.pop %v1687
      %v1848 = vrcp.pop %v1688
      %v1849 = vrcp.pop %v1689
      %v1850 = vrcp.pop %v1690
      %v1851 = vrcp.pop %v1691
      %v1852 = vrcp.pop %v1692
      %v1853 = vrcp.pop %v1693
      %v1854 = vrcp.pop %v1694
      %v1855 = vrcp.pop %v1695
      %v1856 = vrcp.pop %v1696
      %v1857 = vrcp.pop %v1697
      %v1858 = vrcp.pop %v1698
      %v1859 = vrcp.pop %v1699
      %v1860 = vmul.f32 %v1573, %v1828
      %v1861 = vmul.f32 %v1575, %v1829
      %v1862 = vmul.f32 %v1577, %v1830
      %v1863 = vmul.f32 %v1579, %v1831
      %v1864 = vmul.f32 %v1581, %v1832
      %v1865 = vmul.f32 %v1583, %v1833
      %v1866 = vmul.f32 %v1585, %v1834
      %v1867 = vmul.f32 %v1587, %v1835
      %v1868 = vmul.f32 %v1589, %v1836
      %v1869 = vmul.f32 %v1591, %v1837
      %v1870 = vmul.f32 %v1593, %v1838
      %v1871 = vmul.f32 %v1595, %v1839
      %v1872 = vmul.f32 %v1597, %v1840
      %v1873 = vmul.f32 %v1599, %v1841
      %v1874 = vmul.f32 %v1601, %v1842
      %v1875 = vmul.f32 %v1603, %v1843
      %v1876 = vmul.f32 %v1605, %v1844
      %v1877 = vmul.f32 %v1607, %v1845
      %v1878 = vmul.f32 %v1609, %v1846
      %v1879 = vmul.f32 %v1611, %v1847
      %v1880 = vmul.f32 %v1613, %v1848
      %v1881 = vmul.f32 %v1615, %v1849
      %v1882 = vmul.f32 %v1617, %v1850
      %v1883 = vmul.f32 %v1619, %v1851
      %v1884 = vmul.f32 %v1621, %v1852
      %v1885 = vmul.f32 %v1623, %v1853
      %v1886 = vmul.f32 %v1625, %v1854
      %v1887 = vmul.f32 %v1627, %v1855
      %v1888 = vmul.f32 %v1629, %v1856
      %v1889 = vmul.f32 %v1631, %v1857
      %v1890 = vmul.f32 %v1633, %v1858
      %v1891 = vmul.f32 %v1635, %v1859
      %v1892 = vpack.c.bf16 %v1861, %v1860
      %v1893 = vpack.c.bf16 %v1863, %v1862
      %v1894 = vpack.c.bf16 %v1865, %v1864
      %v1895 = vpack.c.bf16 %v1867, %v1866
      %v1896 = vpack.c.bf16 %v1869, %v1868
      %v1897 = vpack.c.bf16 %v1871, %v1870
      %v1898 = vpack.c.bf16 %v1873, %v1872
      %v1899 = vpack.c.bf16 %v1875, %v1874
      %v1900 = vpack.c.bf16 %v1877, %v1876
      %v1901 = vpack.c.bf16 %v1879, %v1878
      %v1902 = vpack.c.bf16 %v1881, %v1880
      %v1903 = vpack.c.bf16 %v1883, %v1882
      %v1904 = vpack.c.bf16 %v1885, %v1884
      %v1905 = vpack.c.bf16 %v1887, %v1886
      %v1906 = vpack.c.bf16 %v1889, %v1888
      %v1907 = vpack.c.bf16 %v1891, %v1890
      %v1908 = vld [vmem:[%s5] sm:$0xf]
      %v1909 = vld [vmem:[%s5 + $0x4] sm:$0xf]
      %v1910 = vld [vmem:[%s5 + $0x8] sm:$0xf]
      %v1911 = vld [vmem:[%s5 + $0xc] sm:$0xf]
      %v1912 = vld [vmem:[%s5 + $0x10] sm:$0xf]
      %v1913 = vld [vmem:[%s5 + $0x14] sm:$0xf]
      %v1914 = vld [vmem:[%s5 + $0x18] sm:$0xf]
      %v1915 = vld [vmem:[%s5 + $0x1c] sm:$0xf]
      %v1916 = vpack.c.bf16 %v1800, %v1796
      %v1917 = vpack.c.bf16 %v1801, %v1797
      %v1918 = vpack.c.bf16 %v1802, %v1798
      %v1919 = vpack.c.bf16 %v1803, %v1799
      %v1920 = vpack.c.bf16 %v1808, %v1804
      %v1921 = vpack.c.bf16 %v1809, %v1805
      %v1922 = vpack.c.bf16 %v1810, %v1806
      %v1923 = vpack.c.bf16 %v1811, %v1807
      %v1924 = vpack.c.bf16 %v1816, %v1812
      %v1925 = vpack.c.bf16 %v1817, %v1813
      %v1926 = vpack.c.bf16 %v1818, %v1814
      %v1927 = vpack.c.bf16 %v1819, %v1815
      %v1928 = vpack.c.bf16 %v1824, %v1820
      %v1929 = vpack.c.bf16 %v1825, %v1821
      %v1930 = vpack.c.bf16 %v1826, %v1822
      %v1931 = vpack.c.bf16 %v1827, %v1823
      %v1932 = vld [vmem:[%s6] sm:$0xff]
      %v1933 = vld [vmem:[%s6 + $0x8] sm:$0xff]
      %v1934 = vld [vmem:[%s6 + $0x10] sm:$0xff]
      %v1935 = vld [vmem:[%s6 + $0x18] sm:$0xff]
      %v1936 = vld [vmem:[%s6 + $0x20] sm:$0xff]
      %v1937 = vld [vmem:[%s6 + $0x28] sm:$0xff]
      %v1938 = vld [vmem:[%s6 + $0x30] sm:$0xff]
      %v1939 = vld [vmem:[%s6 + $0x38] sm:$0xff]
      %1941 = vset.pattern.permute.xlu0 0
      %1942 = vperm.xlu0 %1941, %v1932
      %v1943 = vpop.permute.xlu0 %1942
      %1946 = vset.pattern.permute.xlu0 0
      %1947 = vperm.xlu0 %1946, %v1933
      %v1948 = vpop.permute.xlu0 %1947
      %1951 = vset.pattern.permute.xlu0 0
      %1952 = vperm.xlu0 %1951, %v1934
      %v1953 = vpop.permute.xlu0 %1952
      %1956 = vset.pattern.permute.xlu0 0
      %1957 = vperm.xlu0 %1956, %v1935
      %v1958 = vpop.permute.xlu0 %1957
      %1961 = vset.pattern.permute.xlu0 0
      %1962 = vperm.xlu0 %1961, %v1936
      %v1963 = vpop.permute.xlu0 %1962
      %1966 = vset.pattern.permute.xlu0 0
      %1967 = vperm.xlu0 %1966, %v1937
      %v1968 = vpop.permute.xlu0 %1967
      %1971 = vset.pattern.permute.xlu0 0
      %1972 = vperm.xlu0 %1971, %v1938
      %v1973 = vpop.permute.xlu0 %1972
      %1976 = vset.pattern.permute.xlu0 0
      %1977 = vperm.xlu0 %1976, %v1939
      %v1978 = vpop.permute.xlu0 %1977
      %v1988 = vunpack.c.l.b16 %v1908
      %v1989 = vunpack.c.l.b16 %v1909
      %v1990 = vunpack.c.l.b16 %v1910
      %v1991 = vunpack.c.l.b16 %v1911
      %v1992 = vunpack.c.l.b16 %v1912
      %v1993 = vunpack.c.l.b16 %v1913
      %v1994 = vunpack.c.l.b16 %v1914
      %v1995 = vunpack.c.l.b16 %v1915
      %v1996 = vpack.c.b16 %v1989, %v1988
      %v1997 = vpack.c.b16 %v1991, %v1990
      %v1998 = vpack.c.b16 %v1993, %v1992
      %v1999 = vpack.c.b16 %v1995, %v1994
      %v2001 = vsel %vm1379, %v1996, 0
      %v2004 = vsel %vm1379, %v1997, 0
      %v2007 = vsel %vm1379, %v1998, 0
      %v2010 = vsel %vm1379, %v1999, 0
      %2012 = vmatpush.bf16.msra.mxu0 0
      %2013 = vmatpush.bf16.msra.mxu0 0
      %2014 = vmatpush.bf16.msra.mxu0 0
      %2015 = vmatpush.bf16.msra.mxu0 0
      %2016 = vmatpush.bf16.msra.mxu0 %v1928
      %2017 = vmatpush.bf16.msra.mxu0 %v1924
      %2018 = vmatpush.bf16.msra.mxu0 %v1920
      %2019 = vmatpush.bf16.msra.mxu0 %v1916
      %2020 = vmatmul.bf16.gmra.mxu0 %v2001
      %v2021 = vpop.f32.mrf.mxu0
      %v2022 = vadd.f32 %v1943, %v2021
      %v2023 = vpop.f32.mrf.mxu0
      %v2024 = vadd.f32 %v1948, %v2023
      %2025 = vmatmul.bf16.gmra.mxu0 %v2004
      %v2026 = vpop.f32.mrf.mxu0
      %v2027 = vadd.f32 %v1953, %v2026
      %v2028 = vpop.f32.mrf.mxu0
      %v2029 = vadd.f32 %v1958, %v2028
      %2030 = vmatmul.bf16.gmra.mxu0 %v2007
      %v2031 = vpop.f32.mrf.mxu0
      %v2032 = vadd.f32 %v1963, %v2031
      %v2033 = vpop.f32.mrf.mxu0
      %v2034 = vadd.f32 %v1968, %v2033
      %2035 = vmatmul.bf16.gmra.mxu0 %v2010
      %v2036 = vpop.f32.mrf.mxu0
      %v2037 = vadd.f32 %v1973, %v2036
      %v2038 = vpop.f32.mrf.mxu0
      %v2039 = vadd.f32 %v1978, %v2038
      %2040 = vdwg.mxu0
      %2041 = vmatpush.bf16.msra.mxu0 0
      %2042 = vmatpush.bf16.msra.mxu0 0
      %2043 = vmatpush.bf16.msra.mxu0 0
      %2044 = vmatpush.bf16.msra.mxu0 0
      %2045 = vmatpush.bf16.msra.mxu0 %v1929
      %2046 = vmatpush.bf16.msra.mxu0 %v1925
      %2047 = vmatpush.bf16.msra.mxu0 %v1921
      %2048 = vmatpush.bf16.msra.mxu0 %v1917
      %2049 = vmatmul.bf16.gmra.mxu0 %v2001
      %v2050 = vpop.f32.mrf.mxu0
      %v2051 = vadd.f32 %v1943, %v2050
      %v2052 = vpop.f32.mrf.mxu0
      %v2053 = vadd.f32 %v1948, %v2052
      %2054 = vmatmul.bf16.gmra.mxu0 %v2004
      %v2055 = vpop.f32.mrf.mxu0
      %v2056 = vadd.f32 %v1953, %v2055
      %v2057 = vpop.f32.mrf.mxu0
      %v2058 = vadd.f32 %v1958, %v2057
      %2059 = vmatmul.bf16.gmra.mxu0 %v2007
      %v2060 = vpop.f32.mrf.mxu0
      %v2061 = vadd.f32 %v1963, %v2060
      %v2062 = vpop.f32.mrf.mxu0
      %v2063 = vadd.f32 %v1968, %v2062
      %2064 = vmatmul.bf16.gmra.mxu0 %v2010
      %v2065 = vpop.f32.mrf.mxu0
      %v2066 = vadd.f32 %v1973, %v2065
      %v2067 = vpop.f32.mrf.mxu0
      %v2068 = vadd.f32 %v1978, %v2067
      %2069 = vdwg.mxu0
      %2070 = vmatpush.bf16.msra.mxu0 0
      %2071 = vmatpush.bf16.msra.mxu0 0
      %2072 = vmatpush.bf16.msra.mxu0 0
      %2073 = vmatpush.bf16.msra.mxu0 0
      %2074 = vmatpush.bf16.msra.mxu0 %v1930
      %2075 = vmatpush.bf16.msra.mxu0 %v1926
      %2076 = vmatpush.bf16.msra.mxu0 %v1922
      %2077 = vmatpush.bf16.msra.mxu0 %v1918
      %2078 = vmatmul.bf16.gmra.mxu0 %v2001
      %v2079 = vpop.f32.mrf.mxu0
      %v2080 = vadd.f32 %v1943, %v2079
      %v2081 = vpop.f32.mrf.mxu0
      %v2082 = vadd.f32 %v1948, %v2081
      %2083 = vmatmul.bf16.gmra.mxu0 %v2004
      %v2084 = vpop.f32.mrf.mxu0
      %v2085 = vadd.f32 %v1953, %v2084
      %v2086 = vpop.f32.mrf.mxu0
      %v2087 = vadd.f32 %v1958, %v2086
      %2088 = vmatmul.bf16.gmra.mxu0 %v2007
      %v2089 = vpop.f32.mrf.mxu0
      %v2090 = vadd.f32 %v1963, %v2089
      %v2091 = vpop.f32.mrf.mxu0
      %v2092 = vadd.f32 %v1968, %v2091
      %2093 = vmatmul.bf16.gmra.mxu0 %v2010
      %v2094 = vpop.f32.mrf.mxu0
      %v2095 = vadd.f32 %v1973, %v2094
      %v2096 = vpop.f32.mrf.mxu0
      %v2097 = vadd.f32 %v1978, %v2096
      %2098 = vdwg.mxu0
      %2099 = vmatpush.bf16.msra.mxu0 0
      %2100 = vmatpush.bf16.msra.mxu0 0
      %2101 = vmatpush.bf16.msra.mxu0 0
      %2102 = vmatpush.bf16.msra.mxu0 0
      %2103 = vmatpush.bf16.msra.mxu0 %v1931
      %2104 = vmatpush.bf16.msra.mxu0 %v1927
      %2105 = vmatpush.bf16.msra.mxu0 %v1923
      %2106 = vmatpush.bf16.msra.mxu0 %v1919
      %2107 = vmatmul.bf16.gmra.mxu0 %v2001
      %v2108 = vpop.f32.mrf.mxu0
      %v2109 = vadd.f32 %v1943, %v2108
      %v2110 = vpop.f32.mrf.mxu0
      %v2111 = vadd.f32 %v1948, %v2110
      %2112 = vmatmul.bf16.gmra.mxu0 %v2004
      %v2113 = vpop.f32.mrf.mxu0
      %v2114 = vadd.f32 %v1953, %v2113
      %v2115 = vpop.f32.mrf.mxu0
      %v2116 = vadd.f32 %v1958, %v2115
      %2117 = vmatmul.bf16.gmra.mxu0 %v2007
      %v2118 = vpop.f32.mrf.mxu0
      %v2119 = vadd.f32 %v1963, %v2118
      %v2120 = vpop.f32.mrf.mxu0
      %v2121 = vadd.f32 %v1968, %v2120
      %2122 = vmatmul.bf16.gmra.mxu0 %v2010
      %v2123 = vpop.f32.mrf.mxu0
      %v2124 = vadd.f32 %v1973, %v2123
      %v2125 = vpop.f32.mrf.mxu0
      %v2126 = vadd.f32 %v1978, %v2125
      %2127 = vdwg.mxu0
      %v2128 = vmul.f32 %v2022, 100.0
      %v2129 = vmul.f32 %v2051, 100.0
      %v2130 = vmul.f32 %v2080, 100.0
      %v2131 = vmul.f32 %v2109, 100.0
      %v2132 = vmul.f32 %v2024, 100.0
      %v2133 = vmul.f32 %v2053, 100.0
      %v2134 = vmul.f32 %v2082, 100.0
      %v2135 = vmul.f32 %v2111, 100.0
      %v2136 = vmul.f32 %v2027, 100.0
      %v2137 = vmul.f32 %v2056, 100.0
      %v2138 = vmul.f32 %v2085, 100.0
      %v2139 = vmul.f32 %v2114, 100.0
      %v2140 = vmul.f32 %v2029, 100.0
      %v2141 = vmul.f32 %v2058, 100.0
      %v2142 = vmul.f32 %v2087, 100.0
      %v2143 = vmul.f32 %v2116, 100.0
      %v2144 = vmul.f32 %v2032, 100.0
      %v2145 = vmul.f32 %v2061, 100.0
      %v2146 = vmul.f32 %v2090, 100.0
      %v2147 = vmul.f32 %v2119, 100.0
      %v2148 = vmul.f32 %v2034, 100.0
      %v2149 = vmul.f32 %v2063, 100.0
      %v2150 = vmul.f32 %v2092, 100.0
      %v2151 = vmul.f32 %v2121, 100.0
      %v2152 = vmul.f32 %v2037, 100.0
      %v2153 = vmul.f32 %v2066, 100.0
      %v2154 = vmul.f32 %v2095, 100.0
      %v2155 = vmul.f32 %v2124, 100.0
      %v2156 = vmul.f32 %v2039, 100.0
      %v2157 = vmul.f32 %v2068, 100.0
      %v2158 = vmul.f32 %v2097, 100.0
      %v2159 = vmul.f32 %v2126, 100.0
      %v2160 = vmin.f32 %v2128, 20.0
      %v2161 = vmin.f32 %v2129, 20.0
      %v2162 = vmin.f32 %v2130, 20.0
      %v2163 = vmin.f32 %v2131, 20.0
      %v2164 = vmin.f32 %v2132, 20.0
      %v2165 = vmin.f32 %v2133, 20.0
      %v2166 = vmin.f32 %v2134, 20.0
      %v2167 = vmin.f32 %v2135, 20.0
      %v2168 = vmin.f32 %v2136, 20.0
      %v2169 = vmin.f32 %v2137, 20.0
      %v2170 = vmin.f32 %v2138, 20.0
      %v2171 = vmin.f32 %v2139, 20.0
      %v2172 = vmin.f32 %v2140, 20.0
      %v2173 = vmin.f32 %v2141, 20.0
      %v2174 = vmin.f32 %v2142, 20.0
      %v2175 = vmin.f32 %v2143, 20.0
      %v2176 = vmin.f32 %v2144, 20.0
      %v2177 = vmin.f32 %v2145, 20.0
      %v2178 = vmin.f32 %v2146, 20.0
      %v2179 = vmin.f32 %v2147, 20.0
      %v2180 = vmin.f32 %v2148, 20.0
      %v2181 = vmin.f32 %v2149, 20.0
      %v2182 = vmin.f32 %v2150, 20.0
      %v2183 = vmin.f32 %v2151, 20.0
      %v2184 = vmin.f32 %v2152, 20.0
      %v2185 = vmin.f32 %v2153, 20.0
      %v2186 = vmin.f32 %v2154, 20.0
      %v2187 = vmin.f32 %v2155, 20.0
      %v2188 = vmin.f32 %v2156, 20.0
      %v2189 = vmin.f32 %v2157, 20.0
      %v2190 = vmin.f32 %v2158, 20.0
      %v2191 = vmin.f32 %v2159, 20.0
      %v2192 = vmul.f32 %v2160, 1.442695
      %v2193 = vpow.pop %v2192
      %v2194 = vmul.f32 %v2161, 1.442695
      %v2195 = vpow.pop %v2194
      %v2196 = vmul.f32 %v2162, 1.442695
      %v2197 = vpow.pop %v2196
      %v2198 = vmul.f32 %v2163, 1.442695
      %v2199 = vpow.pop %v2198
      %v2200 = vmul.f32 %v2164, 1.442695
      %v2201 = vpow.pop %v2200
      %v2202 = vmul.f32 %v2165, 1.442695
      %v2203 = vpow.pop %v2202
      %v2204 = vmul.f32 %v2166, 1.442695
      %v2205 = vpow.pop %v2204
      %v2206 = vmul.f32 %v2167, 1.442695
      %v2207 = vpow.pop %v2206
      %v2208 = vmul.f32 %v2168, 1.442695
      %v2209 = vpow.pop %v2208
      %v2210 = vmul.f32 %v2169, 1.442695
      %v2211 = vpow.pop %v2210
      %v2212 = vmul.f32 %v2170, 1.442695
      %v2213 = vpow.pop %v2212
      %v2214 = vmul.f32 %v2171, 1.442695
      %v2215 = vpow.pop %v2214
      %v2216 = vmul.f32 %v2172, 1.442695
      %v2217 = vpow.pop %v2216
      %v2218 = vmul.f32 %v2173, 1.442695
      %v2219 = vpow.pop %v2218
      %v2220 = vmul.f32 %v2174, 1.442695
      %v2221 = vpow.pop %v2220
      %v2222 = vmul.f32 %v2175, 1.442695
      %v2223 = vpow.pop %v2222
      %v2224 = vmul.f32 %v2176, 1.442695
      %v2225 = vpow.pop %v2224
      %v2226 = vmul.f32 %v2177, 1.442695
      %v2227 = vpow.pop %v2226
      %v2228 = vmul.f32 %v2178, 1.442695
      %v2229 = vpow.pop %v2228
      %v2230 = vmul.f32 %v2179, 1.442695
      %v2231 = vpow.pop %v2230
      %v2232 = vmul.f32 %v2180, 1.442695
      %v2233 = vpow.pop %v2232
      %v2234 = vmul.f32 %v2181, 1.442695
      %v2235 = vpow.pop %v2234
      %v2236 = vmul.f32 %v2182, 1.442695
      %v2237 = vpow.pop %v2236
      %v2238 = vmul.f32 %v2183, 1.442695
      %v2239 = vpow.pop %v2238
      %v2240 = vmul.f32 %v2184, 1.442695
      %v2241 = vpow.pop %v2240
      %v2242 = vmul.f32 %v2185, 1.442695
      %v2243 = vpow.pop %v2242
      %v2244 = vmul.f32 %v2186, 1.442695
      %v2245 = vpow.pop %v2244
      %v2246 = vmul.f32 %v2187, 1.442695
      %v2247 = vpow.pop %v2246
      %v2248 = vmul.f32 %v2188, 1.442695
      %v2249 = vpow.pop %v2248
      %v2250 = vmul.f32 %v2189, 1.442695
      %v2251 = vpow.pop %v2250
      %v2252 = vmul.f32 %v2190, 1.442695
      %v2253 = vpow.pop %v2252
      %v2254 = vmul.f32 %v2191, 1.442695
      %v2255 = vpow.pop %v2254
      %vm2256 = vcmp.gt.f32.partialorder %v2128, 20.0
      %vm2257 = vcmp.gt.f32.partialorder %v2129, 20.0
      %vm2258 = vcmp.gt.f32.partialorder %v2130, 20.0
      %vm2259 = vcmp.gt.f32.partialorder %v2131, 20.0
      %vm2260 = vcmp.gt.f32.partialorder %v2132, 20.0
      %vm2261 = vcmp.gt.f32.partialorder %v2133, 20.0
      %vm2262 = vcmp.gt.f32.partialorder %v2134, 20.0
      %vm2263 = vcmp.gt.f32.partialorder %v2135, 20.0
      %vm2264 = vcmp.gt.f32.partialorder %v2136, 20.0
      %vm2265 = vcmp.gt.f32.partialorder %v2137, 20.0
      %vm2266 = vcmp.gt.f32.partialorder %v2138, 20.0
      %vm2267 = vcmp.gt.f32.partialorder %v2139, 20.0
      %vm2268 = vcmp.gt.f32.partialorder %v2140, 20.0
      %vm2269 = vcmp.gt.f32.partialorder %v2141, 20.0
      %vm2270 = vcmp.gt.f32.partialorder %v2142, 20.0
      %vm2271 = vcmp.gt.f32.partialorder %v2143, 20.0
      %vm2272 = vcmp.gt.f32.partialorder %v2144, 20.0
      %vm2273 = vcmp.gt.f32.partialorder %v2145, 20.0
      %vm2274 = vcmp.gt.f32.partialorder %v2146, 20.0
      %vm2275 = vcmp.gt.f32.partialorder %v2147, 20.0
      %vm2276 = vcmp.gt.f32.partialorder %v2148, 20.0
      %vm2277 = vcmp.gt.f32.partialorder %v2149, 20.0
      %vm2278 = vcmp.gt.f32.partialorder %v2150, 20.0
      %vm2279 = vcmp.gt.f32.partialorder %v2151, 20.0
      %vm2280 = vcmp.gt.f32.partialorder %v2152, 20.0
      %vm2281 = vcmp.gt.f32.partialorder %v2153, 20.0
      %vm2282 = vcmp.gt.f32.partialorder %v2154, 20.0
      %vm2283 = vcmp.gt.f32.partialorder %v2155, 20.0
      %vm2284 = vcmp.gt.f32.partialorder %v2156, 20.0
      %vm2285 = vcmp.gt.f32.partialorder %v2157, 20.0
      %vm2286 = vcmp.gt.f32.partialorder %v2158, 20.0
      %vm2287 = vcmp.gt.f32.partialorder %v2159, 20.0
      %v2288 = vadd.f32 %v2193, 1.0
      %v2289 = vadd.f32 %v2195, 1.0
      %v2290 = vadd.f32 %v2197, 1.0
      %v2291 = vadd.f32 %v2199, 1.0
      %v2292 = vadd.f32 %v2201, 1.0
      %v2293 = vadd.f32 %v2203, 1.0
      %v2294 = vadd.f32 %v2205, 1.0
      %v2295 = vadd.f32 %v2207, 1.0
      %v2296 = vadd.f32 %v2209, 1.0
      %v2297 = vadd.f32 %v2211, 1.0
      %v2298 = vadd.f32 %v2213, 1.0
      %v2299 = vadd.f32 %v2215, 1.0
      %v2300 = vadd.f32 %v2217, 1.0
      %v2301 = vadd.f32 %v2219, 1.0
      %v2302 = vadd.f32 %v2221, 1.0
      %v2303 = vadd.f32 %v2223, 1.0
      %v2304 = vadd.f32 %v2225, 1.0
      %v2305 = vadd.f32 %v2227, 1.0
      %v2306 = vadd.f32 %v2229, 1.0
      %v2307 = vadd.f32 %v2231, 1.0
      %v2308 = vadd.f32 %v2233, 1.0
      %v2309 = vadd.f32 %v2235, 1.0
      %v2310 = vadd.f32 %v2237, 1.0
      %v2311 = vadd.f32 %v2239, 1.0
      %v2312 = vadd.f32 %v2241, 1.0
      %v2313 = vadd.f32 %v2243, 1.0
      %v2314 = vadd.f32 %v2245, 1.0
      %v2315 = vadd.f32 %v2247, 1.0
      %v2316 = vadd.f32 %v2249, 1.0
      %v2317 = vadd.f32 %v2251, 1.0
      %v2318 = vadd.f32 %v2253, 1.0
      %v2319 = vadd.f32 %v2255, 1.0
      %v2320 = vlog2.pop %v2288
      %v2321 = vmul.f32 %v2320, 0.6931472
      %v2322 = vlog2.pop %v2289
      %v2323 = vmul.f32 %v2322, 0.6931472
      %v2324 = vlog2.pop %v2290
      %v2325 = vmul.f32 %v2324, 0.6931472
      %v2326 = vlog2.pop %v2291
      %v2327 = vmul.f32 %v2326, 0.6931472
      %v2328 = vlog2.pop %v2292
      %v2329 = vmul.f32 %v2328, 0.6931472
      %v2330 = vlog2.pop %v2293
      %v2331 = vmul.f32 %v2330, 0.6931472
      %v2332 = vlog2.pop %v2294
      %v2333 = vmul.f32 %v2332, 0.6931472
      %v2334 = vlog2.pop %v2295
      %v2335 = vmul.f32 %v2334, 0.6931472
      %v2336 = vlog2.pop %v2296
      %v2337 = vmul.f32 %v2336, 0.6931472
      %v2338 = vlog2.pop %v2297
      %v2339 = vmul.f32 %v2338, 0.6931472
      %v2340 = vlog2.pop %v2298
      %v2341 = vmul.f32 %v2340, 0.6931472
      %v2342 = vlog2.pop %v2299
      %v2343 = vmul.f32 %v2342, 0.6931472
      %v2344 = vlog2.pop %v2300
      %v2345 = vmul.f32 %v2344, 0.6931472
      %v2346 = vlog2.pop %v2301
      %v2347 = vmul.f32 %v2346, 0.6931472
      %v2348 = vlog2.pop %v2302
      %v2349 = vmul.f32 %v2348, 0.6931472
      %v2350 = vlog2.pop %v2303
      %v2351 = vmul.f32 %v2350, 0.6931472
      %v2352 = vlog2.pop %v2304
      %v2353 = vmul.f32 %v2352, 0.6931472
      %v2354 = vlog2.pop %v2305
      %v2355 = vmul.f32 %v2354, 0.6931472
      %v2356 = vlog2.pop %v2306
      %v2357 = vmul.f32 %v2356, 0.6931472
      %v2358 = vlog2.pop %v2307
      %v2359 = vmul.f32 %v2358, 0.6931472
      %v2360 = vlog2.pop %v2308
      %v2361 = vmul.f32 %v2360, 0.6931472
      %v2362 = vlog2.pop %v2309
      %v2363 = vmul.f32 %v2362, 0.6931472
      %v2364 = vlog2.pop %v2310
      %v2365 = vmul.f32 %v2364, 0.6931472
      %v2366 = vlog2.pop %v2311
      %v2367 = vmul.f32 %v2366, 0.6931472
      %v2368 = vlog2.pop %v2312
      %v2369 = vmul.f32 %v2368, 0.6931472
      %v2370 = vlog2.pop %v2313
      %v2371 = vmul.f32 %v2370, 0.6931472
      %v2372 = vlog2.pop %v2314
      %v2373 = vmul.f32 %v2372, 0.6931472
      %v2374 = vlog2.pop %v2315
      %v2375 = vmul.f32 %v2374, 0.6931472
      %v2376 = vlog2.pop %v2316
      %v2377 = vmul.f32 %v2376, 0.6931472
      %v2378 = vlog2.pop %v2317
      %v2379 = vmul.f32 %v2378, 0.6931472
      %v2380 = vlog2.pop %v2318
      %v2381 = vmul.f32 %v2380, 0.6931472
      %v2382 = vlog2.pop %v2319
      %v2383 = vmul.f32 %v2382, 0.6931472
      %v2384 = vmul.f32 %v2321, 0.01
      %v2385 = vmul.f32 %v2323, 0.01
      %v2386 = vmul.f32 %v2325, 0.01
      %v2387 = vmul.f32 %v2327, 0.01
      %v2388 = vmul.f32 %v2329, 0.01
      %v2389 = vmul.f32 %v2331, 0.01
      %v2390 = vmul.f32 %v2333, 0.01
      %v2391 = vmul.f32 %v2335, 0.01
      %v2392 = vmul.f32 %v2337, 0.01
      %v2393 = vmul.f32 %v2339, 0.01
      %v2394 = vmul.f32 %v2341, 0.01
      %v2395 = vmul.f32 %v2343, 0.01
      %v2396 = vmul.f32 %v2345, 0.01
      %v2397 = vmul.f32 %v2347, 0.01
      %v2398 = vmul.f32 %v2349, 0.01
      %v2399 = vmul.f32 %v2351, 0.01
      %v2400 = vmul.f32 %v2353, 0.01
      %v2401 = vmul.f32 %v2355, 0.01
      %v2402 = vmul.f32 %v2357, 0.01
      %v2403 = vmul.f32 %v2359, 0.01
      %v2404 = vmul.f32 %v2361, 0.01
      %v2405 = vmul.f32 %v2363, 0.01
      %v2406 = vmul.f32 %v2365, 0.01
      %v2407 = vmul.f32 %v2367, 0.01
      %v2408 = vmul.f32 %v2369, 0.01
      %v2409 = vmul.f32 %v2371, 0.01
      %v2410 = vmul.f32 %v2373, 0.01
      %v2411 = vmul.f32 %v2375, 0.01
      %v2412 = vmul.f32 %v2377, 0.01
      %v2413 = vmul.f32 %v2379, 0.01
      %v2414 = vmul.f32 %v2381, 0.01
      %v2415 = vmul.f32 %v2383, 0.01
      %v2416 = vsel %vm2256, %v2022, %v2384
      %v2417 = vsel %vm2257, %v2051, %v2385
      %v2418 = vsel %vm2258, %v2080, %v2386
      %v2419 = vsel %vm2259, %v2109, %v2387
      %v2420 = vsel %vm2260, %v2024, %v2388
      %v2421 = vsel %vm2261, %v2053, %v2389
      %v2422 = vsel %vm2262, %v2082, %v2390
      %v2423 = vsel %vm2263, %v2111, %v2391
      %v2424 = vsel %vm2264, %v2027, %v2392
      %v2425 = vsel %vm2265, %v2056, %v2393
      %v2426 = vsel %vm2266, %v2085, %v2394
      %v2427 = vsel %vm2267, %v2114, %v2395
      %v2428 = vsel %vm2268, %v2029, %v2396
      %v2429 = vsel %vm2269, %v2058, %v2397
      %v2430 = vsel %vm2270, %v2087, %v2398
      %v2431 = vsel %vm2271, %v2116, %v2399
      %v2432 = vsel %vm2272, %v2032, %v2400
      %v2433 = vsel %vm2273, %v2061, %v2401
      %v2434 = vsel %vm2274, %v2090, %v2402
      %v2435 = vsel %vm2275, %v2119, %v2403
      %v2436 = vsel %vm2276, %v2034, %v2404
      %v2437 = vsel %vm2277, %v2063, %v2405
      %v2438 = vsel %vm2278, %v2092, %v2406
      %v2439 = vsel %vm2279, %v2121, %v2407
      %v2440 = vsel %vm2280, %v2037, %v2408
      %v2441 = vsel %vm2281, %v2066, %v2409
      %v2442 = vsel %vm2282, %v2095, %v2410
      %v2443 = vsel %vm2283, %v2124, %v2411
      %v2444 = vsel %vm2284, %v2039, %v2412
      %v2445 = vsel %vm2285, %v2068, %v2413
      %v2446 = vsel %vm2286, %v2097, %v2414
      %v2447 = vsel %vm2287, %v2126, %v2415
      %v2448 = vrcp.pop %v2288
      %v2449 = vrcp.pop %v2289
      %v2450 = vrcp.pop %v2290
      %v2451 = vrcp.pop %v2291
      %v2452 = vrcp.pop %v2292
      %v2453 = vrcp.pop %v2293
      %v2454 = vrcp.pop %v2294
      %v2455 = vrcp.pop %v2295
      %v2456 = vrcp.pop %v2296
      %v2457 = vrcp.pop %v2297
      %v2458 = vrcp.pop %v2298
      %v2459 = vrcp.pop %v2299
      %v2460 = vrcp.pop %v2300
      %v2461 = vrcp.pop %v2301
      %v2462 = vrcp.pop %v2302
      %v2463 = vrcp.pop %v2303
      %v2464 = vrcp.pop %v2304
      %v2465 = vrcp.pop %v2305
      %v2466 = vrcp.pop %v2306
      %v2467 = vrcp.pop %v2307
      %v2468 = vrcp.pop %v2308
      %v2469 = vrcp.pop %v2309
      %v2470 = vrcp.pop %v2310
      %v2471 = vrcp.pop %v2311
      %v2472 = vrcp.pop %v2312
      %v2473 = vrcp.pop %v2313
      %v2474 = vrcp.pop %v2314
      %v2475 = vrcp.pop %v2315
      %v2476 = vrcp.pop %v2316
      %v2477 = vrcp.pop %v2317
      %v2478 = vrcp.pop %v2318
      %v2479 = vrcp.pop %v2319
      %v2480 = vmul.f32 %v2193, %v2448
      %v2481 = vmul.f32 %v2195, %v2449
      %v2482 = vmul.f32 %v2197, %v2450
      %v2483 = vmul.f32 %v2199, %v2451
      %v2484 = vmul.f32 %v2201, %v2452
      %v2485 = vmul.f32 %v2203, %v2453
      %v2486 = vmul.f32 %v2205, %v2454
      %v2487 = vmul.f32 %v2207, %v2455
      %v2488 = vmul.f32 %v2209, %v2456
      %v2489 = vmul.f32 %v2211, %v2457
      %v2490 = vmul.f32 %v2213, %v2458
      %v2491 = vmul.f32 %v2215, %v2459
      %v2492 = vmul.f32 %v2217, %v2460
      %v2493 = vmul.f32 %v2219, %v2461
      %v2494 = vmul.f32 %v2221, %v2462
      %v2495 = vmul.f32 %v2223, %v2463
      %v2496 = vmul.f32 %v2225, %v2464
      %v2497 = vmul.f32 %v2227, %v2465
      %v2498 = vmul.f32 %v2229, %v2466
      %v2499 = vmul.f32 %v2231, %v2467
      %v2500 = vmul.f32 %v2233, %v2468
      %v2501 = vmul.f32 %v2235, %v2469
      %v2502 = vmul.f32 %v2237, %v2470
      %v2503 = vmul.f32 %v2239, %v2471
      %v2504 = vmul.f32 %v2241, %v2472
      %v2505 = vmul.f32 %v2243, %v2473
      %v2506 = vmul.f32 %v2245, %v2474
      %v2507 = vmul.f32 %v2247, %v2475
      %v2508 = vmul.f32 %v2249, %v2476
      %v2509 = vmul.f32 %v2251, %v2477
      %v2510 = vmul.f32 %v2253, %v2478
      %v2511 = vmul.f32 %v2255, %v2479
      %v2512 = vpack.c.bf16 %v2481, %v2480
      %v2513 = vpack.c.bf16 %v2483, %v2482
      %v2514 = vpack.c.bf16 %v2485, %v2484
      %v2515 = vpack.c.bf16 %v2487, %v2486
      %v2516 = vpack.c.bf16 %v2489, %v2488
      %v2517 = vpack.c.bf16 %v2491, %v2490
      %v2518 = vpack.c.bf16 %v2493, %v2492
      %v2519 = vpack.c.bf16 %v2495, %v2494
      %v2520 = vpack.c.bf16 %v2497, %v2496
      %v2521 = vpack.c.bf16 %v2499, %v2498
      %v2522 = vpack.c.bf16 %v2501, %v2500
      %v2523 = vpack.c.bf16 %v2503, %v2502
      %v2524 = vpack.c.bf16 %v2505, %v2504
      %v2525 = vpack.c.bf16 %v2507, %v2506
      %v2526 = vpack.c.bf16 %v2509, %v2508
      %v2527 = vpack.c.bf16 %v2511, %v2510
      %v2528 = vld [vmem:[%s7] sm:$0xf]
      %v2529 = vld [vmem:[%s7 + $0x4] sm:$0xf]
      %v2530 = vld [vmem:[%s7 + $0x8] sm:$0xf]
      %v2531 = vld [vmem:[%s7 + $0xc] sm:$0xf]
      %v2532 = vld [vmem:[%s7 + $0x10] sm:$0xf]
      %v2533 = vld [vmem:[%s7 + $0x14] sm:$0xf]
      %v2534 = vld [vmem:[%s7 + $0x18] sm:$0xf]
      %v2535 = vld [vmem:[%s7 + $0x1c] sm:$0xf]
      %v2536 = vld [vmem:[%s7 + $0x20] sm:$0x1]
      %v2537 = vpack.c.bf16 %v2420, %v2416
      %v2538 = vpack.c.bf16 %v2421, %v2417
      %v2539 = vpack.c.bf16 %v2422, %v2418
      %v2540 = vpack.c.bf16 %v2423, %v2419
      %v2541 = vpack.c.bf16 %v2428, %v2424
      %v2542 = vpack.c.bf16 %v2429, %v2425
      %v2543 = vpack.c.bf16 %v2430, %v2426
      %v2544 = vpack.c.bf16 %v2431, %v2427
      %v2545 = vpack.c.bf16 %v2436, %v2432
      %v2546 = vpack.c.bf16 %v2437, %v2433
      %v2547 = vpack.c.bf16 %v2438, %v2434
      %v2548 = vpack.c.bf16 %v2439, %v2435
      %v2549 = vpack.c.bf16 %v2444, %v2440
      %v2550 = vpack.c.bf16 %v2445, %v2441
      %v2551 = vpack.c.bf16 %v2446, %v2442
      %v2552 = vpack.c.bf16 %v2447, %v2443
      %v2553 = vld [vmem:[%s8] sm:$0xff]
      %v2554 = vld [vmem:[%s8 + $0x8] sm:$0xff]
      %v2555 = vld [vmem:[%s8 + $0x10] sm:$0xff]
      %v2556 = vld [vmem:[%s8 + $0x18] sm:$0xff]
      %v2557 = vld [vmem:[%s8 + $0x20] sm:$0xff]
      %v2558 = vld [vmem:[%s8 + $0x28] sm:$0xff]
      %v2559 = vld [vmem:[%s8 + $0x30] sm:$0xff]
      %v2560 = vld [vmem:[%s8 + $0x38] sm:$0xff]
      %v2561 = vld [vmem:[%s8 + $0x40] sm:$0x1]
      %2563 = vset.pattern.permute.xlu0 0
      %2564 = vperm.xlu0 %2563, %v2553
      %v2565 = vpop.permute.xlu0 %2564
      %2568 = vset.pattern.permute.xlu0 0
      %2569 = vperm.xlu0 %2568, %v2554
      %v2570 = vpop.permute.xlu0 %2569
      %2573 = vset.pattern.permute.xlu0 0
      %2574 = vperm.xlu0 %2573, %v2555
      %v2575 = vpop.permute.xlu0 %2574
      %2578 = vset.pattern.permute.xlu0 0
      %2579 = vperm.xlu0 %2578, %v2556
      %v2580 = vpop.permute.xlu0 %2579
      %2583 = vset.pattern.permute.xlu0 0
      %2584 = vperm.xlu0 %2583, %v2557
      %v2585 = vpop.permute.xlu0 %2584
      %2588 = vset.pattern.permute.xlu0 0
      %2589 = vperm.xlu0 %2588, %v2558
      %v2590 = vpop.permute.xlu0 %2589
      %2593 = vset.pattern.permute.xlu0 0
      %2594 = vperm.xlu0 %2593, %v2559
      %v2595 = vpop.permute.xlu0 %2594
      %2598 = vset.pattern.permute.xlu0 0
      %2599 = vperm.xlu0 %2598, %v2560
      %v2600 = vpop.permute.xlu0 %2599
      %2603 = vset.pattern.permute.xlu0 0
      %2604 = vperm.xlu0 %2603, %v2561
      %v2605 = vpop.permute.xlu0 %2604
      %v2616 = vunpack.c.l.b16 %v2528
      %v2617 = vunpack.c.l.b16 %v2529
      %v2618 = vunpack.c.l.b16 %v2530
      %v2619 = vunpack.c.l.b16 %v2531
      %v2620 = vunpack.c.l.b16 %v2532
      %v2621 = vunpack.c.l.b16 %v2533
      %v2622 = vunpack.c.l.b16 %v2534
      %v2623 = vunpack.c.l.b16 %v2535
      %v2624 = vunpack.c.l.b16 %v2536
      %v2625 = vpack.c.b16 %v2617, %v2616
      %v2626 = vpack.c.b16 %v2619, %v2618
      %v2627 = vpack.c.b16 %v2621, %v2620
      %v2628 = vpack.c.b16 %v2623, %v2622
      %v2629 = vpack.c.b16 %v2624, %v2624
      %v2631 = vsel %vm1379, %v2625, 0
      %v2634 = vsel %vm1379, %v2626, 0
      %v2637 = vsel %vm1379, %v2627, 0
      %v2640 = vsel %vm1379, %v2628, 0
      %v2643 = vsel %vm1379, %v2629, 0
      %2645 = vmatpush.bf16.msra.mxu0 0
      %2646 = vmatpush.bf16.msra.mxu0 0
      %2647 = vmatpush.bf16.msra.mxu0 0
      %2648 = vmatpush.bf16.msra.mxu0 0
      %2649 = vmatpush.bf16.msra.mxu0 %v2549
      %2650 = vmatpush.bf16.msra.mxu0 %v2545
      %2651 = vmatpush.bf16.msra.mxu0 %v2541
      %2652 = vmatpush.bf16.msra.mxu0 %v2537
      %2653 = vmatmul.bf16.gmra.mxu0 %v2631
      %v2654 = vpop.f32.mrf.mxu0
      %v2655 = vadd.f32 %v2565, %v2654
      %v2656 = vpop.f32.mrf.mxu0
      %v2657 = vadd.f32 %v2570, %v2656
      %2658 = vmatmul.bf16.gmra.mxu0 %v2634
      %v2659 = vpop.f32.mrf.mxu0
      %v2660 = vadd.f32 %v2575, %v2659
      %v2661 = vpop.f32.mrf.mxu0
      %v2662 = vadd.f32 %v2580, %v2661
      %2663 = vmatmul.bf16.gmra.mxu0 %v2637
      %v2664 = vpop.f32.mrf.mxu0
      %v2665 = vadd.f32 %v2585, %v2664
      %v2666 = vpop.f32.mrf.mxu0
      %v2667 = vadd.f32 %v2590, %v2666
      %2668 = vmatmul.bf16.gmra.mxu0 %v2640
      %v2669 = vpop.f32.mrf.mxu0
      %v2670 = vadd.f32 %v2595, %v2669
      %v2671 = vpop.f32.mrf.mxu0
      %v2672 = vadd.f32 %v2600, %v2671
      %2673 = vmatmul.bf16.gmra.mxu0 %v2643
      %v2674 = vpop.f32.mrf.mxu0
      %v2675 = vadd.f32 %v2605, %v2674
      %v2676 = vpop.f32.mrf.mxu0
      %2677 = vdwg.mxu0
      %2678 = vmatpush.bf16.msra.mxu0 0
      %2679 = vmatpush.bf16.msra.mxu0 0
      %2680 = vmatpush.bf16.msra.mxu0 0
      %2681 = vmatpush.bf16.msra.mxu0 0
      %2682 = vmatpush.bf16.msra.mxu0 %v2550
      %2683 = vmatpush.bf16.msra.mxu0 %v2546
      %2684 = vmatpush.bf16.msra.mxu0 %v2542
      %2685 = vmatpush.bf16.msra.mxu0 %v2538
      %2686 = vmatmul.bf16.gmra.mxu0 %v2631
      %v2687 = vpop.f32.mrf.mxu0
      %v2688 = vadd.f32 %v2565, %v2687
      %v2689 = vpop.f32.mrf.mxu0
      %v2690 = vadd.f32 %v2570, %v2689
      %2691 = vmatmul.bf16.gmra.mxu0 %v2634
      %v2692 = vpop.f32.mrf.mxu0
      %v2693 = vadd.f32 %v2575, %v2692
      %v2694 = vpop.f32.mrf.mxu0
      %v2695 = vadd.f32 %v2580, %v2694
      %2696 = vmatmul.bf16.gmra.mxu0 %v2637
      %v2697 = vpop.f32.mrf.mxu0
      %v2698 = vadd.f32 %v2585, %v2697
      %v2699 = vpop.f32.mrf.mxu0
      %v2700 = vadd.f32 %v2590, %v2699
      %2701 = vmatmul.bf16.gmra.mxu0 %v2640
      %v2702 = vpop.f32.mrf.mxu0
      %v2703 = vadd.f32 %v2595, %v2702
      %v2704 = vpop.f32.mrf.mxu0
      %v2705 = vadd.f32 %v2600, %v2704
      %2706 = vmatmul.bf16.gmra.mxu0 %v2643
      %v2707 = vpop.f32.mrf.mxu0
      %v2708 = vadd.f32 %v2605, %v2707
      %v2709 = vpop.f32.mrf.mxu0
      %2710 = vdwg.mxu0
      %2711 = vmatpush.bf16.msra.mxu0 0
      %2712 = vmatpush.bf16.msra.mxu0 0
      %2713 = vmatpush.bf16.msra.mxu0 0
      %2714 = vmatpush.bf16.msra.mxu0 0
      %2715 = vmatpush.bf16.msra.mxu0 %v2551
      %2716 = vmatpush.bf16.msra.mxu0 %v2547
      %2717 = vmatpush.bf16.msra.mxu0 %v2543
      %2718 = vmatpush.bf16.msra.mxu0 %v2539
      %2719 = vmatmul.bf16.gmra.mxu0 %v2631
      %v2720 = vpop.f32.mrf.mxu0
      %v2721 = vadd.f32 %v2565, %v2720
      %v2722 = vpop.f32.mrf.mxu0
      %v2723 = vadd.f32 %v2570, %v2722
      %2724 = vmatmul.bf16.gmra.mxu0 %v2634
      %v2725 = vpop.f32.mrf.mxu0
      %v2726 = vadd.f32 %v2575, %v2725
      %v2727 = vpop.f32.mrf.mxu0
      %v2728 = vadd.f32 %v2580, %v2727
      %2729 = vmatmul.bf16.gmra.mxu0 %v2637
      %v2730 = vpop.f32.mrf.mxu0
      %v2731 = vadd.f32 %v2585, %v2730
      %v2732 = vpop.f32.mrf.mxu0
      %v2733 = vadd.f32 %v2590, %v2732
      %2734 = vmatmul.bf16.gmra.mxu0 %v2640
      %v2735 = vpop.f32.mrf.mxu0
      %v2736 = vadd.f32 %v2595, %v2735
      %v2737 = vpop.f32.mrf.mxu0
      %v2738 = vadd.f32 %v2600, %v2737
      %2739 = vmatmul.bf16.gmra.mxu0 %v2643
      %v2740 = vpop.f32.mrf.mxu0
      %v2741 = vadd.f32 %v2605, %v2740
      %v2742 = vpop.f32.mrf.mxu0
      %2743 = vdwg.mxu0
      %2744 = vmatpush.bf16.msra.mxu0 0
      %2745 = vmatpush.bf16.msra.mxu0 0
      %2746 = vmatpush.bf16.msra.mxu0 0
      %2747 = vmatpush.bf16.msra.mxu0 0
      %2748 = vmatpush.bf16.msra.mxu0 %v2552
      %2749 = vmatpush.bf16.msra.mxu0 %v2548
      %2750 = vmatpush.bf16.msra.mxu0 %v2544
      %2751 = vmatpush.bf16.msra.mxu0 %v2540
      %2752 = vmatmul.bf16.gmra.mxu0 %v2631
      %v2753 = vpop.f32.mrf.mxu0
      %v2754 = vadd.f32 %v2565, %v2753
      %v2755 = vpop.f32.mrf.mxu0
      %v2756 = vadd.f32 %v2570, %v2755
      %2757 = vmatmul.bf16.gmra.mxu0 %v2634
      %v2758 = vpop.f32.mrf.mxu0
      %v2759 = vadd.f32 %v2575, %v2758
      %v2760 = vpop.f32.mrf.mxu0
      %v2761 = vadd.f32 %v2580, %v2760
      %2762 = vmatmul.bf16.gmra.mxu0 %v2637
      %v2763 = vpop.f32.mrf.mxu0
      %v2764 = vadd.f32 %v2585, %v2763
      %v2765 = vpop.f32.mrf.mxu0
      %v2766 = vadd.f32 %v2590, %v2765
      %2767 = vmatmul.bf16.gmra.mxu0 %v2640
      %v2768 = vpop.f32.mrf.mxu0
      %v2769 = vadd.f32 %v2595, %v2768
      %v2770 = vpop.f32.mrf.mxu0
      %v2771 = vadd.f32 %v2600, %v2770
      %2772 = vmatmul.bf16.gmra.mxu0 %v2643
      %v2773 = vpop.f32.mrf.mxu0
      %v2774 = vadd.f32 %v2605, %v2773
      %v2775 = vpop.f32.mrf.mxu0
      %2776 = vdwg.mxu0
      %v2777 = vpack.c.bf16 %v2657, %v2655
      %v2778 = vpack.c.bf16 %v2690, %v2688
      %v2779 = vpack.c.bf16 %v2723, %v2721
      %v2780 = vpack.c.bf16 %v2756, %v2754
      %v2781 = vpack.c.bf16 %v2662, %v2660
      %v2782 = vpack.c.bf16 %v2695, %v2693
      %v2783 = vpack.c.bf16 %v2728, %v2726
      %v2784 = vpack.c.bf16 %v2761, %v2759
      %v2785 = vpack.c.bf16 %v2667, %v2665
      %v2786 = vpack.c.bf16 %v2700, %v2698
      %v2787 = vpack.c.bf16 %v2733, %v2731
      %v2788 = vpack.c.bf16 %v2766, %v2764
      %v2789 = vpack.c.bf16 %v2672, %v2670
      %v2790 = vpack.c.bf16 %v2705, %v2703
      %v2791 = vpack.c.bf16 %v2738, %v2736
      %v2792 = vpack.c.bf16 %v2771, %v2769
      %v2793 = vld [vmem:[%s12] sm:$0xf]
      %v2794 = vld [vmem:[%s12 + $0x4] sm:$0xf]
      %v2795 = vld [vmem:[%s12 + $0x8] sm:$0xf]
      %v2796 = vld [vmem:[%s12 + $0xc] sm:$0xf]
      %v2797 = vld [vmem:[%s12 + $0x10] sm:$0xf]
      %v2798 = vld [vmem:[%s12 + $0x14] sm:$0xf]
      %v2799 = vld [vmem:[%s12 + $0x18] sm:$0xf]
      %v2800 = vld [vmem:[%s12 + $0x1c] sm:$0xf]
      %2802 = vset.pattern.permute.xlu0 0
      %2803 = vperm.xlu0 %2802, %v2793
      %v2804 = vpop.permute.xlu0 %2803
      %v2807 = vunpack.c.l.s4 839922192
      %v2808 = vunpack.c.0.s8 %v2807
      %v2809 = vperm.slane %v2804, %v2808
      %2811 = vset.pattern.permute.xlu0 0
      %2812 = vperm.xlu0 %2811, %v2794
      %v2813 = vpop.permute.xlu0 %2812
      %v2816 = vunpack.c.l.s4 839922192
      %v2817 = vunpack.c.0.s8 %v2816
      %v2818 = vperm.slane %v2813, %v2817
      %2820 = vset.pattern.permute.xlu0 0
      %2821 = vperm.xlu0 %2820, %v2795
      %v2822 = vpop.permute.xlu0 %2821
      %v2825 = vunpack.c.l.s4 839922192
      %v2826 = vunpack.c.0.s8 %v2825
      %v2827 = vperm.slane %v2822, %v2826
      %2829 = vset.pattern.permute.xlu0 0
      %2830 = vperm.xlu0 %2829, %v2796
      %v2831 = vpop.permute.xlu0 %2830
      %v2834 = vunpack.c.l.s4 839922192
      %v2835 = vunpack.c.0.s8 %v2834
      %v2836 = vperm.slane %v2831, %v2835
      %2838 = vset.pattern.permute.xlu0 0
      %2839 = vperm.xlu0 %2838, %v2797
      %v2840 = vpop.permute.xlu0 %2839
      %v2843 = vunpack.c.l.s4 839922192
      %v2844 = vunpack.c.0.s8 %v2843
      %v2845 = vperm.slane %v2840, %v2844
      %2847 = vset.pattern.permute.xlu0 0
      %2848 = vperm.xlu0 %2847, %v2798
      %v2849 = vpop.permute.xlu0 %2848
      %v2852 = vunpack.c.l.s4 839922192
      %v2853 = vunpack.c.0.s8 %v2852
      %v2854 = vperm.slane %v2849, %v2853
      %2856 = vset.pattern.permute.xlu0 0
      %2857 = vperm.xlu0 %2856, %v2799
      %v2858 = vpop.permute.xlu0 %2857
      %v2861 = vunpack.c.l.s4 839922192
      %v2862 = vunpack.c.0.s8 %v2861
      %v2863 = vperm.slane %v2858, %v2862
      %2865 = vset.pattern.permute.xlu0 0
      %2866 = vperm.xlu0 %2865, %v2800
      %v2867 = vpop.permute.xlu0 %2866
      %v2870 = vunpack.c.l.s4 839922192
      %v2871 = vunpack.c.0.s8 %v2870
      %v2872 = vperm.slane %v2867, %v2871
      %v2873 = vunpack.c.l.bf16 %v2512
      %v2874 = vunpack.c.h.bf16 %v2512
      %v2875 = vunpack.c.l.bf16 %v2513
      %v2876 = vunpack.c.h.bf16 %v2513
      %v2877 = vunpack.c.l.bf16 %v2514
      %v2878 = vunpack.c.h.bf16 %v2514
      %v2879 = vunpack.c.l.bf16 %v2515
      %v2880 = vunpack.c.h.bf16 %v2515
      %v2881 = vunpack.c.l.bf16 %v2516
      %v2882 = vunpack.c.h.bf16 %v2516
      %v2883 = vunpack.c.l.bf16 %v2517
      %v2884 = vunpack.c.h.bf16 %v2517
      %v2885 = vunpack.c.l.bf16 %v2518
      %v2886 = vunpack.c.h.bf16 %v2518
      %v2887 = vunpack.c.l.bf16 %v2519
      %v2888 = vunpack.c.h.bf16 %v2519
      %v2889 = vunpack.c.l.bf16 %v2520
      %v2890 = vunpack.c.h.bf16 %v2520
      %v2891 = vunpack.c.l.bf16 %v2521
      %v2892 = vunpack.c.h.bf16 %v2521
      %v2893 = vunpack.c.l.bf16 %v2522
      %v2894 = vunpack.c.h.bf16 %v2522
      %v2895 = vunpack.c.l.bf16 %v2523
      %v2896 = vunpack.c.h.bf16 %v2523
      %v2897 = vunpack.c.l.bf16 %v2524
      %v2898 = vunpack.c.h.bf16 %v2524
      %v2899 = vunpack.c.l.bf16 %v2525
      %v2900 = vunpack.c.h.bf16 %v2525
      %v2901 = vunpack.c.l.bf16 %v2526
      %v2902 = vunpack.c.h.bf16 %v2526
      %v2903 = vunpack.c.l.bf16 %v2527
      %v2904 = vunpack.c.h.bf16 %v2527
      %v2905 = vunpack.c.l.bf16 %v2809
      %v2906 = vunpack.c.l.bf16 %v2818
      %v2907 = vunpack.c.l.bf16 %v2827
      %v2908 = vunpack.c.l.bf16 %v2836
      %v2909 = vunpack.c.l.bf16 %v2845
      %v2910 = vunpack.c.l.bf16 %v2854
      %v2911 = vunpack.c.l.bf16 %v2863
      %v2912 = vunpack.c.l.bf16 %v2872
      %v2913 = vmul.f32 %v2873, %v2905
      %v2914 = vmul.f32 %v2874, %v2905
      %v2915 = vmul.f32 %v2875, %v2905
      %v2916 = vmul.f32 %v2876, %v2905
      %v2917 = vmul.f32 %v2877, %v2906
      %v2918 = vmul.f32 %v2878, %v2906
      %v2919 = vmul.f32 %v2879, %v2906
      %v2920 = vmul.f32 %v2880, %v2906
      %v2921 = vmul.f32 %v2881, %v2907
      %v2922 = vmul.f32 %v2882, %v2907
      %v2923 = vmul.f32 %v2883, %v2907
      %v2924 = vmul.f32 %v2884, %v2907
      %v2925 = vmul.f32 %v2885, %v2908
      %v2926 = vmul.f32 %v2886, %v2908
      %v2927 = vmul.f32 %v2887, %v2908
      %v2928 = vmul.f32 %v2888, %v2908
      %v2929 = vmul.f32 %v2889, %v2909
      %v2930 = vmul.f32 %v2890, %v2909
      %v2931 = vmul.f32 %v2891, %v2909
      %v2932 = vmul.f32 %v2892, %v2909
      %v2933 = vmul.f32 %v2893, %v2910
      %v2934 = vmul.f32 %v2894, %v2910
      %v2935 = vmul.f32 %v2895, %v2910
      %v2936 = vmul.f32 %v2896, %v2910
      %v2937 = vmul.f32 %v2897, %v2911
      %v2938 = vmul.f32 %v2898, %v2911
      %v2939 = vmul.f32 %v2899, %v2911
      %v2940 = vmul.f32 %v2900, %v2911
      %v2941 = vmul.f32 %v2901, %v2912
      %v2942 = vmul.f32 %v2902, %v2912
      %v2943 = vmul.f32 %v2903, %v2912
      %v2944 = vmul.f32 %v2904, %v2912
      %v2945 = vpack.c.bf16 %v2917, %v2913
      %v2946 = vpack.c.bf16 %v2918, %v2914
      %v2947 = vpack.c.bf16 %v2919, %v2915
      %v2948 = vpack.c.bf16 %v2920, %v2916
      %v2949 = vpack.c.bf16 %v2925, %v2921
      %v2950 = vpack.c.bf16 %v2926, %v2922
      %v2951 = vpack.c.bf16 %v2927, %v2923
      %v2952 = vpack.c.bf16 %v2928, %v2924
      %v2953 = vpack.c.bf16 %v2933, %v2929
      %v2954 = vpack.c.bf16 %v2934, %v2930
      %v2955 = vpack.c.bf16 %v2935, %v2931
      %v2956 = vpack.c.bf16 %v2936, %v2932
      %v2957 = vpack.c.bf16 %v2941, %v2937
      %v2958 = vpack.c.bf16 %v2942, %v2938
      %v2959 = vpack.c.bf16 %v2943, %v2939
      %v2960 = vpack.c.bf16 %v2944, %v2940
      %v2961 = vld [vmem:[%s11] sm:$0xf]
      %v2962 = vld [vmem:[%s11 + $0x4] sm:$0xf]
      %v2963 = vld [vmem:[%s11 + $0x8] sm:$0xf]
      %v2964 = vld [vmem:[%s11 + $0xc] sm:$0xf]
      %v2965 = vld [vmem:[%s11 + $0x10] sm:$0xf]
      %v2966 = vld [vmem:[%s11 + $0x14] sm:$0xf]
      %v2967 = vld [vmem:[%s11 + $0x18] sm:$0xf]
      %v2968 = vld [vmem:[%s11 + $0x1c] sm:$0xf]
      %v2977 = vunpack.c.l.b16 %v2961
      %v2978 = vunpack.c.l.b16 %v2962
      %v2979 = vunpack.c.l.b16 %v2963
      %v2980 = vunpack.c.l.b16 %v2964
      %v2981 = vunpack.c.l.b16 %v2965
      %v2982 = vunpack.c.l.b16 %v2966
      %v2983 = vunpack.c.l.b16 %v2967
      %v2984 = vunpack.c.l.b16 %v2968
      %v2985 = vpack.c.b16 %v2978, %v2977
      %v2986 = vpack.c.b16 %v2980, %v2979
      %v2987 = vpack.c.b16 %v2982, %v2981
      %v2988 = vpack.c.b16 %v2984, %v2983
      %v2990 = vsel %vm1379, %v2985, 0
      %v2993 = vsel %vm1379, %v2986, 0
      %v2996 = vsel %vm1379, %v2987, 0
      %v2999 = vsel %vm1379, %v2988, 0
      %3001 = vmatpush.bf16.msra.mxu0 0
      %3002 = vmatpush.bf16.msra.mxu0 0
      %3003 = vmatpush.bf16.msra.mxu0 0
      %3004 = vmatpush.bf16.msra.mxu0 0
      %3005 = vmatpush.bf16.msra.mxu0 %v2957
      %3006 = vmatpush.bf16.msra.mxu0 %v2953
      %3007 = vmatpush.bf16.msra.mxu0 %v2949
      %3008 = vmatpush.bf16.msra.mxu0 %v2945
      %3009 = vmatmul.bf16.gmra.mxu0 %v2990
      %v3010 = vpop.f32.mrf.mxu0
      %v3011 = vadd.f32 0.0, %v3010
      %v3012 = vpop.f32.mrf.mxu0
      %v3013 = vadd.f32 0.0, %v3012
      %3014 = vmatmul.bf16.gmra.mxu0 %v2993
      %v3015 = vpop.f32.mrf.mxu0
      %v3016 = vadd.f32 0.0, %v3015
      %v3017 = vpop.f32.mrf.mxu0
      %v3018 = vadd.f32 0.0, %v3017
      %3019 = vmatmul.bf16.gmra.mxu0 %v2996
      %v3020 = vpop.f32.mrf.mxu0
      %v3021 = vadd.f32 0.0, %v3020
      %v3022 = vpop.f32.mrf.mxu0
      %v3023 = vadd.f32 0.0, %v3022
      %3024 = vmatmul.bf16.gmra.mxu0 %v2999
      %v3025 = vpop.f32.mrf.mxu0
      %v3026 = vadd.f32 0.0, %v3025
      %v3027 = vpop.f32.mrf.mxu0
      %v3028 = vadd.f32 0.0, %v3027
      %3029 = vdwg.mxu0
      %3030 = vmatpush.bf16.msra.mxu0 0
      %3031 = vmatpush.bf16.msra.mxu0 0
      %3032 = vmatpush.bf16.msra.mxu0 0
      %3033 = vmatpush.bf16.msra.mxu0 0
      %3034 = vmatpush.bf16.msra.mxu0 %v2958
      %3035 = vmatpush.bf16.msra.mxu0 %v2954
      %3036 = vmatpush.bf16.msra.mxu0 %v2950
      %3037 = vmatpush.bf16.msra.mxu0 %v2946
      %3038 = vmatmul.bf16.gmra.mxu0 %v2990
      %v3039 = vpop.f32.mrf.mxu0
      %v3040 = vadd.f32 0.0, %v3039
      %v3041 = vpop.f32.mrf.mxu0
      %v3042 = vadd.f32 0.0, %v3041
      %3043 = vmatmul.bf16.gmra.mxu0 %v2993
      %v3044 = vpop.f32.mrf.mxu0
      %v3045 = vadd.f32 0.0, %v3044
      %v3046 = vpop.f32.mrf.mxu0
      %v3047 = vadd.f32 0.0, %v3046
      %3048 = vmatmul.bf16.gmra.mxu0 %v2996
      %v3049 = vpop.f32.mrf.mxu0
      %v3050 = vadd.f32 0.0, %v3049
      %v3051 = vpop.f32.mrf.mxu0
      %v3052 = vadd.f32 0.0, %v3051
      %3053 = vmatmul.bf16.gmra.mxu0 %v2999
      %v3054 = vpop.f32.mrf.mxu0
      %v3055 = vadd.f32 0.0, %v3054
      %v3056 = vpop.f32.mrf.mxu0
      %v3057 = vadd.f32 0.0, %v3056
      %3058 = vdwg.mxu0
      %3059 = vmatpush.bf16.msra.mxu0 0
      %3060 = vmatpush.bf16.msra.mxu0 0
      %3061 = vmatpush.bf16.msra.mxu0 0
      %3062 = vmatpush.bf16.msra.mxu0 0
      %3063 = vmatpush.bf16.msra.mxu0 %v2959
      %3064 = vmatpush.bf16.msra.mxu0 %v2955
      %3065 = vmatpush.bf16.msra.mxu0 %v2951
      %3066 = vmatpush.bf16.msra.mxu0 %v2947
      %3067 = vmatmul.bf16.gmra.mxu0 %v2990
      %v3068 = vpop.f32.mrf.mxu0
      %v3069 = vadd.f32 0.0, %v3068
      %v3070 = vpop.f32.mrf.mxu0
      %v3071 = vadd.f32 0.0, %v3070
      %3072 = vmatmul.bf16.gmra.mxu0 %v2993
      %v3073 = vpop.f32.mrf.mxu0
      %v3074 = vadd.f32 0.0, %v3073
      %v3075 = vpop.f32.mrf.mxu0
      %v3076 = vadd.f32 0.0, %v3075
      %3077 = vmatmul.bf16.gmra.mxu0 %v2996
      %v3078 = vpop.f32.mrf.mxu0
      %v3079 = vadd.f32 0.0, %v3078
      %v3080 = vpop.f32.mrf.mxu0
      %v3081 = vadd.f32 0.0, %v3080
      %3082 = vmatmul.bf16.gmra.mxu0 %v2999
      %v3083 = vpop.f32.mrf.mxu0
      %v3084 = vadd.f32 0.0, %v3083
      %v3085 = vpop.f32.mrf.mxu0
      %v3086 = vadd.f32 0.0, %v3085
      %3087 = vdwg.mxu0
      %3088 = vmatpush.bf16.msra.mxu0 0
      %3089 = vmatpush.bf16.msra.mxu0 0
      %3090 = vmatpush.bf16.msra.mxu0 0
      %3091 = vmatpush.bf16.msra.mxu0 0
      %3092 = vmatpush.bf16.msra.mxu0 %v2960
      %3093 = vmatpush.bf16.msra.mxu0 %v2956
      %3094 = vmatpush.bf16.msra.mxu0 %v2952
      %3095 = vmatpush.bf16.msra.mxu0 %v2948
      %3096 = vmatmul.bf16.gmra.mxu0 %v2990
      %v3097 = vpop.f32.mrf.mxu0
      %v3098 = vadd.f32 0.0, %v3097
      %v3099 = vpop.f32.mrf.mxu0
      %v3100 = vadd.f32 0.0, %v3099
      %3101 = vmatmul.bf16.gmra.mxu0 %v2993
      %v3102 = vpop.f32.mrf.mxu0
      %v3103 = vadd.f32 0.0, %v3102
      %v3104 = vpop.f32.mrf.mxu0
      %v3105 = vadd.f32 0.0, %v3104
      %3106 = vmatmul.bf16.gmra.mxu0 %v2996
      %v3107 = vpop.f32.mrf.mxu0
      %v3108 = vadd.f32 0.0, %v3107
      %v3109 = vpop.f32.mrf.mxu0
      %v3110 = vadd.f32 0.0, %v3109
      %3111 = vmatmul.bf16.gmra.mxu0 %v2999
      %v3112 = vpop.f32.mrf.mxu0
      %v3113 = vadd.f32 0.0, %v3112
      %v3114 = vpop.f32.mrf.mxu0
      %v3115 = vadd.f32 0.0, %v3114
      %3116 = vdwg.mxu0
      %v3117 = vunpack.c.l.bf16 %v1892
      %v3118 = vunpack.c.h.bf16 %v1892
      %v3119 = vunpack.c.l.bf16 %v1893
      %v3120 = vunpack.c.h.bf16 %v1893
      %v3121 = vunpack.c.l.bf16 %v1894
      %v3122 = vunpack.c.h.bf16 %v1894
      %v3123 = vunpack.c.l.bf16 %v1895
      %v3124 = vunpack.c.h.bf16 %v1895
      %v3125 = vunpack.c.l.bf16 %v1896
      %v3126 = vunpack.c.h.bf16 %v1896
      %v3127 = vunpack.c.l.bf16 %v1897
      %v3128 = vunpack.c.h.bf16 %v1897
      %v3129 = vunpack.c.l.bf16 %v1898
      %v3130 = vunpack.c.h.bf16 %v1898
      %v3131 = vunpack.c.l.bf16 %v1899
      %v3132 = vunpack.c.h.bf16 %v1899
      %v3133 = vunpack.c.l.bf16 %v1900
      %v3134 = vunpack.c.h.bf16 %v1900
      %v3135 = vunpack.c.l.bf16 %v1901
      %v3136 = vunpack.c.h.bf16 %v1901
      %v3137 = vunpack.c.l.bf16 %v1902
      %v3138 = vunpack.c.h.bf16 %v1902
      %v3139 = vunpack.c.l.bf16 %v1903
      %v3140 = vunpack.c.h.bf16 %v1903
      %v3141 = vunpack.c.l.bf16 %v1904
      %v3142 = vunpack.c.h.bf16 %v1904
      %v3143 = vunpack.c.l.bf16 %v1905
      %v3144 = vunpack.c.h.bf16 %v1905
      %v3145 = vunpack.c.l.bf16 %v1906
      %v3146 = vunpack.c.h.bf16 %v1906
      %v3147 = vunpack.c.l.bf16 %v1907
      %v3148 = vunpack.c.h.bf16 %v1907
      %v3149 = vmul.f32 %v3117, %v3011
      %v3150 = vmul.f32 %v3118, %v3040
      %v3151 = vmul.f32 %v3119, %v3069
      %v3152 = vmul.f32 %v3120, %v3098
      %v3153 = vmul.f32 %v3121, %v3013
      %v3154 = vmul.f32 %v3122, %v3042
      %v3155 = vmul.f32 %v3123, %v3071
      %v3156 = vmul.f32 %v3124, %v3100
      %v3157 = vmul.f32 %v3125, %v3016
      %v3158 = vmul.f32 %v3126, %v3045
      %v3159 = vmul.f32 %v3127, %v3074
      %v3160 = vmul.f32 %v3128, %v3103
      %v3161 = vmul.f32 %v3129, %v3018
      %v3162 = vmul.f32 %v3130, %v3047
      %v3163 = vmul.f32 %v3131, %v3076
      %v3164 = vmul.f32 %v3132, %v3105
      %v3165 = vmul.f32 %v3133, %v3021
      %v3166 = vmul.f32 %v3134, %v3050
      %v3167 = vmul.f32 %v3135, %v3079
      %v3168 = vmul.f32 %v3136, %v3108
      %v3169 = vmul.f32 %v3137, %v3023
      %v3170 = vmul.f32 %v3138, %v3052
      %v3171 = vmul.f32 %v3139, %v3081
      %v3172 = vmul.f32 %v3140, %v3110
      %v3173 = vmul.f32 %v3141, %v3026
      %v3174 = vmul.f32 %v3142, %v3055
      %v3175 = vmul.f32 %v3143, %v3084
      %v3176 = vmul.f32 %v3144, %v3113
      %v3177 = vmul.f32 %v3145, %v3028
      %v3178 = vmul.f32 %v3146, %v3057
      %v3179 = vmul.f32 %v3147, %v3086
      %v3180 = vmul.f32 %v3148, %v3115
      %v3181 = vld [vmem:[%s10] sm:$0xf]
      %v3182 = vld [vmem:[%s10 + $0x4] sm:$0xf]
      %v3183 = vld [vmem:[%s10 + $0x8] sm:$0xf]
      %v3184 = vld [vmem:[%s10 + $0xc] sm:$0xf]
      %v3185 = vld [vmem:[%s10 + $0x10] sm:$0xf]
      %v3186 = vld [vmem:[%s10 + $0x14] sm:$0xf]
      %v3187 = vld [vmem:[%s10 + $0x18] sm:$0xf]
      %v3188 = vld [vmem:[%s10 + $0x1c] sm:$0xf]
      %v3189 = vpack.c.bf16 %v3153, %v3149
      %v3190 = vpack.c.bf16 %v3154, %v3150
      %v3191 = vpack.c.bf16 %v3155, %v3151
      %v3192 = vpack.c.bf16 %v3156, %v3152
      %v3193 = vpack.c.bf16 %v3161, %v3157
      %v3194 = vpack.c.bf16 %v3162, %v3158
      %v3195 = vpack.c.bf16 %v3163, %v3159
      %v3196 = vpack.c.bf16 %v3164, %v3160
      %v3197 = vpack.c.bf16 %v3169, %v3165
      %v3198 = vpack.c.bf16 %v3170, %v3166
      %v3199 = vpack.c.bf16 %v3171, %v3167
      %v3200 = vpack.c.bf16 %v3172, %v3168
      %v3201 = vpack.c.bf16 %v3177, %v3173
      %v3202 = vpack.c.bf16 %v3178, %v3174
      %v3203 = vpack.c.bf16 %v3179, %v3175
      %v3204 = vpack.c.bf16 %v3180, %v3176
      %v3213 = vunpack.c.l.b16 %v3181
      %v3214 = vunpack.c.l.b16 %v3182
      %v3215 = vunpack.c.l.b16 %v3183
      %v3216 = vunpack.c.l.b16 %v3184
      %v3217 = vunpack.c.l.b16 %v3185
      %v3218 = vunpack.c.l.b16 %v3186
      %v3219 = vunpack.c.l.b16 %v3187
      %v3220 = vunpack.c.l.b16 %v3188
      %v3221 = vpack.c.b16 %v3214, %v3213
      %v3222 = vpack.c.b16 %v3216, %v3215
      %v3223 = vpack.c.b16 %v3218, %v3217
      %v3224 = vpack.c.b16 %v3220, %v3219
      %v3226 = vsel %vm1379, %v3221, 0
      %v3229 = vsel %vm1379, %v3222, 0
      %v3232 = vsel %vm1379, %v3223, 0
      %v3235 = vsel %vm1379, %v3224, 0
      %3237 = vmatpush.bf16.msra.mxu0 0
      %3238 = vmatpush.bf16.msra.mxu0 0
      %3239 = vmatpush.bf16.msra.mxu0 0
      %3240 = vmatpush.bf16.msra.mxu0 0
      %3241 = vmatpush.bf16.msra.mxu0 %v3201
      %3242 = vmatpush.bf16.msra.mxu0 %v3197
      %3243 = vmatpush.bf16.msra.mxu0 %v3193
      %3244 = vmatpush.bf16.msra.mxu0 %v3189
      %3245 = vmatmul.bf16.gmra.mxu0 %v3226
      %v3246 = vpop.f32.mrf.mxu0
      %v3247 = vadd.f32 0.0, %v3246
      %v3248 = vpop.f32.mrf.mxu0
      %v3249 = vadd.f32 0.0, %v3248
      %3250 = vmatmul.bf16.gmra.mxu0 %v3229
      %v3251 = vpop.f32.mrf.mxu0
      %v3252 = vadd.f32 0.0, %v3251
      %v3253 = vpop.f32.mrf.mxu0
      %v3254 = vadd.f32 0.0, %v3253
      %3255 = vmatmul.bf16.gmra.mxu0 %v3232
      %v3256 = vpop.f32.mrf.mxu0
      %v3257 = vadd.f32 0.0, %v3256
      %v3258 = vpop.f32.mrf.mxu0
      %v3259 = vadd.f32 0.0, %v3258
      %3260 = vmatmul.bf16.gmra.mxu0 %v3235
      %v3261 = vpop.f32.mrf.mxu0
      %v3262 = vadd.f32 0.0, %v3261
      %v3263 = vpop.f32.mrf.mxu0
      %v3264 = vadd.f32 0.0, %v3263
      %3265 = vdwg.mxu0
      %3266 = vmatpush.bf16.msra.mxu0 0
      %3267 = vmatpush.bf16.msra.mxu0 0
      %3268 = vmatpush.bf16.msra.mxu0 0
      %3269 = vmatpush.bf16.msra.mxu0 0
      %3270 = vmatpush.bf16.msra.mxu0 %v3202
      %3271 = vmatpush.bf16.msra.mxu0 %v3198
      %3272 = vmatpush.bf16.msra.mxu0 %v3194
      %3273 = vmatpush.bf16.msra.mxu0 %v3190
      %3274 = vmatmul.bf16.gmra.mxu0 %v3226
      %v3275 = vpop.f32.mrf.mxu0
      %v3276 = vadd.f32 0.0, %v3275
      %v3277 = vpop.f32.mrf.mxu0
      %v3278 = vadd.f32 0.0, %v3277
      %3279 = vmatmul.bf16.gmra.mxu0 %v3229
      %v3280 = vpop.f32.mrf.mxu0
      %v3281 = vadd.f32 0.0, %v3280
      %v3282 = vpop.f32.mrf.mxu0
      %v3283 = vadd.f32 0.0, %v3282
      %3284 = vmatmul.bf16.gmra.mxu0 %v3232
      %v3285 = vpop.f32.mrf.mxu0
      %v3286 = vadd.f32 0.0, %v3285
      %v3287 = vpop.f32.mrf.mxu0
      %v3288 = vadd.f32 0.0, %v3287
      %3289 = vmatmul.bf16.gmra.mxu0 %v3235
      %v3290 = vpop.f32.mrf.mxu0
      %v3291 = vadd.f32 0.0, %v3290
      %v3292 = vpop.f32.mrf.mxu0
      %v3293 = vadd.f32 0.0, %v3292
      %3294 = vdwg.mxu0
      %3295 = vmatpush.bf16.msra.mxu0 0
      %3296 = vmatpush.bf16.msra.mxu0 0
      %3297 = vmatpush.bf16.msra.mxu0 0
      %3298 = vmatpush.bf16.msra.mxu0 0
      %3299 = vmatpush.bf16.msra.mxu0 %v3203
      %3300 = vmatpush.bf16.msra.mxu0 %v3199
      %3301 = vmatpush.bf16.msra.mxu0 %v3195
      %3302 = vmatpush.bf16.msra.mxu0 %v3191
      %3303 = vmatmul.bf16.gmra.mxu0 %v3226
      %v3304 = vpop.f32.mrf.mxu0
      %v3305 = vadd.f32 0.0, %v3304
      %v3306 = vpop.f32.mrf.mxu0
      %v3307 = vadd.f32 0.0, %v3306
      %3308 = vmatmul.bf16.gmra.mxu0 %v3229
      %v3309 = vpop.f32.mrf.mxu0
      %v3310 = vadd.f32 0.0, %v3309
      %v3311 = vpop.f32.mrf.mxu0
      %v3312 = vadd.f32 0.0, %v3311
      %3313 = vmatmul.bf16.gmra.mxu0 %v3232
      %v3314 = vpop.f32.mrf.mxu0
      %v3315 = vadd.f32 0.0, %v3314
      %v3316 = vpop.f32.mrf.mxu0
      %v3317 = vadd.f32 0.0, %v3316
      %3318 = vmatmul.bf16.gmra.mxu0 %v3235
      %v3319 = vpop.f32.mrf.mxu0
      %v3320 = vadd.f32 0.0, %v3319
      %v3321 = vpop.f32.mrf.mxu0
      %v3322 = vadd.f32 0.0, %v3321
      %3323 = vdwg.mxu0
      %3324 = vmatpush.bf16.msra.mxu0 0
      %3325 = vmatpush.bf16.msra.mxu0 0
      %3326 = vmatpush.bf16.msra.mxu0 0
      %3327 = vmatpush.bf16.msra.mxu0 0
      %3328 = vmatpush.bf16.msra.mxu0 %v3204
      %3329 = vmatpush.bf16.msra.mxu0 %v3200
      %3330 = vmatpush.bf16.msra.mxu0 %v3196
      %3331 = vmatpush.bf16.msra.mxu0 %v3192
      %3332 = vmatmul.bf16.gmra.mxu0 %v3226
      %v3333 = vpop.f32.mrf.mxu0
      %v3334 = vadd.f32 0.0, %v3333
      %v3335 = vpop.f32.mrf.mxu0
      %v3336 = vadd.f32 0.0, %v3335
      %3337 = vmatmul.bf16.gmra.mxu0 %v3229
      %v3338 = vpop.f32.mrf.mxu0
      %v3339 = vadd.f32 0.0, %v3338
      %v3340 = vpop.f32.mrf.mxu0
      %v3341 = vadd.f32 0.0, %v3340
      %3342 = vmatmul.bf16.gmra.mxu0 %v3232
      %v3343 = vpop.f32.mrf.mxu0
      %v3344 = vadd.f32 0.0, %v3343
      %v3345 = vpop.f32.mrf.mxu0
      %v3346 = vadd.f32 0.0, %v3345
      %3347 = vmatmul.bf16.gmra.mxu0 %v3235
      %v3348 = vpop.f32.mrf.mxu0
      %v3349 = vadd.f32 0.0, %v3348
      %v3350 = vpop.f32.mrf.mxu0
      %v3351 = vadd.f32 0.0, %v3350
      %3352 = vdwg.mxu0
      %v3353 = vunpack.c.l.bf16 %v1271
      %v3354 = vunpack.c.h.bf16 %v1271
      %v3355 = vunpack.c.l.bf16 %v1272
      %v3356 = vunpack.c.h.bf16 %v1272
      %v3357 = vunpack.c.l.bf16 %v1273
      %v3358 = vunpack.c.h.bf16 %v1273
      %v3359 = vunpack.c.l.bf16 %v1274
      %v3360 = vunpack.c.h.bf16 %v1274
      %v3361 = vunpack.c.l.bf16 %v1275
      %v3362 = vunpack.c.h.bf16 %v1275
      %v3363 = vunpack.c.l.bf16 %v1276
      %v3364 = vunpack.c.h.bf16 %v1276
      %v3365 = vunpack.c.l.bf16 %v1277
      %v3366 = vunpack.c.h.bf16 %v1277
      %v3367 = vunpack.c.l.bf16 %v1278
      %v3368 = vunpack.c.h.bf16 %v1278
      %v3369 = vunpack.c.l.bf16 %v1279
      %v3370 = vunpack.c.h.bf16 %v1279
      %v3371 = vunpack.c.l.bf16 %v1280
      %v3372 = vunpack.c.h.bf16 %v1280
      %v3373 = vunpack.c.l.bf16 %v1281
      %v3374 = vunpack.c.h.bf16 %v1281
      %v3375 = vunpack.c.l.bf16 %v1282
      %v3376 = vunpack.c.h.bf16 %v1282
      %v3377 = vunpack.c.l.bf16 %v1283
      %v3378 = vunpack.c.h.bf16 %v1283
      %v3379 = vunpack.c.l.bf16 %v1284
      %v3380 = vunpack.c.h.bf16 %v1284
      %v3381 = vunpack.c.l.bf16 %v1285
      %v3382 = vunpack.c.h.bf16 %v1285
      %v3383 = vunpack.c.l.bf16 %v1286
      %v3384 = vunpack.c.h.bf16 %v1286
      %v3385 = vmul.f32 %v3353, %v3247
      %v3386 = vmul.f32 %v3354, %v3276
      %v3387 = vmul.f32 %v3355, %v3305
      %v3388 = vmul.f32 %v3356, %v3334
      %v3389 = vmul.f32 %v3357, %v3249
      %v3390 = vmul.f32 %v3358, %v3278
      %v3391 = vmul.f32 %v3359, %v3307
      %v3392 = vmul.f32 %v3360, %v3336
      %v3393 = vmul.f32 %v3361, %v3252
      %v3394 = vmul.f32 %v3362, %v3281
      %v3395 = vmul.f32 %v3363, %v3310
      %v3396 = vmul.f32 %v3364, %v3339
      %v3397 = vmul.f32 %v3365, %v3254
      %v3398 = vmul.f32 %v3366, %v3283
      %v3399 = vmul.f32 %v3367, %v3312
      %v3400 = vmul.f32 %v3368, %v3341
      %v3401 = vmul.f32 %v3369, %v3257
      %v3402 = vmul.f32 %v3370, %v3286
      %v3403 = vmul.f32 %v3371, %v3315
      %v3404 = vmul.f32 %v3372, %v3344
      %v3405 = vmul.f32 %v3373, %v3259
      %v3406 = vmul.f32 %v3374, %v3288
      %v3407 = vmul.f32 %v3375, %v3317
      %v3408 = vmul.f32 %v3376, %v3346
      %v3409 = vmul.f32 %v3377, %v3262
      %v3410 = vmul.f32 %v3378, %v3291
      %v3411 = vmul.f32 %v3379, %v3320
      %v3412 = vmul.f32 %v3380, %v3349
      %v3413 = vmul.f32 %v3381, %v3264
      %v3414 = vmul.f32 %v3382, %v3293
      %v3415 = vmul.f32 %v3383, %v3322
      %v3416 = vmul.f32 %v3384, %v3351
      %v3417 = vld [vmem:[%s9] sm:$0x3]
      %v3418 = vpack.c.bf16 %v3389, %v3385
      %v3419 = vpack.c.bf16 %v3390, %v3386
      %v3420 = vpack.c.bf16 %v3391, %v3387
      %v3421 = vpack.c.bf16 %v3392, %v3388
      %v3422 = vpack.c.bf16 %v3397, %v3393
      %v3423 = vpack.c.bf16 %v3398, %v3394
      %v3424 = vpack.c.bf16 %v3399, %v3395
      %v3425 = vpack.c.bf16 %v3400, %v3396
      %v3426 = vpack.c.bf16 %v3405, %v3401
      %v3427 = vpack.c.bf16 %v3406, %v3402
      %v3428 = vpack.c.bf16 %v3407, %v3403
      %v3429 = vpack.c.bf16 %v3408, %v3404
      %v3430 = vpack.c.bf16 %v3413, %v3409
      %v3431 = vpack.c.bf16 %v3414, %v3410
      %v3432 = vpack.c.bf16 %v3415, %v3411
      %v3433 = vpack.c.bf16 %v3416, %v3412
      %v3435 = vsel %vm1379, %v3417, 0
      %3437 = vmatpush.bf16.msra.mxu0 0
      %3438 = vmatpush.bf16.msra.mxu0 0
      %3439 = vmatpush.bf16.msra.mxu0 0
      %3440 = vmatpush.bf16.msra.mxu0 0
      %3441 = vmatpush.bf16.msra.mxu0 %v3430
      %3442 = vmatpush.bf16.msra.mxu0 %v3426
      %3443 = vmatpush.bf16.msra.mxu0 %v3422
      %3444 = vmatpush.bf16.msra.mxu0 %v3418
      %3445 = vmatmul.bf16.gmra.mxu0 %v3435
      %v3446 = vpop.f32.mrf.mxu0
      %v3447 = vadd.f32 0.0, %v3446
      %v3448 = vpop.f32.mrf.mxu0
      %3449 = vdwg.mxu0
      %3450 = vmatpush.bf16.msra.mxu0 0
      %3451 = vmatpush.bf16.msra.mxu0 0
      %3452 = vmatpush.bf16.msra.mxu0 0
      %3453 = vmatpush.bf16.msra.mxu0 0
      %3454 = vmatpush.bf16.msra.mxu0 %v3431
      %3455 = vmatpush.bf16.msra.mxu0 %v3427
      %3456 = vmatpush.bf16.msra.mxu0 %v3423
      %3457 = vmatpush.bf16.msra.mxu0 %v3419
      %3458 = vmatmul.bf16.gmra.mxu0 %v3435
      %v3459 = vpop.f32.mrf.mxu0
      %v3460 = vadd.f32 0.0, %v3459
      %v3461 = vpop.f32.mrf.mxu0
      %3462 = vdwg.mxu0
      %3463 = vmatpush.bf16.msra.mxu0 0
      %3464 = vmatpush.bf16.msra.mxu0 0
      %3465 = vmatpush.bf16.msra.mxu0 0
      %3466 = vmatpush.bf16.msra.mxu0 0
      %3467 = vmatpush.bf16.msra.mxu0 %v3432
      %3468 = vmatpush.bf16.msra.mxu0 %v3428
      %3469 = vmatpush.bf16.msra.mxu0 %v3424
      %3470 = vmatpush.bf16.msra.mxu0 %v3420
      %3471 = vmatmul.bf16.gmra.mxu0 %v3435
      %v3472 = vpop.f32.mrf.mxu0
      %v3473 = vadd.f32 0.0, %v3472
      %v3474 = vpop.f32.mrf.mxu0
      %3475 = vdwg.mxu0
      %3476 = vmatpush.bf16.msra.mxu0 0
      %3477 = vmatpush.bf16.msra.mxu0 0
      %3478 = vmatpush.bf16.msra.mxu0 0
      %3479 = vmatpush.bf16.msra.mxu0 0
      %3480 = vmatpush.bf16.msra.mxu0 %v3433
      %3481 = vmatpush.bf16.msra.mxu0 %v3429
      %3482 = vmatpush.bf16.msra.mxu0 %v3425
      %3483 = vmatpush.bf16.msra.mxu0 %v3421
      %3484 = vmatmul.bf16.gmra.mxu0 %v3435
      %v3485 = vpop.f32.mrf.mxu0
      %v3486 = vadd.f32 0.0, %v3485
      %v3487 = vpop.f32.mrf.mxu0
      %3488 = vdwg.mxu0
      %v3489 = vmul.f32 %v661, %v661
      %v3490 = vmul.f32 %v662, %v662
      %v3491 = vmul.f32 %v663, %v663
      %v3492 = vmul.f32 %v664, %v664
      %vm3493 = vcmask 1042432
      %v3494 = vsel %vm3493, %v3489, 0.0
      %v3495 = vrot.slane %v3494, 4
      %v3496 = vadd.f32 %v3494, %v3495
      %v3497 = vrot.slane %v3496, 2
      %v3498 = vadd.f32 %v3496, %v3497
      %v3499 = vrot.slane %v3498, 1
      %v3500 = vadd.f32 %v3498, %v3499
      %v3501 = vsel %vm3493, %v3490, 0.0
      %v3502 = vrot.slane %v3501, 4
      %v3503 = vadd.f32 %v3501, %v3502
      %v3504 = vrot.slane %v3503, 2
      %v3505 = vadd.f32 %v3503, %v3504
      %v3506 = vrot.slane %v3505, 1
      %v3507 = vadd.f32 %v3505, %v3506
      %v3508 = vsel %vm3493, %v3491, 0.0
      %v3509 = vrot.slane %v3508, 4
      %v3510 = vadd.f32 %v3508, %v3509
      %v3511 = vrot.slane %v3510, 2
      %v3512 = vadd.f32 %v3510, %v3511
      %v3513 = vrot.slane %v3512, 1
      %v3514 = vadd.f32 %v3512, %v3513
      %v3515 = vsel %vm3493, %v3492, 0.0
      %v3516 = vrot.slane %v3515, 4
      %v3517 = vadd.f32 %v3515, %v3516
      %v3518 = vrot.slane %v3517, 2
      %v3519 = vadd.f32 %v3517, %v3518
      %v3520 = vrot.slane %v3519, 1
      %v3521 = vadd.f32 %v3519, %v3520
      %v3522 = vrsqrt.pop %v3500
      %v3523 = vmul.f32 %v3522, %v3500
      %v3524 = vmul.f32 %v3523, %v3522
      %v3525 = vmul.f32 0.5, %v3524
      %v3526 = vsub.f32 1.5, %v3525
      %v3527 = vmul.f32 %v3522, %v3526
      %v3528 = vmul.f32 %v3500, %v3527
      %vm3529 = vcmp.eq.f32.partialorder %v3500, inf
      %v3530 = vsel %vm3529, %v3500, %v3528
      %vm3531 = vcmp.eq.f32.partialorder %v3500, 0.0
      %v3532 = vand.u32 %v3500, 2147483648
      %v3533 = vsel %vm3531, %v3532, %v3530
      %v3534 = vrsqrt.pop %v3507
      %v3535 = vmul.f32 %v3534, %v3507
      %v3536 = vmul.f32 %v3535, %v3534
      %v3537 = vmul.f32 0.5, %v3536
      %v3538 = vsub.f32 1.5, %v3537
      %v3539 = vmul.f32 %v3534, %v3538
      %v3540 = vmul.f32 %v3507, %v3539
      %vm3541 = vcmp.eq.f32.partialorder %v3507, inf
      %v3542 = vsel %vm3541, %v3507, %v3540
      %vm3543 = vcmp.eq.f32.partialorder %v3507, 0.0
      %v3544 = vand.u32 %v3507, 2147483648
      %v3545 = vsel %vm3543, %v3544, %v3542
      %v3546 = vrsqrt.pop %v3514
      %v3547 = vmul.f32 %v3546, %v3514
      %v3548 = vmul.f32 %v3547, %v3546
      %v3549 = vmul.f32 0.5, %v3548
      %v3550 = vsub.f32 1.5, %v3549
      %v3551 = vmul.f32 %v3546, %v3550
      %v3552 = vmul.f32 %v3514, %v3551
      %vm3553 = vcmp.eq.f32.partialorder %v3514, inf
      %v3554 = vsel %vm3553, %v3514, %v3552
      %vm3555 = vcmp.eq.f32.partialorder %v3514, 0.0
      %v3556 = vand.u32 %v3514, 2147483648
      %v3557 = vsel %vm3555, %v3556, %v3554
      %v3558 = vrsqrt.pop %v3521
      %v3559 = vmul.f32 %v3558, %v3521
      %v3560 = vmul.f32 %v3559, %v3558
      %v3561 = vmul.f32 0.5, %v3560
      %v3562 = vsub.f32 1.5, %v3561
      %v3563 = vmul.f32 %v3558, %v3562
      %v3564 = vmul.f32 %v3521, %v3563
      %vm3565 = vcmp.eq.f32.partialorder %v3521, inf
      %v3566 = vsel %vm3565, %v3521, %v3564
      %vm3567 = vcmp.eq.f32.partialorder %v3521, 0.0
      %v3568 = vand.u32 %v3521, 2147483648
      %v3569 = vsel %vm3567, %v3568, %v3566
      %v3570 = vsub.f32 3.0, %v3533
      %v3571 = vsub.f32 3.0, %v3545
      %v3572 = vsub.f32 3.0, %v3557
      %v3573 = vsub.f32 3.0, %v3569
      %vm3574 = vcmp.lt.f32.partialorder %v3570, %v2675
      %vm3575 = vcmp.lt.f32.partialorder %v3571, %v2708
      %vm3576 = vcmp.lt.f32.partialorder %v3572, %v2741
      %vm3577 = vcmp.lt.f32.partialorder %v3573, %v2774
      %v3578 = vsel %vm3574, %v3570, %v2675
      %v3579 = vsel %vm3575, %v3571, %v2708
      %v3580 = vsel %vm3576, %v3572, %v2741
      %v3581 = vsel %vm3577, %v3573, %v2774
      %v3582 = vld [vmem:[%s13] sm:$0xf]
      %v3583 = vld [vmem:[%s13 + $0x4] sm:$0xf]
      %v3584 = vld [vmem:[%s13 + $0x8] sm:$0xf]
      %v3585 = vld [vmem:[%s13 + $0xc] sm:$0xf]
      %v3586 = vld [vmem:[%s13 + $0x10] sm:$0xf]
      %v3587 = vld [vmem:[%s13 + $0x14] sm:$0xf]
      %v3588 = vld [vmem:[%s13 + $0x18] sm:$0xf]
      %v3589 = vld [vmem:[%s13 + $0x1c] sm:$0xf]
      %v3590 = vld [vmem:[%s14] sm:$0xf]
      %v3591 = vld [vmem:[%s14 + $0x4] sm:$0xf]
      %v3592 = vld [vmem:[%s14 + $0x8] sm:$0xf]
      %v3593 = vld [vmem:[%s14 + $0xc] sm:$0xf]
      %v3594 = vld [vmem:[%s14 + $0x10] sm:$0xf]
      %v3595 = vld [vmem:[%s14 + $0x14] sm:$0xf]
      %v3596 = vld [vmem:[%s14 + $0x18] sm:$0xf]
      %v3597 = vld [vmem:[%s14 + $0x1c] sm:$0xf]
      %v3598 = vpack.c.bf16 %v3447, %v3447
      %v3599 = vpack.c.bf16 %v3460, %v3460
      %v3600 = vpack.c.bf16 %v3473, %v3473
      %v3601 = vpack.c.bf16 %v3486, %v3486
      %v3610 = vunpack.c.l.b16 %v3590
      %v3611 = vunpack.c.l.b16 %v3591
      %v3612 = vunpack.c.l.b16 %v3592
      %v3613 = vunpack.c.l.b16 %v3593
      %v3614 = vunpack.c.l.b16 %v3594
      %v3615 = vunpack.c.l.b16 %v3595
      %v3616 = vunpack.c.l.b16 %v3596
      %v3617 = vunpack.c.l.b16 %v3597
      %v3618 = vpack.c.b16 %v3611, %v3610
      %v3619 = vpack.c.b16 %v3613, %v3612
      %v3620 = vpack.c.b16 %v3615, %v3614
      %v3621 = vpack.c.b16 %v3617, %v3616
      %vm3622 = vcmask 23552
      %v3624 = vsel %vm3622, %v3618, 0
      %v3627 = vsel %vm3622, %v3619, 0
      %v3630 = vsel %vm3622, %v3620, 0
      %v3633 = vsel %vm3622, %v3621, 0
      %vm3635 = vcmask 1040384
      %vm3636 = vcmask 1041408
      %v3637 = vsel %vm3635, 4294967295, 65535
      %v3638 = vsel %vm3636, %v3637, 0
      %v3640 = vand.u32 %v3598, %v3638
      %v3643 = vand.u32 %v3599, %v3638
      %v3646 = vand.u32 %v3600, %v3638
      %v3649 = vand.u32 %v3601, %v3638
      %3651 = vmatpush.bf16.msra.mxu0 0
      %3652 = vmatpush.bf16.msra.mxu0 0
      %3653 = vmatpush.bf16.msra.mxu0 0
      %3654 = vmatpush.bf16.msra.mxu0 0
      %3655 = vmatpush.bf16.msra.mxu0 0
      %3656 = vmatpush.bf16.msra.mxu0 0
      %3657 = vmatpush.bf16.msra.mxu0 0
      %3658 = vmatpush.bf16.msra.mxu0 %v3640
      %3659 = vmatmul.bf16.gmra.mxu0 %v3624
      %v3660 = vpop.f32.mrf.mxu0
      %v3661 = vadd.f32 0.0, %v3660
      %v3662 = vpop.f32.mrf.mxu0
      %v3663 = vadd.f32 0.0, %v3662
      %3664 = vmatmul.bf16.gmra.mxu0 %v3627
      %v3665 = vpop.f32.mrf.mxu0
      %v3666 = vadd.f32 0.0, %v3665
      %v3667 = vpop.f32.mrf.mxu0
      %v3668 = vadd.f32 0.0, %v3667
      %3669 = vmatmul.bf16.gmra.mxu0 %v3630
      %v3670 = vpop.f32.mrf.mxu0
      %v3671 = vadd.f32 0.0, %v3670
      %v3672 = vpop.f32.mrf.mxu0
      %v3673 = vadd.f32 0.0, %v3672
      %3674 = vmatmul.bf16.gmra.mxu0 %v3633
      %v3675 = vpop.f32.mrf.mxu0
      %v3676 = vadd.f32 0.0, %v3675
      %v3677 = vpop.f32.mrf.mxu0
      %v3678 = vadd.f32 0.0, %v3677
      %3679 = vdwg.mxu0
      %3680 = vmatpush.bf16.msra.mxu0 0
      %3681 = vmatpush.bf16.msra.mxu0 0
      %3682 = vmatpush.bf16.msra.mxu0 0
      %3683 = vmatpush.bf16.msra.mxu0 0
      %3684 = vmatpush.bf16.msra.mxu0 0
      %3685 = vmatpush.bf16.msra.mxu0 0
      %3686 = vmatpush.bf16.msra.mxu0 0
      %3687 = vmatpush.bf16.msra.mxu0 %v3643
      %3688 = vmatmul.bf16.gmra.mxu0 %v3624
      %v3689 = vpop.f32.mrf.mxu0
      %v3690 = vadd.f32 0.0, %v3689
      %v3691 = vpop.f32.mrf.mxu0
      %v3692 = vadd.f32 0.0, %v3691
      %3693 = vmatmul.bf16.gmra.mxu0 %v3627
      %v3694 = vpop.f32.mrf.mxu0
      %v3695 = vadd.f32 0.0, %v3694
      %v3696 = vpop.f32.mrf.mxu0
      %v3697 = vadd.f32 0.0, %v3696
      %3698 = vmatmul.bf16.gmra.mxu0 %v3630
      %v3699 = vpop.f32.mrf.mxu0
      %v3700 = vadd.f32 0.0, %v3699
      %v3701 = vpop.f32.mrf.mxu0
      %v3702 = vadd.f32 0.0, %v3701
      %3703 = vmatmul.bf16.gmra.mxu0 %v3633
      %v3704 = vpop.f32.mrf.mxu0
      %v3705 = vadd.f32 0.0, %v3704
      %v3706 = vpop.f32.mrf.mxu0
      %v3707 = vadd.f32 0.0, %v3706
      %3708 = vdwg.mxu0
      %3709 = vmatpush.bf16.msra.mxu0 0
      %3710 = vmatpush.bf16.msra.mxu0 0
      %3711 = vmatpush.bf16.msra.mxu0 0
      %3712 = vmatpush.bf16.msra.mxu0 0
      %3713 = vmatpush.bf16.msra.mxu0 0
      %3714 = vmatpush.bf16.msra.mxu0 0
      %3715 = vmatpush.bf16.msra.mxu0 0
      %3716 = vmatpush.bf16.msra.mxu0 %v3646
      %3717 = vmatmul.bf16.gmra.mxu0 %v3624
      %v3718 = vpop.f32.mrf.mxu0
      %v3719 = vadd.f32 0.0, %v3718
      %v3720 = vpop.f32.mrf.mxu0
      %v3721 = vadd.f32 0.0, %v3720
      %3722 = vmatmul.bf16.gmra.mxu0 %v3627
      %v3723 = vpop.f32.mrf.mxu0
      %v3724 = vadd.f32 0.0, %v3723
      %v3725 = vpop.f32.mrf.mxu0
      %v3726 = vadd.f32 0.0, %v3725
      %3727 = vmatmul.bf16.gmra.mxu0 %v3630
      %v3728 = vpop.f32.mrf.mxu0
      %v3729 = vadd.f32 0.0, %v3728
      %v3730 = vpop.f32.mrf.mxu0
      %v3731 = vadd.f32 0.0, %v3730
      %3732 = vmatmul.bf16.gmra.mxu0 %v3633
      %v3733 = vpop.f32.mrf.mxu0
      %v3734 = vadd.f32 0.0, %v3733
      %v3735 = vpop.f32.mrf.mxu0
      %v3736 = vadd.f32 0.0, %v3735
      %3737 = vdwg.mxu0
      %3738 = vmatpush.bf16.msra.mxu0 0
      %3739 = vmatpush.bf16.msra.mxu0 0
      %3740 = vmatpush.bf16.msra.mxu0 0
      %3741 = vmatpush.bf16.msra.mxu0 0
      %3742 = vmatpush.bf16.msra.mxu0 0
      %3743 = vmatpush.bf16.msra.mxu0 0
      %3744 = vmatpush.bf16.msra.mxu0 0
      %3745 = vmatpush.bf16.msra.mxu0 %v3649
      %3746 = vmatmul.bf16.gmra.mxu0 %v3624
      %v3747 = vpop.f32.mrf.mxu0
      %v3748 = vadd.f32 0.0, %v3747
      %v3749 = vpop.f32.mrf.mxu0
      %v3750 = vadd.f32 0.0, %v3749
      %3751 = vmatmul.bf16.gmra.mxu0 %v3627
      %v3752 = vpop.f32.mrf.mxu0
      %v3753 = vadd.f32 0.0, %v3752
      %v3754 = vpop.f32.mrf.mxu0
      %v3755 = vadd.f32 0.0, %v3754
      %3756 = vmatmul.bf16.gmra.mxu0 %v3630
      %v3757 = vpop.f32.mrf.mxu0
      %v3758 = vadd.f32 0.0, %v3757
      %v3759 = vpop.f32.mrf.mxu0
      %v3760 = vadd.f32 0.0, %v3759
      %3761 = vmatmul.bf16.gmra.mxu0 %v3633
      %v3762 = vpop.f32.mrf.mxu0
      %v3763 = vadd.f32 0.0, %v3762
      %v3764 = vpop.f32.mrf.mxu0
      %v3765 = vadd.f32 0.0, %v3764
      %3766 = vdwg.mxu0
      %v3775 = vunpack.c.l.b16 %v3582
      %v3776 = vunpack.c.l.b16 %v3583
      %v3777 = vunpack.c.l.b16 %v3584
      %v3778 = vunpack.c.l.b16 %v3585
      %v3779 = vunpack.c.l.b16 %v3586
      %v3780 = vunpack.c.l.b16 %v3587
      %v3781 = vunpack.c.l.b16 %v3588
      %v3782 = vunpack.c.l.b16 %v3589
      %v3783 = vpack.c.b16 %v3776, %v3775
      %v3784 = vpack.c.b16 %v3778, %v3777
      %v3785 = vpack.c.b16 %v3780, %v3779
      %v3786 = vpack.c.b16 %v3782, %v3781
      %v3788 = vsel %vm745, %v3783, 0
      %v3791 = vsel %vm745, %v3784, 0
      %v3794 = vsel %vm745, %v3785, 0
      %v3797 = vsel %vm745, %v3786, 0
      %3799 = vmatpush.bf16.msra.mxu0 0
      %3800 = vmatpush.bf16.msra.mxu0 0
      %3801 = vmatpush.bf16.msra.mxu0 0
      %3802 = vmatpush.bf16.msra.mxu0 0
      %3803 = vmatpush.bf16.msra.mxu0 0
      %3804 = vmatpush.bf16.msra.mxu0 0
      %3805 = vmatpush.bf16.msra.mxu0 0
      %3806 = vmatpush.bf16.msra.mxu0 %v760
      %3807 = vmatmul.bf16.gmra.mxu0 %v3788
      %v3808 = vpop.f32.mrf.mxu0
      %v3809 = vadd.f32 %v3661, %v3808
      %v3810 = vpop.f32.mrf.mxu0
      %v3811 = vadd.f32 %v3663, %v3810
      %3812 = vmatmul.bf16.gmra.mxu0 %v3791
      %v3813 = vpop.f32.mrf.mxu0
      %v3814 = vadd.f32 %v3666, %v3813
      %v3815 = vpop.f32.mrf.mxu0
      %v3816 = vadd.f32 %v3668, %v3815
      %3817 = vmatmul.bf16.gmra.mxu0 %v3794
      %v3818 = vpop.f32.mrf.mxu0
      %v3819 = vadd.f32 %v3671, %v3818
      %v3820 = vpop.f32.mrf.mxu0
      %v3821 = vadd.f32 %v3673, %v3820
      %3822 = vmatmul.bf16.gmra.mxu0 %v3797
      %v3823 = vpop.f32.mrf.mxu0
      %v3824 = vadd.f32 %v3676, %v3823
      %v3825 = vpop.f32.mrf.mxu0
      %v3826 = vadd.f32 %v3678, %v3825
      %3827 = vdwg.mxu0
      %3828 = vmatpush.bf16.msra.mxu0 0
      %3829 = vmatpush.bf16.msra.mxu0 0
      %3830 = vmatpush.bf16.msra.mxu0 0
      %3831 = vmatpush.bf16.msra.mxu0 0
      %3832 = vmatpush.bf16.msra.mxu0 0
      %3833 = vmatpush.bf16.msra.mxu0 0
      %3834 = vmatpush.bf16.msra.mxu0 0
      %3835 = vmatpush.bf16.msra.mxu0 %v763
      %3836 = vmatmul.bf16.gmra.mxu0 %v3788
      %v3837 = vpop.f32.mrf.mxu0
      %v3838 = vadd.f32 %v3690, %v3837
      %v3839 = vpop.f32.mrf.mxu0
      %v3840 = vadd.f32 %v3692, %v3839
      %3841 = vmatmul.bf16.gmra.mxu0 %v3791
      %v3842 = vpop.f32.mrf.mxu0
      %v3843 = vadd.f32 %v3695, %v3842
      %v3844 = vpop.f32.mrf.mxu0
      %v3845 = vadd.f32 %v3697, %v3844
      %3846 = vmatmul.bf16.gmra.mxu0 %v3794
      %v3847 = vpop.f32.mrf.mxu0
      %v3848 = vadd.f32 %v3700, %v3847
      %v3849 = vpop.f32.mrf.mxu0
      %v3850 = vadd.f32 %v3702, %v3849
      %3851 = vmatmul.bf16.gmra.mxu0 %v3797
      %v3852 = vpop.f32.mrf.mxu0
      %v3853 = vadd.f32 %v3705, %v3852
      %v3854 = vpop.f32.mrf.mxu0
      %v3855 = vadd.f32 %v3707, %v3854
      %3856 = vdwg.mxu0
      %3857 = vmatpush.bf16.msra.mxu0 0
      %3858 = vmatpush.bf16.msra.mxu0 0
      %3859 = vmatpush.bf16.msra.mxu0 0
      %3860 = vmatpush.bf16.msra.mxu0 0
      %3861 = vmatpush.bf16.msra.mxu0 0
      %3862 = vmatpush.bf16.msra.mxu0 0
      %3863 = vmatpush.bf16.msra.mxu0 0
      %3864 = vmatpush.bf16.msra.mxu0 %v766
      %3865 = vmatmul.bf16.gmra.mxu0 %v3788
      %v3866 = vpop.f32.mrf.mxu0
      %v3867 = vadd.f32 %v3719, %v3866
      %v3868 = vpop.f32.mrf.mxu0
      %v3869 = vadd.f32 %v3721, %v3868
      %3870 = vmatmul.bf16.gmra.mxu0 %v3791
      %v3871 = vpop.f32.mrf.mxu0
      %v3872 = vadd.f32 %v3724, %v3871
      %v3873 = vpop.f32.mrf.mxu0
      %v3874 = vadd.f32 %v3726, %v3873
      %3875 = vmatmul.bf16.gmra.mxu0 %v3794
      %v3876 = vpop.f32.mrf.mxu0
      %v3877 = vadd.f32 %v3729, %v3876
      %v3878 = vpop.f32.mrf.mxu0
      %v3879 = vadd.f32 %v3731, %v3878
      %3880 = vmatmul.bf16.gmra.mxu0 %v3797
      %v3881 = vpop.f32.mrf.mxu0
      %v3882 = vadd.f32 %v3734, %v3881
      %v3883 = vpop.f32.mrf.mxu0
      %v3884 = vadd.f32 %v3736, %v3883
      %3885 = vdwg.mxu0
      %3886 = vmatpush.bf16.msra.mxu0 0
      %3887 = vmatpush.bf16.msra.mxu0 0
      %3888 = vmatpush.bf16.msra.mxu0 0
      %3889 = vmatpush.bf16.msra.mxu0 0
      %3890 = vmatpush.bf16.msra.mxu0 0
      %3891 = vmatpush.bf16.msra.mxu0 0
      %3892 = vmatpush.bf16.msra.mxu0 0
      %3893 = vmatpush.bf16.msra.mxu0 %v769
      %3894 = vmatmul.bf16.gmra.mxu0 %v3788
      %v3895 = vpop.f32.mrf.mxu0
      %v3896 = vadd.f32 %v3748, %v3895
      %v3897 = vpop.f32.mrf.mxu0
      %v3898 = vadd.f32 %v3750, %v3897
      %3899 = vmatmul.bf16.gmra.mxu0 %v3791
      %v3900 = vpop.f32.mrf.mxu0
      %v3901 = vadd.f32 %v3753, %v3900
      %v3902 = vpop.f32.mrf.mxu0
      %v3903 = vadd.f32 %v3755, %v3902
      %3904 = vmatmul.bf16.gmra.mxu0 %v3794
      %v3905 = vpop.f32.mrf.mxu0
      %v3906 = vadd.f32 %v3758, %v3905
      %v3907 = vpop.f32.mrf.mxu0
      %v3908 = vadd.f32 %v3760, %v3907
      %3909 = vmatmul.bf16.gmra.mxu0 %v3797
      %v3910 = vpop.f32.mrf.mxu0
      %v3911 = vadd.f32 %v3763, %v3910
      %v3912 = vpop.f32.mrf.mxu0
      %v3913 = vadd.f32 %v3765, %v3912
      %3914 = vdwg.mxu0
      %v3915 = vld [vmem:[%s15] sm:$0xf]
      %v3916 = vld [vmem:[%s15 + $0x4] sm:$0xf]
      %v3917 = vld [vmem:[%s15 + $0x8] sm:$0xf]
      %v3918 = vld [vmem:[%s15 + $0xc] sm:$0xf]
      %v3919 = vld [vmem:[%s15 + $0x10] sm:$0xf]
      %v3920 = vld [vmem:[%s15 + $0x14] sm:$0xf]
      %v3921 = vld [vmem:[%s15 + $0x18] sm:$0xf]
      %v3922 = vld [vmem:[%s15 + $0x1c] sm:$0xf]
      %v3931 = vunpack.c.l.b16 %v3915
      %v3932 = vunpack.c.l.b16 %v3916
      %v3933 = vunpack.c.l.b16 %v3917
      %v3934 = vunpack.c.l.b16 %v3918
      %v3935 = vunpack.c.l.b16 %v3919
      %v3936 = vunpack.c.l.b16 %v3920
      %v3937 = vunpack.c.l.b16 %v3921
      %v3938 = vunpack.c.l.b16 %v3922
      %v3939 = vpack.c.b16 %v3932, %v3931
      %v3940 = vpack.c.b16 %v3934, %v3933
      %v3941 = vpack.c.b16 %v3936, %v3935
      %v3942 = vpack.c.b16 %v3938, %v3937
      %v3944 = vsel %vm1379, %v3939, 0
      %v3947 = vsel %vm1379, %v3940, 0
      %v3950 = vsel %vm1379, %v3941, 0
      %v3953 = vsel %vm1379, %v3942, 0
      %3955 = vmatpush.bf16.msra.mxu0 0
      %3956 = vmatpush.bf16.msra.mxu0 0
      %3957 = vmatpush.bf16.msra.mxu0 0
      %3958 = vmatpush.bf16.msra.mxu0 0
      %3959 = vmatpush.bf16.msra.mxu0 %v2789
      %3960 = vmatpush.bf16.msra.mxu0 %v2785
      %3961 = vmatpush.bf16.msra.mxu0 %v2781
      %3962 = vmatpush.bf16.msra.mxu0 %v2777
      %3963 = vmatmul.bf16.gmra.mxu0 %v3944
      %v3964 = vpop.f32.mrf.mxu0
      %v3965 = vadd.f32 0.0, %v3964
      %v3966 = vpop.f32.mrf.mxu0
      %v3967 = vadd.f32 0.0, %v3966
      %3968 = vmatmul.bf16.gmra.mxu0 %v3947
      %v3969 = vpop.f32.mrf.mxu0
      %v3970 = vadd.f32 0.0, %v3969
      %v3971 = vpop.f32.mrf.mxu0
      %v3972 = vadd.f32 0.0, %v3971
      %3973 = vmatmul.bf16.gmra.mxu0 %v3950
      %v3974 = vpop.f32.mrf.mxu0
      %v3975 = vadd.f32 0.0, %v3974
      %v3976 = vpop.f32.mrf.mxu0
      %v3977 = vadd.f32 0.0, %v3976
      %3978 = vmatmul.bf16.gmra.mxu0 %v3953
      %v3979 = vpop.f32.mrf.mxu0
      %v3980 = vadd.f32 0.0, %v3979
      %v3981 = vpop.f32.mrf.mxu0
      %v3982 = vadd.f32 0.0, %v3981
      %3983 = vdwg.mxu0
      %3984 = vmatpush.bf16.msra.mxu0 0
      %3985 = vmatpush.bf16.msra.mxu0 0
      %3986 = vmatpush.bf16.msra.mxu0 0
      %3987 = vmatpush.bf16.msra.mxu0 0
      %3988 = vmatpush.bf16.msra.mxu0 %v2790
      %3989 = vmatpush.bf16.msra.mxu0 %v2786
      %3990 = vmatpush.bf16.msra.mxu0 %v2782
      %3991 = vmatpush.bf16.msra.mxu0 %v2778
      %3992 = vmatmul.bf16.gmra.mxu0 %v3944
      %v3993 = vpop.f32.mrf.mxu0
      %v3994 = vadd.f32 0.0, %v3993
      %v3995 = vpop.f32.mrf.mxu0
      %v3996 = vadd.f32 0.0, %v3995
      %3997 = vmatmul.bf16.gmra.mxu0 %v3947
      %v3998 = vpop.f32.mrf.mxu0
      %v3999 = vadd.f32 0.0, %v3998
      %v4000 = vpop.f32.mrf.mxu0
      %v4001 = vadd.f32 0.0, %v4000
      %4002 = vmatmul.bf16.gmra.mxu0 %v3950
      %v4003 = vpop.f32.mrf.mxu0
      %v4004 = vadd.f32 0.0, %v4003
      %v4005 = vpop.f32.mrf.mxu0
      %v4006 = vadd.f32 0.0, %v4005
      %4007 = vmatmul.bf16.gmra.mxu0 %v3953
      %v4008 = vpop.f32.mrf.mxu0
      %v4009 = vadd.f32 0.0, %v4008
      %v4010 = vpop.f32.mrf.mxu0
      %v4011 = vadd.f32 0.0, %v4010
      %4012 = vdwg.mxu0
      %4013 = vmatpush.bf16.msra.mxu0 0
      %4014 = vmatpush.bf16.msra.mxu0 0
      %4015 = vmatpush.bf16.msra.mxu0 0
      %4016 = vmatpush.bf16.msra.mxu0 0
      %4017 = vmatpush.bf16.msra.mxu0 %v2791
      %4018 = vmatpush.bf16.msra.mxu0 %v2787
      %4019 = vmatpush.bf16.msra.mxu0 %v2783
      %4020 = vmatpush.bf16.msra.mxu0 %v2779
      %4021 = vmatmul.bf16.gmra.mxu0 %v3944
      %v4022 = vpop.f32.mrf.mxu0
      %v4023 = vadd.f32 0.0, %v4022
      %v4024 = vpop.f32.mrf.mxu0
      %v4025 = vadd.f32 0.0, %v4024
      %4026 = vmatmul.bf16.gmra.mxu0 %v3947
      %v4027 = vpop.f32.mrf.mxu0
      %v4028 = vadd.f32 0.0, %v4027
      %v4029 = vpop.f32.mrf.mxu0
      %v4030 = vadd.f32 0.0, %v4029
      %4031 = vmatmul.bf16.gmra.mxu0 %v3950
      %v4032 = vpop.f32.mrf.mxu0
      %v4033 = vadd.f32 0.0, %v4032
      %v4034 = vpop.f32.mrf.mxu0
      %v4035 = vadd.f32 0.0, %v4034
      %4036 = vmatmul.bf16.gmra.mxu0 %v3953
      %v4037 = vpop.f32.mrf.mxu0
      %v4038 = vadd.f32 0.0, %v4037
      %v4039 = vpop.f32.mrf.mxu0
      %v4040 = vadd.f32 0.0, %v4039
      %4041 = vdwg.mxu0
      %4042 = vmatpush.bf16.msra.mxu0 0
      %4043 = vmatpush.bf16.msra.mxu0 0
      %4044 = vmatpush.bf16.msra.mxu0 0
      %4045 = vmatpush.bf16.msra.mxu0 0
      %4046 = vmatpush.bf16.msra.mxu0 %v2792
      %4047 = vmatpush.bf16.msra.mxu0 %v2788
      %4048 = vmatpush.bf16.msra.mxu0 %v2784
      %4049 = vmatpush.bf16.msra.mxu0 %v2780
      %4050 = vmatmul.bf16.gmra.mxu0 %v3944
      %v4051 = vpop.f32.mrf.mxu0
      %v4052 = vadd.f32 0.0, %v4051
      %v4053 = vpop.f32.mrf.mxu0
      %v4054 = vadd.f32 0.0, %v4053
      %4055 = vmatmul.bf16.gmra.mxu0 %v3947
      %v4056 = vpop.f32.mrf.mxu0
      %v4057 = vadd.f32 0.0, %v4056
      %v4058 = vpop.f32.mrf.mxu0
      %v4059 = vadd.f32 0.0, %v4058
      %4060 = vmatmul.bf16.gmra.mxu0 %v3950
      %v4061 = vpop.f32.mrf.mxu0
      %v4062 = vadd.f32 0.0, %v4061
      %v4063 = vpop.f32.mrf.mxu0
      %v4064 = vadd.f32 0.0, %v4063
      %4065 = vmatmul.bf16.gmra.mxu0 %v3953
      %v4066 = vpop.f32.mrf.mxu0
      %v4067 = vadd.f32 0.0, %v4066
      %v4068 = vpop.f32.mrf.mxu0
      %v4069 = vadd.f32 0.0, %v4068
      %4070 = vdwg.mxu0
      %v4071 = vadd.f32 %v3809, %v3965
      %v4072 = vadd.f32 %v3838, %v3994
      %v4073 = vadd.f32 %v3867, %v4023
      %v4074 = vadd.f32 %v3896, %v4052
      %v4075 = vadd.f32 %v3811, %v3967
      %v4076 = vadd.f32 %v3840, %v3996
      %v4077 = vadd.f32 %v3869, %v4025
      %v4078 = vadd.f32 %v3898, %v4054
      %v4079 = vadd.f32 %v3814, %v3970
      %v4080 = vadd.f32 %v3843, %v3999
      %v4081 = vadd.f32 %v3872, %v4028
      %v4082 = vadd.f32 %v3901, %v4057
      %v4083 = vadd.f32 %v3816, %v3972
      %v4084 = vadd.f32 %v3845, %v4001
      %v4085 = vadd.f32 %v3874, %v4030
      %v4086 = vadd.f32 %v3903, %v4059
      %v4087 = vadd.f32 %v3819, %v3975
      %v4088 = vadd.f32 %v3848, %v4004
      %v4089 = vadd.f32 %v3877, %v4033
      %v4090 = vadd.f32 %v3906, %v4062
      %v4091 = vadd.f32 %v3821, %v3977
      %v4092 = vadd.f32 %v3850, %v4006
      %v4093 = vadd.f32 %v3879, %v4035
      %v4094 = vadd.f32 %v3908, %v4064
      %v4095 = vadd.f32 %v3824, %v3980
      %v4096 = vadd.f32 %v3853, %v4009
      %v4097 = vadd.f32 %v3882, %v4038
      %v4098 = vadd.f32 %v3911, %v4067
      %v4099 = vadd.f32 %v3826, %v3982
      %v4100 = vadd.f32 %v3855, %v4011
      %v4101 = vadd.f32 %v3884, %v4040
      %v4102 = vadd.f32 %v3913, %v4069
      %v4103 = vld [vmem:[%s16] sm:$0xff]
      %v4104 = vld [vmem:[%s16 + $0x8] sm:$0xff]
      %v4105 = vld [vmem:[%s16 + $0x10] sm:$0xff]
      %v4106 = vld [vmem:[%s16 + $0x18] sm:$0xff]
      %v4107 = vld [vmem:[%s16 + $0x20] sm:$0xff]
      %v4108 = vld [vmem:[%s16 + $0x28] sm:$0xff]
      %v4109 = vld [vmem:[%s16 + $0x30] sm:$0xff]
      %v4110 = vld [vmem:[%s16 + $0x38] sm:$0xff]
      %4112 = vset.pattern.permute.xlu0 0
      %4113 = vperm.xlu0 %4112, %v4103
      %v4114 = vpop.permute.xlu0 %4113
      %4117 = vset.pattern.permute.xlu0 0
      %4118 = vperm.xlu0 %4117, %v4104
      %v4119 = vpop.permute.xlu0 %4118
      %4122 = vset.pattern.permute.xlu0 0
      %4123 = vperm.xlu0 %4122, %v4105
      %v4124 = vpop.permute.xlu0 %4123
      %4127 = vset.pattern.permute.xlu0 0
      %4128 = vperm.xlu0 %4127, %v4106
      %v4129 = vpop.permute.xlu0 %4128
      %4132 = vset.pattern.permute.xlu0 0
      %4133 = vperm.xlu0 %4132, %v4107
      %v4134 = vpop.permute.xlu0 %4133
      %4137 = vset.pattern.permute.xlu0 0
      %4138 = vperm.xlu0 %4137, %v4108
      %v4139 = vpop.permute.xlu0 %4138
      %4142 = vset.pattern.permute.xlu0 0
      %4143 = vperm.xlu0 %4142, %v4109
      %v4144 = vpop.permute.xlu0 %4143
      %4147 = vset.pattern.permute.xlu0 0
      %4148 = vperm.xlu0 %4147, %v4110
      %v4149 = vpop.permute.xlu0 %4148
      %v4151 = vadd.f32 %v4071, %v4114
      %v4152 = vadd.f32 %v4072, %v4114
      %v4153 = vadd.f32 %v4073, %v4114
      %v4154 = vadd.f32 %v4074, %v4114
      %v4155 = vadd.f32 %v4075, %v4119
      %v4156 = vadd.f32 %v4076, %v4119
      %v4157 = vadd.f32 %v4077, %v4119
      %v4158 = vadd.f32 %v4078, %v4119
      %v4159 = vadd.f32 %v4079, %v4124
      %v4160 = vadd.f32 %v4080, %v4124
      %v4161 = vadd.f32 %v4081, %v4124
      %v4162 = vadd.f32 %v4082, %v4124
      %v4163 = vadd.f32 %v4083, %v4129
      %v4164 = vadd.f32 %v4084, %v4129
      %v4165 = vadd.f32 %v4085, %v4129
      %v4166 = vadd.f32 %v4086, %v4129
      %v4167 = vadd.f32 %v4087, %v4134
      %v4168 = vadd.f32 %v4088, %v4134
      %v4169 = vadd.f32 %v4089, %v4134
      %v4170 = vadd.f32 %v4090, %v4134
      %v4171 = vadd.f32 %v4091, %v4139
      %v4172 = vadd.f32 %v4092, %v4139
      %v4173 = vadd.f32 %v4093, %v4139
      %v4174 = vadd.f32 %v4094, %v4139
      %v4175 = vadd.f32 %v4095, %v4144
      %v4176 = vadd.f32 %v4096, %v4144
      %v4177 = vadd.f32 %v4097, %v4144
      %v4178 = vadd.f32 %v4098, %v4144
      %v4179 = vadd.f32 %v4099, %v4149
      %v4180 = vadd.f32 %v4100, %v4149
      %v4181 = vadd.f32 %v4101, %v4149
      %v4182 = vadd.f32 %v4102, %v4149
      %v4183 = vmax.f32 %v4151, 0.0
      %v4184 = vmax.f32 %v4152, 0.0
      %v4185 = vmax.f32 %v4153, 0.0
      %v4186 = vmax.f32 %v4154, 0.0
      %v4187 = vmax.f32 %v4155, 0.0
      %v4188 = vmax.f32 %v4156, 0.0
      %v4189 = vmax.f32 %v4157, 0.0
      %v4190 = vmax.f32 %v4158, 0.0
      %v4191 = vmax.f32 %v4159, 0.0
      %v4192 = vmax.f32 %v4160, 0.0
      %v4193 = vmax.f32 %v4161, 0.0
      %v4194 = vmax.f32 %v4162, 0.0
      %v4195 = vmax.f32 %v4163, 0.0
      %v4196 = vmax.f32 %v4164, 0.0
      %v4197 = vmax.f32 %v4165, 0.0
      %v4198 = vmax.f32 %v4166, 0.0
      %v4199 = vmax.f32 %v4167, 0.0
      %v4200 = vmax.f32 %v4168, 0.0
      %v4201 = vmax.f32 %v4169, 0.0
      %v4202 = vmax.f32 %v4170, 0.0
      %v4203 = vmax.f32 %v4171, 0.0
      %v4204 = vmax.f32 %v4172, 0.0
      %v4205 = vmax.f32 %v4173, 0.0
      %v4206 = vmax.f32 %v4174, 0.0
      %v4207 = vmax.f32 %v4175, 0.0
      %v4208 = vmax.f32 %v4176, 0.0
      %v4209 = vmax.f32 %v4177, 0.0
      %v4210 = vmax.f32 %v4178, 0.0
      %v4211 = vmax.f32 %v4179, 0.0
      %v4212 = vmax.f32 %v4180, 0.0
      %v4213 = vmax.f32 %v4181, 0.0
      %v4214 = vmax.f32 %v4182, 0.0
      %v4215 = vld [vmem:[%s17] sm:$0xf]
      %v4216 = vld [vmem:[%s17 + $0x4] sm:$0xf]
      %v4217 = vld [vmem:[%s17 + $0x8] sm:$0xf]
      %v4218 = vld [vmem:[%s17 + $0xc] sm:$0xf]
      %v4219 = vld [vmem:[%s17 + $0x10] sm:$0xf]
      %v4220 = vld [vmem:[%s17 + $0x14] sm:$0xf]
      %v4221 = vld [vmem:[%s17 + $0x18] sm:$0xf]
      %v4222 = vld [vmem:[%s17 + $0x1c] sm:$0xf]
      %v4223 = vpack.c.bf16 %v4187, %v4183
      %v4224 = vpack.c.bf16 %v4188, %v4184
      %v4225 = vpack.c.bf16 %v4189, %v4185
      %v4226 = vpack.c.bf16 %v4190, %v4186
      %v4227 = vpack.c.bf16 %v4195, %v4191
      %v4228 = vpack.c.bf16 %v4196, %v4192
      %v4229 = vpack.c.bf16 %v4197, %v4193
      %v4230 = vpack.c.bf16 %v4198, %v4194
      %v4231 = vpack.c.bf16 %v4203, %v4199
      %v4232 = vpack.c.bf16 %v4204, %v4200
      %v4233 = vpack.c.bf16 %v4205, %v4201
      %v4234 = vpack.c.bf16 %v4206, %v4202
      %v4235 = vpack.c.bf16 %v4211, %v4207
      %v4236 = vpack.c.bf16 %v4212, %v4208
      %v4237 = vpack.c.bf16 %v4213, %v4209
      %v4238 = vpack.c.bf16 %v4214, %v4210
      %v4239 = vld [vmem:[%s18] sm:$0xff]
      %v4240 = vld [vmem:[%s18 + $0x8] sm:$0xff]
      %v4241 = vld [vmem:[%s18 + $0x10] sm:$0xff]
      %v4242 = vld [vmem:[%s18 + $0x18] sm:$0xff]
      %v4243 = vld [vmem:[%s18 + $0x20] sm:$0xff]
      %v4244 = vld [vmem:[%s18 + $0x28] sm:$0xff]
      %v4245 = vld [vmem:[%s18 + $0x30] sm:$0xff]
      %v4246 = vld [vmem:[%s18 + $0x38] sm:$0xff]
      %4248 = vset.pattern.permute.xlu0 0
      %4249 = vperm.xlu0 %4248, %v4239
      %v4250 = vpop.permute.xlu0 %4249
      %4253 = vset.pattern.permute.xlu0 0
      %4254 = vperm.xlu0 %4253, %v4240
      %v4255 = vpop.permute.xlu0 %4254
      %4258 = vset.pattern.permute.xlu0 0
      %4259 = vperm.xlu0 %4258, %v4241
      %v4260 = vpop.permute.xlu0 %4259
      %4263 = vset.pattern.permute.xlu0 0
      %4264 = vperm.xlu0 %4263, %v4242
      %v4265 = vpop.permute.xlu0 %4264
      %4268 = vset.pattern.permute.xlu0 0
      %4269 = vperm.xlu0 %4268, %v4243
      %v4270 = vpop.permute.xlu0 %4269
      %4273 = vset.pattern.permute.xlu0 0
      %4274 = vperm.xlu0 %4273, %v4244
      %v4275 = vpop.permute.xlu0 %4274
      %4278 = vset.pattern.permute.xlu0 0
      %4279 = vperm.xlu0 %4278, %v4245
      %v4280 = vpop.permute.xlu0 %4279
      %4283 = vset.pattern.permute.xlu0 0
      %4284 = vperm.xlu0 %4283, %v4246
      %v4285 = vpop.permute.xlu0 %4284
      %v4295 = vunpack.c.l.b16 %v4215
      %v4296 = vunpack.c.l.b16 %v4216
      %v4297 = vunpack.c.l.b16 %v4217
      %v4298 = vunpack.c.l.b16 %v4218
      %v4299 = vunpack.c.l.b16 %v4219
      %v4300 = vunpack.c.l.b16 %v4220
      %v4301 = vunpack.c.l.b16 %v4221
      %v4302 = vunpack.c.l.b16 %v4222
      %v4303 = vpack.c.b16 %v4296, %v4295
      %v4304 = vpack.c.b16 %v4298, %v4297
      %v4305 = vpack.c.b16 %v4300, %v4299
      %v4306 = vpack.c.b16 %v4302, %v4301
      %v4308 = vsel %vm1379, %v4303, 0
      %v4311 = vsel %vm1379, %v4304, 0
      %v4314 = vsel %vm1379, %v4305, 0
      %v4317 = vsel %vm1379, %v4306, 0
      %4319 = vmatpush.bf16.msra.mxu0 0
      %4320 = vmatpush.bf16.msra.mxu0 0
      %4321 = vmatpush.bf16.msra.mxu0 0
      %4322 = vmatpush.bf16.msra.mxu0 0
      %4323 = vmatpush.bf16.msra.mxu0 %v4235
      %4324 = vmatpush.bf16.msra.mxu0 %v4231
      %4325 = vmatpush.bf16.msra.mxu0 %v4227
      %4326 = vmatpush.bf16.msra.mxu0 %v4223
      %4327 = vmatmul.bf16.gmra.mxu0 %v4308
      %v4328 = vpop.f32.mrf.mxu0
      %v4329 = vadd.f32 %v4250, %v4328
      %v4330 = vpop.f32.mrf.mxu0
      %v4331 = vadd.f32 %v4255, %v4330
      %4332 = vmatmul.bf16.gmra.mxu0 %v4311
      %v4333 = vpop.f32.mrf.mxu0
      %v4334 = vadd.f32 %v4260, %v4333
      %v4335 = vpop.f32.mrf.mxu0
      %v4336 = vadd.f32 %v4265, %v4335
      %4337 = vmatmul.bf16.gmra.mxu0 %v4314
      %v4338 = vpop.f32.mrf.mxu0
      %v4339 = vadd.f32 %v4270, %v4338
      %v4340 = vpop.f32.mrf.mxu0
      %v4341 = vadd.f32 %v4275, %v4340
      %4342 = vmatmul.bf16.gmra.mxu0 %v4317
      %v4343 = vpop.f32.mrf.mxu0
      %v4344 = vadd.f32 %v4280, %v4343
      %v4345 = vpop.f32.mrf.mxu0
      %v4346 = vadd.f32 %v4285, %v4345
      %4347 = vdwg.mxu0
      %4348 = vmatpush.bf16.msra.mxu0 0
      %4349 = vmatpush.bf16.msra.mxu0 0
      %4350 = vmatpush.bf16.msra.mxu0 0
      %4351 = vmatpush.bf16.msra.mxu0 0
      %4352 = vmatpush.bf16.msra.mxu0 %v4236
      %4353 = vmatpush.bf16.msra.mxu0 %v4232
      %4354 = vmatpush.bf16.msra.mxu0 %v4228
      %4355 = vmatpush.bf16.msra.mxu0 %v4224
      %4356 = vmatmul.bf16.gmra.mxu0 %v4308
      %v4357 = vpop.f32.mrf.mxu0
      %v4358 = vadd.f32 %v4250, %v4357
      %v4359 = vpop.f32.mrf.mxu0
      %v4360 = vadd.f32 %v4255, %v4359
      %4361 = vmatmul.bf16.gmra.mxu0 %v4311
      %v4362 = vpop.f32.mrf.mxu0
      %v4363 = vadd.f32 %v4260, %v4362
      %v4364 = vpop.f32.mrf.mxu0
      %v4365 = vadd.f32 %v4265, %v4364
      %4366 = vmatmul.bf16.gmra.mxu0 %v4314
      %v4367 = vpop.f32.mrf.mxu0
      %v4368 = vadd.f32 %v4270, %v4367
      %v4369 = vpop.f32.mrf.mxu0
      %v4370 = vadd.f32 %v4275, %v4369
      %4371 = vmatmul.bf16.gmra.mxu0 %v4317
      %v4372 = vpop.f32.mrf.mxu0
      %v4373 = vadd.f32 %v4280, %v4372
      %v4374 = vpop.f32.mrf.mxu0
      %v4375 = vadd.f32 %v4285, %v4374
      %4376 = vdwg.mxu0
      %4377 = vmatpush.bf16.msra.mxu0 0
      %4378 = vmatpush.bf16.msra.mxu0 0
      %4379 = vmatpush.bf16.msra.mxu0 0
      %4380 = vmatpush.bf16.msra.mxu0 0
      %4381 = vmatpush.bf16.msra.mxu0 %v4237
      %4382 = vmatpush.bf16.msra.mxu0 %v4233
      %4383 = vmatpush.bf16.msra.mxu0 %v4229
      %4384 = vmatpush.bf16.msra.mxu0 %v4225
      %4385 = vmatmul.bf16.gmra.mxu0 %v4308
      %v4386 = vpop.f32.mrf.mxu0
      %v4387 = vadd.f32 %v4250, %v4386
      %v4388 = vpop.f32.mrf.mxu0
      %v4389 = vadd.f32 %v4255, %v4388
      %4390 = vmatmul.bf16.gmra.mxu0 %v4311
      %v4391 = vpop.f32.mrf.mxu0
      %v4392 = vadd.f32 %v4260, %v4391
      %v4393 = vpop.f32.mrf.mxu0
      %v4394 = vadd.f32 %v4265, %v4393
      %4395 = vmatmul.bf16.gmra.mxu0 %v4314
      %v4396 = vpop.f32.mrf.mxu0
      %v4397 = vadd.f32 %v4270, %v4396
      %v4398 = vpop.f32.mrf.mxu0
      %v4399 = vadd.f32 %v4275, %v4398
      %4400 = vmatmul.bf16.gmra.mxu0 %v4317
      %v4401 = vpop.f32.mrf.mxu0
      %v4402 = vadd.f32 %v4280, %v4401
      %v4403 = vpop.f32.mrf.mxu0
      %v4404 = vadd.f32 %v4285, %v4403
      %4405 = vdwg.mxu0
      %4406 = vmatpush.bf16.msra.mxu0 0
      %4407 = vmatpush.bf16.msra.mxu0 0
      %4408 = vmatpush.bf16.msra.mxu0 0
      %4409 = vmatpush.bf16.msra.mxu0 0
      %4410 = vmatpush.bf16.msra.mxu0 %v4238
      %4411 = vmatpush.bf16.msra.mxu0 %v4234
      %4412 = vmatpush.bf16.msra.mxu0 %v4230
      %4413 = vmatpush.bf16.msra.mxu0 %v4226
      %4414 = vmatmul.bf16.gmra.mxu0 %v4308
      %v4415 = vpop.f32.mrf.mxu0
      %v4416 = vadd.f32 %v4250, %v4415
      %v4417 = vpop.f32.mrf.mxu0
      %v4418 = vadd.f32 %v4255, %v4417
      %4419 = vmatmul.bf16.gmra.mxu0 %v4311
      %v4420 = vpop.f32.mrf.mxu0
      %v4421 = vadd.f32 %v4260, %v4420
      %v4422 = vpop.f32.mrf.mxu0
      %v4423 = vadd.f32 %v4265, %v4422
      %4424 = vmatmul.bf16.gmra.mxu0 %v4314
      %v4425 = vpop.f32.mrf.mxu0
      %v4426 = vadd.f32 %v4270, %v4425
      %v4427 = vpop.f32.mrf.mxu0
      %v4428 = vadd.f32 %v4275, %v4427
      %4429 = vmatmul.bf16.gmra.mxu0 %v4317
      %v4430 = vpop.f32.mrf.mxu0
      %v4431 = vadd.f32 %v4280, %v4430
      %v4432 = vpop.f32.mrf.mxu0
      %v4433 = vadd.f32 %v4285, %v4432
      %4434 = vdwg.mxu0
      %v4435 = vmax.f32 %v4329, 0.0
      %v4436 = vmax.f32 %v4358, 0.0
      %v4437 = vmax.f32 %v4387, 0.0
      %v4438 = vmax.f32 %v4416, 0.0
      %v4439 = vmax.f32 %v4331, 0.0
      %v4440 = vmax.f32 %v4360, 0.0
      %v4441 = vmax.f32 %v4389, 0.0
      %v4442 = vmax.f32 %v4418, 0.0
      %v4443 = vmax.f32 %v4334, 0.0
      %v4444 = vmax.f32 %v4363, 0.0
      %v4445 = vmax.f32 %v4392, 0.0
      %v4446 = vmax.f32 %v4421, 0.0
      %v4447 = vmax.f32 %v4336, 0.0
      %v4448 = vmax.f32 %v4365, 0.0
      %v4449 = vmax.f32 %v4394, 0.0
      %v4450 = vmax.f32 %v4423, 0.0
      %v4451 = vmax.f32 %v4339, 0.0
      %v4452 = vmax.f32 %v4368, 0.0
      %v4453 = vmax.f32 %v4397, 0.0
      %v4454 = vmax.f32 %v4426, 0.0
      %v4455 = vmax.f32 %v4341, 0.0
      %v4456 = vmax.f32 %v4370, 0.0
      %v4457 = vmax.f32 %v4399, 0.0
      %v4458 = vmax.f32 %v4428, 0.0
      %v4459 = vmax.f32 %v4344, 0.0
      %v4460 = vmax.f32 %v4373, 0.0
      %v4461 = vmax.f32 %v4402, 0.0
      %v4462 = vmax.f32 %v4431, 0.0
      %v4463 = vmax.f32 %v4346, 0.0
      %v4464 = vmax.f32 %v4375, 0.0
      %v4465 = vmax.f32 %v4404, 0.0
      %v4466 = vmax.f32 %v4433, 0.0
      %v4467 = vld [vmem:[%s19] sm:$0x3]
      %v4468 = vpack.c.bf16 %v4439, %v4435
      %v4469 = vpack.c.bf16 %v4440, %v4436
      %v4470 = vpack.c.bf16 %v4441, %v4437
      %v4471 = vpack.c.bf16 %v4442, %v4438
      %v4472 = vpack.c.bf16 %v4447, %v4443
      %v4473 = vpack.c.bf16 %v4448, %v4444
      %v4474 = vpack.c.bf16 %v4449, %v4445
      %v4475 = vpack.c.bf16 %v4450, %v4446
      %v4476 = vpack.c.bf16 %v4455, %v4451
      %v4477 = vpack.c.bf16 %v4456, %v4452
      %v4478 = vpack.c.bf16 %v4457, %v4453
      %v4479 = vpack.c.bf16 %v4458, %v4454
      %v4480 = vpack.c.bf16 %v4463, %v4459
      %v4481 = vpack.c.bf16 %v4464, %v4460
      %v4482 = vpack.c.bf16 %v4465, %v4461
      %v4483 = vpack.c.bf16 %v4466, %v4462
      %v4484 = vld [vmem:[%s20] sm:$0x7]
      %4486 = vset.pattern.permute.xlu0 0
      %4487 = vperm.xlu0 %4486, %v4484
      %v4488 = vpop.permute.xlu0 %4487
      %v4491 = vsel %vm1379, %v4467, 0
      %4493 = vmatpush.bf16.msra.mxu0 0
      %4494 = vmatpush.bf16.msra.mxu0 0
      %4495 = vmatpush.bf16.msra.mxu0 0
      %4496 = vmatpush.bf16.msra.mxu0 0
      %4497 = vmatpush.bf16.msra.mxu0 %v4480
      %4498 = vmatpush.bf16.msra.mxu0 %v4476
      %4499 = vmatpush.bf16.msra.mxu0 %v4472
      %4500 = vmatpush.bf16.msra.mxu0 %v4468
      %4501 = vmatmul.bf16.gmra.mxu0 %v4491
      %v4502 = vpop.f32.mrf.mxu0
      %v4503 = vadd.f32 %v4488, %v4502
      %v4504 = vpop.f32.mrf.mxu0
      %4505 = vdwg.mxu0
      %4506 = vmatpush.bf16.msra.mxu0 0
      %4507 = vmatpush.bf16.msra.mxu0 0
      %4508 = vmatpush.bf16.msra.mxu0 0
      %4509 = vmatpush.bf16.msra.mxu0 0
      %4510 = vmatpush.bf16.msra.mxu0 %v4481
      %4511 = vmatpush.bf16.msra.mxu0 %v4477
      %4512 = vmatpush.bf16.msra.mxu0 %v4473
      %4513 = vmatpush.bf16.msra.mxu0 %v4469
      %4514 = vmatmul.bf16.gmra.mxu0 %v4491
      %v4515 = vpop.f32.mrf.mxu0
      %v4516 = vadd.f32 %v4488, %v4515
      %v4517 = vpop.f32.mrf.mxu0
      %4518 = vdwg.mxu0
      %4519 = vmatpush.bf16.msra.mxu0 0
      %4520 = vmatpush.bf16.msra.mxu0 0
      %4521 = vmatpush.bf16.msra.mxu0 0
      %4522 = vmatpush.bf16.msra.mxu0 0
      %4523 = vmatpush.bf16.msra.mxu0 %v4482
      %4524 = vmatpush.bf16.msra.mxu0 %v4478
      %4525 = vmatpush.bf16.msra.mxu0 %v4474
      %4526 = vmatpush.bf16.msra.mxu0 %v4470
      %4527 = vmatmul.bf16.gmra.mxu0 %v4491
      %v4528 = vpop.f32.mrf.mxu0
      %v4529 = vadd.f32 %v4488, %v4528
      %v4530 = vpop.f32.mrf.mxu0
      %4531 = vdwg.mxu0
      %4532 = vmatpush.bf16.msra.mxu0 0
      %4533 = vmatpush.bf16.msra.mxu0 0
      %4534 = vmatpush.bf16.msra.mxu0 0
      %4535 = vmatpush.bf16.msra.mxu0 0
      %4536 = vmatpush.bf16.msra.mxu0 %v4483
      %4537 = vmatpush.bf16.msra.mxu0 %v4479
      %4538 = vmatpush.bf16.msra.mxu0 %v4475
      %4539 = vmatpush.bf16.msra.mxu0 %v4471
      %4540 = vmatmul.bf16.gmra.mxu0 %v4491
      %v4541 = vpop.f32.mrf.mxu0
      %v4542 = vadd.f32 %v4488, %v4541
      %v4543 = vpop.f32.mrf.mxu0
      %4544 = vdwg.mxu0
      %v4545 = vsub.f32 0.0, %v4503
      %v4546 = vsub.f32 0.0, %v4516
      %v4547 = vsub.f32 0.0, %v4529
      %v4548 = vsub.f32 0.0, %v4542
      %v4549 = vmin.f32 %v4545, 80.0
      %v4550 = vmin.f32 %v4546, 80.0
      %v4551 = vmin.f32 %v4547, 80.0
      %v4552 = vmin.f32 %v4548, 80.0
      %v4553 = vmul.f32 %v4549, 1.442695
      %v4554 = vpow.pop %v4553
      %v4555 = vmul.f32 %v4550, 1.442695
      %v4556 = vpow.pop %v4555
      %v4557 = vmul.f32 %v4551, 1.442695
      %v4558 = vpow.pop %v4557
      %v4559 = vmul.f32 %v4552, 1.442695
      %v4560 = vpow.pop %v4559
      %v4561 = vadd.f32 %v4554, 1.0
      %v4562 = vadd.f32 %v4556, 1.0
      %v4563 = vadd.f32 %v4558, 1.0
      %v4564 = vadd.f32 %v4560, 1.0
      %v4565 = vrcp.pop %v4561
      %v4566 = vrcp.pop %v4562
      %v4567 = vrcp.pop %v4563
      %v4568 = vrcp.pop %v4564
      %v4573 = vrot.slane %v3447, 5
      %v4574 = vrot.slane %v3460, 5
      %v4575 = vrot.slane %v3473, 5
      %v4576 = vrot.slane %v3486, 5
      %v4585 = vrot.slane %v3578, 2
      %v4586 = vrot.slane %v3579, 2
      %v4587 = vrot.slane %v3580, 2
      %v4588 = vrot.slane %v3581, 2
      %v4593 = vsel %vm3493, %v4565, %v4573
      %v4594 = vsel %vm3493, %v4566, %v4574
      %v4595 = vsel %vm3493, %v4567, %v4575
      %v4596 = vsel %vm3493, %v4568, %v4576
      %vm4597 = vcmask 1045504
      %v4598 = vsel %vm4597, %v4593, %v4585
      %v4599 = vsel %vm4597, %v4594, %v4586
      %v4600 = vsel %vm4597, %v4595, %v4587
      %v4601 = vsel %vm4597, %v4596, %v4588
      %vm4602 = vcmask 1046528
      %v4603 = vsel %vm4602, %v4598, 0.0
      %v4604 = vsel %vm4602, %v4599, 0.0
      %v4605 = vsel %vm4602, %v4600, 0.0
      %v4606 = vsel %vm4602, %v4601, 0.0
      %4607 = vst [vmem:[%s658] sm:$0xff] %v4603
      %4608 = vst [vmem:[%s658 + $0x8] sm:$0xff] %v4604
      %4609 = vst [vmem:[%s658 + $0x10] sm:$0xff] %v4605
      %4610 = vst [vmem:[%s658 + $0x18] sm:$0xff] %v4606
      %s4611 = smul.u32 4, %s32
      %p4612 = scmp.lt.s32.totalorder %s4611, 23
      %s4613 = scalar_select %p4612, %s4611, 23
      %s4614 = smul.addr %s4613, 8
      %s4615 = scalar_lea.vmem %s21, %s4614
      // Predicated region
      $region105: #{_lambda_.6} parent=103 // pred_check
        %p4616 = pneg %p496
      $region106: #{_lambda_.6} parent=103 // pred_check_branch
        %4618 = sbr.rel (%p4616) target = $region108
      $region107: #{_lambda_.6} parent=103 // pred_region
        %s4619 = smul.u32 4, %s32
      $region108: #{_lambda_.6} parent=103 // pred_fallthru
        _
    $region104: #{_lambda_.6} parent=5 // pred_fallthru
      _
    %p4620 = scmp.le.s32.totalorder 2, %s27
    // Predicated region
    $region109: #{_lambda_.6} parent=5 // pred_check
      %p4621 = pneg %p4620
    $region110: #{_lambda_.6} parent=5 // pred_check_branch
      %4623 = sbr.rel (%p4621) target = $region112
    $region111: #{_lambda_.6} parent=5 // pred_region
      %s4624 = ssub.s32 %s27, 2
      // Predicated region
      $region113: #{_lambda_.6} parent=111 // pred_check
        %p4625 = pneg %p502
      $region114: #{_lambda_.6} parent=111 // pred_check_branch
        %4627 = sbr.rel (%p4625) target = $region116
      $region115: #{_lambda_.6} parent=111 // pred_region
        %s4628 = smul.u32 4, %s33
        %p4629 = scmp.lt.s32.totalorder %s4628, 23
        %s4630 = scalar_select %p4629, %s4628, 23
        %s4631 = smul.addr %s4630, 8
        %s4632 = scalar_lea.vmem %s21, %s4631
      $region116: #{_lambda_.6} parent=111 // pred_fallthru
        _
    $region112: #{_lambda_.6} parent=5 // pred_fallthru
      _
  $region6: #{_lambda_.6} parent=0 // loop_footer
    %s31 = sadd.s32 1, %s27
  $region7: #{_lambda_.6} parent=0 // loop_footer_branch
    %26 = sbr.rel target = $region3
  $region8: #{_lambda_.6} parent=0 // loop_exit
    _

</llo_original>
